<compile_context>
chip_gen: v6e
topology: v6e:2x2x1
jax: 0.10.0
libtpu: 0.0.40
codegen_flags: <defaults>
</compile_context>

<pallas_src>
import jax
import jax.numpy as jnp
from jax import lax
from jax.experimental import pallas as pl
from jax.experimental.pallas import tpu as pltpu

# Row tile for all matmul kernels. Worst case (branch_L, real input sizes):
# x tile (512,1024) bf16 x2 buffers + resident weights (~1 MiB) + outputs
# (512,512) bf16 x2 -> well under the 16/32 MiB scoped-VMEM defaults.
_MAX_TM = 512
_NCH = 6  # (x, y, w, h, angle, conf) per anchor


def _round_up(x, n):
    return ((x + n - 1) // n) * n


def _pick_tm(m, max_tm=_MAX_TM):
    """Pick a row tile (multiple of 8) and padded row count for (m, C) matmuls."""
    if m % 8 == 0:
        t = min(max_tm, m)
        t -= t % 8
        while m % t != 0:
            t -= 8
        return t, m
    tm = min(max_tm, _round_up(m, 8))
    return tm, _round_up(m, tm)


def _pad_rows(x, m_pad):
    m = x.shape[0]
    if m_pad == m:
        return x
    return jnp.pad(x, ((0, m_pad - m), (0, 0)))


# ----------------------------- kernel helpers -------------------------------

def _leaky(x, neg_slope):
    return jnp.where(x >= 0.0, x, x * neg_slope)


def _bbox_transform(raw, shift, anch, stride, angle_range, n_ch):
    """RAPiD.output_transform on a (TM, nA*6) tile of raw detections (f32)."""
    sig = 1.0 / (1.0 + jnp.exp(-raw))                 # EUP
    ex = jnp.exp(raw)                                 # EUP
    # per-column sub-channel index c = col mod 6 (compare/subtract only, nA<=3)
    col = lax.broadcasted_iota(jnp.int32, raw.shape, 1)
    c = jnp.where(col >= 2 * n_ch, col - 2 * n_ch,
                  jnp.where(col >= n_ch, col - n_ch, col))
    sh = jnp.where(c == 0, shift[:, 0:1], shift[:, 1:2])   # x-index / y-index per row
    xy = (sig + sh) * stride                          # c in {0, 1}
    wh = ex * anch                                    # c in {2, 3}; anch == 1 elsewhere
    ang = sig * angle_range - 0.5 * angle_range       # c == 4
    return jnp.where(c < 2, xy,
                     jnp.where(c < 4, wh,
                               jnp.where(c == 4, ang, sig)))


# ------------------------------ Pallas kernels ------------------------------

def _make_mm_bias_act_kernel(neg_slope):
    """(TM,Cin)bf16 @ (Cin,Cout)bf16 -> f32 acc, + bias, optional leaky_relu."""

    def kernel(x_ref, w_ref, b_ref, o_ref):
        acc = jnp.dot(x_ref[...], w_ref[...], preferred_element_type=jnp.float32)
        acc = acc + b_ref[...]
        if neg_slope is not None:                     # static Python branch
            acc = _leaky(acc, neg_slope)
        o_ref[...] = acc.astype(o_ref.dtype)

    return kernel


def _make_head_kernel(neg_slope, stride, angle_range, n_ch, chained):
    """Fused YOLO branch head.

    chained=False (branch_L):
        mid = leaky(x @ Wm + bm);  raw = mid @ Wd + bd;  box = transform(raw)
    chained=True (branch_M / branch_S):
        m1  = leaky(x @ Wm + bm)
        mid = leaky(m1 @ Wf1 + prev_up @ Wf2 + bf)      # == concat + conv
        raw = mid @ Wd + bd;  box = transform(raw)
    Two outputs per tile: mid (bf16 feature for the next branch) and boxes (f32).
    Only Python scalars are closed over.
    """
    stride = float(stride)
    ar = float(angle_range)

    if chained:
        def kernel(x_ref, p_ref, wm_ref, bm_ref, w1_ref, w2_ref, bf_ref,
                   wd_ref, bd_ref, shift_ref, anch_ref, mid_ref, box_ref):
            m1 = jnp.dot(x_ref[...], wm_ref[...], preferred_element_type=jnp.float32)
            m1 = _leaky(m1 + bm_ref[...], neg_slope).astype(jnp.bfloat16)
            acc = jnp.dot(m1, w1_ref[...], preferred_element_type=jnp.float32)
            acc = acc + jnp.dot(p_ref[...], w2_ref[...],
                                preferred_element_type=jnp.float32)
            mid = _leaky(acc + bf_ref[...], neg_slope).astype(mid_ref.dtype)
            mid_ref[...] = mid
            raw = jnp.dot(mid, wd_ref[...],
                          preferred_element_type=jnp.float32) + bd_ref[...]
            box_ref[...] = _bbox_transform(raw, shift_ref[...], anch_ref[...],
                                           stride, ar, n_ch)
    else:
        def kernel(x_ref, wm_ref, bm_ref, wd_ref, bd_ref,
                   shift_ref, anch_ref, mid_ref, box_ref):
            acc = jnp.dot(x_ref[...], wm_ref[...], preferred_element_type=jnp.float32)
            mid = _leaky(acc + bm_ref[...], neg_slope).astype(mid_ref.dtype)
            mid_ref[...] = mid
            raw = jnp.dot(mid, wd_ref[...],
                          preferred_element_type=jnp.float32) + bd_ref[...]
            box_ref[...] = _bbox_transform(raw, shift_ref[...], anch_ref[...],
                                           stride, ar, n_ch)

    return kernel


# ------------------------------ conv wrappers -------------------------------

def conv1x1(x_nhwc, w_bf16, b_f32, neg_slope=None, out_dtype=jnp.bfloat16):
    """1x1 conv on a channels-last feature map as a row-tiled Pallas matmul."""
    n, h, wd, cin = x_nhwc.shape
    cout = w_bf16.shape[1]
    m = n * h * wd
    tm, m_pad = _pick_tm(m)
    x2 = _pad_rows(x_nhwc.reshape(m, cin), m_pad)
    out = pl.pallas_call(
        _make_mm_bias_act_kernel(neg_slope),
        out_shape=jax.ShapeDtypeStruct((m_pad, cout), out_dtype),
        grid_spec=pltpu.PrefetchScalarGridSpec(
            num_scalar_prefetch=0,
            grid=(m_pad // tm,),
            in_specs=[
                pl.BlockSpec((tm, cin), lambda i: (i, 0)),
                pl.BlockSpec((cin, cout), lambda i: (0, 0)),   # weight VMEM-resident
                pl.BlockSpec((1, cout), lambda i: (0, 0)),
            ],
            out_specs=pl.BlockSpec((tm, cout), lambda i: (i, 0)),
        ),
        compiler_params=pltpu.CompilerParams(dimension_semantics=("parallel",)),
    )(x2, w_bf16, b_f32.reshape(1, cout))
    return out[:m].reshape(n, h, wd, cout)


def _grid_shifts(n, h, wd, m_pad):
    """Per-row (x_index, y_index) table for the output transform, (m_pad, 2) f32."""
    xs = jnp.broadcast_to(jnp.arange(wd, dtype=jnp.float32)[None, None, :], (n, h, wd))
    ys = jnp.broadcast_to(jnp.arange(h, dtype=jnp.float32)[None, :, None], (n, h, wd))
    return _pad_rows(jnp.stack([xs, ys], axis=-1).reshape(n * h * wd, 2), m_pad)


def _anchor_cols(anchors):
    """Per-column anchor multipliers [1, 1, aw, ah, 1, 1] per anchor -> (1, nA*6)."""
    n_anchors = anchors.shape[0]
    ones = jnp.ones((n_anchors, 1), jnp.float32)
    return jnp.concatenate(
        [ones, ones, anchors.astype(jnp.float32), ones, ones], axis=1
    ).reshape(1, n_anchors * _NCH)


def yolo_head(feat, prev_up, bp, stride, anchors, angle_range, neg_slope=0.1):
    """One fused pallas_call: branch conv stack + detection conv + output_transform.

    Returns (mid_nhwc bf16, bboxes (nB, nA*nH*nW, 6) f32).
    """
    n, h, wd, cin = feat.shape
    n_anchors = anchors.shape[0]
    assert n_anchors <= 3
    ncol = n_anchors * _NCH
    chained = prev_up is not None
    half = bp['fuse_w1'].shape[1] if chained else bp['mid_w'].shape[1]
    m = n * h * wd
    tm, m_pad = _pick_tm(m)

    x2 = _pad_rows(feat.reshape(m, cin), m_pad)
    shifts = _grid_shifts(n, h, wd, m_pad)
    anch_col = _anchor_cols(anchors)

    kernel = _make_head_kernel(neg_slope, stride, angle_range, _NCH, chained)
    out_shape = (jax.ShapeDtypeStruct((m_pad, half), jnp.bfloat16),
                 jax.ShapeDtypeStruct((m_pad, ncol), jnp.float32))
    out_specs = [pl.BlockSpec((tm, half), lambda i: (i, 0)),
                 pl.BlockSpec((tm, ncol), lambda i: (i, 0))]

    if chained:
        cprev = prev_up.shape[3]
        p2 = _pad_rows(prev_up.reshape(m, cprev), m_pad)
        mid_c = bp['mid_w'].shape[1]
        in_specs = [
            pl.BlockSpec((tm, cin), lambda i: (i, 0)),
            pl.BlockSpec((tm, cprev), lambda i: (i, 0)),
            pl.BlockSpec((cin, mid_c), lambda i: (0, 0)),
            pl.BlockSpec((1, mid_c), lambda i: (0, 0)),
            pl.BlockSpec((mid_c, half), lambda i: (0, 0)),
            pl.BlockSpec((cprev, half), lambda i: (0, 0)),
            pl.BlockSpec((1, half), lambda i: (0, 0)),
            pl.BlockSpec((half, ncol), lambda i: (0, 0)),
            pl.BlockSpec((1, ncol), lambda i: (0, 0)),
            pl.BlockSpec((tm, 2), lambda i: (i, 0)),
            pl.BlockSpec((1, ncol), lambda i: (0, 0)),
        ]
        args = (x2, p2,
                bp['mid_w'], bp['mid_b'].reshape(1, mid_c),
                bp['fuse_w1'], bp['fuse_w2'], bp['fuse_b'].reshape(1, half),
                bp['det_w'], bp['det_b'].reshape(1, ncol),
                shifts, anch_col)
    else:
        in_specs = [
            pl.BlockSpec((tm, cin), lambda i: (i, 0)),
            pl.BlockSpec((cin, half), lambda i: (0, 0)),
            pl.BlockSpec((1, half), lambda i: (0, 0)),
            pl.BlockSpec((half, ncol), lambda i: (0, 0)),
            pl.BlockSpec((1, ncol), lambda i: (0, 0)),
            pl.BlockSpec((tm, 2), lambda i: (i, 0)),
            pl.BlockSpec((1, ncol), lambda i: (0, 0)),
        ]
        args = (x2,
                bp['mid_w'], bp['mid_b'].reshape(1, half),
                bp['det_w'], bp['det_b'].reshape(1, ncol),
                shifts, anch_col)

    mid, boxes = pl.pallas_call(
        kernel,
        out_shape=out_shape,
        grid_spec=pltpu.PrefetchScalarGridSpec(
            num_scalar_prefetch=0,
            grid=(m_pad // tm,),
            in_specs=in_specs,
            out_specs=out_specs,
        ),
        compiler_params=pltpu.CompilerParams(dimension_semantics=("parallel",)),
    )(*args)

    mid = mid[:m].reshape(n, h, wd, half)
    boxes = boxes[:m].reshape(n, h, wd, n_anchors, _NCH)
    # (nB, nH, nW, nA, 6) -> (nB, nA, nH, nW, 6) -> (nB, nA*nH*nW, 6): PyTorch order
    boxes = jnp.transpose(boxes, (0, 3, 1, 2, 4)).reshape(n, n_anchors * h * wd, _NCH)
    return mid, boxes


# ------------------------------ RAPiD model ---------------------------------

class RAPiD:
    def __init__(self, input_hw=(64, 64), key=jax.random.PRNGKey(42)):
        self.strides = [8, 16, 32]
        self.angle_range = 360.0
        self.input_hw = input_hw
        chS, chM, chL = (256, 512, 1024)
        self.channels = (chS, chM, chL)
        anchors = [[[18.7807, 33.4659], [28.8912, 61.7536], [48.6849, 68.3897]],
                   [[45.0668, 101.4673], [63.0952, 113.5382], [81.3909, 134.4554]],
                   [[91.7364, 144.9949], [137.5189, 178.4791], [194.4429, 250.7985]]]
        self._build_branch_infos(anchors)
        self.params = self._init_params(key, chS, chM, chL)

    # -- deterministic parameter init (shapes implied by __init__) --
    @staticmethod
    def _dense(key, cin, cout):
        kw, kb = jax.random.split(key)
        w = jax.random.normal(kw, (cin, cout), jnp.float32) / jnp.sqrt(float(cin))
        b = jax.random.normal(kb, (cout,), jnp.float32) * 0.01
        return w, b

    def _init_params(self, key, chS, chM, chL):
        ks = jax.random.split(key, 16)
        p = {}

        def backbone_proj(k, cout):
            w, b = self._dense(k, 3, cout)
            w = jnp.pad(w, ((0, 5), (0, 0)))       # pad K: 3 -> 8 for the MXU
            return w.astype(jnp.bfloat16), b

        p['bb_S'] = backbone_proj(ks[0], chS)
        p['bb_M'] = backbone_proj(ks[1], chM)
        p['bb_L'] = backbone_proj(ks[2], chL)

        def branch(keys, in_, prev_ch):
            half = in_ // 2
            mw, mb = self._dense(keys[0], in_, half)
            dw, db = self._dense(keys[1], half, 18)
            bp = {'mid_w': mw.astype(jnp.bfloat16), 'mid_b': mb,
                  'det_w': dw.astype(jnp.bfloat16), 'det_b': db}
            if prev_ch is not None:
                pin, pout = prev_ch
                pw, pb = self._dense(keys[2], pin, pout)
                fw, fb = self._dense(keys[3], half + pout, half)
                bp['prev_w'] = pw.astype(jnp.bfloat16)
                bp['prev_b'] = pb
                # split-K halves of the fuse weight: rows [:half] hit `mid`,
                # rows [half:] hit the upsampled `prev` (== concat + conv).
                bp['fuse_w1'] = fw[:half].astype(jnp.bfloat16)
                bp['fuse_w2'] = fw[half:].astype(jnp.bfloat16)
                bp['fuse_b'] = fb
            return bp

        p['branch_L'] = branch(ks[3:5], chL, None)
        p['branch_M'] = branch(ks[5:9], chM, (chL // 2, chM // 2))
        p['branch_S'] = branch(ks[9:13], chS, (chM // 2, chS // 2))
        return p

    def _build_branch_infos(self, anchors):
        imgh, imgw = self.input_hw
        assert imgh % self.strides[-1] == 0 and imgw % self.strides[-1] == 0
        infos = []
        for i, strd in enumerate(self.strides):
            assert imgh % strd == 0 and imgw % strd == 0
            nH, nW = imgh // strd, imgw // strd
            anch = jnp.asarray(anchors[i], dtype=jnp.float32)   # (3, 2)
            infos.append((strd, nH, nW, anch))
        self._branch_infos = infos

    # -- stand-in backbone (TODO(synk): real Darknet53 not in provided source) --
    @staticmethod
    def _avgpool(x_nhwc, s):
        n, h, w, c = x_nhwc.shape
        return x_nhwc.reshape(n, h // s, s, w // s, s, c).mean(axis=(2, 4))

    def backbone(self, x_nchw):
        p = self.params
        x = jnp.transpose(x_nchw, (0, 2, 3, 1))        # NCHW -> NHWC, once
        p8 = self._avgpool(x, 8)                       # progressive pooling:
        p16 = self._avgpool(p8, 2)                     # image read from HBM once
        p32 = self._avgpool(p16, 2)

        def proj(feat, wkey):
            w, b = p[wkey]
            feat = jnp.pad(feat, ((0, 0), (0, 0), (0, 0), (0, 5))).astype(jnp.bfloat16)
            return conv1x1(feat, w, b, neg_slope=None)

        small = proj(p8, 'bb_S')     # (N, H/8,  W/8,  256) bf16
        medium = proj(p16, 'bb_M')   # (N, H/16, W/16, 512) bf16
        large = proj(p32, 'bb_L')    # (N, H/32, W/32, 1024) bf16
        return small, medium, large

    # -- stand-in YOLOBranch (TODO(synk): real YOLOBranch conv stack not in source) --
    def yolo_branch(self, feat, previous, bp, branch_index):
        prev_up = None
        if previous is not None:
            prev = conv1x1(previous, bp['prev_w'], bp['prev_b'], neg_slope=0.1)
            prev_up = jnp.repeat(jnp.repeat(prev, 2, axis=1), 2, axis=2)  # nearest 2x
        strd, nH, nW, anch = self._branch_infos[branch_index]
        mid, bboxes = yolo_head(feat, prev_up, bp, strd, anch, self.angle_range)
        return bboxes, mid

    def forward(self, x):
        assert x.shape[2:4] == self.input_hw
        small, medium, large = self.backbone(x)
        bb_L, feat_L = self.yolo_branch(large, None, self.params['branch_L'], 2)
        bb_M, feat_M = self.yolo_branch(medium, feat_L, self.params['branch_M'], 1)
        bb_S, _ = self.yolo_branch(small, feat_M, self.params['branch_S'], 0)
        # concat order S, M, L — identical to the PyTorch forward
        return jnp.concatenate([bb_S, bb_M, bb_L], axis=1)


# --------------------------------- driver -----------------------------------

if __name__ == "__main__":
    N, C, H, W = 2, 3, 64, 64
    x = jax.random.normal(jax.random.PRNGKey(0), (N, C, H, W), jnp.float32)

    model = RAPiD(input_hw=(H, W), key=jax.random.PRNGKey(42))
    fwd = jax.jit(model.forward)
    bboxes = jax.block_until_ready(fwd(x))

    nA = 3
    expected_rows = sum(nA * (H // s) * (W // s) for s in model.strides)
    assert bboxes.shape == (N, expected_rows, 6), bboxes.shape
    assert bboxes.dtype == jnp.float32
    assert bool(jnp.all(jnp.isfinite(bboxes)))
    print("KERNEL_OK")
</pallas_src>

<mosaic_0001>
module attributes {stable_mosaic.version = 11 : i64} {
  func.func @kernel(%arg0: i32, %arg1: memref<8x8xbf16, #tpu.memory_space<vmem>>, %arg2: memref<8x1024xbf16, #tpu.memory_space<vmem>>, %arg3: memref<1x1024xf32, #tpu.memory_space<vmem>>, %arg4: memref<8x1024xbf16, #tpu.memory_space<vmem>>) attributes {dimension_semantics = [#tpu.dimension_semantics<parallel>], iteration_bounds = array<i64: 1>, scalar_prefetch = 0 : i64, scratch_operands = 0 : i64, tpu.core_type = #tpu.core_type<tc>, window_params = [{transform_indices = @transform_0, window_bounds = array<i64: 8, 8>}, {pipeline_mode = #tpu.pipeline_mode<synchronous>, transform_indices = @transform_1, window_bounds = array<i64: 8, 1024>}, {pipeline_mode = #tpu.pipeline_mode<synchronous>, transform_indices = @transform_2, window_bounds = array<i64: 1, 1024>}, {transform_indices = @transform_3, window_bounds = array<i64: 8, 1024>}]} {
    %c0 = arith.constant 0 : index
    %c0_0 = arith.constant 0 : index
    %0 = vector.load %arg1[%c0, %c0_0] : memref<8x8xbf16, #tpu.memory_space<vmem>>, vector<8x8xbf16>
    %c0_1 = arith.constant 0 : index
    %c0_2 = arith.constant 0 : index
    %1 = vector.load %arg2[%c0_1, %c0_2] : memref<8x1024xbf16, #tpu.memory_space<vmem>>, vector<8x1024xbf16>
    %cst = arith.constant dense<0.000000e+00> : vector<8x1024xf32>
    %2 = tpu.matmul %0, %1, %cst {dimension_numbers = #tpu.dot_dimension_numbers<[1], [0], [0], [1], [0, 0, 1, 1], [], []>} : vector<8x8xbf16>, vector<8x1024xbf16>, vector<8x1024xf32> -> vector<8x1024xf32>
    %c0_3 = arith.constant 0 : index
    %c0_4 = arith.constant 0 : index
    %3 = vector.load %arg3[%c0_3, %c0_4] : memref<1x1024xf32, #tpu.memory_space<vmem>>, vector<1x1024xf32>
    %4 = vector.broadcast %3 : vector<1x1024xf32> to vector<8x1024xf32>
    %5 = arith.addf %2, %4 : vector<8x1024xf32>
    %6 = arith.truncf %5 : vector<8x1024xf32> to vector<8x1024xbf16>
    %c0_5 = arith.constant 0 : index
    %c0_6 = arith.constant 0 : index
    %7 = vector.load %arg4[%c0_5, %c0_6] : memref<8x1024xbf16, #tpu.memory_space<vmem>>, vector<8x1024xbf16>
    tpu.vector_store %arg4[%c0_5, %c0_6], %6 {strides = array<i32>} : memref<8x1024xbf16, #tpu.memory_space<vmem>>, vector<8x1024xbf16>,
    return
  }
  func.func @transform_0(%arg0: i32) -> (i32, i32) {
    %c0_i32 = arith.constant 0 : i32
    %c0_i32_0 = arith.constant 0 : i32
    return %arg0, %c0_i32 : i32, i32
  }
  func.func @transform_1(%arg0: i32) -> (i32, i32) {
    %c0_i32 = arith.constant 0 : i32
    %c0_i32_0 = arith.constant 0 : i32
    %c0_i32_1 = arith.constant 0 : i32
    return %c0_i32, %c0_i32_0 : i32, i32
  }
  func.func @transform_2(%arg0: i32) -> (i32, i32) {
    %c0_i32 = arith.constant 0 : i32
    %c0_i32_0 = arith.constant 0 : i32
    %c0_i32_1 = arith.constant 0 : i32
    return %c0_i32, %c0_i32_0 : i32, i32
  }
  func.func @transform_3(%arg0: i32) -> (i32, i32) {
    %c0_i32 = arith.constant 0 : i32
    %c0_i32_0 = arith.constant 0 : i32
    return %arg0, %c0_i32 : i32, i32
  }
}

module attributes {stable_mosaic.version = 11 : i64} {
  func.func @kernel(%arg0: i32, %arg1: memref<8x1024xbf16, #tpu.memory_space<vmem>>, %arg2: memref<1024x512xbf16, #tpu.memory_space<vmem>>, %arg3: memref<1x512xf32, #tpu.memory_space<vmem>>, %arg4: memref<512x18xbf16, #tpu.memory_space<vmem>>, %arg5: memref<1x18xf32, #tpu.memory_space<vmem>>, %arg6: memref<8x2xf32, #tpu.memory_space<vmem>>, %arg7: memref<1x18xf32, #tpu.memory_space<vmem>>, %arg8: memref<8x512xbf16, #tpu.memory_space<vmem>>, %arg9: memref<8x18xf32, #tpu.memory_space<vmem>>) attributes {dimension_semantics = [#tpu.dimension_semantics<parallel>], iteration_bounds = array<i64: 1>, scalar_prefetch = 0 : i64, scratch_operands = 0 : i64, tpu.core_type = #tpu.core_type<tc>, window_params = [{transform_indices = @transform_0, window_bounds = array<i64: 8, 1024>}, {pipeline_mode = #tpu.pipeline_mode<synchronous>, transform_indices = @transform_1, window_bounds = array<i64: 1024, 512>}, {pipeline_mode = #tpu.pipeline_mode<synchronous>, transform_indices = @transform_2, window_bounds = array<i64: 1, 512>}, {pipeline_mode = #tpu.pipeline_mode<synchronous>, transform_indices = @transform_3, window_bounds = array<i64: 512, 18>}, {pipeline_mode = #tpu.pipeline_mode<synchronous>, transform_indices = @transform_4, window_bounds = array<i64: 1, 18>}, {transform_indices = @transform_5, window_bounds = array<i64: 8, 2>}, {pipeline_mode = #tpu.pipeline_mode<synchronous>, transform_indices = @transform_6, window_bounds = array<i64: 1, 18>}, {transform_indices = @transform_7, window_bounds = array<i64: 8, 512>}, {transform_indices = @transform_8, window_bounds = array<i64: 8, 18>}]} {
    %c0 = arith.constant 0 : index
    %c0_0 = arith.constant 0 : index
    %0 = vector.load %arg1[%c0, %c0_0] : memref<8x1024xbf16, #tpu.memory_space<vmem>>, vector<8x1024xbf16>
    %c0_1 = arith.constant 0 : index
    %c0_2 = arith.constant 0 : index
    %1 = vector.load %arg2[%c0_1, %c0_2] : memref<1024x512xbf16, #tpu.memory_space<vmem>>, vector<1024x512xbf16>
    %cst = arith.constant dense<0.000000e+00> : vector<8x512xf32>
    %2 = tpu.matmul %0, %1, %cst {dimension_numbers = #tpu.dot_dimension_numbers<[1], [0], [0], [1], [0, 0, 1, 1], [], []>} : vector<8x1024xbf16>, vector<1024x512xbf16>, vector<8x512xf32> -> vector<8x512xf32>
    %c0_3 = arith.constant 0 : index
    %c0_4 = arith.constant 0 : index
    %3 = vector.load %arg3[%c0_3, %c0_4] : memref<1x512xf32, #tpu.memory_space<vmem>>, vector<1x512xf32>
    %4 = vector.broadcast %3 : vector<1x512xf32> to vector<8x512xf32>
    %5 = arith.addf %2, %4 : vector<8x512xf32>
    %cst_5 = arith.constant 0.000000e+00 : f32
    %6 = vector.broadcast %cst_5 : f32 to vector<8x512xf32>
    %7 = arith.cmpf oge, %5, %6 : vector<8x512xf32>
    %cst_6 = arith.constant 1.000000e-01 : f32
    %8 = vector.broadcast %cst_6 : f32 to vector<8x512xf32>
    %9 = arith.mulf %5, %8 : vector<8x512xf32>
    %10 = arith.select %7, %5, %9 : vector<8x512xi1>, vector<8x512xf32>
    %11 = arith.truncf %10 : vector<8x512xf32> to vector<8x512xbf16>
    %c0_7 = arith.constant 0 : index
    %c0_8 = arith.constant 0 : index
    %12 = vector.load %arg8[%c0_7, %c0_8] : memref<8x512xbf16, #tpu.memory_space<vmem>>, vector<8x512xbf16>
    tpu.vector_store %arg8[%c0_7, %c0_8], %11 {strides = array<i32>} : memref<8x512xbf16, #tpu.memory_space<vmem>>, vector<8x512xbf16>,
    %c0_9 = arith.constant 0 : index
    %c0_10 = arith.constant 0 : index
    %13 = vector.load %arg4[%c0_9, %c0_10] : memref<512x18xbf16, #tpu.memory_space<vmem>>, vector<512x18xbf16>
    %cst_11 = arith.constant dense<0.000000e+00> : vector<8x18xf32>
    %14 = tpu.matmul %11, %13, %cst_11 {dimension_numbers = #tpu.dot_dimension_numbers<[1], [0], [0], [1], [0, 0, 1, 1], [], []>} : vector<8x512xbf16>, vector<512x18xbf16>, vector<8x18xf32> -> vector<8x18xf32>
    %c0_12 = arith.constant 0 : index
    %c0_13 = arith.constant 0 : index
    %15 = vector.load %arg5[%c0_12, %c0_13] : memref<1x18xf32, #tpu.memory_space<vmem>>, vector<1x18xf32>
    %16 = vector.broadcast %15 : vector<1x18xf32> to vector<8x18xf32>
    %17 = arith.addf %14, %16 : vector<8x18xf32>
    %c0_14 = arith.constant 0 : index
    %c0_15 = arith.constant 0 : index
    %18 = vector.load %arg6[%c0_14, %c0_15] : memref<8x2xf32, #tpu.memory_space<vmem>>, vector<8x2xf32>
    %c0_16 = arith.constant 0 : index
    %c0_17 = arith.constant 0 : index
    %19 = vector.load %arg7[%c0_16, %c0_17] : memref<1x18xf32, #tpu.memory_space<vmem>>, vector<1x18xf32>
    %cst_18 = arith.constant 0.000000e+00 : f32
    %20 = vector.broadcast %cst_18 : f32 to vector<8x18xf32>
    %21 = arith.subf %20, %17 : vector<8x18xf32>
    %22 = math.exp %21 : vector<8x18xf32>
    %cst_19 = arith.constant 1.000000e+00 : f32
    %23 = vector.broadcast %cst_19 : f32 to vector<8x18xf32>
    %24 = arith.addf %23, %22 : vector<8x18xf32>
    %cst_20 = arith.constant 1.000000e+00 : f32
    %25 = vector.broadcast %cst_20 : f32 to vector<8x18xf32>
    %26 = arith.divf %25, %24 : vector<8x18xf32>
    %27 = math.exp %17 : vector<8x18xf32>
    %28 = tpu.iota {dimensions = array<i32: 1>} : vector<8x18xi32>
    %c12_i32 = arith.constant 12 : i32
    %29 = vector.broadcast %c12_i32 : i32 to vector<8x18xi32>
    %30 = arith.cmpi sge, %28, %29 : vector<8x18xi32>
    %c12_i32_21 = arith.constant 12 : i32
    %31 = vector.broadcast %c12_i32_21 : i32 to vector<8x18xi32>
    %32 = arith.subi %28, %31 : vector<8x18xi32>
    %c6_i32 = arith.constant 6 : i32
    %33 = vector.broadcast %c6_i32 : i32 to vector<8x18xi32>
    %34 = arith.cmpi sge, %28, %33 : vector<8x18xi32>
    %c6_i32_22 = arith.constant 6 : i32
    %35 = vector.broadcast %c6_i32_22 : i32 to vector<8x18xi32>
    %36 = arith.subi %28, %35 : vector<8x18xi32>
    %37 = arith.select %34, %36, %28 : vector<8x18xi1>, vector<8x18xi32>
    %38 = arith.select %30, %32, %37 : vector<8x18xi1>, vector<8x18xi32>
    %c0_i32 = arith.constant 0 : i32
    %39 = vector.broadcast %c0_i32 : i32 to vector<8x18xi32>
    %40 = arith.cmpi eq, %38, %39 : vector<8x18xi32>
    %41 = vector.extract_strided_slice %18 {offsets = [0, 0], sizes = [8, 1], strides = [1, 1]} : vector<8x2xf32> to vector<8x1xf32>
    %42 = vector.extract_strided_slice %18 {offsets = [0, 1], sizes = [8, 1], strides = [1, 1]} : vector<8x2xf32> to vector<8x1xf32>
    %43 = vector.shape_cast %41 : vector<8x1xf32> to vector<8x1xf32>
    %44 = vector.broadcast %43 : vector<8x1xf32> to vector<8x18xf32>
    %45 = vector.shape_cast %42 : vector<8x1xf32> to vector<8x1xf32>
    %46 = vector.broadcast %45 : vector<8x1xf32> to vector<8x18xf32>
    %47 = arith.select %40, %44, %46 : vector<8x18xi1>, vector<8x18xf32>
    %48 = arith.addf %26, %47 : vector<8x18xf32>
    %cst_23 = arith.constant 3.200000e+01 : f32
    %49 = vector.broadcast %cst_23 : f32 to vector<8x18xf32>
    %50 = arith.mulf %48, %49 : vector<8x18xf32>
    %51 = vector.broadcast %19 : vector<1x18xf32> to vector<8x18xf32>
    %52 = arith.mulf %27, %51 : vector<8x18xf32>
    %cst_24 = arith.constant 3.600000e+02 : f32
    %53 = vector.broadcast %cst_24 : f32 to vector<8x18xf32>
    %54 = arith.mulf %26, %53 : vector<8x18xf32>
    %cst_25 = arith.constant 1.800000e+02 : f32
    %55 = vector.broadcast %cst_25 : f32 to vector<8x18xf32>
    %56 = arith.subf %54, %55 : vector<8x18xf32>
    %c2_i32 = arith.constant 2 : i32
    %57 = vector.broadcast %c2_i32 : i32 to vector<8x18xi32>
    %58 = arith.cmpi slt, %38, %57 : vector<8x18xi32>
    %c4_i32 = arith.constant 4 : i32
    %59 = vector.broadcast %c4_i32 : i32 to vector<8x18xi32>
    %60 = arith.cmpi slt, %38, %59 : vector<8x18xi32>
    %c4_i32_26 = arith.constant 4 : i32
    %61 = vector.broadcast %c4_i32_26 : i32 to vector<8x18xi32>
    %62 = arith.cmpi eq, %38, %61 : vector<8x18xi32>
    %63 = arith.select %62, %56, %26 : vector<8x18xi1>, vector<8x18xf32>
    %64 = arith.select %60, %52, %63 : vector<8x18xi1>, vector<8x18xf32>
    %65 = arith.select %58, %50, %64 : vector<8x18xi1>, vector<8x18xf32>
    %c0_27 = arith.constant 0 : index
    %c0_28 = arith.constant 0 : index
    %66 = vector.load %arg9[%c0_27, %c0_28] : memref<8x18xf32, #tpu.memory_space<vmem>>, vector<8x18xf32>
    tpu.vector_store %arg9[%c0_27, %c0_28], %65 {strides = array<i32>} : memref<8x18xf32, #tpu.memory_space<vmem>>, vector<8x18xf32>,
    return
  }
  func.func @transform_0(%arg0: i32) -> (i32, i32) {
    %c0_i32 = arith.constant 0 : i32
    %c0_i32_0 = arith.constant 0 : i32
    return %arg0, %c0_i32 : i32, i32
  }
  func.func @transform_1(%arg0: i32) -> (i32, i32) {
    %c0_i32 = arith.constant 0 : i32
    %c0_i32_0 = arith.constant 0 : i32
    %c0_i32_1 = arith.constant 0 : i32
    return %c0_i32, %c0_i32_0 : i32, i32
  }
  func.func @transform_2(%arg0: i32) -> (i32, i32) {
    %c0_i32 = arith.constant 0 : i32
    %c0_i32_0 = arith.constant 0 : i32
    %c0_i32_1 = arith.constant 0 : i32
    return %c0_i32, %c0_i32_0 : i32, i32
  }
  func.func @transform_3(%arg0: i32) -> (i32, i32) {
    %c0_i32 = arith.constant 0 : i32
    %c0_i32_0 = arith.constant 0 : i32
    %c0_i32_1 = arith.constant 0 : i32
    return %c0_i32, %c0_i32_0 : i32, i32
  }
  func.func @transform_4(%arg0: i32) -> (i32, i32) {
    %c0_i32 = arith.constant 0 : i32
    %c0_i32_0 = arith.constant 0 : i32
    %c0_i32_1 = arith.constant 0 : i32
    return %c0_i32, %c0_i32_0 : i32, i32
  }
  func.func @transform_5(%arg0: i32) -> (i32, i32) {
    %c0_i32 = arith.constant 0 : i32
    %c0_i32_0 = arith.constant 0 : i32
    return %arg0, %c0_i32 : i32, i32
  }
  func.func @transform_6(%arg0: i32) -> (i32, i32) {
    %c0_i32 = arith.constant 0 : i32
    %c0_i32_0 = arith.constant 0 : i32
    %c0_i32_1 = arith.constant 0 : i32
    return %c0_i32, %c0_i32_0 : i32, i32
  }
  func.func @transform_7(%arg0: i32) -> (i32, i32) {
    %c0_i32 = arith.constant 0 : i32
    %c0_i32_0 = arith.constant 0 : i32
    return %arg0, %c0_i32 : i32, i32
  }
  func.func @transform_8(%arg0: i32) -> (i32, i32) {
    %c0_i32 = arith.constant 0 : i32
    %c0_i32_0 = arith.constant 0 : i32
    return %arg0, %c0_i32 : i32, i32
  }
}

module attributes {stable_mosaic.version = 11 : i64} {
  func.func @kernel(%arg0: i32, %arg1: memref<8x512xbf16, #tpu.memory_space<vmem>>, %arg2: memref<512x256xbf16, #tpu.memory_space<vmem>>, %arg3: memref<1x256xf32, #tpu.memory_space<vmem>>, %arg4: memref<8x256xbf16, #tpu.memory_space<vmem>>) attributes {dimension_semantics = [#tpu.dimension_semantics<parallel>], iteration_bounds = array<i64: 1>, scalar_prefetch = 0 : i64, scratch_operands = 0 : i64, tpu.core_type = #tpu.core_type<tc>, window_params = [{transform_indices = @transform_0, window_bounds = array<i64: 8, 512>}, {pipeline_mode = #tpu.pipeline_mode<synchronous>, transform_indices = @transform_1, window_bounds = array<i64: 512, 256>}, {pipeline_mode = #tpu.pipeline_mode<synchronous>, transform_indices = @transform_2, window_bounds = array<i64: 1, 256>}, {transform_indices = @transform_3, window_bounds = array<i64: 8, 256>}]} {
    %c0 = arith.constant 0 : index
    %c0_0 = arith.constant 0 : index
    %0 = vector.load %arg1[%c0, %c0_0] : memref<8x512xbf16, #tpu.memory_space<vmem>>, vector<8x512xbf16>
    %c0_1 = arith.constant 0 : index
    %c0_2 = arith.constant 0 : index
    %1 = vector.load %arg2[%c0_1, %c0_2] : memref<512x256xbf16, #tpu.memory_space<vmem>>, vector<512x256xbf16>
    %cst = arith.constant dense<0.000000e+00> : vector<8x256xf32>
    %2 = tpu.matmul %0, %1, %cst {dimension_numbers = #tpu.dot_dimension_numbers<[1], [0], [0], [1], [0, 0, 1, 1], [], []>} : vector<8x512xbf16>, vector<512x256xbf16>, vector<8x256xf32> -> vector<8x256xf32>
    %c0_3 = arith.constant 0 : index
    %c0_4 = arith.constant 0 : index
    %3 = vector.load %arg3[%c0_3, %c0_4] : memref<1x256xf32, #tpu.memory_space<vmem>>, vector<1x256xf32>
    %4 = vector.broadcast %3 : vector<1x256xf32> to vector<8x256xf32>
    %5 = arith.addf %2, %4 : vector<8x256xf32>
    %cst_5 = arith.constant 0.000000e+00 : f32
    %6 = vector.broadcast %cst_5 : f32 to vector<8x256xf32>
    %7 = arith.cmpf oge, %5, %6 : vector<8x256xf32>
    %cst_6 = arith.constant 1.000000e-01 : f32
    %8 = vector.broadcast %cst_6 : f32 to vector<8x256xf32>
    %9 = arith.mulf %5, %8 : vector<8x256xf32>
    %10 = arith.select %7, %5, %9 : vector<8x256xi1>, vector<8x256xf32>
    %11 = arith.truncf %10 : vector<8x256xf32> to vector<8x256xbf16>
    %c0_7 = arith.constant 0 : index
    %c0_8 = arith.constant 0 : index
    %12 = vector.load %arg4[%c0_7, %c0_8] : memref<8x256xbf16, #tpu.memory_space<vmem>>, vector<8x256xbf16>
    tpu.vector_store %arg4[%c0_7, %c0_8], %11 {strides = array<i32>} : memref<8x256xbf16, #tpu.memory_space<vmem>>, vector<8x256xbf16>,
    return
  }
  func.func @transform_0(%arg0: i32) -> (i32, i32) {
    %c0_i32 = arith.constant 0 : i32
    %c0_i32_0 = arith.constant 0 : i32
    return %arg0, %c0_i32 : i32, i32
  }
  func.func @transform_1(%arg0: i32) -> (i32, i32) {
    %c0_i32 = arith.constant 0 : i32
    %c0_i32_0 = arith.constant 0 : i32
    %c0_i32_1 = arith.constant 0 : i32
    return %c0_i32, %c0_i32_0 : i32, i32
  }
  func.func @transform_2(%arg0: i32) -> (i32, i32) {
    %c0_i32 = arith.constant 0 : i32
    %c0_i32_0 = arith.constant 0 : i32
    %c0_i32_1 = arith.constant 0 : i32
    return %c0_i32, %c0_i32_0 : i32, i32
  }
  func.func @transform_3(%arg0: i32) -> (i32, i32) {
    %c0_i32 = arith.constant 0 : i32
    %c0_i32_0 = arith.constant 0 : i32
    return %arg0, %c0_i32 : i32, i32
  }
}

module attributes {stable_mosaic.version = 11 : i64} {
  func.func @kernel(%arg0: i32, %arg1: memref<32x8xbf16, #tpu.memory_space<vmem>>, %arg2: memref<8x512xbf16, #tpu.memory_space<vmem>>, %arg3: memref<1x512xf32, #tpu.memory_space<vmem>>, %arg4: memref<32x512xbf16, #tpu.memory_space<vmem>>) attributes {dimension_semantics = [#tpu.dimension_semantics<parallel>], iteration_bounds = array<i64: 1>, scalar_prefetch = 0 : i64, scratch_operands = 0 : i64, tpu.core_type = #tpu.core_type<tc>, window_params = [{transform_indices = @transform_0, window_bounds = array<i64: 32, 8>}, {pipeline_mode = #tpu.pipeline_mode<synchronous>, transform_indices = @transform_1, window_bounds = array<i64: 8, 512>}, {pipeline_mode = #tpu.pipeline_mode<synchronous>, transform_indices = @transform_2, window_bounds = array<i64: 1, 512>}, {transform_indices = @transform_3, window_bounds = array<i64: 32, 512>}]} {
    %c0 = arith.constant 0 : index
    %c0_0 = arith.constant 0 : index
    %0 = vector.load %arg1[%c0, %c0_0] : memref<32x8xbf16, #tpu.memory_space<vmem>>, vector<32x8xbf16>
    %c0_1 = arith.constant 0 : index
    %c0_2 = arith.constant 0 : index
    %1 = vector.load %arg2[%c0_1, %c0_2] : memref<8x512xbf16, #tpu.memory_space<vmem>>, vector<8x512xbf16>
    %cst = arith.constant dense<0.000000e+00> : vector<32x512xf32>
    %2 = tpu.matmul %0, %1, %cst {dimension_numbers = #tpu.dot_dimension_numbers<[1], [0], [0], [1], [0, 0, 1, 1], [], []>} : vector<32x8xbf16>, vector<8x512xbf16>, vector<32x512xf32> -> vector<32x512xf32>
    %c0_3 = arith.constant 0 : index
    %c0_4 = arith.constant 0 : index
    %3 = vector.load %arg3[%c0_3, %c0_4] : memref<1x512xf32, #tpu.memory_space<vmem>>, vector<1x512xf32>
    %4 = vector.broadcast %3 : vector<1x512xf32> to vector<32x512xf32>
    %5 = arith.addf %2, %4 : vector<32x512xf32>
    %6 = arith.truncf %5 : vector<32x512xf32> to vector<32x512xbf16>
    %c0_5 = arith.constant 0 : index
    %c0_6 = arith.constant 0 : index
    %7 = vector.load %arg4[%c0_5, %c0_6] : memref<32x512xbf16, #tpu.memory_space<vmem>>, vector<32x512xbf16>
    tpu.vector_store %arg4[%c0_5, %c0_6], %6 {strides = array<i32>} : memref<32x512xbf16, #tpu.memory_space<vmem>>, vector<32x512xbf16>,
    return
  }
  func.func @transform_0(%arg0: i32) -> (i32, i32) {
    %c0_i32 = arith.constant 0 : i32
    %c0_i32_0 = arith.constant 0 : i32
    return %arg0, %c0_i32 : i32, i32
  }
  func.func @transform_1(%arg0: i32) -> (i32, i32) {
    %c0_i32 = arith.constant 0 : i32
    %c0_i32_0 = arith.constant 0 : i32
    %c0_i32_1 = arith.constant 0 : i32
    return %c0_i32, %c0_i32_0 : i32, i32
  }
  func.func @transform_2(%arg0: i32) -> (i32, i32) {
    %c0_i32 = arith.constant 0 : i32
    %c0_i32_0 = arith.constant 0 : i32
    %c0_i32_1 = arith.constant 0 : i32
    return %c0_i32, %c0_i32_0 : i32, i32
  }
  func.func @transform_3(%arg0: i32) -> (i32, i32) {
    %c0_i32 = arith.constant 0 : i32
    %c0_i32_0 = arith.constant 0 : i32
    return %arg0, %c0_i32 : i32, i32
  }
}

module attributes {stable_mosaic.version = 11 : i64} {
  func.func @kernel(%arg0: i32, %arg1: memref<32x512xbf16, #tpu.memory_space<vmem>>, %arg2: memref<32x256xbf16, #tpu.memory_space<vmem>>, %arg3: memref<512x256xbf16, #tpu.memory_space<vmem>>, %arg4: memref<1x256xf32, #tpu.memory_space<vmem>>, %arg5: memref<256x256xbf16, #tpu.memory_space<vmem>>, %arg6: memref<256x256xbf16, #tpu.memory_space<vmem>>, %arg7: memref<1x256xf32, #tpu.memory_space<vmem>>, %arg8: memref<256x18xbf16, #tpu.memory_space<vmem>>, %arg9: memref<1x18xf32, #tpu.memory_space<vmem>>, %arg10: memref<32x2xf32, #tpu.memory_space<vmem>>, %arg11: memref<1x18xf32, #tpu.memory_space<vmem>>, %arg12: memref<32x256xbf16, #tpu.memory_space<vmem>>, %arg13: memref<32x18xf32, #tpu.memory_space<vmem>>) attributes {dimension_semantics = [#tpu.dimension_semantics<parallel>], iteration_bounds = array<i64: 1>, scalar_prefetch = 0 : i64, scratch_operands = 0 : i64, tpu.core_type = #tpu.core_type<tc>, window_params = [{transform_indices = @transform_0, window_bounds = array<i64: 32, 512>}, {transform_indices = @transform_1, window_bounds = array<i64: 32, 256>}, {pipeline_mode = #tpu.pipeline_mode<synchronous>, transform_indices = @transform_2, window_bounds = array<i64: 512, 256>}, {pipeline_mode = #tpu.pipeline_mode<synchronous>, transform_indices = @transform_3, window_bounds = array<i64: 1, 256>}, {pipeline_mode = #tpu.pipeline_mode<synchronous>, transform_indices = @transform_4, window_bounds = array<i64: 256, 256>}, {pipeline_mode = #tpu.pipeline_mode<synchronous>, transform_indices = @transform_5, window_bounds = array<i64: 256, 256>}, {pipeline_mode = #tpu.pipeline_mode<synchronous>, transform_indices = @transform_6, window_bounds = array<i64: 1, 256>}, {pipeline_mode = #tpu.pipeline_mode<synchronous>, transform_indices = @transform_7, window_bounds = array<i64: 256, 18>}, {pipeline_mode = #tpu.pipeline_mode<synchronous>, transform_indices = @transform_8, window_bounds = array<i64: 1, 18>}, {transform_indices = @transform_9, window_bounds = array<i64: 32, 2>}, {pipeline_mode = #tpu.pipeline_mode<synchronous>, transform_indices = @transform_10, window_bounds = array<i64: 1, 18>}, {transform_indices = @transform_11, window_bounds = array<i64: 32, 256>}, {transform_indices = @transform_12, window_bounds = array<i64: 32, 18>}]} {
    %c0 = arith.constant 0 : index
    %c0_0 = arith.constant 0 : index
    %0 = vector.load %arg1[%c0, %c0_0] : memref<32x512xbf16, #tpu.memory_space<vmem>>, vector<32x512xbf16>
    %c0_1 = arith.constant 0 : index
    %c0_2 = arith.constant 0 : index
    %1 = vector.load %arg3[%c0_1, %c0_2] : memref<512x256xbf16, #tpu.memory_space<vmem>>, vector<512x256xbf16>
    %cst = arith.constant dense<0.000000e+00> : vector<32x256xf32>
    %2 = tpu.matmul %0, %1, %cst {dimension_numbers = #tpu.dot_dimension_numbers<[1], [0], [0], [1], [0, 0, 1, 1], [], []>} : vector<32x512xbf16>, vector<512x256xbf16>, vector<32x256xf32> -> vector<32x256xf32>
    %c0_3 = arith.constant 0 : index
    %c0_4 = arith.constant 0 : index
    %3 = vector.load %arg4[%c0_3, %c0_4] : memref<1x256xf32, #tpu.memory_space<vmem>>, vector<1x256xf32>
    %4 = vector.broadcast %3 : vector<1x256xf32> to vector<32x256xf32>
    %5 = arith.addf %2, %4 : vector<32x256xf32>
    %cst_5 = arith.constant 0.000000e+00 : f32
    %6 = vector.broadcast %cst_5 : f32 to vector<32x256xf32>
    %7 = arith.cmpf oge, %5, %6 : vector<32x256xf32>
    %cst_6 = arith.constant 1.000000e-01 : f32
    %8 = vector.broadcast %cst_6 : f32 to vector<32x256xf32>
    %9 = arith.mulf %5, %8 : vector<32x256xf32>
    %10 = arith.select %7, %5, %9 : vector<32x256xi1>, vector<32x256xf32>
    %11 = arith.truncf %10 : vector<32x256xf32> to vector<32x256xbf16>
    %c0_7 = arith.constant 0 : index
    %c0_8 = arith.constant 0 : index
    %12 = vector.load %arg5[%c0_7, %c0_8] : memref<256x256xbf16, #tpu.memory_space<vmem>>, vector<256x256xbf16>
    %cst_9 = arith.constant dense<0.000000e+00> : vector<32x256xf32>
    %13 = tpu.matmul %11, %12, %cst_9 {dimension_numbers = #tpu.dot_dimension_numbers<[1], [0], [0], [1], [0, 0, 1, 1], [], []>} : vector<32x256xbf16>, vector<256x256xbf16>, vector<32x256xf32> -> vector<32x256xf32>
    %c0_10 = arith.constant 0 : index
    %c0_11 = arith.constant 0 : index
    %14 = vector.load %arg2[%c0_10, %c0_11] : memref<32x256xbf16, #tpu.memory_space<vmem>>, vector<32x256xbf16>
    %c0_12 = arith.constant 0 : index
    %c0_13 = arith.constant 0 : index
    %15 = vector.load %arg6[%c0_12, %c0_13] : memref<256x256xbf16, #tpu.memory_space<vmem>>, vector<256x256xbf16>
    %cst_14 = arith.constant dense<0.000000e+00> : vector<32x256xf32>
    %16 = tpu.matmul %14, %15, %cst_14 {dimension_numbers = #tpu.dot_dimension_numbers<[1], [0], [0], [1], [0, 0, 1, 1], [], []>} : vector<32x256xbf16>, vector<256x256xbf16>, vector<32x256xf32> -> vector<32x256xf32>
    %17 = arith.addf %13, %16 : vector<32x256xf32>
    %c0_15 = arith.constant 0 : index
    %c0_16 = arith.constant 0 : index
    %18 = vector.load %arg7[%c0_15, %c0_16] : memref<1x256xf32, #tpu.memory_space<vmem>>, vector<1x256xf32>
    %19 = vector.broadcast %18 : vector<1x256xf32> to vector<32x256xf32>
    %20 = arith.addf %17, %19 : vector<32x256xf32>
    %cst_17 = arith.constant 0.000000e+00 : f32
    %21 = vector.broadcast %cst_17 : f32 to vector<32x256xf32>
    %22 = arith.cmpf oge, %20, %21 : vector<32x256xf32>
    %cst_18 = arith.constant 1.000000e-01 : f32
    %23 = vector.broadcast %cst_18 : f32 to vector<32x256xf32>
    %24 = arith.mulf %20, %23 : vector<32x256xf32>
    %25 = arith.select %22, %20, %24 : vector<32x256xi1>, vector<32x256xf32>
    %26 = arith.truncf %25 : vector<32x256xf32> to vector<32x256xbf16>
    %c0_19 = arith.constant 0 : index
    %c0_20 = arith.constant 0 : index
    %27 = vector.load %arg12[%c0_19, %c0_20] : memref<32x256xbf16, #tpu.memory_space<vmem>>, vector<32x256xbf16>
    tpu.vector_store %arg12[%c0_19, %c0_20], %26 {strides = array<i32>} : memref<32x256xbf16, #tpu.memory_space<vmem>>, vector<32x256xbf16>,
    %c0_21 = arith.constant 0 : index
    %c0_22 = arith.constant 0 : index
    %28 = vector.load %arg8[%c0_21, %c0_22] : memref<256x18xbf16, #tpu.memory_space<vmem>>, vector<256x18xbf16>
    %cst_23 = arith.constant dense<0.000000e+00> : vector<32x18xf32>
    %29 = tpu.matmul %26, %28, %cst_23 {dimension_numbers = #tpu.dot_dimension_numbers<[1], [0], [0], [1], [0, 0, 1, 1], [], []>} : vector<32x256xbf16>, vector<256x18xbf16>, vector<32x18xf32> -> vector<32x18xf32>
    %c0_24 = arith.constant 0 : index
    %c0_25 = arith.constant 0 : index
    %30 = vector.load %arg9[%c0_24, %c0_25] : memref<1x18xf32, #tpu.memory_space<vmem>>, vector<1x18xf32>
    %31 = vector.broadcast %30 : vector<1x18xf32> to vector<32x18xf32>
    %32 = arith.addf %29, %31 : vector<32x18xf32>
    %c0_26 = arith.constant 0 : index
    %c0_27 = arith.constant 0 : index
    %33 = vector.load %arg10[%c0_26, %c0_27] : memref<32x2xf32, #tpu.memory_space<vmem>>, vector<32x2xf32>
    %c0_28 = arith.constant 0 : index
    %c0_29 = arith.constant 0 : index
    %34 = vector.load %arg11[%c0_28, %c0_29] : memref<1x18xf32, #tpu.memory_space<vmem>>, vector<1x18xf32>
    %cst_30 = arith.constant 0.000000e+00 : f32
    %35 = vector.broadcast %cst_30 : f32 to vector<32x18xf32>
    %36 = arith.subf %35, %32 : vector<32x18xf32>
    %37 = math.exp %36 : vector<32x18xf32>
    %cst_31 = arith.constant 1.000000e+00 : f32
    %38 = vector.broadcast %cst_31 : f32 to vector<32x18xf32>
    %39 = arith.addf %38, %37 : vector<32x18xf32>
    %cst_32 = arith.constant 1.000000e+00 : f32
    %40 = vector.broadcast %cst_32 : f32 to vector<32x18xf32>
    %41 = arith.divf %40, %39 : vector<32x18xf32>
    %42 = math.exp %32 : vector<32x18xf32>
    %43 = tpu.iota {dimensions = array<i32: 1>} : vector<32x18xi32>
    %c12_i32 = arith.constant 12 : i32
    %44 = vector.broadcast %c12_i32 : i32 to vector<32x18xi32>
    %45 = arith.cmpi sge, %43, %44 : vector<32x18xi32>
    %c12_i32_33 = arith.constant 12 : i32
    %46 = vector.broadcast %c12_i32_33 : i32 to vector<32x18xi32>
    %47 = arith.subi %43, %46 : vector<32x18xi32>
    %c6_i32 = arith.constant 6 : i32
    %48 = vector.broadcast %c6_i32 : i32 to vector<32x18xi32>
    %49 = arith.cmpi sge, %43, %48 : vector<32x18xi32>
    %c6_i32_34 = arith.constant 6 : i32
    %50 = vector.broadcast %c6_i32_34 : i32 to vector<32x18xi32>
    %51 = arith.subi %43, %50 : vector<32x18xi32>
    %52 = arith.select %49, %51, %43 : vector<32x18xi1>, vector<32x18xi32>
    %53 = arith.select %45, %47, %52 : vector<32x18xi1>, vector<32x18xi32>
    %c0_i32 = arith.constant 0 : i32
    %54 = vector.broadcast %c0_i32 : i32 to vector<32x18xi32>
    %55 = arith.cmpi eq, %53, %54 : vector<32x18xi32>
    %56 = vector.extract_strided_slice %33 {offsets = [0, 0], sizes = [32, 1], strides = [1, 1]} : vector<32x2xf32> to vector<32x1xf32>
    %57 = vector.extract_strided_slice %33 {offsets = [0, 1], sizes = [32, 1], strides = [1, 1]} : vector<32x2xf32> to vector<32x1xf32>
    %58 = vector.shape_cast %56 : vector<32x1xf32> to vector<32x1xf32>
    %59 = vector.broadcast %58 : vector<32x1xf32> to vector<32x18xf32>
    %60 = vector.shape_cast %57 : vector<32x1xf32> to vector<32x1xf32>
    %61 = vector.broadcast %60 : vector<32x1xf32> to vector<32x18xf32>
    %62 = arith.select %55, %59, %61 : vector<32x18xi1>, vector<32x18xf32>
    %63 = arith.addf %41, %62 : vector<32x18xf32>
    %cst_35 = arith.constant 1.600000e+01 : f32
    %64 = vector.broadcast %cst_35 : f32 to vector<32x18xf32>
    %65 = arith.mulf %63, %64 : vector<32x18xf32>
    %66 = vector.broadcast %34 : vector<1x18xf32> to vector<32x18xf32>
    %67 = arith.mulf %42, %66 : vector<32x18xf32>
    %cst_36 = arith.constant 3.600000e+02 : f32
    %68 = vector.broadcast %cst_36 : f32 to vector<32x18xf32>
    %69 = arith.mulf %41, %68 : vector<32x18xf32>
    %cst_37 = arith.constant 1.800000e+02 : f32
    %70 = vector.broadcast %cst_37 : f32 to vector<32x18xf32>
    %71 = arith.subf %69, %70 : vector<32x18xf32>
    %c2_i32 = arith.constant 2 : i32
    %72 = vector.broadcast %c2_i32 : i32 to vector<32x18xi32>
    %73 = arith.cmpi slt, %53, %72 : vector<32x18xi32>
    %c4_i32 = arith.constant 4 : i32
    %74 = vector.broadcast %c4_i32 : i32 to vector<32x18xi32>
    %75 = arith.cmpi slt, %53, %74 : vector<32x18xi32>
    %c4_i32_38 = arith.constant 4 : i32
    %76 = vector.broadcast %c4_i32_38 : i32 to vector<32x18xi32>
    %77 = arith.cmpi eq, %53, %76 : vector<32x18xi32>
    %78 = arith.select %77, %71, %41 : vector<32x18xi1>, vector<32x18xf32>
    %79 = arith.select %75, %67, %78 : vector<32x18xi1>, vector<32x18xf32>
    %80 = arith.select %73, %65, %79 : vector<32x18xi1>, vector<32x18xf32>
    %c0_39 = arith.constant 0 : index
    %c0_40 = arith.constant 0 : index
    %81 = vector.load %arg13[%c0_39, %c0_40] : memref<32x18xf32, #tpu.memory_space<vmem>>, vector<32x18xf32>
    tpu.vector_store %arg13[%c0_39, %c0_40], %80 {strides = array<i32>} : memref<32x18xf32, #tpu.memory_space<vmem>>, vector<32x18xf32>,
    return
  }
  func.func @transform_0(%arg0: i32) -> (i32, i32) {
    %c0_i32 = arith.constant 0 : i32
    %c0_i32_0 = arith.constant 0 : i32
    return %arg0, %c0_i32 : i32, i32
  }
  func.func @transform_1(%arg0: i32) -> (i32, i32) {
    %c0_i32 = arith.constant 0 : i32
    %c0_i32_0 = arith.constant 0 : i32
    return %arg0, %c0_i32 : i32, i32
  }
  func.func @transform_2(%arg0: i32) -> (i32, i32) {
    %c0_i32 = arith.constant 0 : i32
    %c0_i32_0 = arith.constant 0 : i32
    %c0_i32_1 = arith.constant 0 : i32
    return %c0_i32, %c0_i32_0 : i32, i32
  }
  func.func @transform_3(%arg0: i32) -> (i32, i32) {
    %c0_i32 = arith.constant 0 : i32
    %c0_i32_0 = arith.constant 0 : i32
    %c0_i32_1 = arith.constant 0 : i32
    return %c0_i32, %c0_i32_0 : i32, i32
  }
  func.func @transform_4(%arg0: i32) -> (i32, i32) {
    %c0_i32 = arith.constant 0 : i32
    %c0_i32_0 = arith.constant 0 : i32
    %c0_i32_1 = arith.constant 0 : i32
    return %c0_i32, %c0_i32_0 : i32, i32
  }
  func.func @transform_5(%arg0: i32) -> (i32, i32) {
    %c0_i32 = arith.constant 0 : i32
    %c0_i32_0 = arith.constant 0 : i32
    %c0_i32_1 = arith.constant 0 : i32
    return %c0_i32, %c0_i32_0 : i32, i32
  }
  func.func @transform_6(%arg0: i32) -> (i32, i32) {
    %c0_i32 = arith.constant 0 : i32
    %c0_i32_0 = arith.constant 0 : i32
    %c0_i32_1 = arith.constant 0 : i32
    return %c0_i32, %c0_i32_0 : i32, i32
  }
  func.func @transform_7(%arg0: i32) -> (i32, i32) {
    %c0_i32 = arith.constant 0 : i32
    %c0_i32_0 = arith.constant 0 : i32
    %c0_i32_1 = arith.constant 0 : i32
    return %c0_i32, %c0_i32_0 : i32, i32
  }
  func.func @transform_8(%arg0: i32) -> (i32, i32) {
    %c0_i32 = arith.constant 0 : i32
    %c0_i32_0 = arith.constant 0 : i32
    %c0_i32_1 = arith.constant 0 : i32
    return %c0_i32, %c0_i32_0 : i32, i32
  }
  func.func @transform_9(%arg0: i32) -> (i32, i32) {
    %c0_i32 = arith.constant 0 : i32
    %c0_i32_0 = arith.constant 0 : i32
    return %arg0, %c0_i32 : i32, i32
  }
  func.func @transform_10(%arg0: i32) -> (i32, i32) {
    %c0_i32 = arith.constant 0 : i32
    %c0_i32_0 = arith.constant 0 : i32
    %c0_i32_1 = arith.constant 0 : i32
    return %c0_i32, %c0_i32_0 : i32, i32
  }
  func.func @transform_11(%arg0: i32) -> (i32, i32) {
    %c0_i32 = arith.constant 0 : i32
    %c0_i32_0 = arith.constant 0 : i32
    return %arg0, %c0_i32 : i32, i32
  }
  func.func @transform_12(%arg0: i32) -> (i32, i32) {
    %c0_i32 = arith.constant 0 : i32
    %c0_i32_0 = arith.constant 0 : i32
    return %arg0, %c0_i32 : i32, i32
  }
}

module attributes {stable_mosaic.version = 11 : i64} {
  func.func @kernel(%arg0: i32, %arg1: memref<32x256xbf16, #tpu.memory_space<vmem>>, %arg2: memref<256x128xbf16, #tpu.memory_space<vmem>>, %arg3: memref<1x128xf32, #tpu.memory_space<vmem>>, %arg4: memref<32x128xbf16, #tpu.memory_space<vmem>>) attributes {dimension_semantics = [#tpu.dimension_semantics<parallel>], iteration_bounds = array<i64: 1>, scalar_prefetch = 0 : i64, scratch_operands = 0 : i64, tpu.core_type = #tpu.core_type<tc>, window_params = [{transform_indices = @transform_0, window_bounds = array<i64: 32, 256>}, {pipeline_mode = #tpu.pipeline_mode<synchronous>, transform_indices = @transform_1, window_bounds = array<i64: 256, 128>}, {pipeline_mode = #tpu.pipeline_mode<synchronous>, transform_indices = @transform_2, window_bounds = array<i64: 1, 128>}, {transform_indices = @transform_3, window_bounds = array<i64: 32, 128>}]} {
    %c0 = arith.constant 0 : index
    %c0_0 = arith.constant 0 : index
    %0 = vector.load %arg1[%c0, %c0_0] : memref<32x256xbf16, #tpu.memory_space<vmem>>, vector<32x256xbf16>
    %c0_1 = arith.constant 0 : index
    %c0_2 = arith.constant 0 : index
    %1 = vector.load %arg2[%c0_1, %c0_2] : memref<256x128xbf16, #tpu.memory_space<vmem>>, vector<256x128xbf16>
    %cst = arith.constant dense<0.000000e+00> : vector<32x128xf32>
    %2 = tpu.matmul %0, %1, %cst {dimension_numbers = #tpu.dot_dimension_numbers<[1], [0], [0], [1], [0, 0, 1, 1], [], []>} : vector<32x256xbf16>, vector<256x128xbf16>, vector<32x128xf32> -> vector<32x128xf32>
    %c0_3 = arith.constant 0 : index
    %c0_4 = arith.constant 0 : index
    %3 = vector.load %arg3[%c0_3, %c0_4] : memref<1x128xf32, #tpu.memory_space<vmem>>, vector<1x128xf32>
    %4 = vector.broadcast %3 : vector<1x128xf32> to vector<32x128xf32>
    %5 = arith.addf %2, %4 : vector<32x128xf32>
    %cst_5 = arith.constant 0.000000e+00 : f32
    %6 = vector.broadcast %cst_5 : f32 to vector<32x128xf32>
    %7 = arith.cmpf oge, %5, %6 : vector<32x128xf32>
    %cst_6 = arith.constant 1.000000e-01 : f32
    %8 = vector.broadcast %cst_6 : f32 to vector<32x128xf32>
    %9 = arith.mulf %5, %8 : vector<32x128xf32>
    %10 = arith.select %7, %5, %9 : vector<32x128xi1>, vector<32x128xf32>
    %11 = arith.truncf %10 : vector<32x128xf32> to vector<32x128xbf16>
    %c0_7 = arith.constant 0 : index
    %c0_8 = arith.constant 0 : index
    %12 = vector.load %arg4[%c0_7, %c0_8] : memref<32x128xbf16, #tpu.memory_space<vmem>>, vector<32x128xbf16>
    tpu.vector_store %arg4[%c0_7, %c0_8], %11 {strides = array<i32>} : memref<32x128xbf16, #tpu.memory_space<vmem>>, vector<32x128xbf16>,
    return
  }
  func.func @transform_0(%arg0: i32) -> (i32, i32) {
    %c0_i32 = arith.constant 0 : i32
    %c0_i32_0 = arith.constant 0 : i32
    return %arg0, %c0_i32 : i32, i32
  }
  func.func @transform_1(%arg0: i32) -> (i32, i32) {
    %c0_i32 = arith.constant 0 : i32
    %c0_i32_0 = arith.constant 0 : i32
    %c0_i32_1 = arith.constant 0 : i32
    return %c0_i32, %c0_i32_0 : i32, i32
  }
  func.func @transform_2(%arg0: i32) -> (i32, i32) {
    %c0_i32 = arith.constant 0 : i32
    %c0_i32_0 = arith.constant 0 : i32
    %c0_i32_1 = arith.constant 0 : i32
    return %c0_i32, %c0_i32_0 : i32, i32
  }
  func.func @transform_3(%arg0: i32) -> (i32, i32) {
    %c0_i32 = arith.constant 0 : i32
    %c0_i32_0 = arith.constant 0 : i32
    return %arg0, %c0_i32 : i32, i32
  }
}

module attributes {stable_mosaic.version = 11 : i64} {
  func.func @kernel(%arg0: i32, %arg1: memref<128x8xbf16, #tpu.memory_space<vmem>>, %arg2: memref<8x256xbf16, #tpu.memory_space<vmem>>, %arg3: memref<1x256xf32, #tpu.memory_space<vmem>>, %arg4: memref<128x256xbf16, #tpu.memory_space<vmem>>) attributes {dimension_semantics = [#tpu.dimension_semantics<parallel>], iteration_bounds = array<i64: 1>, scalar_prefetch = 0 : i64, scratch_operands = 0 : i64, tpu.core_type = #tpu.core_type<tc>, window_params = [{transform_indices = @transform_0, window_bounds = array<i64: 128, 8>}, {pipeline_mode = #tpu.pipeline_mode<synchronous>, transform_indices = @transform_1, window_bounds = array<i64: 8, 256>}, {pipeline_mode = #tpu.pipeline_mode<synchronous>, transform_indices = @transform_2, window_bounds = array<i64: 1, 256>}, {transform_indices = @transform_3, window_bounds = array<i64: 128, 256>}]} {
    %c0 = arith.constant 0 : index
    %c0_0 = arith.constant 0 : index
    %0 = vector.load %arg1[%c0, %c0_0] : memref<128x8xbf16, #tpu.memory_space<vmem>>, vector<128x8xbf16>
    %c0_1 = arith.constant 0 : index
    %c0_2 = arith.constant 0 : index
    %1 = vector.load %arg2[%c0_1, %c0_2] : memref<8x256xbf16, #tpu.memory_space<vmem>>, vector<8x256xbf16>
    %cst = arith.constant dense<0.000000e+00> : vector<128x256xf32>
    %2 = tpu.matmul %0, %1, %cst {dimension_numbers = #tpu.dot_dimension_numbers<[1], [0], [0], [1], [0, 0, 1, 1], [], []>} : vector<128x8xbf16>, vector<8x256xbf16>, vector<128x256xf32> -> vector<128x256xf32>
    %c0_3 = arith.constant 0 : index
    %c0_4 = arith.constant 0 : index
    %3 = vector.load %arg3[%c0_3, %c0_4] : memref<1x256xf32, #tpu.memory_space<vmem>>, vector<1x256xf32>
    %4 = vector.broadcast %3 : vector<1x256xf32> to vector<128x256xf32>
    %5 = arith.addf %2, %4 : vector<128x256xf32>
    %6 = arith.truncf %5 : vector<128x256xf32> to vector<128x256xbf16>
    %c0_5 = arith.constant 0 : index
    %c0_6 = arith.constant 0 : index
    %7 = vector.load %arg4[%c0_5, %c0_6] : memref<128x256xbf16, #tpu.memory_space<vmem>>, vector<128x256xbf16>
    tpu.vector_store %arg4[%c0_5, %c0_6], %6 {strides = array<i32>} : memref<128x256xbf16, #tpu.memory_space<vmem>>, vector<128x256xbf16>,
    return
  }
  func.func @transform_0(%arg0: i32) -> (i32, i32) {
    %c0_i32 = arith.constant 0 : i32
    %c0_i32_0 = arith.constant 0 : i32
    return %arg0, %c0_i32 : i32, i32
  }
  func.func @transform_1(%arg0: i32) -> (i32, i32) {
    %c0_i32 = arith.constant 0 : i32
    %c0_i32_0 = arith.constant 0 : i32
    %c0_i32_1 = arith.constant 0 : i32
    return %c0_i32, %c0_i32_0 : i32, i32
  }
  func.func @transform_2(%arg0: i32) -> (i32, i32) {
    %c0_i32 = arith.constant 0 : i32
    %c0_i32_0 = arith.constant 0 : i32
    %c0_i32_1 = arith.constant 0 : i32
    return %c0_i32, %c0_i32_0 : i32, i32
  }
  func.func @transform_3(%arg0: i32) -> (i32, i32) {
    %c0_i32 = arith.constant 0 : i32
    %c0_i32_0 = arith.constant 0 : i32
    return %arg0, %c0_i32 : i32, i32
  }
}

module attributes {stable_mosaic.version = 11 : i64} {
  func.func @kernel(%arg0: i32, %arg1: memref<128x256xbf16, #tpu.memory_space<vmem>>, %arg2: memref<128x128xbf16, #tpu.memory_space<vmem>>, %arg3: memref<256x128xbf16, #tpu.memory_space<vmem>>, %arg4: memref<1x128xf32, #tpu.memory_space<vmem>>, %arg5: memref<128x128xbf16, #tpu.memory_space<vmem>>, %arg6: memref<128x128xbf16, #tpu.memory_space<vmem>>, %arg7: memref<1x128xf32, #tpu.memory_space<vmem>>, %arg8: memref<128x18xbf16, #tpu.memory_space<vmem>>, %arg9: memref<1x18xf32, #tpu.memory_space<vmem>>, %arg10: memref<128x2xf32, #tpu.memory_space<vmem>>, %arg11: memref<1x18xf32, #tpu.memory_space<vmem>>, %arg12: memref<128x128xbf16, #tpu.memory_space<vmem>>, %arg13: memref<128x18xf32, #tpu.memory_space<vmem>>) attributes {dimension_semantics = [#tpu.dimension_semantics<parallel>], iteration_bounds = array<i64: 1>, scalar_prefetch = 0 : i64, scratch_operands = 0 : i64, tpu.core_type = #tpu.core_type<tc>, window_params = [{transform_indices = @transform_0, window_bounds = array<i64: 128, 256>}, {transform_indices = @transform_1, window_bounds = array<i64: 128, 128>}, {pipeline_mode = #tpu.pipeline_mode<synchronous>, transform_indices = @transform_2, window_bounds = array<i64: 256, 128>}, {pipeline_mode = #tpu.pipeline_mode<synchronous>, transform_indices = @transform_3, window_bounds = array<i64: 1, 128>}, {pipeline_mode = #tpu.pipeline_mode<synchronous>, transform_indices = @transform_4, window_bounds = array<i64: 128, 128>}, {pipeline_mode = #tpu.pipeline_mode<synchronous>, transform_indices = @transform_5, window_bounds = array<i64: 128, 128>}, {pipeline_mode = #tpu.pipeline_mode<synchronous>, transform_indices = @transform_6, window_bounds = array<i64: 1, 128>}, {pipeline_mode = #tpu.pipeline_mode<synchronous>, transform_indices = @transform_7, window_bounds = array<i64: 128, 18>}, {pipeline_mode = #tpu.pipeline_mode<synchronous>, transform_indices = @transform_8, window_bounds = array<i64: 1, 18>}, {transform_indices = @transform_9, window_bounds = array<i64: 128, 2>}, {pipeline_mode = #tpu.pipeline_mode<synchronous>, transform_indices = @transform_10, window_bounds = array<i64: 1, 18>}, {transform_indices = @transform_11, window_bounds = array<i64: 128, 128>}, {transform_indices = @transform_12, window_bounds = array<i64: 128, 18>}]} {
    %c0 = arith.constant 0 : index
    %c0_0 = arith.constant 0 : index
    %0 = vector.load %arg1[%c0, %c0_0] : memref<128x256xbf16, #tpu.memory_space<vmem>>, vector<128x256xbf16>
    %c0_1 = arith.constant 0 : index
    %c0_2 = arith.constant 0 : index
    %1 = vector.load %arg3[%c0_1, %c0_2] : memref<256x128xbf16, #tpu.memory_space<vmem>>, vector<256x128xbf16>
    %cst = arith.constant dense<0.000000e+00> : vector<128x128xf32>
    %2 = tpu.matmul %0, %1, %cst {dimension_numbers = #tpu.dot_dimension_numbers<[1], [0], [0], [1], [0, 0, 1, 1], [], []>} : vector<128x256xbf16>, vector<256x128xbf16>, vector<128x128xf32> -> vector<128x128xf32>
    %c0_3 = arith.constant 0 : index
    %c0_4 = arith.constant 0 : index
    %3 = vector.load %arg4[%c0_3, %c0_4] : memref<1x128xf32, #tpu.memory_space<vmem>>, vector<1x128xf32>
    %4 = vector.broadcast %3 : vector<1x128xf32> to vector<128x128xf32>
    %5 = arith.addf %2, %4 : vector<128x128xf32>
    %cst_5 = arith.constant 0.000000e+00 : f32
    %6 = vector.broadcast %cst_5 : f32 to vector<128x128xf32>
    %7 = arith.cmpf oge, %5, %6 : vector<128x128xf32>
    %cst_6 = arith.constant 1.000000e-01 : f32
    %8 = vector.broadcast %cst_6 : f32 to vector<128x128xf32>
    %9 = arith.mulf %5, %8 : vector<128x128xf32>
    %10 = arith.select %7, %5, %9 : vector<128x128xi1>, vector<128x128xf32>
    %11 = arith.truncf %10 : vector<128x128xf32> to vector<128x128xbf16>
    %c0_7 = arith.constant 0 : index
    %c0_8 = arith.constant 0 : index
    %12 = vector.load %arg5[%c0_7, %c0_8] : memref<128x128xbf16, #tpu.memory_space<vmem>>, vector<128x128xbf16>
    %cst_9 = arith.constant dense<0.000000e+00> : vector<128x128xf32>
    %13 = tpu.matmul %11, %12, %cst_9 {dimension_numbers = #tpu.dot_dimension_numbers<[1], [0], [0], [1], [0, 0, 1, 1], [], []>} : vector<128x128xbf16>, vector<128x128xbf16>, vector<128x128xf32> -> vector<128x128xf32>
    %c0_10 = arith.constant 0 : index
    %c0_11 = arith.constant 0 : index
    %14 = vector.load %arg2[%c0_10, %c0_11] : memref<128x128xbf16, #tpu.memory_space<vmem>>, vector<128x128xbf16>
    %c0_12 = arith.constant 0 : index
    %c0_13 = arith.constant 0 : index
    %15 = vector.load %arg6[%c0_12, %c0_13] : memref<128x128xbf16, #tpu.memory_space<vmem>>, vector<128x128xbf16>
    %cst_14 = arith.constant dense<0.000000e+00> : vector<128x128xf32>
    %16 = tpu.matmul %14, %15, %cst_14 {dimension_numbers = #tpu.dot_dimension_numbers<[1], [0], [0], [1], [0, 0, 1, 1], [], []>} : vector<128x128xbf16>, vector<128x128xbf16>, vector<128x128xf32> -> vector<128x128xf32>
    %17 = arith.addf %13, %16 : vector<128x128xf32>
    %c0_15 = arith.constant 0 : index
    %c0_16 = arith.constant 0 : index
    %18 = vector.load %arg7[%c0_15, %c0_16] : memref<1x128xf32, #tpu.memory_space<vmem>>, vector<1x128xf32>
    %19 = vector.broadcast %18 : vector<1x128xf32> to vector<128x128xf32>
    %20 = arith.addf %17, %19 : vector<128x128xf32>
    %cst_17 = arith.constant 0.000000e+00 : f32
    %21 = vector.broadcast %cst_17 : f32 to vector<128x128xf32>
    %22 = arith.cmpf oge, %20, %21 : vector<128x128xf32>
    %cst_18 = arith.constant 1.000000e-01 : f32
    %23 = vector.broadcast %cst_18 : f32 to vector<128x128xf32>
    %24 = arith.mulf %20, %23 : vector<128x128xf32>
    %25 = arith.select %22, %20, %24 : vector<128x128xi1>, vector<128x128xf32>
    %26 = arith.truncf %25 : vector<128x128xf32> to vector<128x128xbf16>
    %c0_19 = arith.constant 0 : index
    %c0_20 = arith.constant 0 : index
    %27 = vector.load %arg12[%c0_19, %c0_20] : memref<128x128xbf16, #tpu.memory_space<vmem>>, vector<128x128xbf16>
    tpu.vector_store %arg12[%c0_19, %c0_20], %26 {strides = array<i32>} : memref<128x128xbf16, #tpu.memory_space<vmem>>, vector<128x128xbf16>,
    %c0_21 = arith.constant 0 : index
    %c0_22 = arith.constant 0 : index
    %28 = vector.load %arg8[%c0_21, %c0_22] : memref<128x18xbf16, #tpu.memory_space<vmem>>, vector<128x18xbf16>
    %cst_23 = arith.constant dense<0.000000e+00> : vector<128x18xf32>
    %29 = tpu.matmul %26, %28, %cst_23 {dimension_numbers = #tpu.dot_dimension_numbers<[1], [0], [0], [1], [0, 0, 1, 1], [], []>} : vector<128x128xbf16>, vector<128x18xbf16>, vector<128x18xf32> -> vector<128x18xf32>
    %c0_24 = arith.constant 0 : index
    %c0_25 = arith.constant 0 : index
    %30 = vector.load %arg9[%c0_24, %c0_25] : memref<1x18xf32, #tpu.memory_space<vmem>>, vector<1x18xf32>
    %31 = vector.broadcast %30 : vector<1x18xf32> to vector<128x18xf32>
    %32 = arith.addf %29, %31 : vector<128x18xf32>
    %c0_26 = arith.constant 0 : index
    %c0_27 = arith.constant 0 : index
    %33 = vector.load %arg10[%c0_26, %c0_27] : memref<128x2xf32, #tpu.memory_space<vmem>>, vector<128x2xf32>
    %c0_28 = arith.constant 0 : index
    %c0_29 = arith.constant 0 : index
    %34 = vector.load %arg11[%c0_28, %c0_29] : memref<1x18xf32, #tpu.memory_space<vmem>>, vector<1x18xf32>
    %cst_30 = arith.constant 0.000000e+00 : f32
    %35 = vector.broadcast %cst_30 : f32 to vector<128x18xf32>
    %36 = arith.subf %35, %32 : vector<128x18xf32>
    %37 = math.exp %36 : vector<128x18xf32>
    %cst_31 = arith.constant 1.000000e+00 : f32
    %38 = vector.broadcast %cst_31 : f32 to vector<128x18xf32>
    %39 = arith.addf %38, %37 : vector<128x18xf32>
    %cst_32 = arith.constant 1.000000e+00 : f32
    %40 = vector.broadcast %cst_32 : f32 to vector<128x18xf32>
    %41 = arith.divf %40, %39 : vector<128x18xf32>
    %42 = math.exp %32 : vector<128x18xf32>
    %43 = tpu.iota {dimensions = array<i32: 1>} : vector<128x18xi32>
    %c12_i32 = arith.constant 12 : i32
    %44 = vector.broadcast %c12_i32 : i32 to vector<128x18xi32>
    %45 = arith.cmpi sge, %43, %44 : vector<128x18xi32>
    %c12_i32_33 = arith.constant 12 : i32
    %46 = vector.broadcast %c12_i32_33 : i32 to vector<128x18xi32>
    %47 = arith.subi %43, %46 : vector<128x18xi32>
    %c6_i32 = arith.constant 6 : i32
    %48 = vector.broadcast %c6_i32 : i32 to vector<128x18xi32>
    %49 = arith.cmpi sge, %43, %48 : vector<128x18xi32>
    %c6_i32_34 = arith.constant 6 : i32
    %50 = vector.broadcast %c6_i32_34 : i32 to vector<128x18xi32>
    %51 = arith.subi %43, %50 : vector<128x18xi32>
    %52 = arith.select %49, %51, %43 : vector<128x18xi1>, vector<128x18xi32>
    %53 = arith.select %45, %47, %52 : vector<128x18xi1>, vector<128x18xi32>
    %c0_i32 = arith.constant 0 : i32
    %54 = vector.broadcast %c0_i32 : i32 to vector<128x18xi32>
    %55 = arith.cmpi eq, %53, %54 : vector<128x18xi32>
    %56 = vector.extract_strided_slice %33 {offsets = [0, 0], sizes = [128, 1], strides = [1, 1]} : vector<128x2xf32> to vector<128x1xf32>
    %57 = vector.extract_strided_slice %33 {offsets = [0, 1], sizes = [128, 1], strides = [1, 1]} : vector<128x2xf32> to vector<128x1xf32>
    %58 = vector.shape_cast %56 : vector<128x1xf32> to vector<128x1xf32>
    %59 = vector.broadcast %58 : vector<128x1xf32> to vector<128x18xf32>
    %60 = vector.shape_cast %57 : vector<128x1xf32> to vector<128x1xf32>
    %61 = vector.broadcast %60 : vector<128x1xf32> to vector<128x18xf32>
    %62 = arith.select %55, %59, %61 : vector<128x18xi1>, vector<128x18xf32>
    %63 = arith.addf %41, %62 : vector<128x18xf32>
    %cst_35 = arith.constant 8.000000e+00 : f32
    %64 = vector.broadcast %cst_35 : f32 to vector<128x18xf32>
    %65 = arith.mulf %63, %64 : vector<128x18xf32>
    %66 = vector.broadcast %34 : vector<1x18xf32> to vector<128x18xf32>
    %67 = arith.mulf %42, %66 : vector<128x18xf32>
    %cst_36 = arith.constant 3.600000e+02 : f32
    %68 = vector.broadcast %cst_36 : f32 to vector<128x18xf32>
    %69 = arith.mulf %41, %68 : vector<128x18xf32>
    %cst_37 = arith.constant 1.800000e+02 : f32
    %70 = vector.broadcast %cst_37 : f32 to vector<128x18xf32>
    %71 = arith.subf %69, %70 : vector<128x18xf32>
    %c2_i32 = arith.constant 2 : i32
    %72 = vector.broadcast %c2_i32 : i32 to vector<128x18xi32>
    %73 = arith.cmpi slt, %53, %72 : vector<128x18xi32>
    %c4_i32 = arith.constant 4 : i32
    %74 = vector.broadcast %c4_i32 : i32 to vector<128x18xi32>
    %75 = arith.cmpi slt, %53, %74 : vector<128x18xi32>
    %c4_i32_38 = arith.constant 4 : i32
    %76 = vector.broadcast %c4_i32_38 : i32 to vector<128x18xi32>
    %77 = arith.cmpi eq, %53, %76 : vector<128x18xi32>
    %78 = arith.select %77, %71, %41 : vector<128x18xi1>, vector<128x18xf32>
    %79 = arith.select %75, %67, %78 : vector<128x18xi1>, vector<128x18xf32>
    %80 = arith.select %73, %65, %79 : vector<128x18xi1>, vector<128x18xf32>
    %c0_39 = arith.constant 0 : index
    %c0_40 = arith.constant 0 : index
    %81 = vector.load %arg13[%c0_39, %c0_40] : memref<128x18xf32, #tpu.memory_space<vmem>>, vector<128x18xf32>
    tpu.vector_store %arg13[%c0_39, %c0_40], %80 {strides = array<i32>} : memref<128x18xf32, #tpu.memory_space<vmem>>, vector<128x18xf32>,
    return
  }
  func.func @transform_0(%arg0: i32) -> (i32, i32) {
    %c0_i32 = arith.constant 0 : i32
    %c0_i32_0 = arith.constant 0 : i32
    return %arg0, %c0_i32 : i32, i32
  }
  func.func @transform_1(%arg0: i32) -> (i32, i32) {
    %c0_i32 = arith.constant 0 : i32
    %c0_i32_0 = arith.constant 0 : i32
    return %arg0, %c0_i32 : i32, i32
  }
  func.func @transform_2(%arg0: i32) -> (i32, i32) {
    %c0_i32 = arith.constant 0 : i32
    %c0_i32_0 = arith.constant 0 : i32
    %c0_i32_1 = arith.constant 0 : i32
    return %c0_i32, %c0_i32_0 : i32, i32
  }
  func.func @transform_3(%arg0: i32) -> (i32, i32) {
    %c0_i32 = arith.constant 0 : i32
    %c0_i32_0 = arith.constant 0 : i32
    %c0_i32_1 = arith.constant 0 : i32
    return %c0_i32, %c0_i32_0 : i32, i32
  }
  func.func @transform_4(%arg0: i32) -> (i32, i32) {
    %c0_i32 = arith.constant 0 : i32
    %c0_i32_0 = arith.constant 0 : i32
    %c0_i32_1 = arith.constant 0 : i32
    return %c0_i32, %c0_i32_0 : i32, i32
  }
  func.func @transform_5(%arg0: i32) -> (i32, i32) {
    %c0_i32 = arith.constant 0 : i32
    %c0_i32_0 = arith.constant 0 : i32
    %c0_i32_1 = arith.constant 0 : i32
    return %c0_i32, %c0_i32_0 : i32, i32
  }
  func.func @transform_6(%arg0: i32) -> (i32, i32) {
    %c0_i32 = arith.constant 0 : i32
    %c0_i32_0 = arith.constant 0 : i32
    %c0_i32_1 = arith.constant 0 : i32
    return %c0_i32, %c0_i32_0 : i32, i32
  }
  func.func @transform_7(%arg0: i32) -> (i32, i32) {
    %c0_i32 = arith.constant 0 : i32
    %c0_i32_0 = arith.constant 0 : i32
    %c0_i32_1 = arith.constant 0 : i32
    return %c0_i32, %c0_i32_0 : i32, i32
  }
  func.func @transform_8(%arg0: i32) -> (i32, i32) {
    %c0_i32 = arith.constant 0 : i32
    %c0_i32_0 = arith.constant 0 : i32
    %c0_i32_1 = arith.constant 0 : i32
    return %c0_i32, %c0_i32_0 : i32, i32
  }
  func.func @transform_9(%arg0: i32) -> (i32, i32) {
    %c0_i32 = arith.constant 0 : i32
    %c0_i32_0 = arith.constant 0 : i32
    return %arg0, %c0_i32 : i32, i32
  }
  func.func @transform_10(%arg0: i32) -> (i32, i32) {
    %c0_i32 = arith.constant 0 : i32
    %c0_i32_0 = arith.constant 0 : i32
    %c0_i32_1 = arith.constant 0 : i32
    return %c0_i32, %c0_i32_0 : i32, i32
  }
  func.func @transform_11(%arg0: i32) -> (i32, i32) {
    %c0_i32 = arith.constant 0 : i32
    %c0_i32_0 = arith.constant 0 : i32
    return %arg0, %c0_i32 : i32, i32
  }
  func.func @transform_12(%arg0: i32) -> (i32, i32) {
    %c0_i32 = arith.constant 0 : i32
    %c0_i32_0 = arith.constant 0 : i32
    return %arg0, %c0_i32 : i32, i32
  }
}

</mosaic_0001>

<llo_original>
// kernel: forward.10
$region0: #{forward.10}
  #allocation0 [shape = 'u32[]', space=smem, size = 0x4, offset = 0x4, fixed_abs, tag = 'smem constant byte address 0x4 - core index']
  #allocation1 [shape = 'u32[144,128]{1,0:T(1,128)}', space=vmem, size = 0x12000, scoped, tag = 'internal scratch']
  %s0 = inlined_call_operand.vmem [shape: bf16[8,8], index: 0, kind: input, shape index: {}]
  %s1 = inlined_call_operand.vmem [shape: bf16[8,1024], index: 1, kind: input, shape index: {}]
  %s2 = inlined_call_operand.vmem [shape: f32[1,1024], index: 2, kind: input, shape index: {}]
  %s3 = inlined_call_operand.vmem [shape: bf16[8,1024], index: 3, kind: output, shape index: {}]
  %s4 = sld [smem:[#allocation0]]
  $region22: #{forward.10} parent=0
    _
  %s6 = ssub.s32 1, %s4
  %s7 = scalar_select 0, %s6, %s4
  // Predicated region
  $region2: #{forward.10} parent=0 // pred_check
    _
  $region3: #{forward.10} parent=0 // pred_check_branch
    %9 = sbr.rel (0) target = $region5
  $region4: #{forward.10} parent=0 // pred_region
    _
  $region5: #{forward.10} parent=0 // pred_fallthru
    _
  // Predicated region
  $region6: #{forward.10} parent=0 // pred_check
    _
  $region7: #{forward.10} parent=0 // pred_check_branch
    %11 = sbr.rel (0) target = $region9
  $region8: #{forward.10} parent=0 // pred_region
    _
  $region9: #{forward.10} parent=0 // pred_fallthru
    _
  // Predicated region
  $region10: #{forward.10} parent=0 // pred_check
    _
  $region11: #{forward.10} parent=0 // pred_check_branch
    %13 = sbr.rel (0) target = $region13
  $region12: #{forward.10} parent=0 // pred_region
    _
  $region13: #{forward.10} parent=0 // pred_fallthru
    _
  %v15 = vld [vmem:[%s0] sm:$0xf]
  %v16 = vld [vmem:[%s1] sm:$0xff]
  %v17 = vld [vmem:[%s1 + $0x8] sm:$0xff]
  %v18 = vld [vmem:[%s1 + $0x10] sm:$0xff]
  %v19 = vld [vmem:[%s1 + $0x18] sm:$0xff]
  %v20 = vld [vmem:[%s2] sm:$0xff]
  %v22 = vlaneseq
  %v23 = vshrl.u32 %v22, 7
  %v24 = vsub.s32 0, %v23
  %v25 = vrot.slane %v20, %v24
  %v26 = vlaneseq
  %v27 = vshrl.u32 %v26, 7
  %v28 = vsub.s32 1, %v27
  %v29 = vrot.slane %v20, %v28
  %v30 = vlaneseq
  %v31 = vshrl.u32 %v30, 7
  %v32 = vsub.s32 2, %v31
  %v33 = vrot.slane %v20, %v32
  %v34 = vlaneseq
  %v35 = vshrl.u32 %v34, 7
  %v36 = vsub.s32 3, %v35
  %v37 = vrot.slane %v20, %v36
  %v38 = vlaneseq
  %v39 = vshrl.u32 %v38, 7
  %v40 = vsub.s32 4, %v39
  %v41 = vrot.slane %v20, %v40
  %v42 = vlaneseq
  %v43 = vshrl.u32 %v42, 7
  %v44 = vsub.s32 5, %v43
  %v45 = vrot.slane %v20, %v44
  %v46 = vlaneseq
  %v47 = vshrl.u32 %v46, 7
  %v48 = vsub.s32 6, %v47
  %v49 = vrot.slane %v20, %v48
  %v50 = vlaneseq
  %v51 = vshrl.u32 %v50, 7
  %v52 = vsub.s32 7, %v51
  %v53 = vrot.slane %v20, %v52
  %v66 = vunpack.c.l.b16 %v16
  %v67 = vunpack.c.h.b16 %v16
  %v68 = vunpack.c.l.b16 %v17
  %v69 = vunpack.c.h.b16 %v17
  %v70 = vunpack.c.l.b16 %v18
  %v71 = vunpack.c.h.b16 %v18
  %v72 = vunpack.c.l.b16 %v19
  %v73 = vunpack.c.h.b16 %v19
  %v74 = vpack.c.b16 %v66, %v66
  %v75 = vpack.c.b16 %v67, %v67
  %v76 = vpack.c.b16 %v68, %v68
  %v77 = vpack.c.b16 %v69, %v69
  %v78 = vpack.c.b16 %v70, %v70
  %v79 = vpack.c.b16 %v71, %v71
  %v80 = vpack.c.b16 %v72, %v72
  %v81 = vpack.c.b16 %v73, %v73
  %vm82 = vcmask 64512
  %v84 = vsel %vm82, %v15, 0
  %vm86 = vcmask 1043456
  %v88 = vsel %vm86, %v74, 0
  %v91 = vsel %vm86, %v75, 0
  %v94 = vsel %vm86, %v76, 0
  %v97 = vsel %vm86, %v77, 0
  %v100 = vsel %vm86, %v78, 0
  %v103 = vsel %vm86, %v79, 0
  %v106 = vsel %vm86, %v80, 0
  %v109 = vsel %vm86, %v81, 0
  %111 = vmatprep.subr.bf16.mxu0 0
  %112 = vmatpush1.bf16.msra.mxu0 0
  %113 = vmatprep.subr.bf16.mxu0 0
  %114 = vmatpush1.bf16.msra.mxu0 0
  %115 = vmatprep.subr.bf16.mxu0 0
  %116 = vmatpush1.bf16.msra.mxu0 0
  %117 = vmatprep.subr.bf16.mxu0 0
  %118 = vmatpush1.bf16.msra.mxu0 0
  %119 = vmatprep.subr.bf16.mxu0 0
  %120 = vmatpush1.bf16.msra.mxu0 0
  %121 = vmatprep.subr.bf16.mxu0 0
  %122 = vmatpush1.bf16.msra.mxu0 0
  %123 = vmatprep.subr.bf16.mxu0 0
  %124 = vmatpush1.bf16.msra.mxu0 0
  %125 = vmatprep.subr.bf16.mxu0 %v91
  %126 = vmatpush1.bf16.msra.mxu0 %v88
  %127 = vmatprep.subr.bf16.mxu0 0
  %128 = vmatpush2.bf16.msra.mxu0 0
  %129 = vmatprep.subr.bf16.mxu0 0
  %130 = vmatpush2.bf16.msra.mxu0 0
  %131 = vmatprep.subr.bf16.mxu0 0
  %132 = vmatpush2.bf16.msra.mxu0 0
  %133 = vmatprep.subr.bf16.mxu0 0
  %134 = vmatpush2.bf16.msra.mxu0 0
  %135 = vmatprep.subr.bf16.mxu0 0
  %136 = vmatpush2.bf16.msra.mxu0 0
  %137 = vmatprep.subr.bf16.mxu0 0
  %138 = vmatpush2.bf16.msra.mxu0 0
  %139 = vmatprep.subr.bf16.mxu0 0
  %140 = vmatpush2.bf16.msra.mxu0 0
  %141 = vmatprep.subr.bf16.mxu0 0
  %142 = vmatpush2.bf16.msra.mxu0 0
  %143 = vmatprep.mubr.bf16.mxu0 0
  %144 = vmatmul.mubr.bf16.gmra.mxu0 %v84
  %v145 = vpop.f32.mrf.mxu0
  %v146 = vadd.f32 %v25, %v145
  %v147 = vpop.f32.mrf.mxu0
  %v148 = vadd.f32 %v29, %v147
  %v149 = vpop.f32.mrf.mxu0
  %v150 = vpop.f32.mrf.mxu0
  %151 = vdwg.mxu0
  %152 = vmatprep.subr.bf16.mxu0 0
  %153 = vmatpush1.bf16.msra.mxu0 0
  %154 = vmatprep.subr.bf16.mxu0 0
  %155 = vmatpush1.bf16.msra.mxu0 0
  %156 = vmatprep.subr.bf16.mxu0 0
  %157 = vmatpush1.bf16.msra.mxu0 0
  %158 = vmatprep.subr.bf16.mxu0 0
  %159 = vmatpush1.bf16.msra.mxu0 0
  %160 = vmatprep.subr.bf16.mxu0 0
  %161 = vmatpush1.bf16.msra.mxu0 0
  %162 = vmatprep.subr.bf16.mxu0 0
  %163 = vmatpush1.bf16.msra.mxu0 0
  %164 = vmatprep.subr.bf16.mxu0 0
  %165 = vmatpush1.bf16.msra.mxu0 0
  %166 = vmatprep.subr.bf16.mxu0 %v97
  %167 = vmatpush1.bf16.msra.mxu0 %v94
  %168 = vmatprep.subr.bf16.mxu0 0
  %169 = vmatpush2.bf16.msra.mxu0 0
  %170 = vmatprep.subr.bf16.mxu0 0
  %171 = vmatpush2.bf16.msra.mxu0 0
  %172 = vmatprep.subr.bf16.mxu0 0
  %173 = vmatpush2.bf16.msra.mxu0 0
  %174 = vmatprep.subr.bf16.mxu0 0
  %175 = vmatpush2.bf16.msra.mxu0 0
  %176 = vmatprep.subr.bf16.mxu0 0
  %177 = vmatpush2.bf16.msra.mxu0 0
  %178 = vmatprep.subr.bf16.mxu0 0
  %179 = vmatpush2.bf16.msra.mxu0 0
  %180 = vmatprep.subr.bf16.mxu0 0
  %181 = vmatpush2.bf16.msra.mxu0 0
  %182 = vmatprep.subr.bf16.mxu0 0
  %183 = vmatpush2.bf16.msra.mxu0 0
  %184 = vmatprep.mubr.bf16.mxu0 0
  %185 = vmatmul.mubr.bf16.gmra.mxu0 %v84
  %v186 = vpop.f32.mrf.mxu0
  %v187 = vadd.f32 %v33, %v186
  %v188 = vpop.f32.mrf.mxu0
  %v189 = vadd.f32 %v37, %v188
  %v190 = vpop.f32.mrf.mxu0
  %v191 = vpop.f32.mrf.mxu0
  %192 = vdwg.mxu0
  %193 = vmatprep.subr.bf16.mxu0 0
  %194 = vmatpush1.bf16.msra.mxu0 0
  %195 = vmatprep.subr.bf16.mxu0 0
  %196 = vmatpush1.bf16.msra.mxu0 0
  %197 = vmatprep.subr.bf16.mxu0 0
  %198 = vmatpush1.bf16.msra.mxu0 0
  %199 = vmatprep.subr.bf16.mxu0 0
  %200 = vmatpush1.bf16.msra.mxu0 0
  %201 = vmatprep.subr.bf16.mxu0 0
  %202 = vmatpush1.bf16.msra.mxu0 0
  %203 = vmatprep.subr.bf16.mxu0 0
  %204 = vmatpush1.bf16.msra.mxu0 0
  %205 = vmatprep.subr.bf16.mxu0 0
  %206 = vmatpush1.bf16.msra.mxu0 0
  %207 = vmatprep.subr.bf16.mxu0 %v103
  %208 = vmatpush1.bf16.msra.mxu0 %v100
  %209 = vmatprep.subr.bf16.mxu0 0
  %210 = vmatpush2.bf16.msra.mxu0 0
  %211 = vmatprep.subr.bf16.mxu0 0
  %212 = vmatpush2.bf16.msra.mxu0 0
  %213 = vmatprep.subr.bf16.mxu0 0
  %214 = vmatpush2.bf16.msra.mxu0 0
  %215 = vmatprep.subr.bf16.mxu0 0
  %216 = vmatpush2.bf16.msra.mxu0 0
  %217 = vmatprep.subr.bf16.mxu0 0
  %218 = vmatpush2.bf16.msra.mxu0 0
  %219 = vmatprep.subr.bf16.mxu0 0
  %220 = vmatpush2.bf16.msra.mxu0 0
  %221 = vmatprep.subr.bf16.mxu0 0
  %222 = vmatpush2.bf16.msra.mxu0 0
  %223 = vmatprep.subr.bf16.mxu0 0
  %224 = vmatpush2.bf16.msra.mxu0 0
  %225 = vmatprep.mubr.bf16.mxu0 0
  %226 = vmatmul.mubr.bf16.gmra.mxu0 %v84
  %v227 = vpop.f32.mrf.mxu0
  %v228 = vadd.f32 %v41, %v227
  %v229 = vpop.f32.mrf.mxu0
  %v230 = vadd.f32 %v45, %v229
  %v231 = vpop.f32.mrf.mxu0
  %v232 = vpop.f32.mrf.mxu0
  %233 = vdwg.mxu0
  %234 = vmatprep.subr.bf16.mxu0 0
  %235 = vmatpush1.bf16.msra.mxu0 0
  %236 = vmatprep.subr.bf16.mxu0 0
  %237 = vmatpush1.bf16.msra.mxu0 0
  %238 = vmatprep.subr.bf16.mxu0 0
  %239 = vmatpush1.bf16.msra.mxu0 0
  %240 = vmatprep.subr.bf16.mxu0 0
  %241 = vmatpush1.bf16.msra.mxu0 0
  %242 = vmatprep.subr.bf16.mxu0 0
  %243 = vmatpush1.bf16.msra.mxu0 0
  %244 = vmatprep.subr.bf16.mxu0 0
  %245 = vmatpush1.bf16.msra.mxu0 0
  %246 = vmatprep.subr.bf16.mxu0 0
  %247 = vmatpush1.bf16.msra.mxu0 0
  %248 = vmatprep.subr.bf16.mxu0 %v109
  %249 = vmatpush1.bf16.msra.mxu0 %v106
  %250 = vmatprep.subr.bf16.mxu0 0
  %251 = vmatpush2.bf16.msra.mxu0 0
  %252 = vmatprep.subr.bf16.mxu0 0
  %253 = vmatpush2.bf16.msra.mxu0 0
  %254 = vmatprep.subr.bf16.mxu0 0
  %255 = vmatpush2.bf16.msra.mxu0 0
  %256 = vmatprep.subr.bf16.mxu0 0
  %257 = vmatpush2.bf16.msra.mxu0 0
  %258 = vmatprep.subr.bf16.mxu0 0
  %259 = vmatpush2.bf16.msra.mxu0 0
  %260 = vmatprep.subr.bf16.mxu0 0
  %261 = vmatpush2.bf16.msra.mxu0 0
  %262 = vmatprep.subr.bf16.mxu0 0
  %263 = vmatpush2.bf16.msra.mxu0 0
  %264 = vmatprep.subr.bf16.mxu0 0
  %265 = vmatpush2.bf16.msra.mxu0 0
  %266 = vmatprep.mubr.bf16.mxu0 0
  %267 = vmatmul.mubr.bf16.gmra.mxu0 %v84
  %v268 = vpop.f32.mrf.mxu0
  %v269 = vadd.f32 %v49, %v268
  %v270 = vpop.f32.mrf.mxu0
  %v271 = vadd.f32 %v53, %v270
  %v272 = vpop.f32.mrf.mxu0
  %v273 = vpop.f32.mrf.mxu0
  %274 = vdwg.mxu0
  %v275 = vpack.c.bf16 %v146, %v146
  %v276 = vpack.c.bf16 %v148, %v148
  %v277 = vpack.c.bf16 %v187, %v187
  %v278 = vpack.c.bf16 %v189, %v189
  %v279 = vpack.c.bf16 %v228, %v228
  %v280 = vpack.c.bf16 %v230, %v230
  %v281 = vpack.c.bf16 %v269, %v269
  %v282 = vpack.c.bf16 %v271, %v271
  %v291 = vunpack.c.l.b16 %v275
  %v292 = vunpack.c.l.b16 %v276
  %v293 = vunpack.c.l.b16 %v277
  %v294 = vunpack.c.l.b16 %v278
  %v295 = vunpack.c.l.b16 %v279
  %v296 = vunpack.c.l.b16 %v280
  %v297 = vunpack.c.l.b16 %v281
  %v298 = vunpack.c.l.b16 %v282
  %v299 = vpack.c.b16 %v292, %v291
  %v300 = vpack.c.b16 %v294, %v293
  %v301 = vpack.c.b16 %v296, %v295
  %v302 = vpack.c.b16 %v298, %v297
  %307 = vst [vmem:[%s3] sm:$0xff] %v299
  %308 = vst [vmem:[%s3 + $0x8] sm:$0xff] %v300
  %309 = vst [vmem:[%s3 + $0x10] sm:$0xff] %v301
  %310 = vst [vmem:[%s3 + $0x18] sm:$0xff] %v302
  // Predicated region
  $region14: #{forward.10} parent=0 // pred_check
    _
  $region15: #{forward.10} parent=0 // pred_check_branch
    %312 = sbr.rel (0) target = $region17
  $region16: #{forward.10} parent=0 // pred_region
    _
  $region17: #{forward.10} parent=0 // pred_fallthru
    _
  // Predicated region
  $region18: #{forward.10} parent=0 // pred_check
    _
  $region19: #{forward.10} parent=0 // pred_check_branch
    %314 = sbr.rel (0) target = $region21
  $region20: #{forward.10} parent=0 // pred_region
    _
  $region21: #{forward.10} parent=0 // pred_fallthru
    _

// kernel: forward.12
$region0: #{forward.12}
  #allocation0 [shape = 'u32[]', space=smem, size = 0x4, offset = 0x4, fixed_abs, tag = 'smem constant byte address 0x4 - core index']
  #allocation1 [shape = 'u32[144,128]{1,0:T(1,128)}', space=vmem, size = 0x12000, scoped, tag = 'internal scratch']
  %s0 = inlined_call_operand.vmem [shape: bf16[8,512], index: 0, kind: input, shape index: {}]
  %s1 = inlined_call_operand.vmem [shape: bf16[512,256], index: 1, kind: input, shape index: {}]
  %s2 = inlined_call_operand.vmem [shape: f32[1,256], index: 2, kind: input, shape index: {}]
  %s3 = inlined_call_operand.vmem [shape: bf16[8,256], index: 3, kind: output, shape index: {}]
  %s4 = sld [smem:[#allocation0]]
  $region22: #{forward.12} parent=0
    _
  %s6 = ssub.s32 1, %s4
  %s7 = scalar_select 0, %s6, %s4
  // Predicated region
  $region2: #{forward.12} parent=0 // pred_check
    _
  $region3: #{forward.12} parent=0 // pred_check_branch
    %9 = sbr.rel (0) target = $region5
  $region4: #{forward.12} parent=0 // pred_region
    _
  $region5: #{forward.12} parent=0 // pred_fallthru
    _
  // Predicated region
  $region6: #{forward.12} parent=0 // pred_check
    _
  $region7: #{forward.12} parent=0 // pred_check_branch
    %11 = sbr.rel (0) target = $region9
  $region8: #{forward.12} parent=0 // pred_region
    _
  $region9: #{forward.12} parent=0 // pred_fallthru
    _
  // Predicated region
  $region10: #{forward.12} parent=0 // pred_check
    _
  $region11: #{forward.12} parent=0 // pred_check_branch
    %13 = sbr.rel (0) target = $region13
  $region12: #{forward.12} parent=0 // pred_region
    _
  $region13: #{forward.12} parent=0 // pred_fallthru
    _
  %v14 = vld [vmem:[%s0] sm:$0xff]
  %v15 = vld [vmem:[%s0 + $0x8] sm:$0xff]
  %v16 = vld [vmem:[%s1] sm:$0xff]
  %v17 = vld [vmem:[%s1 + $0x8] sm:$0xff]
  %v18 = vld [vmem:[%s1 + $0x10] sm:$0xff]
  %v19 = vld [vmem:[%s1 + $0x18] sm:$0xff]
  %v20 = vld [vmem:[%s1 + $0x20] sm:$0xff]
  %v21 = vld [vmem:[%s1 + $0x28] sm:$0xff]
  %v22 = vld [vmem:[%s1 + $0x30] sm:$0xff]
  %v23 = vld [vmem:[%s1 + $0x38] sm:$0xff]
  %v24 = vld [vmem:[%s1 + $0x40] sm:$0xff]
  %v25 = vld [vmem:[%s1 + $0x48] sm:$0xff]
  %v26 = vld [vmem:[%s1 + $0x50] sm:$0xff]
  %v27 = vld [vmem:[%s1 + $0x58] sm:$0xff]
  %v28 = vld [vmem:[%s1 + $0x60] sm:$0xff]
  %v29 = vld [vmem:[%s1 + $0x68] sm:$0xff]
  %v30 = vld [vmem:[%s1 + $0x70] sm:$0xff]
  %v31 = vld [vmem:[%s1 + $0x78] sm:$0xff]
  %v32 = vld [vmem:[%s1 + $0x80] sm:$0xff]
  %v33 = vld [vmem:[%s1 + $0x88] sm:$0xff]
  %v34 = vld [vmem:[%s1 + $0x90] sm:$0xff]
  %v35 = vld [vmem:[%s1 + $0x98] sm:$0xff]
  %v36 = vld [vmem:[%s1 + $0xa0] sm:$0xff]
  %v37 = vld [vmem:[%s1 + $0xa8] sm:$0xff]
  %v38 = vld [vmem:[%s1 + $0xb0] sm:$0xff]
  %v39 = vld [vmem:[%s1 + $0xb8] sm:$0xff]
  %v40 = vld [vmem:[%s1 + $0xc0] sm:$0xff]
  %v41 = vld [vmem:[%s1 + $0xc8] sm:$0xff]
  %v42 = vld [vmem:[%s1 + $0xd0] sm:$0xff]
  %v43 = vld [vmem:[%s1 + $0xd8] sm:$0xff]
  %v44 = vld [vmem:[%s1 + $0xe0] sm:$0xff]
  %v45 = vld [vmem:[%s1 + $0xe8] sm:$0xff]
  %v46 = vld [vmem:[%s1 + $0xf0] sm:$0xff]
  %v47 = vld [vmem:[%s1 + $0xf8] sm:$0xff]
  %v48 = vld [vmem:[%s1 + $0x100] sm:$0xff]
  %v49 = vld [vmem:[%s1 + $0x108] sm:$0xff]
  %v50 = vld [vmem:[%s1 + $0x110] sm:$0xff]
  %v51 = vld [vmem:[%s1 + $0x118] sm:$0xff]
  %v52 = vld [vmem:[%s1 + $0x120] sm:$0xff]
  %v53 = vld [vmem:[%s1 + $0x128] sm:$0xff]
  %v54 = vld [vmem:[%s1 + $0x130] sm:$0xff]
  %v55 = vld [vmem:[%s1 + $0x138] sm:$0xff]
  %v56 = vld [vmem:[%s1 + $0x140] sm:$0xff]
  %v57 = vld [vmem:[%s1 + $0x148] sm:$0xff]
  %v58 = vld [vmem:[%s1 + $0x150] sm:$0xff]
  %v59 = vld [vmem:[%s1 + $0x158] sm:$0xff]
  %v60 = vld [vmem:[%s1 + $0x160] sm:$0xff]
  %v61 = vld [vmem:[%s1 + $0x168] sm:$0xff]
  %v62 = vld [vmem:[%s1 + $0x170] sm:$0xff]
  %v63 = vld [vmem:[%s1 + $0x178] sm:$0xff]
  %v64 = vld [vmem:[%s1 + $0x180] sm:$0xff]
  %v65 = vld [vmem:[%s1 + $0x188] sm:$0xff]
  %v66 = vld [vmem:[%s1 + $0x190] sm:$0xff]
  %v67 = vld [vmem:[%s1 + $0x198] sm:$0xff]
  %v68 = vld [vmem:[%s1 + $0x1a0] sm:$0xff]
  %v69 = vld [vmem:[%s1 + $0x1a8] sm:$0xff]
  %v70 = vld [vmem:[%s1 + $0x1b0] sm:$0xff]
  %v71 = vld [vmem:[%s1 + $0x1b8] sm:$0xff]
  %v72 = vld [vmem:[%s1 + $0x1c0] sm:$0xff]
  %v73 = vld [vmem:[%s1 + $0x1c8] sm:$0xff]
  %v74 = vld [vmem:[%s1 + $0x1d0] sm:$0xff]
  %v75 = vld [vmem:[%s1 + $0x1d8] sm:$0xff]
  %v76 = vld [vmem:[%s1 + $0x1e0] sm:$0xff]
  %v77 = vld [vmem:[%s1 + $0x1e8] sm:$0xff]
  %v78 = vld [vmem:[%s1 + $0x1f0] sm:$0xff]
  %v79 = vld [vmem:[%s1 + $0x1f8] sm:$0xff]
  %v80 = vld [vmem:[%s2] sm:$0x3]
  %v82 = vlaneseq
  %v83 = vshrl.u32 %v82, 7
  %v84 = vsub.s32 0, %v83
  %v85 = vrot.slane %v80, %v84
  %v86 = vlaneseq
  %v87 = vshrl.u32 %v86, 7
  %v88 = vsub.s32 1, %v87
  %v89 = vrot.slane %v80, %v88
  %v94 = vunpack.c.l.b16 %v14
  %v95 = vunpack.c.h.b16 %v14
  %v96 = vunpack.c.l.b16 %v15
  %v97 = vunpack.c.h.b16 %v15
  %v98 = vpack.c.b16 %v94, %v94
  %v99 = vpack.c.b16 %v95, %v95
  %v100 = vpack.c.b16 %v96, %v96
  %v101 = vpack.c.b16 %v97, %v97
  %v170 = vunpack.c.l.b16 %v16
  %v171 = vunpack.c.h.b16 %v16
  %v172 = vunpack.c.l.b16 %v17
  %v173 = vunpack.c.h.b16 %v17
  %v174 = vunpack.c.l.b16 %v18
  %v175 = vunpack.c.h.b16 %v18
  %v176 = vunpack.c.l.b16 %v19
  %v177 = vunpack.c.h.b16 %v19
  %v178 = vunpack.c.l.b16 %v20
  %v179 = vunpack.c.h.b16 %v20
  %v180 = vunpack.c.l.b16 %v21
  %v181 = vunpack.c.h.b16 %v21
  %v182 = vunpack.c.l.b16 %v22
  %v183 = vunpack.c.h.b16 %v22
  %v184 = vunpack.c.l.b16 %v23
  %v185 = vunpack.c.h.b16 %v23
  %v186 = vunpack.c.l.b16 %v24
  %v187 = vunpack.c.h.b16 %v24
  %v188 = vunpack.c.l.b16 %v25
  %v189 = vunpack.c.h.b16 %v25
  %v190 = vunpack.c.l.b16 %v26
  %v191 = vunpack.c.h.b16 %v26
  %v192 = vunpack.c.l.b16 %v27
  %v193 = vunpack.c.h.b16 %v27
  %v194 = vunpack.c.l.b16 %v28
  %v195 = vunpack.c.h.b16 %v28
  %v196 = vunpack.c.l.b16 %v29
  %v197 = vunpack.c.h.b16 %v29
  %v198 = vunpack.c.l.b16 %v30
  %v199 = vunpack.c.h.b16 %v30
  %v200 = vunpack.c.l.b16 %v31
  %v201 = vunpack.c.h.b16 %v31
  %v202 = vunpack.c.l.b16 %v32
  %v203 = vunpack.c.h.b16 %v32
  %v204 = vunpack.c.l.b16 %v33
  %v205 = vunpack.c.h.b16 %v33
  %v206 = vunpack.c.l.b16 %v34
  %v207 = vunpack.c.h.b16 %v34
  %v208 = vunpack.c.l.b16 %v35
  %v209 = vunpack.c.h.b16 %v35
  %v210 = vunpack.c.l.b16 %v36
  %v211 = vunpack.c.h.b16 %v36
  %v212 = vunpack.c.l.b16 %v37
  %v213 = vunpack.c.h.b16 %v37
  %v214 = vunpack.c.l.b16 %v38
  %v215 = vunpack.c.h.b16 %v38
  %v216 = vunpack.c.l.b16 %v39
  %v217 = vunpack.c.h.b16 %v39
  %v218 = vunpack.c.l.b16 %v40
  %v219 = vunpack.c.h.b16 %v40
  %v220 = vunpack.c.l.b16 %v41
  %v221 = vunpack.c.h.b16 %v41
  %v222 = vunpack.c.l.b16 %v42
  %v223 = vunpack.c.h.b16 %v42
  %v224 = vunpack.c.l.b16 %v43
  %v225 = vunpack.c.h.b16 %v43
  %v226 = vunpack.c.l.b16 %v44
  %v227 = vunpack.c.h.b16 %v44
  %v228 = vunpack.c.l.b16 %v45
  %v229 = vunpack.c.h.b16 %v45
  %v230 = vunpack.c.l.b16 %v46
  %v231 = vunpack.c.h.b16 %v46
  %v232 = vunpack.c.l.b16 %v47
  %v233 = vunpack.c.h.b16 %v47
  %v234 = vunpack.c.l.b16 %v48
  %v235 = vunpack.c.h.b16 %v48
  %v236 = vunpack.c.l.b16 %v49
  %v237 = vunpack.c.h.b16 %v49
  %v238 = vunpack.c.l.b16 %v50
  %v239 = vunpack.c.h.b16 %v50
  %v240 = vunpack.c.l.b16 %v51
  %v241 = vunpack.c.h.b16 %v51
  %v242 = vunpack.c.l.b16 %v52
  %v243 = vunpack.c.h.b16 %v52
  %v244 = vunpack.c.l.b16 %v53
  %v245 = vunpack.c.h.b16 %v53
  %v246 = vunpack.c.l.b16 %v54
  %v247 = vunpack.c.h.b16 %v54
  %v248 = vunpack.c.l.b16 %v55
  %v249 = vunpack.c.h.b16 %v55
  %v250 = vunpack.c.l.b16 %v56
  %v251 = vunpack.c.h.b16 %v56
  %v252 = vunpack.c.l.b16 %v57
  %v253 = vunpack.c.h.b16 %v57
  %v254 = vunpack.c.l.b16 %v58
  %v255 = vunpack.c.h.b16 %v58
  %v256 = vunpack.c.l.b16 %v59
  %v257 = vunpack.c.h.b16 %v59
  %v258 = vunpack.c.l.b16 %v60
  %v259 = vunpack.c.h.b16 %v60
  %v260 = vunpack.c.l.b16 %v61
  %v261 = vunpack.c.h.b16 %v61
  %v262 = vunpack.c.l.b16 %v62
  %v263 = vunpack.c.h.b16 %v62
  %v264 = vunpack.c.l.b16 %v63
  %v265 = vunpack.c.h.b16 %v63
  %v266 = vunpack.c.l.b16 %v64
  %v267 = vunpack.c.h.b16 %v64
  %v268 = vunpack.c.l.b16 %v65
  %v269 = vunpack.c.h.b16 %v65
  %v270 = vunpack.c.l.b16 %v66
  %v271 = vunpack.c.h.b16 %v66
  %v272 = vunpack.c.l.b16 %v67
  %v273 = vunpack.c.h.b16 %v67
  %v274 = vunpack.c.l.b16 %v68
  %v275 = vunpack.c.h.b16 %v68
  %v276 = vunpack.c.l.b16 %v69
  %v277 = vunpack.c.h.b16 %v69
  %v278 = vunpack.c.l.b16 %v70
  %v279 = vunpack.c.h.b16 %v70
  %v280 = vunpack.c.l.b16 %v71
  %v281 = vunpack.c.h.b16 %v71
  %v282 = vunpack.c.l.b16 %v72
  %v283 = vunpack.c.h.b16 %v72
  %v284 = vunpack.c.l.b16 %v73
  %v285 = vunpack.c.h.b16 %v73
  %v286 = vunpack.c.l.b16 %v74
  %v287 = vunpack.c.h.b16 %v74
  %v288 = vunpack.c.l.b16 %v75
  %v289 = vunpack.c.h.b16 %v75
  %v290 = vunpack.c.l.b16 %v76
  %v291 = vunpack.c.h.b16 %v76
  %v292 = vunpack.c.l.b16 %v77
  %v293 = vunpack.c.h.b16 %v77
  %v294 = vunpack.c.l.b16 %v78
  %v295 = vunpack.c.h.b16 %v78
  %v296 = vunpack.c.l.b16 %v79
  %v297 = vunpack.c.h.b16 %v79
  %v298 = vpack.c.b16 %v172, %v170
  %v299 = vpack.c.b16 %v173, %v171
  %v300 = vpack.c.b16 %v176, %v174
  %v301 = vpack.c.b16 %v177, %v175
  %v302 = vpack.c.b16 %v180, %v178
  %v303 = vpack.c.b16 %v181, %v179
  %v304 = vpack.c.b16 %v184, %v182
  %v305 = vpack.c.b16 %v185, %v183
  %v306 = vpack.c.b16 %v188, %v186
  %v307 = vpack.c.b16 %v189, %v187
  %v308 = vpack.c.b16 %v192, %v190
  %v309 = vpack.c.b16 %v193, %v191
  %v310 = vpack.c.b16 %v196, %v194
  %v311 = vpack.c.b16 %v197, %v195
  %v312 = vpack.c.b16 %v200, %v198
  %v313 = vpack.c.b16 %v201, %v199
  %v314 = vpack.c.b16 %v204, %v202
  %v315 = vpack.c.b16 %v205, %v203
  %v316 = vpack.c.b16 %v208, %v206
  %v317 = vpack.c.b16 %v209, %v207
  %v318 = vpack.c.b16 %v212, %v210
  %v319 = vpack.c.b16 %v213, %v211
  %v320 = vpack.c.b16 %v216, %v214
  %v321 = vpack.c.b16 %v217, %v215
  %v322 = vpack.c.b16 %v220, %v218
  %v323 = vpack.c.b16 %v221, %v219
  %v324 = vpack.c.b16 %v224, %v222
  %v325 = vpack.c.b16 %v225, %v223
  %v326 = vpack.c.b16 %v228, %v226
  %v327 = vpack.c.b16 %v229, %v227
  %v328 = vpack.c.b16 %v232, %v230
  %v329 = vpack.c.b16 %v233, %v231
  %v330 = vpack.c.b16 %v236, %v234
  %v331 = vpack.c.b16 %v237, %v235
  %v332 = vpack.c.b16 %v240, %v238
  %v333 = vpack.c.b16 %v241, %v239
  %v334 = vpack.c.b16 %v244, %v242
  %v335 = vpack.c.b16 %v245, %v243
  %v336 = vpack.c.b16 %v248, %v246
  %v337 = vpack.c.b16 %v249, %v247
  %v338 = vpack.c.b16 %v252, %v250
  %v339 = vpack.c.b16 %v253, %v251
  %v340 = vpack.c.b16 %v256, %v254
  %v341 = vpack.c.b16 %v257, %v255
  %v342 = vpack.c.b16 %v260, %v258
  %v343 = vpack.c.b16 %v261, %v259
  %v344 = vpack.c.b16 %v264, %v262
  %v345 = vpack.c.b16 %v265, %v263
  %v346 = vpack.c.b16 %v268, %v266
  %v347 = vpack.c.b16 %v269, %v267
  %v348 = vpack.c.b16 %v272, %v270
  %v349 = vpack.c.b16 %v273, %v271
  %v350 = vpack.c.b16 %v276, %v274
  %v351 = vpack.c.b16 %v277, %v275
  %v352 = vpack.c.b16 %v280, %v278
  %v353 = vpack.c.b16 %v281, %v279
  %v354 = vpack.c.b16 %v284, %v282
  %v355 = vpack.c.b16 %v285, %v283
  %v356 = vpack.c.b16 %v288, %v286
  %v357 = vpack.c.b16 %v289, %v287
  %v358 = vpack.c.b16 %v292, %v290
  %v359 = vpack.c.b16 %v293, %v291
  %v360 = vpack.c.b16 %v296, %v294
  %v361 = vpack.c.b16 %v297, %v295
  %426 = vmatprep.subr.bf16.mxu0 %v313
  %427 = vmatpush1.bf16.msra.mxu0 %v312
  %428 = vmatprep.subr.bf16.mxu0 %v311
  %429 = vmatpush1.bf16.msra.mxu0 %v310
  %430 = vmatprep.subr.bf16.mxu0 %v309
  %431 = vmatpush1.bf16.msra.mxu0 %v308
  %432 = vmatprep.subr.bf16.mxu0 %v307
  %433 = vmatpush1.bf16.msra.mxu0 %v306
  %434 = vmatprep.subr.bf16.mxu0 %v305
  %435 = vmatpush1.bf16.msra.mxu0 %v304
  %436 = vmatprep.subr.bf16.mxu0 %v303
  %437 = vmatpush1.bf16.msra.mxu0 %v302
  %438 = vmatprep.subr.bf16.mxu0 %v301
  %439 = vmatpush1.bf16.msra.mxu0 %v300
  %440 = vmatprep.subr.bf16.mxu0 %v299
  %441 = vmatpush1.bf16.msra.mxu0 %v298
  %442 = vmatprep.subr.bf16.mxu0 %v329
  %443 = vmatpush2.bf16.msra.mxu0 %v328
  %444 = vmatprep.subr.bf16.mxu0 %v327
  %445 = vmatpush2.bf16.msra.mxu0 %v326
  %446 = vmatprep.subr.bf16.mxu0 %v325
  %447 = vmatpush2.bf16.msra.mxu0 %v324
  %448 = vmatprep.subr.bf16.mxu0 %v323
  %449 = vmatpush2.bf16.msra.mxu0 %v322
  %450 = vmatprep.subr.bf16.mxu0 %v321
  %451 = vmatpush2.bf16.msra.mxu0 %v320
  %452 = vmatprep.subr.bf16.mxu0 %v319
  %453 = vmatpush2.bf16.msra.mxu0 %v318
  %454 = vmatprep.subr.bf16.mxu0 %v317
  %455 = vmatpush2.bf16.msra.mxu0 %v316
  %456 = vmatprep.subr.bf16.mxu0 %v315
  %457 = vmatpush2.bf16.msra.mxu0 %v314
  %458 = vmatprep.mubr.bf16.mxu0 %v99
  %459 = vmatmul.mubr.bf16.gmra.mxu0 %v98
  %v460 = vpop.f32.mrf.mxu0
  %v461 = vadd.f32 %v85, %v460
  %v462 = vpop.f32.mrf.mxu0
  %v463 = vadd.f32 %v89, %v462
  %v464 = vpop.f32.mrf.mxu0
  %v465 = vpop.f32.mrf.mxu0
  %466 = vdwg.mxu0
  %467 = vmatprep.subr.bf16.mxu0 %v345
  %468 = vmatpush1.bf16.msra.mxu0 %v344
  %469 = vmatprep.subr.bf16.mxu0 %v343
  %470 = vmatpush1.bf16.msra.mxu0 %v342
  %471 = vmatprep.subr.bf16.mxu0 %v341
  %472 = vmatpush1.bf16.msra.mxu0 %v340
  %473 = vmatprep.subr.bf16.mxu0 %v339
  %474 = vmatpush1.bf16.msra.mxu0 %v338
  %475 = vmatprep.subr.bf16.mxu0 %v337
  %476 = vmatpush1.bf16.msra.mxu0 %v336
  %477 = vmatprep.subr.bf16.mxu0 %v335
  %478 = vmatpush1.bf16.msra.mxu0 %v334
  %479 = vmatprep.subr.bf16.mxu0 %v333
  %480 = vmatpush1.bf16.msra.mxu0 %v332
  %481 = vmatprep.subr.bf16.mxu0 %v331
  %482 = vmatpush1.bf16.msra.mxu0 %v330
  %483 = vmatprep.subr.bf16.mxu0 %v361
  %484 = vmatpush2.bf16.msra.mxu0 %v360
  %485 = vmatprep.subr.bf16.mxu0 %v359
  %486 = vmatpush2.bf16.msra.mxu0 %v358
  %487 = vmatprep.subr.bf16.mxu0 %v357
  %488 = vmatpush2.bf16.msra.mxu0 %v356
  %489 = vmatprep.subr.bf16.mxu0 %v355
  %490 = vmatpush2.bf16.msra.mxu0 %v354
  %491 = vmatprep.subr.bf16.mxu0 %v353
  %492 = vmatpush2.bf16.msra.mxu0 %v352
  %493 = vmatprep.subr.bf16.mxu0 %v351
  %494 = vmatpush2.bf16.msra.mxu0 %v350
  %495 = vmatprep.subr.bf16.mxu0 %v349
  %496 = vmatpush2.bf16.msra.mxu0 %v348
  %497 = vmatprep.subr.bf16.mxu0 %v347
  %498 = vmatpush2.bf16.msra.mxu0 %v346
  %499 = vmatprep.mubr.bf16.mxu0 %v101
  %500 = vmatmul.mubr.bf16.gmra.mxu0 %v100
  %v501 = vpop.f32.mrf.mxu0
  %v502 = vadd.f32 %v461, %v501
  %v503 = vpop.f32.mrf.mxu0
  %v504 = vadd.f32 %v463, %v503
  %v505 = vpop.f32.mrf.mxu0
  %v506 = vpop.f32.mrf.mxu0
  %507 = vdwg.mxu0
  %vm508 = vcmp.ge.f32.partialorder %v502, 0.0
  %vm509 = vcmp.ge.f32.partialorder %v504, 0.0
  %v510 = vmul.f32 %v502, 0.1
  %v511 = vmul.f32 %v504, 0.1
  %v512 = vsel %vm508, %v502, %v510
  %v513 = vsel %vm509, %v504, %v511
  %v514 = vpack.c.bf16 %v512, %v512
  %v515 = vpack.c.bf16 %v513, %v513
  %v518 = vunpack.c.l.b16 %v514
  %v519 = vunpack.c.l.b16 %v515
  %v520 = vpack.c.b16 %v519, %v518
  %522 = vst [vmem:[%s3] sm:$0xff] %v520
  // Predicated region
  $region14: #{forward.12} parent=0 // pred_check
    _
  $region15: #{forward.12} parent=0 // pred_check_branch
    %524 = sbr.rel (0) target = $region17
  $region16: #{forward.12} parent=0 // pred_region
    _
  $region17: #{forward.12} parent=0 // pred_fallthru
    _
  // Predicated region
  $region18: #{forward.12} parent=0 // pred_check
    _
  $region19: #{forward.12} parent=0 // pred_check_branch
    %526 = sbr.rel (0) target = $region21
  $region20: #{forward.12} parent=0 // pred_region
    _
  $region21: #{forward.12} parent=0 // pred_fallthru
    _

// kernel: forward.9
$region0: #{forward.9}
  #allocation0 [shape = 'u32[]', space=smem, size = 0x4, offset = 0x4, fixed_abs, tag = 'smem constant byte address 0x4 - core index']
  #allocation1 [shape = 'u32[144,128]{1,0:T(1,128)}', space=vmem, size = 0x12000, scoped, tag = 'internal scratch']
  %s0 = inlined_call_operand.vmem [shape: bf16[32,8], index: 0, kind: input, shape index: {}]
  %s1 = inlined_call_operand.vmem [shape: bf16[8,512], index: 1, kind: input, shape index: {}]
  %s2 = inlined_call_operand.vmem [shape: f32[1,512], index: 2, kind: input, shape index: {}]
  %s3 = inlined_call_operand.vmem [shape: bf16[32,512], index: 3, kind: output, shape index: {}]
  %s4 = sld [smem:[#allocation0]]
  $region22: #{forward.9} parent=0
    _
  %s6 = ssub.s32 1, %s4
  %s7 = scalar_select 0, %s6, %s4
  // Predicated region
  $region2: #{forward.9} parent=0 // pred_check
    _
  $region3: #{forward.9} parent=0 // pred_check_branch
    %9 = sbr.rel (0) target = $region5
  $region4: #{forward.9} parent=0 // pred_region
    _
  $region5: #{forward.9} parent=0 // pred_fallthru
    _
  // Predicated region
  $region6: #{forward.9} parent=0 // pred_check
    _
  $region7: #{forward.9} parent=0 // pred_check_branch
    %11 = sbr.rel (0) target = $region9
  $region8: #{forward.9} parent=0 // pred_region
    _
  $region9: #{forward.9} parent=0 // pred_fallthru
    _
  // Predicated region
  $region10: #{forward.9} parent=0 // pred_check
    _
  $region11: #{forward.9} parent=0 // pred_check_branch
    %13 = sbr.rel (0) target = $region13
  $region12: #{forward.9} parent=0 // pred_region
    _
  $region13: #{forward.9} parent=0 // pred_fallthru
    _
  %v15 = vld [vmem:[%s0] sm:$0xf]
  %v16 = vld [vmem:[%s0 + $0x4] sm:$0xf]
  %v17 = vld [vmem:[%s0 + $0x8] sm:$0xf]
  %v18 = vld [vmem:[%s0 + $0xc] sm:$0xf]
  %v19 = vld [vmem:[%s1] sm:$0xff]
  %v20 = vld [vmem:[%s1 + $0x8] sm:$0xff]
  %v21 = vld [vmem:[%s2] sm:$0xf]
  %v23 = vlaneseq
  %v24 = vshrl.u32 %v23, 7
  %v25 = vsub.s32 0, %v24
  %v26 = vrot.slane %v21, %v25
  %v27 = vlaneseq
  %v28 = vshrl.u32 %v27, 7
  %v29 = vsub.s32 1, %v28
  %v30 = vrot.slane %v21, %v29
  %v31 = vlaneseq
  %v32 = vshrl.u32 %v31, 7
  %v33 = vsub.s32 2, %v32
  %v34 = vrot.slane %v21, %v33
  %v35 = vlaneseq
  %v36 = vshrl.u32 %v35, 7
  %v37 = vsub.s32 3, %v36
  %v38 = vrot.slane %v21, %v37
  %v47 = vunpack.c.l.b16 %v15
  %v48 = vunpack.c.l.b16 %v16
  %v49 = vunpack.c.l.b16 %v17
  %v50 = vunpack.c.l.b16 %v18
  %v51 = vpack.c.b16 %v48, %v47
  %v52 = vpack.c.b16 %v50, %v49
  %v55 = vunpack.c.l.b16 %v19
  %v56 = vunpack.c.h.b16 %v19
  %v57 = vunpack.c.l.b16 %v20
  %v58 = vunpack.c.h.b16 %v20
  %v59 = vpack.c.b16 %v55, %v55
  %v60 = vpack.c.b16 %v56, %v56
  %v61 = vpack.c.b16 %v57, %v57
  %v62 = vpack.c.b16 %v58, %v58
  %vm63 = vcmask 64512
  %v65 = vsel %vm63, %v51, 0
  %v68 = vsel %vm63, %v52, 0
  %vm70 = vcmask 1043456
  %v72 = vsel %vm70, %v59, 0
  %v75 = vsel %vm70, %v60, 0
  %v78 = vsel %vm70, %v61, 0
  %v81 = vsel %vm70, %v62, 0
  %83 = vmatprep.subr.bf16.mxu0 0
  %84 = vmatpush1.bf16.msra.mxu0 0
  %85 = vmatprep.subr.bf16.mxu0 0
  %86 = vmatpush1.bf16.msra.mxu0 0
  %87 = vmatprep.subr.bf16.mxu0 0
  %88 = vmatpush1.bf16.msra.mxu0 0
  %89 = vmatprep.subr.bf16.mxu0 0
  %90 = vmatpush1.bf16.msra.mxu0 0
  %91 = vmatprep.subr.bf16.mxu0 0
  %92 = vmatpush1.bf16.msra.mxu0 0
  %93 = vmatprep.subr.bf16.mxu0 0
  %94 = vmatpush1.bf16.msra.mxu0 0
  %95 = vmatprep.subr.bf16.mxu0 0
  %96 = vmatpush1.bf16.msra.mxu0 0
  %97 = vmatprep.subr.bf16.mxu0 %v75
  %98 = vmatpush1.bf16.msra.mxu0 %v72
  %99 = vmatprep.subr.bf16.mxu0 0
  %100 = vmatpush2.bf16.msra.mxu0 0
  %101 = vmatprep.subr.bf16.mxu0 0
  %102 = vmatpush2.bf16.msra.mxu0 0
  %103 = vmatprep.subr.bf16.mxu0 0
  %104 = vmatpush2.bf16.msra.mxu0 0
  %105 = vmatprep.subr.bf16.mxu0 0
  %106 = vmatpush2.bf16.msra.mxu0 0
  %107 = vmatprep.subr.bf16.mxu0 0
  %108 = vmatpush2.bf16.msra.mxu0 0
  %109 = vmatprep.subr.bf16.mxu0 0
  %110 = vmatpush2.bf16.msra.mxu0 0
  %111 = vmatprep.subr.bf16.mxu0 0
  %112 = vmatpush2.bf16.msra.mxu0 0
  %113 = vmatprep.subr.bf16.mxu0 0
  %114 = vmatpush2.bf16.msra.mxu0 0
  %115 = vmatprep.mubr.bf16.mxu0 0
  %116 = vmatmul.mubr.bf16.gmra.mxu0 %v65
  %v117 = vpop.f32.mrf.mxu0
  %v118 = vadd.f32 %v26, %v117
  %v119 = vpop.f32.mrf.mxu0
  %v120 = vadd.f32 %v30, %v119
  %v121 = vpop.f32.mrf.mxu0
  %v122 = vadd.f32 %v26, %v121
  %v123 = vpop.f32.mrf.mxu0
  %v124 = vadd.f32 %v30, %v123
  %125 = vmatprep.mubr.bf16.mxu0 0
  %126 = vmatmul.mubr.bf16.gmra.mxu0 %v68
  %v127 = vpop.f32.mrf.mxu0
  %v128 = vadd.f32 %v26, %v127
  %v129 = vpop.f32.mrf.mxu0
  %v130 = vadd.f32 %v30, %v129
  %v131 = vpop.f32.mrf.mxu0
  %v132 = vadd.f32 %v26, %v131
  %v133 = vpop.f32.mrf.mxu0
  %v134 = vadd.f32 %v30, %v133
  %135 = vdwg.mxu0
  %136 = vmatprep.subr.bf16.mxu0 0
  %137 = vmatpush1.bf16.msra.mxu0 0
  %138 = vmatprep.subr.bf16.mxu0 0
  %139 = vmatpush1.bf16.msra.mxu0 0
  %140 = vmatprep.subr.bf16.mxu0 0
  %141 = vmatpush1.bf16.msra.mxu0 0
  %142 = vmatprep.subr.bf16.mxu0 0
  %143 = vmatpush1.bf16.msra.mxu0 0
  %144 = vmatprep.subr.bf16.mxu0 0
  %145 = vmatpush1.bf16.msra.mxu0 0
  %146 = vmatprep.subr.bf16.mxu0 0
  %147 = vmatpush1.bf16.msra.mxu0 0
  %148 = vmatprep.subr.bf16.mxu0 0
  %149 = vmatpush1.bf16.msra.mxu0 0
  %150 = vmatprep.subr.bf16.mxu0 %v81
  %151 = vmatpush1.bf16.msra.mxu0 %v78
  %152 = vmatprep.subr.bf16.mxu0 0
  %153 = vmatpush2.bf16.msra.mxu0 0
  %154 = vmatprep.subr.bf16.mxu0 0
  %155 = vmatpush2.bf16.msra.mxu0 0
  %156 = vmatprep.subr.bf16.mxu0 0
  %157 = vmatpush2.bf16.msra.mxu0 0
  %158 = vmatprep.subr.bf16.mxu0 0
  %159 = vmatpush2.bf16.msra.mxu0 0
  %160 = vmatprep.subr.bf16.mxu0 0
  %161 = vmatpush2.bf16.msra.mxu0 0
  %162 = vmatprep.subr.bf16.mxu0 0
  %163 = vmatpush2.bf16.msra.mxu0 0
  %164 = vmatprep.subr.bf16.mxu0 0
  %165 = vmatpush2.bf16.msra.mxu0 0
  %166 = vmatprep.subr.bf16.mxu0 0
  %167 = vmatpush2.bf16.msra.mxu0 0
  %168 = vmatprep.mubr.bf16.mxu0 0
  %169 = vmatmul.mubr.bf16.gmra.mxu0 %v65
  %v170 = vpop.f32.mrf.mxu0
  %v171 = vadd.f32 %v34, %v170
  %v172 = vpop.f32.mrf.mxu0
  %v173 = vadd.f32 %v38, %v172
  %v174 = vpop.f32.mrf.mxu0
  %v175 = vadd.f32 %v34, %v174
  %v176 = vpop.f32.mrf.mxu0
  %v177 = vadd.f32 %v38, %v176
  %178 = vmatprep.mubr.bf16.mxu0 0
  %179 = vmatmul.mubr.bf16.gmra.mxu0 %v68
  %v180 = vpop.f32.mrf.mxu0
  %v181 = vadd.f32 %v34, %v180
  %v182 = vpop.f32.mrf.mxu0
  %v183 = vadd.f32 %v38, %v182
  %v184 = vpop.f32.mrf.mxu0
  %v185 = vadd.f32 %v34, %v184
  %v186 = vpop.f32.mrf.mxu0
  %v187 = vadd.f32 %v38, %v186
  %188 = vdwg.mxu0
  %v189 = vpack.c.bf16 %v122, %v118
  %v190 = vpack.c.bf16 %v124, %v120
  %v191 = vpack.c.bf16 %v175, %v171
  %v192 = vpack.c.bf16 %v177, %v173
  %v193 = vpack.c.bf16 %v132, %v128
  %v194 = vpack.c.bf16 %v134, %v130
  %v195 = vpack.c.bf16 %v185, %v181
  %v196 = vpack.c.bf16 %v187, %v183
  %v205 = vunpack.c.l.b16 %v189
  %v206 = vunpack.c.l.b16 %v190
  %v207 = vunpack.c.l.b16 %v191
  %v208 = vunpack.c.l.b16 %v192
  %v209 = vunpack.c.h.b16 %v189
  %v210 = vunpack.c.h.b16 %v190
  %v211 = vunpack.c.h.b16 %v191
  %v212 = vunpack.c.h.b16 %v192
  %v213 = vunpack.c.l.b16 %v193
  %v214 = vunpack.c.l.b16 %v194
  %v215 = vunpack.c.l.b16 %v195
  %v216 = vunpack.c.l.b16 %v196
  %v217 = vunpack.c.h.b16 %v193
  %v218 = vunpack.c.h.b16 %v194
  %v219 = vunpack.c.h.b16 %v195
  %v220 = vunpack.c.h.b16 %v196
  %v221 = vpack.c.b16 %v206, %v205
  %v222 = vpack.c.b16 %v208, %v207
  %v223 = vpack.c.b16 %v210, %v209
  %v224 = vpack.c.b16 %v212, %v211
  %v225 = vpack.c.b16 %v214, %v213
  %v226 = vpack.c.b16 %v216, %v215
  %v227 = vpack.c.b16 %v218, %v217
  %v228 = vpack.c.b16 %v220, %v219
  %237 = vst [vmem:[%s3] sm:$0xff] %v221
  %238 = vst [vmem:[%s3 + $0x8] sm:$0xff] %v222
  %239 = vst [vmem:[%s3 + $0x10] sm:$0xff] %v223
  %240 = vst [vmem:[%s3 + $0x18] sm:$0xff] %v224
  %241 = vst [vmem:[%s3 + $0x20] sm:$0xff] %v225
  %242 = vst [vmem:[%s3 + $0x28] sm:$0xff] %v226
  %243 = vst [vmem:[%s3 + $0x30] sm:$0xff] %v227
  %244 = vst [vmem:[%s3 + $0x38] sm:$0xff] %v228
  // Predicated region
  $region14: #{forward.9} parent=0 // pred_check
    _
  $region15: #{forward.9} parent=0 // pred_check_branch
    %246 = sbr.rel (0) target = $region17
  $region16: #{forward.9} parent=0 // pred_region
    _
  $region17: #{forward.9} parent=0 // pred_fallthru
    _
  // Predicated region
  $region18: #{forward.9} parent=0 // pred_check
    _
  $region19: #{forward.9} parent=0 // pred_check_branch
    %248 = sbr.rel (0) target = $region21
  $region20: #{forward.9} parent=0 // pred_region
    _
  $region21: #{forward.9} parent=0 // pred_fallthru
    _

// kernel: forward.14
$region0: #{forward.14}
  #allocation0 [shape = 'u32[]', space=smem, size = 0x4, offset = 0x4, fixed_abs, tag = 'smem constant byte address 0x4 - core index']
  #allocation1 [shape = 'u32[144,128]{1,0:T(1,128)}', space=vmem, size = 0x12000, scoped, tag = 'internal scratch']
  %s0 = inlined_call_operand.vmem [shape: bf16[32,256], index: 0, kind: input, shape index: {}]
  %s1 = inlined_call_operand.vmem [shape: bf16[256,128], index: 1, kind: input, shape index: {}]
  %s2 = inlined_call_operand.vmem [shape: f32[1,128], index: 2, kind: input, shape index: {}]
  %s3 = inlined_call_operand.vmem [shape: bf16[32,128], index: 3, kind: output, shape index: {}]
  %s4 = sld [smem:[#allocation0]]
  $region22: #{forward.14} parent=0
    _
  %s6 = ssub.s32 1, %s4
  %s7 = scalar_select 0, %s6, %s4
  // Predicated region
  $region2: #{forward.14} parent=0 // pred_check
    _
  $region3: #{forward.14} parent=0 // pred_check_branch
    %9 = sbr.rel (0) target = $region5
  $region4: #{forward.14} parent=0 // pred_region
    _
  $region5: #{forward.14} parent=0 // pred_fallthru
    _
  // Predicated region
  $region6: #{forward.14} parent=0 // pred_check
    _
  $region7: #{forward.14} parent=0 // pred_check_branch
    %11 = sbr.rel (0) target = $region9
  $region8: #{forward.14} parent=0 // pred_region
    _
  $region9: #{forward.14} parent=0 // pred_fallthru
    _
  // Predicated region
  $region10: #{forward.14} parent=0 // pred_check
    _
  $region11: #{forward.14} parent=0 // pred_check_branch
    %13 = sbr.rel (0) target = $region13
  $region12: #{forward.14} parent=0 // pred_region
    _
  $region13: #{forward.14} parent=0 // pred_fallthru
    _
  %v15 = vld [vmem:[%s0] sm:$0xff]
  %v16 = vld [vmem:[%s0 + $0x8] sm:$0xff]
  %v17 = vld [vmem:[%s0 + $0x10] sm:$0xff]
  %v18 = vld [vmem:[%s0 + $0x18] sm:$0xff]
  %v19 = vld [vmem:[%s1] sm:$0xf]
  %v20 = vld [vmem:[%s1 + $0x4] sm:$0xf]
  %v21 = vld [vmem:[%s1 + $0x8] sm:$0xf]
  %v22 = vld [vmem:[%s1 + $0xc] sm:$0xf]
  %v23 = vld [vmem:[%s1 + $0x10] sm:$0xf]
  %v24 = vld [vmem:[%s1 + $0x14] sm:$0xf]
  %v25 = vld [vmem:[%s1 + $0x18] sm:$0xf]
  %v26 = vld [vmem:[%s1 + $0x1c] sm:$0xf]
  %v27 = vld [vmem:[%s1 + $0x20] sm:$0xf]
  %v28 = vld [vmem:[%s1 + $0x24] sm:$0xf]
  %v29 = vld [vmem:[%s1 + $0x28] sm:$0xf]
  %v30 = vld [vmem:[%s1 + $0x2c] sm:$0xf]
  %v31 = vld [vmem:[%s1 + $0x30] sm:$0xf]
  %v32 = vld [vmem:[%s1 + $0x34] sm:$0xf]
  %v33 = vld [vmem:[%s1 + $0x38] sm:$0xf]
  %v34 = vld [vmem:[%s1 + $0x3c] sm:$0xf]
  %v35 = vld [vmem:[%s1 + $0x40] sm:$0xf]
  %v36 = vld [vmem:[%s1 + $0x44] sm:$0xf]
  %v37 = vld [vmem:[%s1 + $0x48] sm:$0xf]
  %v38 = vld [vmem:[%s1 + $0x4c] sm:$0xf]
  %v39 = vld [vmem:[%s1 + $0x50] sm:$0xf]
  %v40 = vld [vmem:[%s1 + $0x54] sm:$0xf]
  %v41 = vld [vmem:[%s1 + $0x58] sm:$0xf]
  %v42 = vld [vmem:[%s1 + $0x5c] sm:$0xf]
  %v43 = vld [vmem:[%s1 + $0x60] sm:$0xf]
  %v44 = vld [vmem:[%s1 + $0x64] sm:$0xf]
  %v45 = vld [vmem:[%s1 + $0x68] sm:$0xf]
  %v46 = vld [vmem:[%s1 + $0x6c] sm:$0xf]
  %v47 = vld [vmem:[%s1 + $0x70] sm:$0xf]
  %v48 = vld [vmem:[%s1 + $0x74] sm:$0xf]
  %v49 = vld [vmem:[%s1 + $0x78] sm:$0xf]
  %v50 = vld [vmem:[%s1 + $0x7c] sm:$0xf]
  %v51 = vld [vmem:[%s2] sm:$0x1]
  %v53 = vlaneseq
  %v54 = vshrl.u32 %v53, 7
  %v55 = vsub.s32 0, %v54
  %v56 = vrot.slane %v51, %v55
  %v62 = vunpack.c.l.b16 %v15
  %v63 = vunpack.c.h.b16 %v15
  %v64 = vunpack.c.l.b16 %v16
  %v65 = vunpack.c.h.b16 %v16
  %v66 = vunpack.c.l.b16 %v17
  %v67 = vunpack.c.h.b16 %v17
  %v68 = vunpack.c.l.b16 %v18
  %v69 = vunpack.c.h.b16 %v18
  %v70 = vpack.c.b16 %v64, %v62
  %v71 = vpack.c.b16 %v65, %v63
  %v72 = vpack.c.b16 %v68, %v66
  %v73 = vpack.c.b16 %v69, %v67
  %v110 = vunpack.c.l.b16 %v19
  %v111 = vunpack.c.l.b16 %v20
  %v112 = vunpack.c.l.b16 %v21
  %v113 = vunpack.c.l.b16 %v22
  %v114 = vunpack.c.l.b16 %v23
  %v115 = vunpack.c.l.b16 %v24
  %v116 = vunpack.c.l.b16 %v25
  %v117 = vunpack.c.l.b16 %v26
  %v118 = vunpack.c.l.b16 %v27
  %v119 = vunpack.c.l.b16 %v28
  %v120 = vunpack.c.l.b16 %v29
  %v121 = vunpack.c.l.b16 %v30
  %v122 = vunpack.c.l.b16 %v31
  %v123 = vunpack.c.l.b16 %v32
  %v124 = vunpack.c.l.b16 %v33
  %v125 = vunpack.c.l.b16 %v34
  %v126 = vunpack.c.l.b16 %v35
  %v127 = vunpack.c.l.b16 %v36
  %v128 = vunpack.c.l.b16 %v37
  %v129 = vunpack.c.l.b16 %v38
  %v130 = vunpack.c.l.b16 %v39
  %v131 = vunpack.c.l.b16 %v40
  %v132 = vunpack.c.l.b16 %v41
  %v133 = vunpack.c.l.b16 %v42
  %v134 = vunpack.c.l.b16 %v43
  %v135 = vunpack.c.l.b16 %v44
  %v136 = vunpack.c.l.b16 %v45
  %v137 = vunpack.c.l.b16 %v46
  %v138 = vunpack.c.l.b16 %v47
  %v139 = vunpack.c.l.b16 %v48
  %v140 = vunpack.c.l.b16 %v49
  %v141 = vunpack.c.l.b16 %v50
  %v142 = vpack.c.b16 %v111, %v110
  %v143 = vpack.c.b16 %v113, %v112
  %v144 = vpack.c.b16 %v115, %v114
  %v145 = vpack.c.b16 %v117, %v116
  %v146 = vpack.c.b16 %v119, %v118
  %v147 = vpack.c.b16 %v121, %v120
  %v148 = vpack.c.b16 %v123, %v122
  %v149 = vpack.c.b16 %v125, %v124
  %v150 = vpack.c.b16 %v127, %v126
  %v151 = vpack.c.b16 %v129, %v128
  %v152 = vpack.c.b16 %v131, %v130
  %v153 = vpack.c.b16 %v133, %v132
  %v154 = vpack.c.b16 %v135, %v134
  %v155 = vpack.c.b16 %v137, %v136
  %v156 = vpack.c.b16 %v139, %v138
  %v157 = vpack.c.b16 %v141, %v140
  %174 = vmatprep.subr.bf16.mxu0 0
  %175 = vmatpush1.bf16.msra.mxu0 %v149
  %176 = vmatprep.subr.bf16.mxu0 0
  %177 = vmatpush1.bf16.msra.mxu0 %v148
  %178 = vmatprep.subr.bf16.mxu0 0
  %179 = vmatpush1.bf16.msra.mxu0 %v147
  %180 = vmatprep.subr.bf16.mxu0 0
  %181 = vmatpush1.bf16.msra.mxu0 %v146
  %182 = vmatprep.subr.bf16.mxu0 0
  %183 = vmatpush1.bf16.msra.mxu0 %v145
  %184 = vmatprep.subr.bf16.mxu0 0
  %185 = vmatpush1.bf16.msra.mxu0 %v144
  %186 = vmatprep.subr.bf16.mxu0 0
  %187 = vmatpush1.bf16.msra.mxu0 %v143
  %188 = vmatprep.subr.bf16.mxu0 0
  %189 = vmatpush1.bf16.msra.mxu0 %v142
  %190 = vmatprep.subr.bf16.mxu0 0
  %191 = vmatpush2.bf16.msra.mxu0 %v157
  %192 = vmatprep.subr.bf16.mxu0 0
  %193 = vmatpush2.bf16.msra.mxu0 %v156
  %194 = vmatprep.subr.bf16.mxu0 0
  %195 = vmatpush2.bf16.msra.mxu0 %v155
  %196 = vmatprep.subr.bf16.mxu0 0
  %197 = vmatpush2.bf16.msra.mxu0 %v154
  %198 = vmatprep.subr.bf16.mxu0 0
  %199 = vmatpush2.bf16.msra.mxu0 %v153
  %200 = vmatprep.subr.bf16.mxu0 0
  %201 = vmatpush2.bf16.msra.mxu0 %v152
  %202 = vmatprep.subr.bf16.mxu0 0
  %203 = vmatpush2.bf16.msra.mxu0 %v151
  %204 = vmatprep.subr.bf16.mxu0 0
  %205 = vmatpush2.bf16.msra.mxu0 %v150
  %206 = vmatprep.mubr.bf16.mxu0 %v71
  %207 = vmatmul.mubr.bf16.gmra.mxu0 %v70
  %v208 = vpop.f32.mrf.mxu0
  %v209 = vadd.f32 %v56, %v208
  %v210 = vpop.f32.mrf.mxu0
  %v211 = vpop.f32.mrf.mxu0
  %v212 = vadd.f32 %v56, %v211
  %v213 = vpop.f32.mrf.mxu0
  %214 = vmatprep.mubr.bf16.mxu0 %v73
  %215 = vmatmul.mubr.bf16.gmra.mxu0 %v72
  %v216 = vpop.f32.mrf.mxu0
  %v217 = vadd.f32 %v56, %v216
  %v218 = vpop.f32.mrf.mxu0
  %v219 = vpop.f32.mrf.mxu0
  %v220 = vadd.f32 %v56, %v219
  %v221 = vpop.f32.mrf.mxu0
  %222 = vdwg.mxu0
  %vm223 = vcmp.ge.f32.partialorder %v209, 0.0
  %vm224 = vcmp.ge.f32.partialorder %v212, 0.0
  %vm225 = vcmp.ge.f32.partialorder %v217, 0.0
  %vm226 = vcmp.ge.f32.partialorder %v220, 0.0
  %v227 = vmul.f32 %v209, 0.1
  %v228 = vmul.f32 %v212, 0.1
  %v229 = vmul.f32 %v217, 0.1
  %v230 = vmul.f32 %v220, 0.1
  %v231 = vsel %vm223, %v209, %v227
  %v232 = vsel %vm224, %v212, %v228
  %v233 = vsel %vm225, %v217, %v229
  %v234 = vsel %vm226, %v220, %v230
  %v235 = vpack.c.bf16 %v232, %v231
  %v236 = vpack.c.bf16 %v234, %v233
  %v239 = vunpack.c.l.b16 %v235
  %v240 = vunpack.c.h.b16 %v235
  %v241 = vunpack.c.l.b16 %v236
  %v242 = vunpack.c.h.b16 %v236
  %v243 = vpack.c.b16 %v239, %v239
  %v244 = vpack.c.b16 %v240, %v240
  %v245 = vpack.c.b16 %v241, %v241
  %v246 = vpack.c.b16 %v242, %v242
  %251 = vst [vmem:[%s3] sm:$0xf] %v243
  %252 = vst [vmem:[%s3 + $0x4] sm:$0xf] %v244
  %253 = vst [vmem:[%s3 + $0x8] sm:$0xf] %v245
  %254 = vst [vmem:[%s3 + $0xc] sm:$0xf] %v246
  // Predicated region
  $region14: #{forward.14} parent=0 // pred_check
    _
  $region15: #{forward.14} parent=0 // pred_check_branch
    %256 = sbr.rel (0) target = $region17
  $region16: #{forward.14} parent=0 // pred_region
    _
  $region17: #{forward.14} parent=0 // pred_fallthru
    _
  // Predicated region
  $region18: #{forward.14} parent=0 // pred_check
    _
  $region19: #{forward.14} parent=0 // pred_check_branch
    %258 = sbr.rel (0) target = $region21
  $region20: #{forward.14} parent=0 // pred_region
    _
  $region21: #{forward.14} parent=0 // pred_fallthru
    _

// kernel: forward.11
$region0: #{forward.11}
  #allocation0 [shape = 'u32[]', space=smem, size = 0x4, offset = 0x4, fixed_abs, tag = 'smem constant byte address 0x4 - core index']
  #allocation1 [shape = 'u32[144,128]{1,0:T(1,128)}', space=vmem, size = 0x12000, scoped, tag = 'internal scratch']
  %s0 = inlined_call_operand.vmem [shape: bf16[8,1024], index: 0, kind: input, shape index: {}]
  %s1 = inlined_call_operand.vmem [shape: bf16[1024,512], index: 1, kind: input, shape index: {}]
  %s2 = inlined_call_operand.vmem [shape: f32[1,512], index: 2, kind: input, shape index: {}]
  %s3 = inlined_call_operand.vmem [shape: bf16[512,18], index: 3, kind: input, shape index: {}]
  %s4 = inlined_call_operand.vmem [shape: f32[1,18], index: 4, kind: input, shape index: {}]
  %s5 = inlined_call_operand.vmem [shape: f32[8,2], index: 5, kind: input, shape index: {}]
  %s6 = inlined_call_operand.vmem [shape: f32[1,18], index: 6, kind: input, shape index: {}]
  %s7 = inlined_call_operand.vmem [shape: bf16[8,512], index: 7, kind: output, shape index: {0}]
  %s8 = inlined_call_operand.vmem [shape: f32[8,18], index: 8, kind: output, shape index: {1}]
  %9 = xla_tuple %s7, %s8
  %s10 = sld [smem:[#allocation0]]
  $region46: #{forward.11} parent=0
    _
  %s12 = ssub.s32 1, %s10
  %s13 = scalar_select 0, %s12, %s10
  // Predicated region
  $region2: #{forward.11} parent=0 // pred_check
    _
  $region3: #{forward.11} parent=0 // pred_check_branch
    %15 = sbr.rel (0) target = $region5
  $region4: #{forward.11} parent=0 // pred_region
    _
  $region5: #{forward.11} parent=0 // pred_fallthru
    _
  // Predicated region
  $region6: #{forward.11} parent=0 // pred_check
    _
  $region7: #{forward.11} parent=0 // pred_check_branch
    %17 = sbr.rel (0) target = $region9
  $region8: #{forward.11} parent=0 // pred_region
    _
  $region9: #{forward.11} parent=0 // pred_fallthru
    _
  // Predicated region
  $region10: #{forward.11} parent=0 // pred_check
    _
  $region11: #{forward.11} parent=0 // pred_check_branch
    %19 = sbr.rel (0) target = $region13
  $region12: #{forward.11} parent=0 // pred_region
    _
  $region13: #{forward.11} parent=0 // pred_fallthru
    _
  // Predicated region
  $region14: #{forward.11} parent=0 // pred_check
    _
  $region15: #{forward.11} parent=0 // pred_check_branch
    %21 = sbr.rel (0) target = $region17
  $region16: #{forward.11} parent=0 // pred_region
    _
  $region17: #{forward.11} parent=0 // pred_fallthru
    _
  // Predicated region
  $region18: #{forward.11} parent=0 // pred_check
    _
  $region19: #{forward.11} parent=0 // pred_check_branch
    %23 = sbr.rel (0) target = $region21
  $region20: #{forward.11} parent=0 // pred_region
    _
  $region21: #{forward.11} parent=0 // pred_fallthru
    _
  // Predicated region
  $region22: #{forward.11} parent=0 // pred_check
    _
  $region23: #{forward.11} parent=0 // pred_check_branch
    %25 = sbr.rel (0) target = $region25
  $region24: #{forward.11} parent=0 // pred_region
    _
  $region25: #{forward.11} parent=0 // pred_fallthru
    _
  // Predicated region
  $region26: #{forward.11} parent=0 // pred_check
    _
  $region27: #{forward.11} parent=0 // pred_check_branch
    %27 = sbr.rel (0) target = $region29
  $region28: #{forward.11} parent=0 // pred_region
    _
  $region29: #{forward.11} parent=0 // pred_fallthru
    _
  %v29 = vld [vmem:[%s0] sm:$0xff]
  %v30 = vld [vmem:[%s0 + $0x8] sm:$0xff]
  %v31 = vld [vmem:[%s0 + $0x10] sm:$0xff]
  %v32 = vld [vmem:[%s0 + $0x18] sm:$0xff]
  %v33 = vld [vmem:[%s1] sm:$0xff]
  %v34 = vld [vmem:[%s1 + $0x8] sm:$0xff]
  %v35 = vld [vmem:[%s1 + $0x10] sm:$0xff]
  %v36 = vld [vmem:[%s1 + $0x18] sm:$0xff]
  %v37 = vld [vmem:[%s1 + $0x20] sm:$0xff]
  %v38 = vld [vmem:[%s1 + $0x28] sm:$0xff]
  %v39 = vld [vmem:[%s1 + $0x30] sm:$0xff]
  %v40 = vld [vmem:[%s1 + $0x38] sm:$0xff]
  %v41 = vld [vmem:[%s1 + $0x40] sm:$0xff]
  %v42 = vld [vmem:[%s1 + $0x48] sm:$0xff]
  %v43 = vld [vmem:[%s1 + $0x50] sm:$0xff]
  %v44 = vld [vmem:[%s1 + $0x58] sm:$0xff]
  %v45 = vld [vmem:[%s1 + $0x60] sm:$0xff]
  %v46 = vld [vmem:[%s1 + $0x68] sm:$0xff]
  %v47 = vld [vmem:[%s1 + $0x70] sm:$0xff]
  %v48 = vld [vmem:[%s1 + $0x78] sm:$0xff]
  %v49 = vld [vmem:[%s1 + $0x80] sm:$0xff]
  %v50 = vld [vmem:[%s1 + $0x88] sm:$0xff]
  %v51 = vld [vmem:[%s1 + $0x90] sm:$0xff]
  %v52 = vld [vmem:[%s1 + $0x98] sm:$0xff]
  %v53 = vld [vmem:[%s1 + $0xa0] sm:$0xff]
  %v54 = vld [vmem:[%s1 + $0xa8] sm:$0xff]
  %v55 = vld [vmem:[%s1 + $0xb0] sm:$0xff]
  %v56 = vld [vmem:[%s1 + $0xb8] sm:$0xff]
  %v57 = vld [vmem:[%s1 + $0xc0] sm:$0xff]
  %v58 = vld [vmem:[%s1 + $0xc8] sm:$0xff]
  %v59 = vld [vmem:[%s1 + $0xd0] sm:$0xff]
  %v60 = vld [vmem:[%s1 + $0xd8] sm:$0xff]
  %v61 = vld [vmem:[%s1 + $0xe0] sm:$0xff]
  %v62 = vld [vmem:[%s1 + $0xe8] sm:$0xff]
  %v63 = vld [vmem:[%s1 + $0xf0] sm:$0xff]
  %v64 = vld [vmem:[%s1 + $0xf8] sm:$0xff]
  %v65 = vld [vmem:[%s1 + $0x100] sm:$0xff]
  %v66 = vld [vmem:[%s1 + $0x108] sm:$0xff]
  %v67 = vld [vmem:[%s1 + $0x110] sm:$0xff]
  %v68 = vld [vmem:[%s1 + $0x118] sm:$0xff]
  %v69 = vld [vmem:[%s1 + $0x120] sm:$0xff]
  %v70 = vld [vmem:[%s1 + $0x128] sm:$0xff]
  %v71 = vld [vmem:[%s1 + $0x130] sm:$0xff]
  %v72 = vld [vmem:[%s1 + $0x138] sm:$0xff]
  %v73 = vld [vmem:[%s1 + $0x140] sm:$0xff]
  %v74 = vld [vmem:[%s1 + $0x148] sm:$0xff]
  %v75 = vld [vmem:[%s1 + $0x150] sm:$0xff]
  %v76 = vld [vmem:[%s1 + $0x158] sm:$0xff]
  %v77 = vld [vmem:[%s1 + $0x160] sm:$0xff]
  %v78 = vld [vmem:[%s1 + $0x168] sm:$0xff]
  %v79 = vld [vmem:[%s1 + $0x170] sm:$0xff]
  %v80 = vld [vmem:[%s1 + $0x178] sm:$0xff]
  %v81 = vld [vmem:[%s1 + $0x180] sm:$0xff]
  %v82 = vld [vmem:[%s1 + $0x188] sm:$0xff]
  %v83 = vld [vmem:[%s1 + $0x190] sm:$0xff]
  %v84 = vld [vmem:[%s1 + $0x198] sm:$0xff]
  %v85 = vld [vmem:[%s1 + $0x1a0] sm:$0xff]
  %v86 = vld [vmem:[%s1 + $0x1a8] sm:$0xff]
  %v87 = vld [vmem:[%s1 + $0x1b0] sm:$0xff]
  %v88 = vld [vmem:[%s1 + $0x1b8] sm:$0xff]
  %v89 = vld [vmem:[%s1 + $0x1c0] sm:$0xff]
  %v90 = vld [vmem:[%s1 + $0x1c8] sm:$0xff]
  %v91 = vld [vmem:[%s1 + $0x1d0] sm:$0xff]
  %v92 = vld [vmem:[%s1 + $0x1d8] sm:$0xff]
  %v93 = vld [vmem:[%s1 + $0x1e0] sm:$0xff]
  %v94 = vld [vmem:[%s1 + $0x1e8] sm:$0xff]
  %v95 = vld [vmem:[%s1 + $0x1f0] sm:$0xff]
  %v96 = vld [vmem:[%s1 + $0x1f8] sm:$0xff]
  %v97 = vld [vmem:[%s1 + $0x200] sm:$0xff]
  %v98 = vld [vmem:[%s1 + $0x208] sm:$0xff]
  %v99 = vld [vmem:[%s1 + $0x210] sm:$0xff]
  %v100 = vld [vmem:[%s1 + $0x218] sm:$0xff]
  %v101 = vld [vmem:[%s1 + $0x220] sm:$0xff]
  %v102 = vld [vmem:[%s1 + $0x228] sm:$0xff]
  %v103 = vld [vmem:[%s1 + $0x230] sm:$0xff]
  %v104 = vld [vmem:[%s1 + $0x238] sm:$0xff]
  %v105 = vld [vmem:[%s1 + $0x240] sm:$0xff]
  %v106 = vld [vmem:[%s1 + $0x248] sm:$0xff]
  %v107 = vld [vmem:[%s1 + $0x250] sm:$0xff]
  %v108 = vld [vmem:[%s1 + $0x258] sm:$0xff]
  %v109 = vld [vmem:[%s1 + $0x260] sm:$0xff]
  %v110 = vld [vmem:[%s1 + $0x268] sm:$0xff]
  %v111 = vld [vmem:[%s1 + $0x270] sm:$0xff]
  %v112 = vld [vmem:[%s1 + $0x278] sm:$0xff]
  %v113 = vld [vmem:[%s1 + $0x280] sm:$0xff]
  %v114 = vld [vmem:[%s1 + $0x288] sm:$0xff]
  %v115 = vld [vmem:[%s1 + $0x290] sm:$0xff]
  %v116 = vld [vmem:[%s1 + $0x298] sm:$0xff]
  %v117 = vld [vmem:[%s1 + $0x2a0] sm:$0xff]
  %v118 = vld [vmem:[%s1 + $0x2a8] sm:$0xff]
  %v119 = vld [vmem:[%s1 + $0x2b0] sm:$0xff]
  %v120 = vld [vmem:[%s1 + $0x2b8] sm:$0xff]
  %v121 = vld [vmem:[%s1 + $0x2c0] sm:$0xff]
  %v122 = vld [vmem:[%s1 + $0x2c8] sm:$0xff]
  %v123 = vld [vmem:[%s1 + $0x2d0] sm:$0xff]
  %v124 = vld [vmem:[%s1 + $0x2d8] sm:$0xff]
  %v125 = vld [vmem:[%s1 + $0x2e0] sm:$0xff]
  %v126 = vld [vmem:[%s1 + $0x2e8] sm:$0xff]
  %v127 = vld [vmem:[%s1 + $0x2f0] sm:$0xff]
  %v128 = vld [vmem:[%s1 + $0x2f8] sm:$0xff]
  %v129 = vld [vmem:[%s1 + $0x300] sm:$0xff]
  %v130 = vld [vmem:[%s1 + $0x308] sm:$0xff]
  %v131 = vld [vmem:[%s1 + $0x310] sm:$0xff]
  %v132 = vld [vmem:[%s1 + $0x318] sm:$0xff]
  %v133 = vld [vmem:[%s1 + $0x320] sm:$0xff]
  %v134 = vld [vmem:[%s1 + $0x328] sm:$0xff]
  %v135 = vld [vmem:[%s1 + $0x330] sm:$0xff]
  %v136 = vld [vmem:[%s1 + $0x338] sm:$0xff]
  %v137 = vld [vmem:[%s1 + $0x340] sm:$0xff]
  %v138 = vld [vmem:[%s1 + $0x348] sm:$0xff]
  %v139 = vld [vmem:[%s1 + $0x350] sm:$0xff]
  %v140 = vld [vmem:[%s1 + $0x358] sm:$0xff]
  %v141 = vld [vmem:[%s1 + $0x360] sm:$0xff]
  %v142 = vld [vmem:[%s1 + $0x368] sm:$0xff]
  %v143 = vld [vmem:[%s1 + $0x370] sm:$0xff]
  %v144 = vld [vmem:[%s1 + $0x378] sm:$0xff]
  %v145 = vld [vmem:[%s1 + $0x380] sm:$0xff]
  %v146 = vld [vmem:[%s1 + $0x388] sm:$0xff]
  %v147 = vld [vmem:[%s1 + $0x390] sm:$0xff]
  %v148 = vld [vmem:[%s1 + $0x398] sm:$0xff]
  %v149 = vld [vmem:[%s1 + $0x3a0] sm:$0xff]
  %v150 = vld [vmem:[%s1 + $0x3a8] sm:$0xff]
  %v151 = vld [vmem:[%s1 + $0x3b0] sm:$0xff]
  %v152 = vld [vmem:[%s1 + $0x3b8] sm:$0xff]
  %v153 = vld [vmem:[%s1 + $0x3c0] sm:$0xff]
  %v154 = vld [vmem:[%s1 + $0x3c8] sm:$0xff]
  %v155 = vld [vmem:[%s1 + $0x3d0] sm:$0xff]
  %v156 = vld [vmem:[%s1 + $0x3d8] sm:$0xff]
  %v157 = vld [vmem:[%s1 + $0x3e0] sm:$0xff]
  %v158 = vld [vmem:[%s1 + $0x3e8] sm:$0xff]
  %v159 = vld [vmem:[%s1 + $0x3f0] sm:$0xff]
  %v160 = vld [vmem:[%s1 + $0x3f8] sm:$0xff]
  %v161 = vld [vmem:[%s1 + $0x400] sm:$0xff]
  %v162 = vld [vmem:[%s1 + $0x408] sm:$0xff]
  %v163 = vld [vmem:[%s1 + $0x410] sm:$0xff]
  %v164 = vld [vmem:[%s1 + $0x418] sm:$0xff]
  %v165 = vld [vmem:[%s1 + $0x420] sm:$0xff]
  %v166 = vld [vmem:[%s1 + $0x428] sm:$0xff]
  %v167 = vld [vmem:[%s1 + $0x430] sm:$0xff]
  %v168 = vld [vmem:[%s1 + $0x438] sm:$0xff]
  %v169 = vld [vmem:[%s1 + $0x440] sm:$0xff]
  %v170 = vld [vmem:[%s1 + $0x448] sm:$0xff]
  %v171 = vld [vmem:[%s1 + $0x450] sm:$0xff]
  %v172 = vld [vmem:[%s1 + $0x458] sm:$0xff]
  %v173 = vld [vmem:[%s1 + $0x460] sm:$0xff]
  %v174 = vld [vmem:[%s1 + $0x468] sm:$0xff]
  %v175 = vld [vmem:[%s1 + $0x470] sm:$0xff]
  %v176 = vld [vmem:[%s1 + $0x478] sm:$0xff]
  %v177 = vld [vmem:[%s1 + $0x480] sm:$0xff]
  %v178 = vld [vmem:[%s1 + $0x488] sm:$0xff]
  %v179 = vld [vmem:[%s1 + $0x490] sm:$0xff]
  %v180 = vld [vmem:[%s1 + $0x498] sm:$0xff]
  %v181 = vld [vmem:[%s1 + $0x4a0] sm:$0xff]
  %v182 = vld [vmem:[%s1 + $0x4a8] sm:$0xff]
  %v183 = vld [vmem:[%s1 + $0x4b0] sm:$0xff]
  %v184 = vld [vmem:[%s1 + $0x4b8] sm:$0xff]
  %v185 = vld [vmem:[%s1 + $0x4c0] sm:$0xff]
  %v186 = vld [vmem:[%s1 + $0x4c8] sm:$0xff]
  %v187 = vld [vmem:[%s1 + $0x4d0] sm:$0xff]
  %v188 = vld [vmem:[%s1 + $0x4d8] sm:$0xff]
  %v189 = vld [vmem:[%s1 + $0x4e0] sm:$0xff]
  %v190 = vld [vmem:[%s1 + $0x4e8] sm:$0xff]
  %v191 = vld [vmem:[%s1 + $0x4f0] sm:$0xff]
  %v192 = vld [vmem:[%s1 + $0x4f8] sm:$0xff]
  %v193 = vld [vmem:[%s1 + $0x500] sm:$0xff]
  %v194 = vld [vmem:[%s1 + $0x508] sm:$0xff]
  %v195 = vld [vmem:[%s1 + $0x510] sm:$0xff]
  %v196 = vld [vmem:[%s1 + $0x518] sm:$0xff]
  %v197 = vld [vmem:[%s1 + $0x520] sm:$0xff]
  %v198 = vld [vmem:[%s1 + $0x528] sm:$0xff]
  %v199 = vld [vmem:[%s1 + $0x530] sm:$0xff]
  %v200 = vld [vmem:[%s1 + $0x538] sm:$0xff]
  %v201 = vld [vmem:[%s1 + $0x540] sm:$0xff]
  %v202 = vld [vmem:[%s1 + $0x548] sm:$0xff]
  %v203 = vld [vmem:[%s1 + $0x550] sm:$0xff]
  %v204 = vld [vmem:[%s1 + $0x558] sm:$0xff]
  %v205 = vld [vmem:[%s1 + $0x560] sm:$0xff]
  %v206 = vld [vmem:[%s1 + $0x568] sm:$0xff]
  %v207 = vld [vmem:[%s1 + $0x570] sm:$0xff]
  %v208 = vld [vmem:[%s1 + $0x578] sm:$0xff]
  %v209 = vld [vmem:[%s1 + $0x580] sm:$0xff]
  %v210 = vld [vmem:[%s1 + $0x588] sm:$0xff]
  %v211 = vld [vmem:[%s1 + $0x590] sm:$0xff]
  %v212 = vld [vmem:[%s1 + $0x598] sm:$0xff]
  %v213 = vld [vmem:[%s1 + $0x5a0] sm:$0xff]
  %v214 = vld [vmem:[%s1 + $0x5a8] sm:$0xff]
  %v215 = vld [vmem:[%s1 + $0x5b0] sm:$0xff]
  %v216 = vld [vmem:[%s1 + $0x5b8] sm:$0xff]
  %v217 = vld [vmem:[%s1 + $0x5c0] sm:$0xff]
  %v218 = vld [vmem:[%s1 + $0x5c8] sm:$0xff]
  %v219 = vld [vmem:[%s1 + $0x5d0] sm:$0xff]
  %v220 = vld [vmem:[%s1 + $0x5d8] sm:$0xff]
  %v221 = vld [vmem:[%s1 + $0x5e0] sm:$0xff]
  %v222 = vld [vmem:[%s1 + $0x5e8] sm:$0xff]
  %v223 = vld [vmem:[%s1 + $0x5f0] sm:$0xff]
  %v224 = vld [vmem:[%s1 + $0x5f8] sm:$0xff]
  %v225 = vld [vmem:[%s1 + $0x600] sm:$0xff]
  %v226 = vld [vmem:[%s1 + $0x608] sm:$0xff]
  %v227 = vld [vmem:[%s1 + $0x610] sm:$0xff]
  %v228 = vld [vmem:[%s1 + $0x618] sm:$0xff]
  %v229 = vld [vmem:[%s1 + $0x620] sm:$0xff]
  %v230 = vld [vmem:[%s1 + $0x628] sm:$0xff]
  %v231 = vld [vmem:[%s1 + $0x630] sm:$0xff]
  %v232 = vld [vmem:[%s1 + $0x638] sm:$0xff]
  %v233 = vld [vmem:[%s1 + $0x640] sm:$0xff]
  %v234 = vld [vmem:[%s1 + $0x648] sm:$0xff]
  %v235 = vld [vmem:[%s1 + $0x650] sm:$0xff]
  %v236 = vld [vmem:[%s1 + $0x658] sm:$0xff]
  %v237 = vld [vmem:[%s1 + $0x660] sm:$0xff]
  %v238 = vld [vmem:[%s1 + $0x668] sm:$0xff]
  %v239 = vld [vmem:[%s1 + $0x670] sm:$0xff]
  %v240 = vld [vmem:[%s1 + $0x678] sm:$0xff]
  %v241 = vld [vmem:[%s1 + $0x680] sm:$0xff]
  %v242 = vld [vmem:[%s1 + $0x688] sm:$0xff]
  %v243 = vld [vmem:[%s1 + $0x690] sm:$0xff]
  %v244 = vld [vmem:[%s1 + $0x698] sm:$0xff]
  %v245 = vld [vmem:[%s1 + $0x6a0] sm:$0xff]
  %v246 = vld [vmem:[%s1 + $0x6a8] sm:$0xff]
  %v247 = vld [vmem:[%s1 + $0x6b0] sm:$0xff]
  %v248 = vld [vmem:[%s1 + $0x6b8] sm:$0xff]
  %v249 = vld [vmem:[%s1 + $0x6c0] sm:$0xff]
  %v250 = vld [vmem:[%s1 + $0x6c8] sm:$0xff]
  %v251 = vld [vmem:[%s1 + $0x6d0] sm:$0xff]
  %v252 = vld [vmem:[%s1 + $0x6d8] sm:$0xff]
  %v253 = vld [vmem:[%s1 + $0x6e0] sm:$0xff]
  %v254 = vld [vmem:[%s1 + $0x6e8] sm:$0xff]
  %v255 = vld [vmem:[%s1 + $0x6f0] sm:$0xff]
  %v256 = vld [vmem:[%s1 + $0x6f8] sm:$0xff]
  %v257 = vld [vmem:[%s1 + $0x700] sm:$0xff]
  %v258 = vld [vmem:[%s1 + $0x708] sm:$0xff]
  %v259 = vld [vmem:[%s1 + $0x710] sm:$0xff]
  %v260 = vld [vmem:[%s1 + $0x718] sm:$0xff]
  %v261 = vld [vmem:[%s1 + $0x720] sm:$0xff]
  %v262 = vld [vmem:[%s1 + $0x728] sm:$0xff]
  %v263 = vld [vmem:[%s1 + $0x730] sm:$0xff]
  %v264 = vld [vmem:[%s1 + $0x738] sm:$0xff]
  %v265 = vld [vmem:[%s1 + $0x740] sm:$0xff]
  %v266 = vld [vmem:[%s1 + $0x748] sm:$0xff]
  %v267 = vld [vmem:[%s1 + $0x750] sm:$0xff]
  %v268 = vld [vmem:[%s1 + $0x758] sm:$0xff]
  %v269 = vld [vmem:[%s1 + $0x760] sm:$0xff]
  %v270 = vld [vmem:[%s1 + $0x768] sm:$0xff]
  %v271 = vld [vmem:[%s1 + $0x770] sm:$0xff]
  %v272 = vld [vmem:[%s1 + $0x778] sm:$0xff]
  %v273 = vld [vmem:[%s1 + $0x780] sm:$0xff]
  %v274 = vld [vmem:[%s1 + $0x788] sm:$0xff]
  %v275 = vld [vmem:[%s1 + $0x790] sm:$0xff]
  %v276 = vld [vmem:[%s1 + $0x798] sm:$0xff]
  %v277 = vld [vmem:[%s1 + $0x7a0] sm:$0xff]
  %v278 = vld [vmem:[%s1 + $0x7a8] sm:$0xff]
  %v279 = vld [vmem:[%s1 + $0x7b0] sm:$0xff]
  %v280 = vld [vmem:[%s1 + $0x7b8] sm:$0xff]
  %v281 = vld [vmem:[%s1 + $0x7c0] sm:$0xff]
  %v282 = vld [vmem:[%s1 + $0x7c8] sm:$0xff]
  %v283 = vld [vmem:[%s1 + $0x7d0] sm:$0xff]
  %v284 = vld [vmem:[%s1 + $0x7d8] sm:$0xff]
  %v285 = vld [vmem:[%s1 + $0x7e0] sm:$0xff]
  %v286 = vld [vmem:[%s1 + $0x7e8] sm:$0xff]
  %v287 = vld [vmem:[%s1 + $0x7f0] sm:$0xff]
  %v288 = vld [vmem:[%s1 + $0x7f8] sm:$0xff]
  %v289 = vld [vmem:[%s2] sm:$0xf]
  %v291 = vlaneseq
  %v292 = vshrl.u32 %v291, 7
  %v293 = vsub.s32 0, %v292
  %v294 = vrot.slane %v289, %v293
  %v295 = vlaneseq
  %v296 = vshrl.u32 %v295, 7
  %v297 = vsub.s32 1, %v296
  %v298 = vrot.slane %v289, %v297
  %v299 = vlaneseq
  %v300 = vshrl.u32 %v299, 7
  %v301 = vsub.s32 2, %v300
  %v302 = vrot.slane %v289, %v301
  %v303 = vlaneseq
  %v304 = vshrl.u32 %v303, 7
  %v305 = vsub.s32 3, %v304
  %v306 = vrot.slane %v289, %v305
  %v315 = vunpack.c.l.b16 %v29
  %v316 = vunpack.c.h.b16 %v29
  %v317 = vunpack.c.l.b16 %v30
  %v318 = vunpack.c.h.b16 %v30
  %v319 = vunpack.c.l.b16 %v31
  %v320 = vunpack.c.h.b16 %v31
  %v321 = vunpack.c.l.b16 %v32
  %v322 = vunpack.c.h.b16 %v32
  %v323 = vpack.c.b16 %v315, %v315
  %v324 = vpack.c.b16 %v316, %v316
  %v325 = vpack.c.b16 %v317, %v317
  %v326 = vpack.c.b16 %v318, %v318
  %v327 = vpack.c.b16 %v319, %v319
  %v328 = vpack.c.b16 %v320, %v320
  %v329 = vpack.c.b16 %v321, %v321
  %v330 = vpack.c.b16 %v322, %v322
  %v595 = vunpack.c.l.b16 %v33
  %v596 = vunpack.c.h.b16 %v33
  %v597 = vunpack.c.l.b16 %v34
  %v598 = vunpack.c.h.b16 %v34
  %v599 = vunpack.c.l.b16 %v35
  %v600 = vunpack.c.h.b16 %v35
  %v601 = vunpack.c.l.b16 %v36
  %v602 = vunpack.c.h.b16 %v36
  %v603 = vunpack.c.l.b16 %v37
  %v604 = vunpack.c.h.b16 %v37
  %v605 = vunpack.c.l.b16 %v38
  %v606 = vunpack.c.h.b16 %v38
  %v607 = vunpack.c.l.b16 %v39
  %v608 = vunpack.c.h.b16 %v39
  %v609 = vunpack.c.l.b16 %v40
  %v610 = vunpack.c.h.b16 %v40
  %v611 = vunpack.c.l.b16 %v41
  %v612 = vunpack.c.h.b16 %v41
  %v613 = vunpack.c.l.b16 %v42
  %v614 = vunpack.c.h.b16 %v42
  %v615 = vunpack.c.l.b16 %v43
  %v616 = vunpack.c.h.b16 %v43
  %v617 = vunpack.c.l.b16 %v44
  %v618 = vunpack.c.h.b16 %v44
  %v619 = vunpack.c.l.b16 %v45
  %v620 = vunpack.c.h.b16 %v45
  %v621 = vunpack.c.l.b16 %v46
  %v622 = vunpack.c.h.b16 %v46
  %v623 = vunpack.c.l.b16 %v47
  %v624 = vunpack.c.h.b16 %v47
  %v625 = vunpack.c.l.b16 %v48
  %v626 = vunpack.c.h.b16 %v48
  %v627 = vunpack.c.l.b16 %v49
  %v628 = vunpack.c.h.b16 %v49
  %v629 = vunpack.c.l.b16 %v50
  %v630 = vunpack.c.h.b16 %v50
  %v631 = vunpack.c.l.b16 %v51
  %v632 = vunpack.c.h.b16 %v51
  %v633 = vunpack.c.l.b16 %v52
  %v634 = vunpack.c.h.b16 %v52
  %v635 = vunpack.c.l.b16 %v53
  %v636 = vunpack.c.h.b16 %v53
  %v637 = vunpack.c.l.b16 %v54
  %v638 = vunpack.c.h.b16 %v54
  %v639 = vunpack.c.l.b16 %v55
  %v640 = vunpack.c.h.b16 %v55
  %v641 = vunpack.c.l.b16 %v56
  %v642 = vunpack.c.h.b16 %v56
  %v643 = vunpack.c.l.b16 %v57
  %v644 = vunpack.c.h.b16 %v57
  %v645 = vunpack.c.l.b16 %v58
  %v646 = vunpack.c.h.b16 %v58
  %v647 = vunpack.c.l.b16 %v59
  %v648 = vunpack.c.h.b16 %v59
  %v649 = vunpack.c.l.b16 %v60
  %v650 = vunpack.c.h.b16 %v60
  %v651 = vunpack.c.l.b16 %v61
  %v652 = vunpack.c.h.b16 %v61
  %v653 = vunpack.c.l.b16 %v62
  %v654 = vunpack.c.h.b16 %v62
  %v655 = vunpack.c.l.b16 %v63
  %v656 = vunpack.c.h.b16 %v63
  %v657 = vunpack.c.l.b16 %v64
  %v658 = vunpack.c.h.b16 %v64
  %v659 = vunpack.c.l.b16 %v65
  %v660 = vunpack.c.h.b16 %v65
  %v661 = vunpack.c.l.b16 %v66
  %v662 = vunpack.c.h.b16 %v66
  %v663 = vunpack.c.l.b16 %v67
  %v664 = vunpack.c.h.b16 %v67
  %v665 = vunpack.c.l.b16 %v68
  %v666 = vunpack.c.h.b16 %v68
  %v667 = vunpack.c.l.b16 %v69
  %v668 = vunpack.c.h.b16 %v69
  %v669 = vunpack.c.l.b16 %v70
  %v670 = vunpack.c.h.b16 %v70
  %v671 = vunpack.c.l.b16 %v71
  %v672 = vunpack.c.h.b16 %v71
  %v673 = vunpack.c.l.b16 %v72
  %v674 = vunpack.c.h.b16 %v72
  %v675 = vunpack.c.l.b16 %v73
  %v676 = vunpack.c.h.b16 %v73
  %v677 = vunpack.c.l.b16 %v74
  %v678 = vunpack.c.h.b16 %v74
  %v679 = vunpack.c.l.b16 %v75
  %v680 = vunpack.c.h.b16 %v75
  %v681 = vunpack.c.l.b16 %v76
  %v682 = vunpack.c.h.b16 %v76
  %v683 = vunpack.c.l.b16 %v77
  %v684 = vunpack.c.h.b16 %v77
  %v685 = vunpack.c.l.b16 %v78
  %v686 = vunpack.c.h.b16 %v78
  %v687 = vunpack.c.l.b16 %v79
  %v688 = vunpack.c.h.b16 %v79
  %v689 = vunpack.c.l.b16 %v80
  %v690 = vunpack.c.h.b16 %v80
  %v691 = vunpack.c.l.b16 %v81
  %v692 = vunpack.c.h.b16 %v81
  %v693 = vunpack.c.l.b16 %v82
  %v694 = vunpack.c.h.b16 %v82
  %v695 = vunpack.c.l.b16 %v83
  %v696 = vunpack.c.h.b16 %v83
  %v697 = vunpack.c.l.b16 %v84
  %v698 = vunpack.c.h.b16 %v84
  %v699 = vunpack.c.l.b16 %v85
  %v700 = vunpack.c.h.b16 %v85
  %v701 = vunpack.c.l.b16 %v86
  %v702 = vunpack.c.h.b16 %v86
  %v703 = vunpack.c.l.b16 %v87
  %v704 = vunpack.c.h.b16 %v87
  %v705 = vunpack.c.l.b16 %v88
  %v706 = vunpack.c.h.b16 %v88
  %v707 = vunpack.c.l.b16 %v89
  %v708 = vunpack.c.h.b16 %v89
  %v709 = vunpack.c.l.b16 %v90
  %v710 = vunpack.c.h.b16 %v90
  %v711 = vunpack.c.l.b16 %v91
  %v712 = vunpack.c.h.b16 %v91
  %v713 = vunpack.c.l.b16 %v92
  %v714 = vunpack.c.h.b16 %v92
  %v715 = vunpack.c.l.b16 %v93
  %v716 = vunpack.c.h.b16 %v93
  %v717 = vunpack.c.l.b16 %v94
  %v718 = vunpack.c.h.b16 %v94
  %v719 = vunpack.c.l.b16 %v95
  %v720 = vunpack.c.h.b16 %v95
  %v721 = vunpack.c.l.b16 %v96
  %v722 = vunpack.c.h.b16 %v96
  %v723 = vunpack.c.l.b16 %v97
  %v724 = vunpack.c.h.b16 %v97
  %v725 = vunpack.c.l.b16 %v98
  %v726 = vunpack.c.h.b16 %v98
  %v727 = vunpack.c.l.b16 %v99
  %v728 = vunpack.c.h.b16 %v99
  %v729 = vunpack.c.l.b16 %v100
  %v730 = vunpack.c.h.b16 %v100
  %v731 = vunpack.c.l.b16 %v101
  %v732 = vunpack.c.h.b16 %v101
  %v733 = vunpack.c.l.b16 %v102
  %v734 = vunpack.c.h.b16 %v102
  %v735 = vunpack.c.l.b16 %v103
  %v736 = vunpack.c.h.b16 %v103
  %v737 = vunpack.c.l.b16 %v104
  %v738 = vunpack.c.h.b16 %v104
  %v739 = vunpack.c.l.b16 %v105
  %v740 = vunpack.c.h.b16 %v105
  %v741 = vunpack.c.l.b16 %v106
  %v742 = vunpack.c.h.b16 %v106
  %v743 = vunpack.c.l.b16 %v107
  %v744 = vunpack.c.h.b16 %v107
  %v745 = vunpack.c.l.b16 %v108
  %v746 = vunpack.c.h.b16 %v108
  %v747 = vunpack.c.l.b16 %v109
  %v748 = vunpack.c.h.b16 %v109
  %v749 = vunpack.c.l.b16 %v110
  %v750 = vunpack.c.h.b16 %v110
  %v751 = vunpack.c.l.b16 %v111
  %v752 = vunpack.c.h.b16 %v111
  %v753 = vunpack.c.l.b16 %v112
  %v754 = vunpack.c.h.b16 %v112
  %v755 = vunpack.c.l.b16 %v113
  %v756 = vunpack.c.h.b16 %v113
  %v757 = vunpack.c.l.b16 %v114
  %v758 = vunpack.c.h.b16 %v114
  %v759 = vunpack.c.l.b16 %v115
  %v760 = vunpack.c.h.b16 %v115
  %v761 = vunpack.c.l.b16 %v116
  %v762 = vunpack.c.h.b16 %v116
  %v763 = vunpack.c.l.b16 %v117
  %v764 = vunpack.c.h.b16 %v117
  %v765 = vunpack.c.l.b16 %v118
  %v766 = vunpack.c.h.b16 %v118
  %v767 = vunpack.c.l.b16 %v119
  %v768 = vunpack.c.h.b16 %v119
  %v769 = vunpack.c.l.b16 %v120
  %v770 = vunpack.c.h.b16 %v120
  %v771 = vunpack.c.l.b16 %v121
  %v772 = vunpack.c.h.b16 %v121
  %v773 = vunpack.c.l.b16 %v122
  %v774 = vunpack.c.h.b16 %v122
  %v775 = vunpack.c.l.b16 %v123
  %v776 = vunpack.c.h.b16 %v123
  %v777 = vunpack.c.l.b16 %v124
  %v778 = vunpack.c.h.b16 %v124
  %v779 = vunpack.c.l.b16 %v125
  %v780 = vunpack.c.h.b16 %v125
  %v781 = vunpack.c.l.b16 %v126
  %v782 = vunpack.c.h.b16 %v126
  %v783 = vunpack.c.l.b16 %v127
  %v784 = vunpack.c.h.b16 %v127
  %v785 = vunpack.c.l.b16 %v128
  %v786 = vunpack.c.h.b16 %v128
  %v787 = vunpack.c.l.b16 %v129
  %v788 = vunpack.c.h.b16 %v129
  %v789 = vunpack.c.l.b16 %v130
  %v790 = vunpack.c.h.b16 %v130
  %v791 = vunpack.c.l.b16 %v131
  %v792 = vunpack.c.h.b16 %v131
  %v793 = vunpack.c.l.b16 %v132
  %v794 = vunpack.c.h.b16 %v132
  %v795 = vunpack.c.l.b16 %v133
  %v796 = vunpack.c.h.b16 %v133
  %v797 = vunpack.c.l.b16 %v134
  %v798 = vunpack.c.h.b16 %v134
  %v799 = vunpack.c.l.b16 %v135
  %v800 = vunpack.c.h.b16 %v135
  %v801 = vunpack.c.l.b16 %v136
  %v802 = vunpack.c.h.b16 %v136
  %v803 = vunpack.c.l.b16 %v137
  %v804 = vunpack.c.h.b16 %v137
  %v805 = vunpack.c.l.b16 %v138
  %v806 = vunpack.c.h.b16 %v138
  %v807 = vunpack.c.l.b16 %v139
  %v808 = vunpack.c.h.b16 %v139
  %v809 = vunpack.c.l.b16 %v140
  %v810 = vunpack.c.h.b16 %v140
  %v811 = vunpack.c.l.b16 %v141
  %v812 = vunpack.c.h.b16 %v141
  %v813 = vunpack.c.l.b16 %v142
  %v814 = vunpack.c.h.b16 %v142
  %v815 = vunpack.c.l.b16 %v143
  %v816 = vunpack.c.h.b16 %v143
  %v817 = vunpack.c.l.b16 %v144
  %v818 = vunpack.c.h.b16 %v144
  %v819 = vunpack.c.l.b16 %v145
  %v820 = vunpack.c.h.b16 %v145
  %v821 = vunpack.c.l.b16 %v146
  %v822 = vunpack.c.h.b16 %v146
  %v823 = vunpack.c.l.b16 %v147
  %v824 = vunpack.c.h.b16 %v147
  %v825 = vunpack.c.l.b16 %v148
  %v826 = vunpack.c.h.b16 %v148
  %v827 = vunpack.c.l.b16 %v149
  %v828 = vunpack.c.h.b16 %v149
  %v829 = vunpack.c.l.b16 %v150
  %v830 = vunpack.c.h.b16 %v150
  %v831 = vunpack.c.l.b16 %v151
  %v832 = vunpack.c.h.b16 %v151
  %v833 = vunpack.c.l.b16 %v152
  %v834 = vunpack.c.h.b16 %v152
  %v835 = vunpack.c.l.b16 %v153
  %v836 = vunpack.c.h.b16 %v153
  %v837 = vunpack.c.l.b16 %v154
  %v838 = vunpack.c.h.b16 %v154
  %v839 = vunpack.c.l.b16 %v155
  %v840 = vunpack.c.h.b16 %v155
  %v841 = vunpack.c.l.b16 %v156
  %v842 = vunpack.c.h.b16 %v156
  %v843 = vunpack.c.l.b16 %v157
  %v844 = vunpack.c.h.b16 %v157
  %v845 = vunpack.c.l.b16 %v158
  %v846 = vunpack.c.h.b16 %v158
  %v847 = vunpack.c.l.b16 %v159
  %v848 = vunpack.c.h.b16 %v159
  %v849 = vunpack.c.l.b16 %v160
  %v850 = vunpack.c.h.b16 %v160
  %v851 = vunpack.c.l.b16 %v161
  %v852 = vunpack.c.h.b16 %v161
  %v853 = vunpack.c.l.b16 %v162
  %v854 = vunpack.c.h.b16 %v162
  %v855 = vunpack.c.l.b16 %v163
  %v856 = vunpack.c.h.b16 %v163
  %v857 = vunpack.c.l.b16 %v164
  %v858 = vunpack.c.h.b16 %v164
  %v859 = vunpack.c.l.b16 %v165
  %v860 = vunpack.c.h.b16 %v165
  %v861 = vunpack.c.l.b16 %v166
  %v862 = vunpack.c.h.b16 %v166
  %v863 = vunpack.c.l.b16 %v167
  %v864 = vunpack.c.h.b16 %v167
  %v865 = vunpack.c.l.b16 %v168
  %v866 = vunpack.c.h.b16 %v168
  %v867 = vunpack.c.l.b16 %v169
  %v868 = vunpack.c.h.b16 %v169
  %v869 = vunpack.c.l.b16 %v170
  %v870 = vunpack.c.h.b16 %v170
  %v871 = vunpack.c.l.b16 %v171
  %v872 = vunpack.c.h.b16 %v171
  %v873 = vunpack.c.l.b16 %v172
  %v874 = vunpack.c.h.b16 %v172
  %v875 = vunpack.c.l.b16 %v173
  %v876 = vunpack.c.h.b16 %v173
  %v877 = vunpack.c.l.b16 %v174
  %v878 = vunpack.c.h.b16 %v174
  %v879 = vunpack.c.l.b16 %v175
  %v880 = vunpack.c.h.b16 %v175
  %v881 = vunpack.c.l.b16 %v176
  %v882 = vunpack.c.h.b16 %v176
  %v883 = vunpack.c.l.b16 %v177
  %v884 = vunpack.c.h.b16 %v177
  %v885 = vunpack.c.l.b16 %v178
  %v886 = vunpack.c.h.b16 %v178
  %v887 = vunpack.c.l.b16 %v179
  %v888 = vunpack.c.h.b16 %v179
  %v889 = vunpack.c.l.b16 %v180
  %v890 = vunpack.c.h.b16 %v180
  %v891 = vunpack.c.l.b16 %v181
  %v892 = vunpack.c.h.b16 %v181
  %v893 = vunpack.c.l.b16 %v182
  %v894 = vunpack.c.h.b16 %v182
  %v895 = vunpack.c.l.b16 %v183
  %v896 = vunpack.c.h.b16 %v183
  %v897 = vunpack.c.l.b16 %v184
  %v898 = vunpack.c.h.b16 %v184
  %v899 = vunpack.c.l.b16 %v185
  %v900 = vunpack.c.h.b16 %v185
  %v901 = vunpack.c.l.b16 %v186
  %v902 = vunpack.c.h.b16 %v186
  %v903 = vunpack.c.l.b16 %v187
  %v904 = vunpack.c.h.b16 %v187
  %v905 = vunpack.c.l.b16 %v188
  %v906 = vunpack.c.h.b16 %v188
  %v907 = vunpack.c.l.b16 %v189
  %v908 = vunpack.c.h.b16 %v189
  %v909 = vunpack.c.l.b16 %v190
  %v910 = vunpack.c.h.b16 %v190
  %v911 = vunpack.c.l.b16 %v191
  %v912 = vunpack.c.h.b16 %v191
  %v913 = vunpack.c.l.b16 %v192
  %v914 = vunpack.c.h.b16 %v192
  %v915 = vunpack.c.l.b16 %v193
  %v916 = vunpack.c.h.b16 %v193
  %v917 = vunpack.c.l.b16 %v194
  %v918 = vunpack.c.h.b16 %v194
  %v919 = vunpack.c.l.b16 %v195
  %v920 = vunpack.c.h.b16 %v195
  %v921 = vunpack.c.l.b16 %v196
  %v922 = vunpack.c.h.b16 %v196
  %v923 = vunpack.c.l.b16 %v197
  %v924 = vunpack.c.h.b16 %v197
  %v925 = vunpack.c.l.b16 %v198
  %v926 = vunpack.c.h.b16 %v198
  %v927 = vunpack.c.l.b16 %v199
  %v928 = vunpack.c.h.b16 %v199
  %v929 = vunpack.c.l.b16 %v200
  %v930 = vunpack.c.h.b16 %v200
  %v931 = vunpack.c.l.b16 %v201
  %v932 = vunpack.c.h.b16 %v201
  %v933 = vunpack.c.l.b16 %v202
  %v934 = vunpack.c.h.b16 %v202
  %v935 = vunpack.c.l.b16 %v203
  %v936 = vunpack.c.h.b16 %v203
  %v937 = vunpack.c.l.b16 %v204
  %v938 = vunpack.c.h.b16 %v204
  %v939 = vunpack.c.l.b16 %v205
  %v940 = vunpack.c.h.b16 %v205
  %v941 = vunpack.c.l.b16 %v206
  %v942 = vunpack.c.h.b16 %v206
  %v943 = vunpack.c.l.b16 %v207
  %v944 = vunpack.c.h.b16 %v207
  %v945 = vunpack.c.l.b16 %v208
  %v946 = vunpack.c.h.b16 %v208
  %v947 = vunpack.c.l.b16 %v209
  %v948 = vunpack.c.h.b16 %v209
  %v949 = vunpack.c.l.b16 %v210
  %v950 = vunpack.c.h.b16 %v210
  %v951 = vunpack.c.l.b16 %v211
  %v952 = vunpack.c.h.b16 %v211
  %v953 = vunpack.c.l.b16 %v212
  %v954 = vunpack.c.h.b16 %v212
  %v955 = vunpack.c.l.b16 %v213
  %v956 = vunpack.c.h.b16 %v213
  %v957 = vunpack.c.l.b16 %v214
  %v958 = vunpack.c.h.b16 %v214
  %v959 = vunpack.c.l.b16 %v215
  %v960 = vunpack.c.h.b16 %v215
  %v961 = vunpack.c.l.b16 %v216
  %v962 = vunpack.c.h.b16 %v216
  %v963 = vunpack.c.l.b16 %v217
  %v964 = vunpack.c.h.b16 %v217
  %v965 = vunpack.c.l.b16 %v218
  %v966 = vunpack.c.h.b16 %v218
  %v967 = vunpack.c.l.b16 %v219
  %v968 = vunpack.c.h.b16 %v219
  %v969 = vunpack.c.l.b16 %v220
  %v970 = vunpack.c.h.b16 %v220
  %v971 = vunpack.c.l.b16 %v221
  %v972 = vunpack.c.h.b16 %v221
  %v973 = vunpack.c.l.b16 %v222
  %v974 = vunpack.c.h.b16 %v222
  %v975 = vunpack.c.l.b16 %v223
  %v976 = vunpack.c.h.b16 %v223
  %v977 = vunpack.c.l.b16 %v224
  %v978 = vunpack.c.h.b16 %v224
  %v979 = vunpack.c.l.b16 %v225
  %v980 = vunpack.c.h.b16 %v225
  %v981 = vunpack.c.l.b16 %v226
  %v982 = vunpack.c.h.b16 %v226
  %v983 = vunpack.c.l.b16 %v227
  %v984 = vunpack.c.h.b16 %v227
  %v985 = vunpack.c.l.b16 %v228
  %v986 = vunpack.c.h.b16 %v228
  %v987 = vunpack.c.l.b16 %v229
  %v988 = vunpack.c.h.b16 %v229
  %v989 = vunpack.c.l.b16 %v230
  %v990 = vunpack.c.h.b16 %v230
  %v991 = vunpack.c.l.b16 %v231
  %v992 = vunpack.c.h.b16 %v231
  %v993 = vunpack.c.l.b16 %v232
  %v994 = vunpack.c.h.b16 %v232
  %v995 = vunpack.c.l.b16 %v233
  %v996 = vunpack.c.h.b16 %v233
  %v997 = vunpack.c.l.b16 %v234
  %v998 = vunpack.c.h.b16 %v234
  %v999 = vunpack.c.l.b16 %v235
  %v1000 = vunpack.c.h.b16 %v235
  %v1001 = vunpack.c.l.b16 %v236
  %v1002 = vunpack.c.h.b16 %v236
  %v1003 = vunpack.c.l.b16 %v237
  %v1004 = vunpack.c.h.b16 %v237
  %v1005 = vunpack.c.l.b16 %v238
  %v1006 = vunpack.c.h.b16 %v238
  %v1007 = vunpack.c.l.b16 %v239
  %v1008 = vunpack.c.h.b16 %v239
  %v1009 = vunpack.c.l.b16 %v240
  %v1010 = vunpack.c.h.b16 %v240
  %v1011 = vunpack.c.l.b16 %v241
  %v1012 = vunpack.c.h.b16 %v241
  %v1013 = vunpack.c.l.b16 %v242
  %v1014 = vunpack.c.h.b16 %v242
  %v1015 = vunpack.c.l.b16 %v243
  %v1016 = vunpack.c.h.b16 %v243
  %v1017 = vunpack.c.l.b16 %v244
  %v1018 = vunpack.c.h.b16 %v244
  %v1019 = vunpack.c.l.b16 %v245
  %v1020 = vunpack.c.h.b16 %v245
  %v1021 = vunpack.c.l.b16 %v246
  %v1022 = vunpack.c.h.b16 %v246
  %v1023 = vunpack.c.l.b16 %v247
  %v1024 = vunpack.c.h.b16 %v247
  %v1025 = vunpack.c.l.b16 %v248
  %v1026 = vunpack.c.h.b16 %v248
  %v1027 = vunpack.c.l.b16 %v249
  %v1028 = vunpack.c.h.b16 %v249
  %v1029 = vunpack.c.l.b16 %v250
  %v1030 = vunpack.c.h.b16 %v250
  %v1031 = vunpack.c.l.b16 %v251
  %v1032 = vunpack.c.h.b16 %v251
  %v1033 = vunpack.c.l.b16 %v252
  %v1034 = vunpack.c.h.b16 %v252
  %v1035 = vunpack.c.l.b16 %v253
  %v1036 = vunpack.c.h.b16 %v253
  %v1037 = vunpack.c.l.b16 %v254
  %v1038 = vunpack.c.h.b16 %v254
  %v1039 = vunpack.c.l.b16 %v255
  %v1040 = vunpack.c.h.b16 %v255
  %v1041 = vunpack.c.l.b16 %v256
  %v1042 = vunpack.c.h.b16 %v256
  %v1043 = vunpack.c.l.b16 %v257
  %v1044 = vunpack.c.h.b16 %v257
  %v1045 = vunpack.c.l.b16 %v258
  %v1046 = vunpack.c.h.b16 %v258
  %v1047 = vunpack.c.l.b16 %v259
  %v1048 = vunpack.c.h.b16 %v259
  %v1049 = vunpack.c.l.b16 %v260
  %v1050 = vunpack.c.h.b16 %v260
  %v1051 = vunpack.c.l.b16 %v261
  %v1052 = vunpack.c.h.b16 %v261
  %v1053 = vunpack.c.l.b16 %v262
  %v1054 = vunpack.c.h.b16 %v262
  %v1055 = vunpack.c.l.b16 %v263
  %v1056 = vunpack.c.h.b16 %v263
  %v1057 = vunpack.c.l.b16 %v264
  %v1058 = vunpack.c.h.b16 %v264
  %v1059 = vunpack.c.l.b16 %v265
  %v1060 = vunpack.c.h.b16 %v265
  %v1061 = vunpack.c.l.b16 %v266
  %v1062 = vunpack.c.h.b16 %v266
  %v1063 = vunpack.c.l.b16 %v267
  %v1064 = vunpack.c.h.b16 %v267
  %v1065 = vunpack.c.l.b16 %v268
  %v1066 = vunpack.c.h.b16 %v268
  %v1067 = vunpack.c.l.b16 %v269
  %v1068 = vunpack.c.h.b16 %v269
  %v1069 = vunpack.c.l.b16 %v270
  %v1070 = vunpack.c.h.b16 %v270
  %v1071 = vunpack.c.l.b16 %v271
  %v1072 = vunpack.c.h.b16 %v271
  %v1073 = vunpack.c.l.b16 %v272
  %v1074 = vunpack.c.h.b16 %v272
  %v1075 = vunpack.c.l.b16 %v273
  %v1076 = vunpack.c.h.b16 %v273
  %v1077 = vunpack.c.l.b16 %v274
  %v1078 = vunpack.c.h.b16 %v274
  %v1079 = vunpack.c.l.b16 %v275
  %v1080 = vunpack.c.h.b16 %v275
  %v1081 = vunpack.c.l.b16 %v276
  %v1082 = vunpack.c.h.b16 %v276
  %v1083 = vunpack.c.l.b16 %v277
  %v1084 = vunpack.c.h.b16 %v277
  %v1085 = vunpack.c.l.b16 %v278
  %v1086 = vunpack.c.h.b16 %v278
  %v1087 = vunpack.c.l.b16 %v279
  %v1088 = vunpack.c.h.b16 %v279
  %v1089 = vunpack.c.l.b16 %v280
  %v1090 = vunpack.c.h.b16 %v280
  %v1091 = vunpack.c.l.b16 %v281
  %v1092 = vunpack.c.h.b16 %v281
  %v1093 = vunpack.c.l.b16 %v282
  %v1094 = vunpack.c.h.b16 %v282
  %v1095 = vunpack.c.l.b16 %v283
  %v1096 = vunpack.c.h.b16 %v283
  %v1097 = vunpack.c.l.b16 %v284
  %v1098 = vunpack.c.h.b16 %v284
  %v1099 = vunpack.c.l.b16 %v285
  %v1100 = vunpack.c.h.b16 %v285
  %v1101 = vunpack.c.l.b16 %v286
  %v1102 = vunpack.c.h.b16 %v286
  %v1103 = vunpack.c.l.b16 %v287
  %v1104 = vunpack.c.h.b16 %v287
  %v1105 = vunpack.c.l.b16 %v288
  %v1106 = vunpack.c.h.b16 %v288
  %v1107 = vpack.c.b16 %v599, %v595
  %v1108 = vpack.c.b16 %v600, %v596
  %v1109 = vpack.c.b16 %v601, %v597
  %v1110 = vpack.c.b16 %v602, %v598
  %v1111 = vpack.c.b16 %v607, %v603
  %v1112 = vpack.c.b16 %v608, %v604
  %v1113 = vpack.c.b16 %v609, %v605
  %v1114 = vpack.c.b16 %v610, %v606
  %v1115 = vpack.c.b16 %v615, %v611
  %v1116 = vpack.c.b16 %v616, %v612
  %v1117 = vpack.c.b16 %v617, %v613
  %v1118 = vpack.c.b16 %v618, %v614
  %v1119 = vpack.c.b16 %v623, %v619
  %v1120 = vpack.c.b16 %v624, %v620
  %v1121 = vpack.c.b16 %v625, %v621
  %v1122 = vpack.c.b16 %v626, %v622
  %v1123 = vpack.c.b16 %v631, %v627
  %v1124 = vpack.c.b16 %v632, %v628
  %v1125 = vpack.c.b16 %v633, %v629
  %v1126 = vpack.c.b16 %v634, %v630
  %v1127 = vpack.c.b16 %v639, %v635
  %v1128 = vpack.c.b16 %v640, %v636
  %v1129 = vpack.c.b16 %v641, %v637
  %v1130 = vpack.c.b16 %v642, %v638
  %v1131 = vpack.c.b16 %v647, %v643
  %v1132 = vpack.c.b16 %v648, %v644
  %v1133 = vpack.c.b16 %v649, %v645
  %v1134 = vpack.c.b16 %v650, %v646
  %v1135 = vpack.c.b16 %v655, %v651
  %v1136 = vpack.c.b16 %v656, %v652
  %v1137 = vpack.c.b16 %v657, %v653
  %v1138 = vpack.c.b16 %v658, %v654
  %v1139 = vpack.c.b16 %v663, %v659
  %v1140 = vpack.c.b16 %v664, %v660
  %v1141 = vpack.c.b16 %v665, %v661
  %v1142 = vpack.c.b16 %v666, %v662
  %v1143 = vpack.c.b16 %v671, %v667
  %v1144 = vpack.c.b16 %v672, %v668
  %v1145 = vpack.c.b16 %v673, %v669
  %v1146 = vpack.c.b16 %v674, %v670
  %v1147 = vpack.c.b16 %v679, %v675
  %v1148 = vpack.c.b16 %v680, %v676
  %v1149 = vpack.c.b16 %v681, %v677
  %v1150 = vpack.c.b16 %v682, %v678
  %v1151 = vpack.c.b16 %v687, %v683
  %v1152 = vpack.c.b16 %v688, %v684
  %v1153 = vpack.c.b16 %v689, %v685
  %v1154 = vpack.c.b16 %v690, %v686
  %v1155 = vpack.c.b16 %v695, %v691
  %v1156 = vpack.c.b16 %v696, %v692
  %v1157 = vpack.c.b16 %v697, %v693
  %v1158 = vpack.c.b16 %v698, %v694
  %v1159 = vpack.c.b16 %v703, %v699
  %v1160 = vpack.c.b16 %v704, %v700
  %v1161 = vpack.c.b16 %v705, %v701
  %v1162 = vpack.c.b16 %v706, %v702
  %v1163 = vpack.c.b16 %v711, %v707
  %v1164 = vpack.c.b16 %v712, %v708
  %v1165 = vpack.c.b16 %v713, %v709
  %v1166 = vpack.c.b16 %v714, %v710
  %v1167 = vpack.c.b16 %v719, %v715
  %v1168 = vpack.c.b16 %v720, %v716
  %v1169 = vpack.c.b16 %v721, %v717
  %v1170 = vpack.c.b16 %v722, %v718
  %v1171 = vpack.c.b16 %v727, %v723
  %v1172 = vpack.c.b16 %v728, %v724
  %v1173 = vpack.c.b16 %v729, %v725
  %v1174 = vpack.c.b16 %v730, %v726
  %v1175 = vpack.c.b16 %v735, %v731
  %v1176 = vpack.c.b16 %v736, %v732
  %v1177 = vpack.c.b16 %v737, %v733
  %v1178 = vpack.c.b16 %v738, %v734
  %v1179 = vpack.c.b16 %v743, %v739
  %v1180 = vpack.c.b16 %v744, %v740
  %v1181 = vpack.c.b16 %v745, %v741
  %v1182 = vpack.c.b16 %v746, %v742
  %v1183 = vpack.c.b16 %v751, %v747
  %v1184 = vpack.c.b16 %v752, %v748
  %v1185 = vpack.c.b16 %v753, %v749
  %v1186 = vpack.c.b16 %v754, %v750
  %v1187 = vpack.c.b16 %v759, %v755
  %v1188 = vpack.c.b16 %v760, %v756
  %v1189 = vpack.c.b16 %v761, %v757
  %v1190 = vpack.c.b16 %v762, %v758
  %v1191 = vpack.c.b16 %v767, %v763
  %v1192 = vpack.c.b16 %v768, %v764
  %v1193 = vpack.c.b16 %v769, %v765
  %v1194 = vpack.c.b16 %v770, %v766
  %v1195 = vpack.c.b16 %v775, %v771
  %v1196 = vpack.c.b16 %v776, %v772
  %v1197 = vpack.c.b16 %v777, %v773
  %v1198 = vpack.c.b16 %v778, %v774
  %v1199 = vpack.c.b16 %v783, %v779
  %v1200 = vpack.c.b16 %v784, %v780
  %v1201 = vpack.c.b16 %v785, %v781
  %v1202 = vpack.c.b16 %v786, %v782
  %v1203 = vpack.c.b16 %v791, %v787
  %v1204 = vpack.c.b16 %v792, %v788
  %v1205 = vpack.c.b16 %v793, %v789
  %v1206 = vpack.c.b16 %v794, %v790
  %v1207 = vpack.c.b16 %v799, %v795
  %v1208 = vpack.c.b16 %v800, %v796
  %v1209 = vpack.c.b16 %v801, %v797
  %v1210 = vpack.c.b16 %v802, %v798
  %v1211 = vpack.c.b16 %v807, %v803
  %v1212 = vpack.c.b16 %v808, %v804
  %v1213 = vpack.c.b16 %v809, %v805
  %v1214 = vpack.c.b16 %v810, %v806
  %v1215 = vpack.c.b16 %v815, %v811
  %v1216 = vpack.c.b16 %v816, %v812
  %v1217 = vpack.c.b16 %v817, %v813
  %v1218 = vpack.c.b16 %v818, %v814
  %v1219 = vpack.c.b16 %v823, %v819
  %v1220 = vpack.c.b16 %v824, %v820
  %v1221 = vpack.c.b16 %v825, %v821
  %v1222 = vpack.c.b16 %v826, %v822
  %v1223 = vpack.c.b16 %v831, %v827
  %v1224 = vpack.c.b16 %v832, %v828
  %v1225 = vpack.c.b16 %v833, %v829
  %v1226 = vpack.c.b16 %v834, %v830
  %v1227 = vpack.c.b16 %v839, %v835
  %v1228 = vpack.c.b16 %v840, %v836
  %v1229 = vpack.c.b16 %v841, %v837
  %v1230 = vpack.c.b16 %v842, %v838
  %v1231 = vpack.c.b16 %v847, %v843
  %v1232 = vpack.c.b16 %v848, %v844
  %v1233 = vpack.c.b16 %v849, %v845
  %v1234 = vpack.c.b16 %v850, %v846
  %v1235 = vpack.c.b16 %v855, %v851
  %v1236 = vpack.c.b16 %v856, %v852
  %v1237 = vpack.c.b16 %v857, %v853
  %v1238 = vpack.c.b16 %v858, %v854
  %v1239 = vpack.c.b16 %v863, %v859
  %v1240 = vpack.c.b16 %v864, %v860
  %v1241 = vpack.c.b16 %v865, %v861
  %v1242 = vpack.c.b16 %v866, %v862
  %v1243 = vpack.c.b16 %v871, %v867
  %v1244 = vpack.c.b16 %v872, %v868
  %v1245 = vpack.c.b16 %v873, %v869
  %v1246 = vpack.c.b16 %v874, %v870
  %v1247 = vpack.c.b16 %v879, %v875
  %v1248 = vpack.c.b16 %v880, %v876
  %v1249 = vpack.c.b16 %v881, %v877
  %v1250 = vpack.c.b16 %v882, %v878
  %v1251 = vpack.c.b16 %v887, %v883
  %v1252 = vpack.c.b16 %v888, %v884
  %v1253 = vpack.c.b16 %v889, %v885
  %v1254 = vpack.c.b16 %v890, %v886
  %v1255 = vpack.c.b16 %v895, %v891
  %v1256 = vpack.c.b16 %v896, %v892
  %v1257 = vpack.c.b16 %v897, %v893
  %v1258 = vpack.c.b16 %v898, %v894
  %v1259 = vpack.c.b16 %v903, %v899
  %v1260 = vpack.c.b16 %v904, %v900
  %v1261 = vpack.c.b16 %v905, %v901
  %v1262 = vpack.c.b16 %v906, %v902
  %v1263 = vpack.c.b16 %v911, %v907
  %v1264 = vpack.c.b16 %v912, %v908
  %v1265 = vpack.c.b16 %v913, %v909
  %v1266 = vpack.c.b16 %v914, %v910
  %v1267 = vpack.c.b16 %v919, %v915
  %v1268 = vpack.c.b16 %v920, %v916
  %v1269 = vpack.c.b16 %v921, %v917
  %v1270 = vpack.c.b16 %v922, %v918
  %v1271 = vpack.c.b16 %v927, %v923
  %v1272 = vpack.c.b16 %v928, %v924
  %v1273 = vpack.c.b16 %v929, %v925
  %v1274 = vpack.c.b16 %v930, %v926
  %v1275 = vpack.c.b16 %v935, %v931
  %v1276 = vpack.c.b16 %v936, %v932
  %v1277 = vpack.c.b16 %v937, %v933
  %v1278 = vpack.c.b16 %v938, %v934
  %v1279 = vpack.c.b16 %v943, %v939
  %v1280 = vpack.c.b16 %v944, %v940
  %v1281 = vpack.c.b16 %v945, %v941
  %v1282 = vpack.c.b16 %v946, %v942
  %v1283 = vpack.c.b16 %v951, %v947
  %v1284 = vpack.c.b16 %v952, %v948
  %v1285 = vpack.c.b16 %v953, %v949
  %v1286 = vpack.c.b16 %v954, %v950
  %v1287 = vpack.c.b16 %v959, %v955
  %v1288 = vpack.c.b16 %v960, %v956
  %v1289 = vpack.c.b16 %v961, %v957
  %v1290 = vpack.c.b16 %v962, %v958
  %v1291 = vpack.c.b16 %v967, %v963
  %v1292 = vpack.c.b16 %v968, %v964
  %v1293 = vpack.c.b16 %v969, %v965
  %v1294 = vpack.c.b16 %v970, %v966
  %v1295 = vpack.c.b16 %v975, %v971
  %v1296 = vpack.c.b16 %v976, %v972
  %v1297 = vpack.c.b16 %v977, %v973
  %v1298 = vpack.c.b16 %v978, %v974
  %v1299 = vpack.c.b16 %v983, %v979
  %v1300 = vpack.c.b16 %v984, %v980
  %v1301 = vpack.c.b16 %v985, %v981
  %v1302 = vpack.c.b16 %v986, %v982
  %v1303 = vpack.c.b16 %v991, %v987
  %v1304 = vpack.c.b16 %v992, %v988
  %v1305 = vpack.c.b16 %v993, %v989
  %v1306 = vpack.c.b16 %v994, %v990
  %v1307 = vpack.c.b16 %v999, %v995
  %v1308 = vpack.c.b16 %v1000, %v996
  %v1309 = vpack.c.b16 %v1001, %v997
  %v1310 = vpack.c.b16 %v1002, %v998
  %v1311 = vpack.c.b16 %v1007, %v1003
  %v1312 = vpack.c.b16 %v1008, %v1004
  %v1313 = vpack.c.b16 %v1009, %v1005
  %v1314 = vpack.c.b16 %v1010, %v1006
  %v1315 = vpack.c.b16 %v1015, %v1011
  %v1316 = vpack.c.b16 %v1016, %v1012
  %v1317 = vpack.c.b16 %v1017, %v1013
  %v1318 = vpack.c.b16 %v1018, %v1014
  %v1319 = vpack.c.b16 %v1023, %v1019
  %v1320 = vpack.c.b16 %v1024, %v1020
  %v1321 = vpack.c.b16 %v1025, %v1021
  %v1322 = vpack.c.b16 %v1026, %v1022
  %v1323 = vpack.c.b16 %v1031, %v1027
  %v1324 = vpack.c.b16 %v1032, %v1028
  %v1325 = vpack.c.b16 %v1033, %v1029
  %v1326 = vpack.c.b16 %v1034, %v1030
  %v1327 = vpack.c.b16 %v1039, %v1035
  %v1328 = vpack.c.b16 %v1040, %v1036
  %v1329 = vpack.c.b16 %v1041, %v1037
  %v1330 = vpack.c.b16 %v1042, %v1038
  %v1331 = vpack.c.b16 %v1047, %v1043
  %v1332 = vpack.c.b16 %v1048, %v1044
  %v1333 = vpack.c.b16 %v1049, %v1045
  %v1334 = vpack.c.b16 %v1050, %v1046
  %v1335 = vpack.c.b16 %v1055, %v1051
  %v1336 = vpack.c.b16 %v1056, %v1052
  %v1337 = vpack.c.b16 %v1057, %v1053
  %v1338 = vpack.c.b16 %v1058, %v1054
  %v1339 = vpack.c.b16 %v1063, %v1059
  %v1340 = vpack.c.b16 %v1064, %v1060
  %v1341 = vpack.c.b16 %v1065, %v1061
  %v1342 = vpack.c.b16 %v1066, %v1062
  %v1343 = vpack.c.b16 %v1071, %v1067
  %v1344 = vpack.c.b16 %v1072, %v1068
  %v1345 = vpack.c.b16 %v1073, %v1069
  %v1346 = vpack.c.b16 %v1074, %v1070
  %v1347 = vpack.c.b16 %v1079, %v1075
  %v1348 = vpack.c.b16 %v1080, %v1076
  %v1349 = vpack.c.b16 %v1081, %v1077
  %v1350 = vpack.c.b16 %v1082, %v1078
  %v1351 = vpack.c.b16 %v1087, %v1083
  %v1352 = vpack.c.b16 %v1088, %v1084
  %v1353 = vpack.c.b16 %v1089, %v1085
  %v1354 = vpack.c.b16 %v1090, %v1086
  %v1355 = vpack.c.b16 %v1095, %v1091
  %v1356 = vpack.c.b16 %v1096, %v1092
  %v1357 = vpack.c.b16 %v1097, %v1093
  %v1358 = vpack.c.b16 %v1098, %v1094
  %v1359 = vpack.c.b16 %v1103, %v1099
  %v1360 = vpack.c.b16 %v1104, %v1100
  %v1361 = vpack.c.b16 %v1105, %v1101
  %v1362 = vpack.c.b16 %v1106, %v1102
  %1619 = vmatprep.subr.bf16.mxu0 %v1136
  %1620 = vmatpush1.bf16.msra.mxu0 %v1135
  %1621 = vmatprep.subr.bf16.mxu0 %v1132
  %1622 = vmatpush1.bf16.msra.mxu0 %v1131
  %1623 = vmatprep.subr.bf16.mxu0 %v1128
  %1624 = vmatpush1.bf16.msra.mxu0 %v1127
  %1625 = vmatprep.subr.bf16.mxu0 %v1124
  %1626 = vmatpush1.bf16.msra.mxu0 %v1123
  %1627 = vmatprep.subr.bf16.mxu0 %v1120
  %1628 = vmatpush1.bf16.msra.mxu0 %v1119
  %1629 = vmatprep.subr.bf16.mxu0 %v1116
  %1630 = vmatpush1.bf16.msra.mxu0 %v1115
  %1631 = vmatprep.subr.bf16.mxu0 %v1112
  %1632 = vmatpush1.bf16.msra.mxu0 %v1111
  %1633 = vmatprep.subr.bf16.mxu0 %v1108
  %1634 = vmatpush1.bf16.msra.mxu0 %v1107
  %1635 = vmatprep.subr.bf16.mxu0 %v1168
  %1636 = vmatpush2.bf16.msra.mxu0 %v1167
  %1637 = vmatprep.subr.bf16.mxu0 %v1164
  %1638 = vmatpush2.bf16.msra.mxu0 %v1163
  %1639 = vmatprep.subr.bf16.mxu0 %v1160
  %1640 = vmatpush2.bf16.msra.mxu0 %v1159
  %1641 = vmatprep.subr.bf16.mxu0 %v1156
  %1642 = vmatpush2.bf16.msra.mxu0 %v1155
  %1643 = vmatprep.subr.bf16.mxu0 %v1152
  %1644 = vmatpush2.bf16.msra.mxu0 %v1151
  %1645 = vmatprep.subr.bf16.mxu0 %v1148
  %1646 = vmatpush2.bf16.msra.mxu0 %v1147
  %1647 = vmatprep.subr.bf16.mxu0 %v1144
  %1648 = vmatpush2.bf16.msra.mxu0 %v1143
  %1649 = vmatprep.subr.bf16.mxu0 %v1140
  %1650 = vmatpush2.bf16.msra.mxu0 %v1139
  %1651 = vmatprep.mubr.bf16.mxu0 %v324
  %1652 = vmatmul.mubr.bf16.gmra.mxu0 %v323
  %v1653 = vpop.f32.mrf.mxu0
  %v1654 = vadd.f32 %v294, %v1653
  %v1655 = vpop.f32.mrf.mxu0
  %v1656 = vadd.f32 %v298, %v1655
  %v1657 = vpop.f32.mrf.mxu0
  %v1658 = vpop.f32.mrf.mxu0
  %1659 = vdwg.mxu0
  %1660 = vmatprep.subr.bf16.mxu0 %v1200
  %1661 = vmatpush1.bf16.msra.mxu0 %v1199
  %1662 = vmatprep.subr.bf16.mxu0 %v1196
  %1663 = vmatpush1.bf16.msra.mxu0 %v1195
  %1664 = vmatprep.subr.bf16.mxu0 %v1192
  %1665 = vmatpush1.bf16.msra.mxu0 %v1191
  %1666 = vmatprep.subr.bf16.mxu0 %v1188
  %1667 = vmatpush1.bf16.msra.mxu0 %v1187
  %1668 = vmatprep.subr.bf16.mxu0 %v1184
  %1669 = vmatpush1.bf16.msra.mxu0 %v1183
  %1670 = vmatprep.subr.bf16.mxu0 %v1180
  %1671 = vmatpush1.bf16.msra.mxu0 %v1179
  %1672 = vmatprep.subr.bf16.mxu0 %v1176
  %1673 = vmatpush1.bf16.msra.mxu0 %v1175
  %1674 = vmatprep.subr.bf16.mxu0 %v1172
  %1675 = vmatpush1.bf16.msra.mxu0 %v1171
  %1676 = vmatprep.subr.bf16.mxu0 %v1232
  %1677 = vmatpush2.bf16.msra.mxu0 %v1231
  %1678 = vmatprep.subr.bf16.mxu0 %v1228
  %1679 = vmatpush2.bf16.msra.mxu0 %v1227
  %1680 = vmatprep.subr.bf16.mxu0 %v1224
  %1681 = vmatpush2.bf16.msra.mxu0 %v1223
  %1682 = vmatprep.subr.bf16.mxu0 %v1220
  %1683 = vmatpush2.bf16.msra.mxu0 %v1219
  %1684 = vmatprep.subr.bf16.mxu0 %v1216
  %1685 = vmatpush2.bf16.msra.mxu0 %v1215
  %1686 = vmatprep.subr.bf16.mxu0 %v1212
  %1687 = vmatpush2.bf16.msra.mxu0 %v1211
  %1688 = vmatprep.subr.bf16.mxu0 %v1208
  %1689 = vmatpush2.bf16.msra.mxu0 %v1207
  %1690 = vmatprep.subr.bf16.mxu0 %v1204
  %1691 = vmatpush2.bf16.msra.mxu0 %v1203
  %1692 = vmatprep.mubr.bf16.mxu0 %v326
  %1693 = vmatmul.mubr.bf16.gmra.mxu0 %v325
  %v1694 = vpop.f32.mrf.mxu0
  %v1695 = vadd.f32 %v1654, %v1694
  %v1696 = vpop.f32.mrf.mxu0
  %v1697 = vadd.f32 %v1656, %v1696
  %v1698 = vpop.f32.mrf.mxu0
  %v1699 = vpop.f32.mrf.mxu0
  %1700 = vdwg.mxu0
  %1701 = vmatprep.subr.bf16.mxu0 %v1264
  %1702 = vmatpush1.bf16.msra.mxu0 %v1263
  %1703 = vmatprep.subr.bf16.mxu0 %v1260
  %1704 = vmatpush1.bf16.msra.mxu0 %v1259
  %1705 = vmatprep.subr.bf16.mxu0 %v1256
  %1706 = vmatpush1.bf16.msra.mxu0 %v1255
  %1707 = vmatprep.subr.bf16.mxu0 %v1252
  %1708 = vmatpush1.bf16.msra.mxu0 %v1251
  %1709 = vmatprep.subr.bf16.mxu0 %v1248
  %1710 = vmatpush1.bf16.msra.mxu0 %v1247
  %1711 = vmatprep.subr.bf16.mxu0 %v1244
  %1712 = vmatpush1.bf16.msra.mxu0 %v1243
  %1713 = vmatprep.subr.bf16.mxu0 %v1240
  %1714 = vmatpush1.bf16.msra.mxu0 %v1239
  %1715 = vmatprep.subr.bf16.mxu0 %v1236
  %1716 = vmatpush1.bf16.msra.mxu0 %v1235
  %1717 = vmatprep.subr.bf16.mxu0 %v1296
  %1718 = vmatpush2.bf16.msra.mxu0 %v1295
  %1719 = vmatprep.subr.bf16.mxu0 %v1292
  %1720 = vmatpush2.bf16.msra.mxu0 %v1291
  %1721 = vmatprep.subr.bf16.mxu0 %v1288
  %1722 = vmatpush2.bf16.msra.mxu0 %v1287
  %1723 = vmatprep.subr.bf16.mxu0 %v1284
  %1724 = vmatpush2.bf16.msra.mxu0 %v1283
  %1725 = vmatprep.subr.bf16.mxu0 %v1280
  %1726 = vmatpush2.bf16.msra.mxu0 %v1279
  %1727 = vmatprep.subr.bf16.mxu0 %v1276
  %1728 = vmatpush2.bf16.msra.mxu0 %v1275
  %1729 = vmatprep.subr.bf16.mxu0 %v1272
  %1730 = vmatpush2.bf16.msra.mxu0 %v1271
  %1731 = vmatprep.subr.bf16.mxu0 %v1268
  %1732 = vmatpush2.bf16.msra.mxu0 %v1267
  %1733 = vmatprep.mubr.bf16.mxu0 %v328
  %1734 = vmatmul.mubr.bf16.gmra.mxu0 %v327
  %v1735 = vpop.f32.mrf.mxu0
  %v1736 = vadd.f32 %v1695, %v1735
  %v1737 = vpop.f32.mrf.mxu0
  %v1738 = vadd.f32 %v1697, %v1737
  %v1739 = vpop.f32.mrf.mxu0
  %v1740 = vpop.f32.mrf.mxu0
  %1741 = vdwg.mxu0
  %1742 = vmatprep.subr.bf16.mxu0 %v1328
  %1743 = vmatpush1.bf16.msra.mxu0 %v1327
  %1744 = vmatprep.subr.bf16.mxu0 %v1324
  %1745 = vmatpush1.bf16.msra.mxu0 %v1323
  %1746 = vmatprep.subr.bf16.mxu0 %v1320
  %1747 = vmatpush1.bf16.msra.mxu0 %v1319
  %1748 = vmatprep.subr.bf16.mxu0 %v1316
  %1749 = vmatpush1.bf16.msra.mxu0 %v1315
  %1750 = vmatprep.subr.bf16.mxu0 %v1312
  %1751 = vmatpush1.bf16.msra.mxu0 %v1311
  %1752 = vmatprep.subr.bf16.mxu0 %v1308
  %1753 = vmatpush1.bf16.msra.mxu0 %v1307
  %1754 = vmatprep.subr.bf16.mxu0 %v1304
  %1755 = vmatpush1.bf16.msra.mxu0 %v1303
  %1756 = vmatprep.subr.bf16.mxu0 %v1300
  %1757 = vmatpush1.bf16.msra.mxu0 %v1299
  %1758 = vmatprep.subr.bf16.mxu0 %v1360
  %1759 = vmatpush2.bf16.msra.mxu0 %v1359
  %1760 = vmatprep.subr.bf16.mxu0 %v1356
  %1761 = vmatpush2.bf16.msra.mxu0 %v1355
  %1762 = vmatprep.subr.bf16.mxu0 %v1352
  %1763 = vmatpush2.bf16.msra.mxu0 %v1351
  %1764 = vmatprep.subr.bf16.mxu0 %v1348
  %1765 = vmatpush2.bf16.msra.mxu0 %v1347
  %1766 = vmatprep.subr.bf16.mxu0 %v1344
  %1767 = vmatpush2.bf16.msra.mxu0 %v1343
  %1768 = vmatprep.subr.bf16.mxu0 %v1340
  %1769 = vmatpush2.bf16.msra.mxu0 %v1339
  %1770 = vmatprep.subr.bf16.mxu0 %v1336
  %1771 = vmatpush2.bf16.msra.mxu0 %v1335
  %1772 = vmatprep.subr.bf16.mxu0 %v1332
  %1773 = vmatpush2.bf16.msra.mxu0 %v1331
  %1774 = vmatprep.mubr.bf16.mxu0 %v330
  %1775 = vmatmul.mubr.bf16.gmra.mxu0 %v329
  %v1776 = vpop.f32.mrf.mxu0
  %v1777 = vadd.f32 %v1736, %v1776
  %v1778 = vpop.f32.mrf.mxu0
  %v1779 = vadd.f32 %v1738, %v1778
  %v1780 = vpop.f32.mrf.mxu0
  %v1781 = vpop.f32.mrf.mxu0
  %1782 = vdwg.mxu0
  %1783 = vmatprep.subr.bf16.mxu0 %v1138
  %1784 = vmatpush1.bf16.msra.mxu0 %v1137
  %1785 = vmatprep.subr.bf16.mxu0 %v1134
  %1786 = vmatpush1.bf16.msra.mxu0 %v1133
  %1787 = vmatprep.subr.bf16.mxu0 %v1130
  %1788 = vmatpush1.bf16.msra.mxu0 %v1129
  %1789 = vmatprep.subr.bf16.mxu0 %v1126
  %1790 = vmatpush1.bf16.msra.mxu0 %v1125
  %1791 = vmatprep.subr.bf16.mxu0 %v1122
  %1792 = vmatpush1.bf16.msra.mxu0 %v1121
  %1793 = vmatprep.subr.bf16.mxu0 %v1118
  %1794 = vmatpush1.bf16.msra.mxu0 %v1117
  %1795 = vmatprep.subr.bf16.mxu0 %v1114
  %1796 = vmatpush1.bf16.msra.mxu0 %v1113
  %1797 = vmatprep.subr.bf16.mxu0 %v1110
  %1798 = vmatpush1.bf16.msra.mxu0 %v1109
  %1799 = vmatprep.subr.bf16.mxu0 %v1170
  %1800 = vmatpush2.bf16.msra.mxu0 %v1169
  %1801 = vmatprep.subr.bf16.mxu0 %v1166
  %1802 = vmatpush2.bf16.msra.mxu0 %v1165
  %1803 = vmatprep.subr.bf16.mxu0 %v1162
  %1804 = vmatpush2.bf16.msra.mxu0 %v1161
  %1805 = vmatprep.subr.bf16.mxu0 %v1158
  %1806 = vmatpush2.bf16.msra.mxu0 %v1157
  %1807 = vmatprep.subr.bf16.mxu0 %v1154
  %1808 = vmatpush2.bf16.msra.mxu0 %v1153
  %1809 = vmatprep.subr.bf16.mxu0 %v1150
  %1810 = vmatpush2.bf16.msra.mxu0 %v1149
  %1811 = vmatprep.subr.bf16.mxu0 %v1146
  %1812 = vmatpush2.bf16.msra.mxu0 %v1145
  %1813 = vmatprep.subr.bf16.mxu0 %v1142
  %1814 = vmatpush2.bf16.msra.mxu0 %v1141
  %1815 = vmatprep.mubr.bf16.mxu0 %v324
  %1816 = vmatmul.mubr.bf16.gmra.mxu0 %v323
  %v1817 = vpop.f32.mrf.mxu0
  %v1818 = vadd.f32 %v302, %v1817
  %v1819 = vpop.f32.mrf.mxu0
  %v1820 = vadd.f32 %v306, %v1819
  %v1821 = vpop.f32.mrf.mxu0
  %v1822 = vpop.f32.mrf.mxu0
  %1823 = vdwg.mxu0
  %1824 = vmatprep.subr.bf16.mxu0 %v1202
  %1825 = vmatpush1.bf16.msra.mxu0 %v1201
  %1826 = vmatprep.subr.bf16.mxu0 %v1198
  %1827 = vmatpush1.bf16.msra.mxu0 %v1197
  %1828 = vmatprep.subr.bf16.mxu0 %v1194
  %1829 = vmatpush1.bf16.msra.mxu0 %v1193
  %1830 = vmatprep.subr.bf16.mxu0 %v1190
  %1831 = vmatpush1.bf16.msra.mxu0 %v1189
  %1832 = vmatprep.subr.bf16.mxu0 %v1186
  %1833 = vmatpush1.bf16.msra.mxu0 %v1185
  %1834 = vmatprep.subr.bf16.mxu0 %v1182
  %1835 = vmatpush1.bf16.msra.mxu0 %v1181
  %1836 = vmatprep.subr.bf16.mxu0 %v1178
  %1837 = vmatpush1.bf16.msra.mxu0 %v1177
  %1838 = vmatprep.subr.bf16.mxu0 %v1174
  %1839 = vmatpush1.bf16.msra.mxu0 %v1173
  %1840 = vmatprep.subr.bf16.mxu0 %v1234
  %1841 = vmatpush2.bf16.msra.mxu0 %v1233
  %1842 = vmatprep.subr.bf16.mxu0 %v1230
  %1843 = vmatpush2.bf16.msra.mxu0 %v1229
  %1844 = vmatprep.subr.bf16.mxu0 %v1226
  %1845 = vmatpush2.bf16.msra.mxu0 %v1225
  %1846 = vmatprep.subr.bf16.mxu0 %v1222
  %1847 = vmatpush2.bf16.msra.mxu0 %v1221
  %1848 = vmatprep.subr.bf16.mxu0 %v1218
  %1849 = vmatpush2.bf16.msra.mxu0 %v1217
  %1850 = vmatprep.subr.bf16.mxu0 %v1214
  %1851 = vmatpush2.bf16.msra.mxu0 %v1213
  %1852 = vmatprep.subr.bf16.mxu0 %v1210
  %1853 = vmatpush2.bf16.msra.mxu0 %v1209
  %1854 = vmatprep.subr.bf16.mxu0 %v1206
  %1855 = vmatpush2.bf16.msra.mxu0 %v1205
  %1856 = vmatprep.mubr.bf16.mxu0 %v326
  %1857 = vmatmul.mubr.bf16.gmra.mxu0 %v325
  %v1858 = vpop.f32.mrf.mxu0
  %v1859 = vadd.f32 %v1818, %v1858
  %v1860 = vpop.f32.mrf.mxu0
  %v1861 = vadd.f32 %v1820, %v1860
  %v1862 = vpop.f32.mrf.mxu0
  %v1863 = vpop.f32.mrf.mxu0
  %1864 = vdwg.mxu0
  %1865 = vmatprep.subr.bf16.mxu0 %v1266
  %1866 = vmatpush1.bf16.msra.mxu0 %v1265
  %1867 = vmatprep.subr.bf16.mxu0 %v1262
  %1868 = vmatpush1.bf16.msra.mxu0 %v1261
  %1869 = vmatprep.subr.bf16.mxu0 %v1258
  %1870 = vmatpush1.bf16.msra.mxu0 %v1257
  %1871 = vmatprep.subr.bf16.mxu0 %v1254
  %1872 = vmatpush1.bf16.msra.mxu0 %v1253
  %1873 = vmatprep.subr.bf16.mxu0 %v1250
  %1874 = vmatpush1.bf16.msra.mxu0 %v1249
  %1875 = vmatprep.subr.bf16.mxu0 %v1246
  %1876 = vmatpush1.bf16.msra.mxu0 %v1245
  %1877 = vmatprep.subr.bf16.mxu0 %v1242
  %1878 = vmatpush1.bf16.msra.mxu0 %v1241
  %1879 = vmatprep.subr.bf16.mxu0 %v1238
  %1880 = vmatpush1.bf16.msra.mxu0 %v1237
  %1881 = vmatprep.subr.bf16.mxu0 %v1298
  %1882 = vmatpush2.bf16.msra.mxu0 %v1297
  %1883 = vmatprep.subr.bf16.mxu0 %v1294
  %1884 = vmatpush2.bf16.msra.mxu0 %v1293
  %1885 = vmatprep.subr.bf16.mxu0 %v1290
  %1886 = vmatpush2.bf16.msra.mxu0 %v1289
  %1887 = vmatprep.subr.bf16.mxu0 %v1286
  %1888 = vmatpush2.bf16.msra.mxu0 %v1285
  %1889 = vmatprep.subr.bf16.mxu0 %v1282
  %1890 = vmatpush2.bf16.msra.mxu0 %v1281
  %1891 = vmatprep.subr.bf16.mxu0 %v1278
  %1892 = vmatpush2.bf16.msra.mxu0 %v1277
  %1893 = vmatprep.subr.bf16.mxu0 %v1274
  %1894 = vmatpush2.bf16.msra.mxu0 %v1273
  %1895 = vmatprep.subr.bf16.mxu0 %v1270
  %1896 = vmatpush2.bf16.msra.mxu0 %v1269
  %1897 = vmatprep.mubr.bf16.mxu0 %v328
  %1898 = vmatmul.mubr.bf16.gmra.mxu0 %v327
  %v1899 = vpop.f32.mrf.mxu0
  %v1900 = vadd.f32 %v1859, %v1899
  %v1901 = vpop.f32.mrf.mxu0
  %v1902 = vadd.f32 %v1861, %v1901
  %v1903 = vpop.f32.mrf.mxu0
  %v1904 = vpop.f32.mrf.mxu0
  %1905 = vdwg.mxu0
  %1906 = vmatprep.subr.bf16.mxu0 %v1330
  %1907 = vmatpush1.bf16.msra.mxu0 %v1329
  %1908 = vmatprep.subr.bf16.mxu0 %v1326
  %1909 = vmatpush1.bf16.msra.mxu0 %v1325
  %1910 = vmatprep.subr.bf16.mxu0 %v1322
  %1911 = vmatpush1.bf16.msra.mxu0 %v1321
  %1912 = vmatprep.subr.bf16.mxu0 %v1318
  %1913 = vmatpush1.bf16.msra.mxu0 %v1317
  %1914 = vmatprep.subr.bf16.mxu0 %v1314
  %1915 = vmatpush1.bf16.msra.mxu0 %v1313
  %1916 = vmatprep.subr.bf16.mxu0 %v1310
  %1917 = vmatpush1.bf16.msra.mxu0 %v1309
  %1918 = vmatprep.subr.bf16.mxu0 %v1306
  %1919 = vmatpush1.bf16.msra.mxu0 %v1305
  %1920 = vmatprep.subr.bf16.mxu0 %v1302
  %1921 = vmatpush1.bf16.msra.mxu0 %v1301
  %1922 = vmatprep.subr.bf16.mxu0 %v1362
  %1923 = vmatpush2.bf16.msra.mxu0 %v1361
  %1924 = vmatprep.subr.bf16.mxu0 %v1358
  %1925 = vmatpush2.bf16.msra.mxu0 %v1357
  %1926 = vmatprep.subr.bf16.mxu0 %v1354
  %1927 = vmatpush2.bf16.msra.mxu0 %v1353
  %1928 = vmatprep.subr.bf16.mxu0 %v1350
  %1929 = vmatpush2.bf16.msra.mxu0 %v1349
  %1930 = vmatprep.subr.bf16.mxu0 %v1346
  %1931 = vmatpush2.bf16.msra.mxu0 %v1345
  %1932 = vmatprep.subr.bf16.mxu0 %v1342
  %1933 = vmatpush2.bf16.msra.mxu0 %v1341
  %1934 = vmatprep.subr.bf16.mxu0 %v1338
  %1935 = vmatpush2.bf16.msra.mxu0 %v1337
  %1936 = vmatprep.subr.bf16.mxu0 %v1334
  %1937 = vmatpush2.bf16.msra.mxu0 %v1333
  %1938 = vmatprep.mubr.bf16.mxu0 %v330
  %1939 = vmatmul.mubr.bf16.gmra.mxu0 %v329
  %v1940 = vpop.f32.mrf.mxu0
  %v1941 = vadd.f32 %v1900, %v1940
  %v1942 = vpop.f32.mrf.mxu0
  %v1943 = vadd.f32 %v1902, %v1942
  %v1944 = vpop.f32.mrf.mxu0
  %v1945 = vpop.f32.mrf.mxu0
  %1946 = vdwg.mxu0
  %vm1947 = vcmp.ge.f32.partialorder %v1777, 0.0
  %vm1948 = vcmp.ge.f32.partialorder %v1779, 0.0
  %vm1949 = vcmp.ge.f32.partialorder %v1941, 0.0
  %vm1950 = vcmp.ge.f32.partialorder %v1943, 0.0
  %v1951 = vmul.f32 %v1777, 0.1
  %v1952 = vmul.f32 %v1779, 0.1
  %v1953 = vmul.f32 %v1941, 0.1
  %v1954 = vmul.f32 %v1943, 0.1
  %v1955 = vsel %vm1947, %v1777, %v1951
  %v1956 = vsel %vm1948, %v1779, %v1952
  %v1957 = vsel %vm1949, %v1941, %v1953
  %v1958 = vsel %vm1950, %v1943, %v1954
  %v1959 = vpack.c.bf16 %v1955, %v1955
  %v1960 = vpack.c.bf16 %v1956, %v1956
  %v1961 = vpack.c.bf16 %v1957, %v1957
  %v1962 = vpack.c.bf16 %v1958, %v1958
  %v1967 = vunpack.c.l.b16 %v1959
  %v1968 = vunpack.c.l.b16 %v1960
  %v1969 = vunpack.c.l.b16 %v1961
  %v1970 = vunpack.c.l.b16 %v1962
  %v1971 = vpack.c.b16 %v1968, %v1967
  %v1972 = vpack.c.b16 %v1970, %v1969
  %1975 = vst [vmem:[%s7] sm:$0xff] %v1971
  %1976 = vst [vmem:[%s7 + $0x8] sm:$0xff] %v1972
  %v1977 = vld [vmem:[%s3] sm:$0xf]
  %v1978 = vld [vmem:[%s3 + $0x4] sm:$0xf]
  %v1979 = vld [vmem:[%s3 + $0x8] sm:$0xf]
  %v1980 = vld [vmem:[%s3 + $0xc] sm:$0xf]
  %v1981 = vld [vmem:[%s3 + $0x10] sm:$0xf]
  %v1982 = vld [vmem:[%s3 + $0x14] sm:$0xf]
  %v1983 = vld [vmem:[%s3 + $0x18] sm:$0xf]
  %v1984 = vld [vmem:[%s3 + $0x1c] sm:$0xf]
  %v1985 = vld [vmem:[%s3 + $0x20] sm:$0xf]
  %v1986 = vld [vmem:[%s3 + $0x24] sm:$0xf]
  %v1987 = vld [vmem:[%s3 + $0x28] sm:$0xf]
  %v1988 = vld [vmem:[%s3 + $0x2c] sm:$0xf]
  %v1989 = vld [vmem:[%s3 + $0x30] sm:$0xf]
  %v1990 = vld [vmem:[%s3 + $0x34] sm:$0xf]
  %v1991 = vld [vmem:[%s3 + $0x38] sm:$0xf]
  %v1992 = vld [vmem:[%s3 + $0x3c] sm:$0xf]
  %v1993 = vld [vmem:[%s3 + $0x40] sm:$0xf]
  %v1994 = vld [vmem:[%s3 + $0x44] sm:$0xf]
  %v1995 = vld [vmem:[%s3 + $0x48] sm:$0xf]
  %v1996 = vld [vmem:[%s3 + $0x4c] sm:$0xf]
  %v1997 = vld [vmem:[%s3 + $0x50] sm:$0xf]
  %v1998 = vld [vmem:[%s3 + $0x54] sm:$0xf]
  %v1999 = vld [vmem:[%s3 + $0x58] sm:$0xf]
  %v2000 = vld [vmem:[%s3 + $0x5c] sm:$0xf]
  %v2001 = vld [vmem:[%s3 + $0x60] sm:$0xf]
  %v2002 = vld [vmem:[%s3 + $0x64] sm:$0xf]
  %v2003 = vld [vmem:[%s3 + $0x68] sm:$0xf]
  %v2004 = vld [vmem:[%s3 + $0x6c] sm:$0xf]
  %v2005 = vld [vmem:[%s3 + $0x70] sm:$0xf]
  %v2006 = vld [vmem:[%s3 + $0x74] sm:$0xf]
  %v2007 = vld [vmem:[%s3 + $0x78] sm:$0xf]
  %v2008 = vld [vmem:[%s3 + $0x7c] sm:$0xf]
  %v2009 = vld [vmem:[%s3 + $0x80] sm:$0xf]
  %v2010 = vld [vmem:[%s3 + $0x84] sm:$0xf]
  %v2011 = vld [vmem:[%s3 + $0x88] sm:$0xf]
  %v2012 = vld [vmem:[%s3 + $0x8c] sm:$0xf]
  %v2013 = vld [vmem:[%s3 + $0x90] sm:$0xf]
  %v2014 = vld [vmem:[%s3 + $0x94] sm:$0xf]
  %v2015 = vld [vmem:[%s3 + $0x98] sm:$0xf]
  %v2016 = vld [vmem:[%s3 + $0x9c] sm:$0xf]
  %v2017 = vld [vmem:[%s3 + $0xa0] sm:$0xf]
  %v2018 = vld [vmem:[%s3 + $0xa4] sm:$0xf]
  %v2019 = vld [vmem:[%s3 + $0xa8] sm:$0xf]
  %v2020 = vld [vmem:[%s3 + $0xac] sm:$0xf]
  %v2021 = vld [vmem:[%s3 + $0xb0] sm:$0xf]
  %v2022 = vld [vmem:[%s3 + $0xb4] sm:$0xf]
  %v2023 = vld [vmem:[%s3 + $0xb8] sm:$0xf]
  %v2024 = vld [vmem:[%s3 + $0xbc] sm:$0xf]
  %v2025 = vld [vmem:[%s3 + $0xc0] sm:$0xf]
  %v2026 = vld [vmem:[%s3 + $0xc4] sm:$0xf]
  %v2027 = vld [vmem:[%s3 + $0xc8] sm:$0xf]
  %v2028 = vld [vmem:[%s3 + $0xcc] sm:$0xf]
  %v2029 = vld [vmem:[%s3 + $0xd0] sm:$0xf]
  %v2030 = vld [vmem:[%s3 + $0xd4] sm:$0xf]
  %v2031 = vld [vmem:[%s3 + $0xd8] sm:$0xf]
  %v2032 = vld [vmem:[%s3 + $0xdc] sm:$0xf]
  %v2033 = vld [vmem:[%s3 + $0xe0] sm:$0xf]
  %v2034 = vld [vmem:[%s3 + $0xe4] sm:$0xf]
  %v2035 = vld [vmem:[%s3 + $0xe8] sm:$0xf]
  %v2036 = vld [vmem:[%s3 + $0xec] sm:$0xf]
  %v2037 = vld [vmem:[%s3 + $0xf0] sm:$0xf]
  %v2038 = vld [vmem:[%s3 + $0xf4] sm:$0xf]
  %v2039 = vld [vmem:[%s3 + $0xf8] sm:$0xf]
  %v2040 = vld [vmem:[%s3 + $0xfc] sm:$0xf]
  %v2041 = vld [vmem:[%s4] sm:$0x1]
  %v2043 = vlaneseq
  %v2044 = vshrl.u32 %v2043, 7
  %v2045 = vsub.s32 0, %v2044
  %v2046 = vrot.slane %v2041, %v2045
  %v2112 = vunpack.c.l.b16 %v1977
  %v2113 = vunpack.c.l.b16 %v1978
  %v2114 = vunpack.c.l.b16 %v1979
  %v2115 = vunpack.c.l.b16 %v1980
  %v2116 = vunpack.c.l.b16 %v1981
  %v2117 = vunpack.c.l.b16 %v1982
  %v2118 = vunpack.c.l.b16 %v1983
  %v2119 = vunpack.c.l.b16 %v1984
  %v2120 = vunpack.c.l.b16 %v1985
  %v2121 = vunpack.c.l.b16 %v1986
  %v2122 = vunpack.c.l.b16 %v1987
  %v2123 = vunpack.c.l.b16 %v1988
  %v2124 = vunpack.c.l.b16 %v1989
  %v2125 = vunpack.c.l.b16 %v1990
  %v2126 = vunpack.c.l.b16 %v1991
  %v2127 = vunpack.c.l.b16 %v1992
  %v2128 = vunpack.c.l.b16 %v1993
  %v2129 = vunpack.c.l.b16 %v1994
  %v2130 = vunpack.c.l.b16 %v1995
  %v2131 = vunpack.c.l.b16 %v1996
  %v2132 = vunpack.c.l.b16 %v1997
  %v2133 = vunpack.c.l.b16 %v1998
  %v2134 = vunpack.c.l.b16 %v1999
  %v2135 = vunpack.c.l.b16 %v2000
  %v2136 = vunpack.c.l.b16 %v2001
  %v2137 = vunpack.c.l.b16 %v2002
  %v2138 = vunpack.c.l.b16 %v2003
  %v2139 = vunpack.c.l.b16 %v2004
  %v2140 = vunpack.c.l.b16 %v2005
  %v2141 = vunpack.c.l.b16 %v2006
  %v2142 = vunpack.c.l.b16 %v2007
  %v2143 = vunpack.c.l.b16 %v2008
  %v2144 = vunpack.c.l.b16 %v2009
  %v2145 = vunpack.c.l.b16 %v2010
  %v2146 = vunpack.c.l.b16 %v2011
  %v2147 = vunpack.c.l.b16 %v2012
  %v2148 = vunpack.c.l.b16 %v2013
  %v2149 = vunpack.c.l.b16 %v2014
  %v2150 = vunpack.c.l.b16 %v2015
  %v2151 = vunpack.c.l.b16 %v2016
  %v2152 = vunpack.c.l.b16 %v2017
  %v2153 = vunpack.c.l.b16 %v2018
  %v2154 = vunpack.c.l.b16 %v2019
  %v2155 = vunpack.c.l.b16 %v2020
  %v2156 = vunpack.c.l.b16 %v2021
  %v2157 = vunpack.c.l.b16 %v2022
  %v2158 = vunpack.c.l.b16 %v2023
  %v2159 = vunpack.c.l.b16 %v2024
  %v2160 = vunpack.c.l.b16 %v2025
  %v2161 = vunpack.c.l.b16 %v2026
  %v2162 = vunpack.c.l.b16 %v2027
  %v2163 = vunpack.c.l.b16 %v2028
  %v2164 = vunpack.c.l.b16 %v2029
  %v2165 = vunpack.c.l.b16 %v2030
  %v2166 = vunpack.c.l.b16 %v2031
  %v2167 = vunpack.c.l.b16 %v2032
  %v2168 = vunpack.c.l.b16 %v2033
  %v2169 = vunpack.c.l.b16 %v2034
  %v2170 = vunpack.c.l.b16 %v2035
  %v2171 = vunpack.c.l.b16 %v2036
  %v2172 = vunpack.c.l.b16 %v2037
  %v2173 = vunpack.c.l.b16 %v2038
  %v2174 = vunpack.c.l.b16 %v2039
  %v2175 = vunpack.c.l.b16 %v2040
  %v2176 = vpack.c.b16 %v2113, %v2112
  %v2177 = vpack.c.b16 %v2115, %v2114
  %v2178 = vpack.c.b16 %v2117, %v2116
  %v2179 = vpack.c.b16 %v2119, %v2118
  %v2180 = vpack.c.b16 %v2121, %v2120
  %v2181 = vpack.c.b16 %v2123, %v2122
  %v2182 = vpack.c.b16 %v2125, %v2124
  %v2183 = vpack.c.b16 %v2127, %v2126
  %v2184 = vpack.c.b16 %v2129, %v2128
  %v2185 = vpack.c.b16 %v2131, %v2130
  %v2186 = vpack.c.b16 %v2133, %v2132
  %v2187 = vpack.c.b16 %v2135, %v2134
  %v2188 = vpack.c.b16 %v2137, %v2136
  %v2189 = vpack.c.b16 %v2139, %v2138
  %v2190 = vpack.c.b16 %v2141, %v2140
  %v2191 = vpack.c.b16 %v2143, %v2142
  %v2192 = vpack.c.b16 %v2145, %v2144
  %v2193 = vpack.c.b16 %v2147, %v2146
  %v2194 = vpack.c.b16 %v2149, %v2148
  %v2195 = vpack.c.b16 %v2151, %v2150
  %v2196 = vpack.c.b16 %v2153, %v2152
  %v2197 = vpack.c.b16 %v2155, %v2154
  %v2198 = vpack.c.b16 %v2157, %v2156
  %v2199 = vpack.c.b16 %v2159, %v2158
  %v2200 = vpack.c.b16 %v2161, %v2160
  %v2201 = vpack.c.b16 %v2163, %v2162
  %v2202 = vpack.c.b16 %v2165, %v2164
  %v2203 = vpack.c.b16 %v2167, %v2166
  %v2204 = vpack.c.b16 %v2169, %v2168
  %v2205 = vpack.c.b16 %v2171, %v2170
  %v2206 = vpack.c.b16 %v2173, %v2172
  %v2207 = vpack.c.b16 %v2175, %v2174
  %2240 = vmatprep.subr.bf16.mxu0 0
  %2241 = vmatpush1.bf16.msra.mxu0 %v2183
  %2242 = vmatprep.subr.bf16.mxu0 0
  %2243 = vmatpush1.bf16.msra.mxu0 %v2182
  %2244 = vmatprep.subr.bf16.mxu0 0
  %2245 = vmatpush1.bf16.msra.mxu0 %v2181
  %2246 = vmatprep.subr.bf16.mxu0 0
  %2247 = vmatpush1.bf16.msra.mxu0 %v2180
  %2248 = vmatprep.subr.bf16.mxu0 0
  %2249 = vmatpush1.bf16.msra.mxu0 %v2179
  %2250 = vmatprep.subr.bf16.mxu0 0
  %2251 = vmatpush1.bf16.msra.mxu0 %v2178
  %2252 = vmatprep.subr.bf16.mxu0 0
  %2253 = vmatpush1.bf16.msra.mxu0 %v2177
  %2254 = vmatprep.subr.bf16.mxu0 0
  %2255 = vmatpush1.bf16.msra.mxu0 %v2176
  %2256 = vmatprep.subr.bf16.mxu0 0
  %2257 = vmatpush2.bf16.msra.mxu0 %v2191
  %2258 = vmatprep.subr.bf16.mxu0 0
  %2259 = vmatpush2.bf16.msra.mxu0 %v2190
  %2260 = vmatprep.subr.bf16.mxu0 0
  %2261 = vmatpush2.bf16.msra.mxu0 %v2189
  %2262 = vmatprep.subr.bf16.mxu0 0
  %2263 = vmatpush2.bf16.msra.mxu0 %v2188
  %2264 = vmatprep.subr.bf16.mxu0 0
  %2265 = vmatpush2.bf16.msra.mxu0 %v2187
  %2266 = vmatprep.subr.bf16.mxu0 0
  %2267 = vmatpush2.bf16.msra.mxu0 %v2186
  %2268 = vmatprep.subr.bf16.mxu0 0
  %2269 = vmatpush2.bf16.msra.mxu0 %v2185
  %2270 = vmatprep.subr.bf16.mxu0 0
  %2271 = vmatpush2.bf16.msra.mxu0 %v2184
  %2272 = vmatprep.mubr.bf16.mxu0 %v1960
  %2273 = vmatmul.mubr.bf16.gmra.mxu0 %v1959
  %v2274 = vpop.f32.mrf.mxu0
  %v2275 = vadd.f32 %v2046, %v2274
  %v2276 = vpop.f32.mrf.mxu0
  %v2277 = vpop.f32.mrf.mxu0
  %v2278 = vpop.f32.mrf.mxu0
  %2279 = vdwg.mxu0
  %2280 = vmatprep.subr.bf16.mxu0 0
  %2281 = vmatpush1.bf16.msra.mxu0 %v2199
  %2282 = vmatprep.subr.bf16.mxu0 0
  %2283 = vmatpush1.bf16.msra.mxu0 %v2198
  %2284 = vmatprep.subr.bf16.mxu0 0
  %2285 = vmatpush1.bf16.msra.mxu0 %v2197
  %2286 = vmatprep.subr.bf16.mxu0 0
  %2287 = vmatpush1.bf16.msra.mxu0 %v2196
  %2288 = vmatprep.subr.bf16.mxu0 0
  %2289 = vmatpush1.bf16.msra.mxu0 %v2195
  %2290 = vmatprep.subr.bf16.mxu0 0
  %2291 = vmatpush1.bf16.msra.mxu0 %v2194
  %2292 = vmatprep.subr.bf16.mxu0 0
  %2293 = vmatpush1.bf16.msra.mxu0 %v2193
  %2294 = vmatprep.subr.bf16.mxu0 0
  %2295 = vmatpush1.bf16.msra.mxu0 %v2192
  %2296 = vmatprep.subr.bf16.mxu0 0
  %2297 = vmatpush2.bf16.msra.mxu0 %v2207
  %2298 = vmatprep.subr.bf16.mxu0 0
  %2299 = vmatpush2.bf16.msra.mxu0 %v2206
  %2300 = vmatprep.subr.bf16.mxu0 0
  %2301 = vmatpush2.bf16.msra.mxu0 %v2205
  %2302 = vmatprep.subr.bf16.mxu0 0
  %2303 = vmatpush2.bf16.msra.mxu0 %v2204
  %2304 = vmatprep.subr.bf16.mxu0 0
  %2305 = vmatpush2.bf16.msra.mxu0 %v2203
  %2306 = vmatprep.subr.bf16.mxu0 0
  %2307 = vmatpush2.bf16.msra.mxu0 %v2202
  %2308 = vmatprep.subr.bf16.mxu0 0
  %2309 = vmatpush2.bf16.msra.mxu0 %v2201
  %2310 = vmatprep.subr.bf16.mxu0 0
  %2311 = vmatpush2.bf16.msra.mxu0 %v2200
  %2312 = vmatprep.mubr.bf16.mxu0 %v1962
  %2313 = vmatmul.mubr.bf16.gmra.mxu0 %v1961
  %v2314 = vpop.f32.mrf.mxu0
  %v2315 = vadd.f32 %v2275, %v2314
  %v2316 = vpop.f32.mrf.mxu0
  %v2317 = vpop.f32.mrf.mxu0
  %v2318 = vpop.f32.mrf.mxu0
  %2319 = vdwg.mxu0
  %v2320 = vld [vmem:[%s5] sm:$0xff]
  %v2321 = vld [vmem:[%s6] sm:$0x1]
  %v2322 = vsub.f32 0.0, %v2315
  %v2323 = vmul.f32 %v2322, 1.442695
  %v2324 = vpow.pop %v2323
  %v2325 = vadd.f32 %v2324, 1.0
  %v2326 = vrcp.pop %v2325
  %v2327 = vmul.f32 1.0, %v2326
  %v2328 = vmul.f32 %v2315, 1.442695
  %v2329 = vpow.pop %v2328
  %v2330 = vlaneseq
  %v2331 = vand.u32 %v2330, 127
  %vm2332 = vcmp.ge.s32.totalorder %v2331, 12
  %v2333 = vsub.s32 %v2331, 12
  %vm2334 = vcmp.ge.s32.totalorder %v2331, 6
  %v2335 = vsub.s32 %v2331, 6
  %v2336 = vsel %vm2334, %v2335, %v2331
  %v2337 = vsel %vm2332, %v2333, %v2336
  %vm2338 = vcmp.eq.s32.totalorder %v2337, 0
  %2340 = vset.pattern.permute.xlu0 0
  %2341 = vperm.xlu0 %2340, %v2320
  %v2342 = vpop.permute.xlu0 %2341
  %2344 = vset.pattern.permute.xlu0 1
  %2345 = vperm.xlu0 %2344, %v2320
  %v2346 = vpop.permute.xlu0 %2345
  %v2348 = vsel %vm2338, %v2342, %v2346
  %v2349 = vadd.f32 %v2327, %v2348
  %v2350 = vmul.f32 %v2349, 32.0
  %v2352 = vlaneseq
  %v2353 = vshrl.u32 %v2352, 7
  %v2354 = vsub.s32 0, %v2353
  %v2355 = vrot.slane %v2321, %v2354
  %v2357 = vmul.f32 %v2329, %v2355
  %v2358 = vmul.f32 %v2327, 360.0
  %v2359 = vsub.f32 %v2358, 180.0
  %vm2360 = vcmp.lt.s32.totalorder %v2337, 2
  %vm2361 = vcmp.lt.s32.totalorder %v2337, 4
  %vm2362 = vcmp.eq.s32.totalorder %v2337, 4
  %v2363 = vsel %vm2362, %v2359, %v2327
  %v2364 = vsel %vm2361, %v2357, %v2363
  %v2365 = vsel %vm2360, %v2350, %v2364
  %vm2366 = vcmask 146432
  %2367 = vst.msk [vmem:[%s8] sm:$0xff] %vm2366, %v2365
  // Predicated region
  $region30: #{forward.11} parent=0 // pred_check
    _
  $region31: #{forward.11} parent=0 // pred_check_branch
    %2369 = sbr.rel (0) target = $region33
  $region32: #{forward.11} parent=0 // pred_region
    _
  $region33: #{forward.11} parent=0 // pred_fallthru
    _
  // Predicated region
  $region34: #{forward.11} parent=0 // pred_check
    _
  $region35: #{forward.11} parent=0 // pred_check_branch
    %2371 = sbr.rel (0) target = $region37
  $region36: #{forward.11} parent=0 // pred_region
    _
  $region37: #{forward.11} parent=0 // pred_fallthru
    _
  // Predicated region
  $region38: #{forward.11} parent=0 // pred_check
    _
  $region39: #{forward.11} parent=0 // pred_check_branch
    %2373 = sbr.rel (0) target = $region41
  $region40: #{forward.11} parent=0 // pred_region
    _
  $region41: #{forward.11} parent=0 // pred_fallthru
    _
  // Predicated region
  $region42: #{forward.11} parent=0 // pred_check
    _
  $region43: #{forward.11} parent=0 // pred_check_branch
    %2375 = sbr.rel (0) target = $region45
  $region44: #{forward.11} parent=0 // pred_region
    _
  $region45: #{forward.11} parent=0 // pred_fallthru
    _

// kernel: forward.13
$region0: #{forward.13}
  #allocation0 [shape = 'u32[]', space=smem, size = 0x4, offset = 0x4, fixed_abs, tag = 'smem constant byte address 0x4 - core index']
  #allocation1 [shape = 'u32[144,128]{1,0:T(1,128)}', space=vmem, size = 0x12000, scoped, tag = 'internal scratch']
  %s0 = inlined_call_operand.vmem [shape: bf16[32,512], index: 0, kind: input, shape index: {}]
  %s1 = inlined_call_operand.vmem [shape: bf16[32,256], index: 1, kind: input, shape index: {}]
  %s2 = inlined_call_operand.vmem [shape: bf16[512,256], index: 2, kind: input, shape index: {}]
  %s3 = inlined_call_operand.vmem [shape: f32[1,256], index: 3, kind: input, shape index: {}]
  %s4 = inlined_call_operand.vmem [shape: bf16[256,256], index: 4, kind: input, shape index: {}]
  %s5 = inlined_call_operand.vmem [shape: bf16[256,256], index: 5, kind: input, shape index: {}]
  %s6 = inlined_call_operand.vmem [shape: f32[1,256], index: 6, kind: input, shape index: {}]
  %s7 = inlined_call_operand.vmem [shape: bf16[256,18], index: 7, kind: input, shape index: {}]
  %s8 = inlined_call_operand.vmem [shape: f32[1,18], index: 8, kind: input, shape index: {}]
  %s9 = inlined_call_operand.vmem [shape: f32[32,2], index: 9, kind: input, shape index: {}]
  %s10 = inlined_call_operand.vmem [shape: f32[1,18], index: 10, kind: input, shape index: {}]
  %s11 = inlined_call_operand.vmem [shape: bf16[32,256], index: 11, kind: output, shape index: {0}]
  %s12 = inlined_call_operand.vmem [shape: f32[32,18], index: 12, kind: output, shape index: {1}]
  %13 = xla_tuple %s11, %s12
  %s14 = sld [smem:[#allocation0]]
  $region62: #{forward.13} parent=0
    _
  %s16 = ssub.s32 1, %s14
  %s17 = scalar_select 0, %s16, %s14
  // Predicated region
  $region2: #{forward.13} parent=0 // pred_check
    _
  $region3: #{forward.13} parent=0 // pred_check_branch
    %19 = sbr.rel (0) target = $region5
  $region4: #{forward.13} parent=0 // pred_region
    _
  $region5: #{forward.13} parent=0 // pred_fallthru
    _
  // Predicated region
  $region6: #{forward.13} parent=0 // pred_check
    _
  $region7: #{forward.13} parent=0 // pred_check_branch
    %21 = sbr.rel (0) target = $region9
  $region8: #{forward.13} parent=0 // pred_region
    _
  $region9: #{forward.13} parent=0 // pred_fallthru
    _
  // Predicated region
  $region10: #{forward.13} parent=0 // pred_check
    _
  $region11: #{forward.13} parent=0 // pred_check_branch
    %23 = sbr.rel (0) target = $region13
  $region12: #{forward.13} parent=0 // pred_region
    _
  $region13: #{forward.13} parent=0 // pred_fallthru
    _
  // Predicated region
  $region14: #{forward.13} parent=0 // pred_check
    _
  $region15: #{forward.13} parent=0 // pred_check_branch
    %25 = sbr.rel (0) target = $region17
  $region16: #{forward.13} parent=0 // pred_region
    _
  $region17: #{forward.13} parent=0 // pred_fallthru
    _
  // Predicated region
  $region18: #{forward.13} parent=0 // pred_check
    _
  $region19: #{forward.13} parent=0 // pred_check_branch
    %27 = sbr.rel (0) target = $region21
  $region20: #{forward.13} parent=0 // pred_region
    _
  $region21: #{forward.13} parent=0 // pred_fallthru
    _
  // Predicated region
  $region22: #{forward.13} parent=0 // pred_check
    _
  $region23: #{forward.13} parent=0 // pred_check_branch
    %29 = sbr.rel (0) target = $region25
  $region24: #{forward.13} parent=0 // pred_region
    _
  $region25: #{forward.13} parent=0 // pred_fallthru
    _
  // Predicated region
  $region26: #{forward.13} parent=0 // pred_check
    _
  $region27: #{forward.13} parent=0 // pred_check_branch
    %31 = sbr.rel (0) target = $region29
  $region28: #{forward.13} parent=0 // pred_region
    _
  $region29: #{forward.13} parent=0 // pred_fallthru
    _
  // Predicated region
  $region30: #{forward.13} parent=0 // pred_check
    _
  $region31: #{forward.13} parent=0 // pred_check_branch
    %33 = sbr.rel (0) target = $region33
  $region32: #{forward.13} parent=0 // pred_region
    _
  $region33: #{forward.13} parent=0 // pred_fallthru
    _
  // Predicated region
  $region34: #{forward.13} parent=0 // pred_check
    _
  $region35: #{forward.13} parent=0 // pred_check_branch
    %35 = sbr.rel (0) target = $region37
  $region36: #{forward.13} parent=0 // pred_region
    _
  $region37: #{forward.13} parent=0 // pred_fallthru
    _
  // Predicated region
  $region38: #{forward.13} parent=0 // pred_check
    _
  $region39: #{forward.13} parent=0 // pred_check_branch
    %37 = sbr.rel (0) target = $region41
  $region40: #{forward.13} parent=0 // pred_region
    _
  $region41: #{forward.13} parent=0 // pred_fallthru
    _
  // Predicated region
  $region42: #{forward.13} parent=0 // pred_check
    _
  $region43: #{forward.13} parent=0 // pred_check_branch
    %39 = sbr.rel (0) target = $region45
  $region44: #{forward.13} parent=0 // pred_region
    _
  $region45: #{forward.13} parent=0 // pred_fallthru
    _
  %v41 = vld [vmem:[%s0] sm:$0xff]
  %v42 = vld [vmem:[%s0 + $0x8] sm:$0xff]
  %v43 = vld [vmem:[%s0 + $0x10] sm:$0xff]
  %v44 = vld [vmem:[%s0 + $0x18] sm:$0xff]
  %v45 = vld [vmem:[%s0 + $0x20] sm:$0xff]
  %v46 = vld [vmem:[%s0 + $0x28] sm:$0xff]
  %v47 = vld [vmem:[%s0 + $0x30] sm:$0xff]
  %v48 = vld [vmem:[%s0 + $0x38] sm:$0xff]
  %v49 = vld [vmem:[%s2] sm:$0xff]
  %v50 = vld [vmem:[%s2 + $0x8] sm:$0xff]
  %v51 = vld [vmem:[%s2 + $0x10] sm:$0xff]
  %v52 = vld [vmem:[%s2 + $0x18] sm:$0xff]
  %v53 = vld [vmem:[%s2 + $0x20] sm:$0xff]
  %v54 = vld [vmem:[%s2 + $0x28] sm:$0xff]
  %v55 = vld [vmem:[%s2 + $0x30] sm:$0xff]
  %v56 = vld [vmem:[%s2 + $0x38] sm:$0xff]
  %v57 = vld [vmem:[%s2 + $0x40] sm:$0xff]
  %v58 = vld [vmem:[%s2 + $0x48] sm:$0xff]
  %v59 = vld [vmem:[%s2 + $0x50] sm:$0xff]
  %v60 = vld [vmem:[%s2 + $0x58] sm:$0xff]
  %v61 = vld [vmem:[%s2 + $0x60] sm:$0xff]
  %v62 = vld [vmem:[%s2 + $0x68] sm:$0xff]
  %v63 = vld [vmem:[%s2 + $0x70] sm:$0xff]
  %v64 = vld [vmem:[%s2 + $0x78] sm:$0xff]
  %v65 = vld [vmem:[%s2 + $0x80] sm:$0xff]
  %v66 = vld [vmem:[%s2 + $0x88] sm:$0xff]
  %v67 = vld [vmem:[%s2 + $0x90] sm:$0xff]
  %v68 = vld [vmem:[%s2 + $0x98] sm:$0xff]
  %v69 = vld [vmem:[%s2 + $0xa0] sm:$0xff]
  %v70 = vld [vmem:[%s2 + $0xa8] sm:$0xff]
  %v71 = vld [vmem:[%s2 + $0xb0] sm:$0xff]
  %v72 = vld [vmem:[%s2 + $0xb8] sm:$0xff]
  %v73 = vld [vmem:[%s2 + $0xc0] sm:$0xff]
  %v74 = vld [vmem:[%s2 + $0xc8] sm:$0xff]
  %v75 = vld [vmem:[%s2 + $0xd0] sm:$0xff]
  %v76 = vld [vmem:[%s2 + $0xd8] sm:$0xff]
  %v77 = vld [vmem:[%s2 + $0xe0] sm:$0xff]
  %v78 = vld [vmem:[%s2 + $0xe8] sm:$0xff]
  %v79 = vld [vmem:[%s2 + $0xf0] sm:$0xff]
  %v80 = vld [vmem:[%s2 + $0xf8] sm:$0xff]
  %v81 = vld [vmem:[%s2 + $0x100] sm:$0xff]
  %v82 = vld [vmem:[%s2 + $0x108] sm:$0xff]
  %v83 = vld [vmem:[%s2 + $0x110] sm:$0xff]
  %v84 = vld [vmem:[%s2 + $0x118] sm:$0xff]
  %v85 = vld [vmem:[%s2 + $0x120] sm:$0xff]
  %v86 = vld [vmem:[%s2 + $0x128] sm:$0xff]
  %v87 = vld [vmem:[%s2 + $0x130] sm:$0xff]
  %v88 = vld [vmem:[%s2 + $0x138] sm:$0xff]
  %v89 = vld [vmem:[%s2 + $0x140] sm:$0xff]
  %v90 = vld [vmem:[%s2 + $0x148] sm:$0xff]
  %v91 = vld [vmem:[%s2 + $0x150] sm:$0xff]
  %v92 = vld [vmem:[%s2 + $0x158] sm:$0xff]
  %v93 = vld [vmem:[%s2 + $0x160] sm:$0xff]
  %v94 = vld [vmem:[%s2 + $0x168] sm:$0xff]
  %v95 = vld [vmem:[%s2 + $0x170] sm:$0xff]
  %v96 = vld [vmem:[%s2 + $0x178] sm:$0xff]
  %v97 = vld [vmem:[%s2 + $0x180] sm:$0xff]
  %v98 = vld [vmem:[%s2 + $0x188] sm:$0xff]
  %v99 = vld [vmem:[%s2 + $0x190] sm:$0xff]
  %v100 = vld [vmem:[%s2 + $0x198] sm:$0xff]
  %v101 = vld [vmem:[%s2 + $0x1a0] sm:$0xff]
  %v102 = vld [vmem:[%s2 + $0x1a8] sm:$0xff]
  %v103 = vld [vmem:[%s2 + $0x1b0] sm:$0xff]
  %v104 = vld [vmem:[%s2 + $0x1b8] sm:$0xff]
  %v105 = vld [vmem:[%s2 + $0x1c0] sm:$0xff]
  %v106 = vld [vmem:[%s2 + $0x1c8] sm:$0xff]
  %v107 = vld [vmem:[%s2 + $0x1d0] sm:$0xff]
  %v108 = vld [vmem:[%s2 + $0x1d8] sm:$0xff]
  %v109 = vld [vmem:[%s2 + $0x1e0] sm:$0xff]
  %v110 = vld [vmem:[%s2 + $0x1e8] sm:$0xff]
  %v111 = vld [vmem:[%s2 + $0x1f0] sm:$0xff]
  %v112 = vld [vmem:[%s2 + $0x1f8] sm:$0xff]
  %v113 = vld [vmem:[%s3] sm:$0x3]
  %v115 = vlaneseq
  %v116 = vshrl.u32 %v115, 7
  %v117 = vsub.s32 0, %v116
  %v118 = vrot.slane %v113, %v117
  %v119 = vlaneseq
  %v120 = vshrl.u32 %v119, 7
  %v121 = vsub.s32 1, %v120
  %v122 = vrot.slane %v113, %v121
  %v133 = vunpack.c.l.b16 %v41
  %v134 = vunpack.c.h.b16 %v41
  %v135 = vunpack.c.l.b16 %v42
  %v136 = vunpack.c.h.b16 %v42
  %v137 = vunpack.c.l.b16 %v43
  %v138 = vunpack.c.h.b16 %v43
  %v139 = vunpack.c.l.b16 %v44
  %v140 = vunpack.c.h.b16 %v44
  %v141 = vunpack.c.l.b16 %v45
  %v142 = vunpack.c.h.b16 %v45
  %v143 = vunpack.c.l.b16 %v46
  %v144 = vunpack.c.h.b16 %v46
  %v145 = vunpack.c.l.b16 %v47
  %v146 = vunpack.c.h.b16 %v47
  %v147 = vunpack.c.l.b16 %v48
  %v148 = vunpack.c.h.b16 %v48
  %v149 = vpack.c.b16 %v137, %v133
  %v150 = vpack.c.b16 %v138, %v134
  %v151 = vpack.c.b16 %v139, %v135
  %v152 = vpack.c.b16 %v140, %v136
  %v153 = vpack.c.b16 %v145, %v141
  %v154 = vpack.c.b16 %v146, %v142
  %v155 = vpack.c.b16 %v147, %v143
  %v156 = vpack.c.b16 %v148, %v144
  %v229 = vunpack.c.l.b16 %v49
  %v230 = vunpack.c.h.b16 %v49
  %v231 = vunpack.c.l.b16 %v50
  %v232 = vunpack.c.h.b16 %v50
  %v233 = vunpack.c.l.b16 %v51
  %v234 = vunpack.c.h.b16 %v51
  %v235 = vunpack.c.l.b16 %v52
  %v236 = vunpack.c.h.b16 %v52
  %v237 = vunpack.c.l.b16 %v53
  %v238 = vunpack.c.h.b16 %v53
  %v239 = vunpack.c.l.b16 %v54
  %v240 = vunpack.c.h.b16 %v54
  %v241 = vunpack.c.l.b16 %v55
  %v242 = vunpack.c.h.b16 %v55
  %v243 = vunpack.c.l.b16 %v56
  %v244 = vunpack.c.h.b16 %v56
  %v245 = vunpack.c.l.b16 %v57
  %v246 = vunpack.c.h.b16 %v57
  %v247 = vunpack.c.l.b16 %v58
  %v248 = vunpack.c.h.b16 %v58
  %v249 = vunpack.c.l.b16 %v59
  %v250 = vunpack.c.h.b16 %v59
  %v251 = vunpack.c.l.b16 %v60
  %v252 = vunpack.c.h.b16 %v60
  %v253 = vunpack.c.l.b16 %v61
  %v254 = vunpack.c.h.b16 %v61
  %v255 = vunpack.c.l.b16 %v62
  %v256 = vunpack.c.h.b16 %v62
  %v257 = vunpack.c.l.b16 %v63
  %v258 = vunpack.c.h.b16 %v63
  %v259 = vunpack.c.l.b16 %v64
  %v260 = vunpack.c.h.b16 %v64
  %v261 = vunpack.c.l.b16 %v65
  %v262 = vunpack.c.h.b16 %v65
  %v263 = vunpack.c.l.b16 %v66
  %v264 = vunpack.c.h.b16 %v66
  %v265 = vunpack.c.l.b16 %v67
  %v266 = vunpack.c.h.b16 %v67
  %v267 = vunpack.c.l.b16 %v68
  %v268 = vunpack.c.h.b16 %v68
  %v269 = vunpack.c.l.b16 %v69
  %v270 = vunpack.c.h.b16 %v69
  %v271 = vunpack.c.l.b16 %v70
  %v272 = vunpack.c.h.b16 %v70
  %v273 = vunpack.c.l.b16 %v71
  %v274 = vunpack.c.h.b16 %v71
  %v275 = vunpack.c.l.b16 %v72
  %v276 = vunpack.c.h.b16 %v72
  %v277 = vunpack.c.l.b16 %v73
  %v278 = vunpack.c.h.b16 %v73
  %v279 = vunpack.c.l.b16 %v74
  %v280 = vunpack.c.h.b16 %v74
  %v281 = vunpack.c.l.b16 %v75
  %v282 = vunpack.c.h.b16 %v75
  %v283 = vunpack.c.l.b16 %v76
  %v284 = vunpack.c.h.b16 %v76
  %v285 = vunpack.c.l.b16 %v77
  %v286 = vunpack.c.h.b16 %v77
  %v287 = vunpack.c.l.b16 %v78
  %v288 = vunpack.c.h.b16 %v78
  %v289 = vunpack.c.l.b16 %v79
  %v290 = vunpack.c.h.b16 %v79
  %v291 = vunpack.c.l.b16 %v80
  %v292 = vunpack.c.h.b16 %v80
  %v293 = vunpack.c.l.b16 %v81
  %v294 = vunpack.c.h.b16 %v81
  %v295 = vunpack.c.l.b16 %v82
  %v296 = vunpack.c.h.b16 %v82
  %v297 = vunpack.c.l.b16 %v83
  %v298 = vunpack.c.h.b16 %v83
  %v299 = vunpack.c.l.b16 %v84
  %v300 = vunpack.c.h.b16 %v84
  %v301 = vunpack.c.l.b16 %v85
  %v302 = vunpack.c.h.b16 %v85
  %v303 = vunpack.c.l.b16 %v86
  %v304 = vunpack.c.h.b16 %v86
  %v305 = vunpack.c.l.b16 %v87
  %v306 = vunpack.c.h.b16 %v87
  %v307 = vunpack.c.l.b16 %v88
  %v308 = vunpack.c.h.b16 %v88
  %v309 = vunpack.c.l.b16 %v89
  %v310 = vunpack.c.h.b16 %v89
  %v311 = vunpack.c.l.b16 %v90
  %v312 = vunpack.c.h.b16 %v90
  %v313 = vunpack.c.l.b16 %v91
  %v314 = vunpack.c.h.b16 %v91
  %v315 = vunpack.c.l.b16 %v92
  %v316 = vunpack.c.h.b16 %v92
  %v317 = vunpack.c.l.b16 %v93
  %v318 = vunpack.c.h.b16 %v93
  %v319 = vunpack.c.l.b16 %v94
  %v320 = vunpack.c.h.b16 %v94
  %v321 = vunpack.c.l.b16 %v95
  %v322 = vunpack.c.h.b16 %v95
  %v323 = vunpack.c.l.b16 %v96
  %v324 = vunpack.c.h.b16 %v96
  %v325 = vunpack.c.l.b16 %v97
  %v326 = vunpack.c.h.b16 %v97
  %v327 = vunpack.c.l.b16 %v98
  %v328 = vunpack.c.h.b16 %v98
  %v329 = vunpack.c.l.b16 %v99
  %v330 = vunpack.c.h.b16 %v99
  %v331 = vunpack.c.l.b16 %v100
  %v332 = vunpack.c.h.b16 %v100
  %v333 = vunpack.c.l.b16 %v101
  %v334 = vunpack.c.h.b16 %v101
  %v335 = vunpack.c.l.b16 %v102
  %v336 = vunpack.c.h.b16 %v102
  %v337 = vunpack.c.l.b16 %v103
  %v338 = vunpack.c.h.b16 %v103
  %v339 = vunpack.c.l.b16 %v104
  %v340 = vunpack.c.h.b16 %v104
  %v341 = vunpack.c.l.b16 %v105
  %v342 = vunpack.c.h.b16 %v105
  %v343 = vunpack.c.l.b16 %v106
  %v344 = vunpack.c.h.b16 %v106
  %v345 = vunpack.c.l.b16 %v107
  %v346 = vunpack.c.h.b16 %v107
  %v347 = vunpack.c.l.b16 %v108
  %v348 = vunpack.c.h.b16 %v108
  %v349 = vunpack.c.l.b16 %v109
  %v350 = vunpack.c.h.b16 %v109
  %v351 = vunpack.c.l.b16 %v110
  %v352 = vunpack.c.h.b16 %v110
  %v353 = vunpack.c.l.b16 %v111
  %v354 = vunpack.c.h.b16 %v111
  %v355 = vunpack.c.l.b16 %v112
  %v356 = vunpack.c.h.b16 %v112
  %v357 = vpack.c.b16 %v231, %v229
  %v358 = vpack.c.b16 %v232, %v230
  %v359 = vpack.c.b16 %v235, %v233
  %v360 = vpack.c.b16 %v236, %v234
  %v361 = vpack.c.b16 %v239, %v237
  %v362 = vpack.c.b16 %v240, %v238
  %v363 = vpack.c.b16 %v243, %v241
  %v364 = vpack.c.b16 %v244, %v242
  %v365 = vpack.c.b16 %v247, %v245
  %v366 = vpack.c.b16 %v248, %v246
  %v367 = vpack.c.b16 %v251, %v249
  %v368 = vpack.c.b16 %v252, %v250
  %v369 = vpack.c.b16 %v255, %v253
  %v370 = vpack.c.b16 %v256, %v254
  %v371 = vpack.c.b16 %v259, %v257
  %v372 = vpack.c.b16 %v260, %v258
  %v373 = vpack.c.b16 %v263, %v261
  %v374 = vpack.c.b16 %v264, %v262
  %v375 = vpack.c.b16 %v267, %v265
  %v376 = vpack.c.b16 %v268, %v266
  %v377 = vpack.c.b16 %v271, %v269
  %v378 = vpack.c.b16 %v272, %v270
  %v379 = vpack.c.b16 %v275, %v273
  %v380 = vpack.c.b16 %v276, %v274
  %v381 = vpack.c.b16 %v279, %v277
  %v382 = vpack.c.b16 %v280, %v278
  %v383 = vpack.c.b16 %v283, %v281
  %v384 = vpack.c.b16 %v284, %v282
  %v385 = vpack.c.b16 %v287, %v285
  %v386 = vpack.c.b16 %v288, %v286
  %v387 = vpack.c.b16 %v291, %v289
  %v388 = vpack.c.b16 %v292, %v290
  %v389 = vpack.c.b16 %v295, %v293
  %v390 = vpack.c.b16 %v296, %v294
  %v391 = vpack.c.b16 %v299, %v297
  %v392 = vpack.c.b16 %v300, %v298
  %v393 = vpack.c.b16 %v303, %v301
  %v394 = vpack.c.b16 %v304, %v302
  %v395 = vpack.c.b16 %v307, %v305
  %v396 = vpack.c.b16 %v308, %v306
  %v397 = vpack.c.b16 %v311, %v309
  %v398 = vpack.c.b16 %v312, %v310
  %v399 = vpack.c.b16 %v315, %v313
  %v400 = vpack.c.b16 %v316, %v314
  %v401 = vpack.c.b16 %v319, %v317
  %v402 = vpack.c.b16 %v320, %v318
  %v403 = vpack.c.b16 %v323, %v321
  %v404 = vpack.c.b16 %v324, %v322
  %v405 = vpack.c.b16 %v327, %v325
  %v406 = vpack.c.b16 %v328, %v326
  %v407 = vpack.c.b16 %v331, %v329
  %v408 = vpack.c.b16 %v332, %v330
  %v409 = vpack.c.b16 %v335, %v333
  %v410 = vpack.c.b16 %v336, %v334
  %v411 = vpack.c.b16 %v339, %v337
  %v412 = vpack.c.b16 %v340, %v338
  %v413 = vpack.c.b16 %v343, %v341
  %v414 = vpack.c.b16 %v344, %v342
  %v415 = vpack.c.b16 %v347, %v345
  %v416 = vpack.c.b16 %v348, %v346
  %v417 = vpack.c.b16 %v351, %v349
  %v418 = vpack.c.b16 %v352, %v350
  %v419 = vpack.c.b16 %v355, %v353
  %v420 = vpack.c.b16 %v356, %v354
  %485 = vmatprep.subr.bf16.mxu0 %v372
  %486 = vmatpush1.bf16.msra.mxu0 %v371
  %487 = vmatprep.subr.bf16.mxu0 %v370
  %488 = vmatpush1.bf16.msra.mxu0 %v369
  %489 = vmatprep.subr.bf16.mxu0 %v368
  %490 = vmatpush1.bf16.msra.mxu0 %v367
  %491 = vmatprep.subr.bf16.mxu0 %v366
  %492 = vmatpush1.bf16.msra.mxu0 %v365
  %493 = vmatprep.subr.bf16.mxu0 %v364
  %494 = vmatpush1.bf16.msra.mxu0 %v363
  %495 = vmatprep.subr.bf16.mxu0 %v362
  %496 = vmatpush1.bf16.msra.mxu0 %v361
  %497 = vmatprep.subr.bf16.mxu0 %v360
  %498 = vmatpush1.bf16.msra.mxu0 %v359
  %499 = vmatprep.subr.bf16.mxu0 %v358
  %500 = vmatpush1.bf16.msra.mxu0 %v357
  %501 = vmatprep.subr.bf16.mxu0 %v388
  %502 = vmatpush2.bf16.msra.mxu0 %v387
  %503 = vmatprep.subr.bf16.mxu0 %v386
  %504 = vmatpush2.bf16.msra.mxu0 %v385
  %505 = vmatprep.subr.bf16.mxu0 %v384
  %506 = vmatpush2.bf16.msra.mxu0 %v383
  %507 = vmatprep.subr.bf16.mxu0 %v382
  %508 = vmatpush2.bf16.msra.mxu0 %v381
  %509 = vmatprep.subr.bf16.mxu0 %v380
  %510 = vmatpush2.bf16.msra.mxu0 %v379
  %511 = vmatprep.subr.bf16.mxu0 %v378
  %512 = vmatpush2.bf16.msra.mxu0 %v377
  %513 = vmatprep.subr.bf16.mxu0 %v376
  %514 = vmatpush2.bf16.msra.mxu0 %v375
  %515 = vmatprep.subr.bf16.mxu0 %v374
  %516 = vmatpush2.bf16.msra.mxu0 %v373
  %517 = vmatprep.mubr.bf16.mxu0 %v150
  %518 = vmatmul.mubr.bf16.gmra.mxu0 %v149
  %v519 = vpop.f32.mrf.mxu0
  %v520 = vadd.f32 %v118, %v519
  %v521 = vpop.f32.mrf.mxu0
  %v522 = vadd.f32 %v122, %v521
  %v523 = vpop.f32.mrf.mxu0
  %v524 = vadd.f32 %v118, %v523
  %v525 = vpop.f32.mrf.mxu0
  %v526 = vadd.f32 %v122, %v525
  %527 = vmatprep.mubr.bf16.mxu0 %v154
  %528 = vmatmul.mubr.bf16.gmra.mxu0 %v153
  %v529 = vpop.f32.mrf.mxu0
  %v530 = vadd.f32 %v118, %v529
  %v531 = vpop.f32.mrf.mxu0
  %v532 = vadd.f32 %v122, %v531
  %v533 = vpop.f32.mrf.mxu0
  %v534 = vadd.f32 %v118, %v533
  %v535 = vpop.f32.mrf.mxu0
  %v536 = vadd.f32 %v122, %v535
  %537 = vdwg.mxu0
  %538 = vmatprep.subr.bf16.mxu0 %v404
  %539 = vmatpush1.bf16.msra.mxu0 %v403
  %540 = vmatprep.subr.bf16.mxu0 %v402
  %541 = vmatpush1.bf16.msra.mxu0 %v401
  %542 = vmatprep.subr.bf16.mxu0 %v400
  %543 = vmatpush1.bf16.msra.mxu0 %v399
  %544 = vmatprep.subr.bf16.mxu0 %v398
  %545 = vmatpush1.bf16.msra.mxu0 %v397
  %546 = vmatprep.subr.bf16.mxu0 %v396
  %547 = vmatpush1.bf16.msra.mxu0 %v395
  %548 = vmatprep.subr.bf16.mxu0 %v394
  %549 = vmatpush1.bf16.msra.mxu0 %v393
  %550 = vmatprep.subr.bf16.mxu0 %v392
  %551 = vmatpush1.bf16.msra.mxu0 %v391
  %552 = vmatprep.subr.bf16.mxu0 %v390
  %553 = vmatpush1.bf16.msra.mxu0 %v389
  %554 = vmatprep.subr.bf16.mxu0 %v420
  %555 = vmatpush2.bf16.msra.mxu0 %v419
  %556 = vmatprep.subr.bf16.mxu0 %v418
  %557 = vmatpush2.bf16.msra.mxu0 %v417
  %558 = vmatprep.subr.bf16.mxu0 %v416
  %559 = vmatpush2.bf16.msra.mxu0 %v415
  %560 = vmatprep.subr.bf16.mxu0 %v414
  %561 = vmatpush2.bf16.msra.mxu0 %v413
  %562 = vmatprep.subr.bf16.mxu0 %v412
  %563 = vmatpush2.bf16.msra.mxu0 %v411
  %564 = vmatprep.subr.bf16.mxu0 %v410
  %565 = vmatpush2.bf16.msra.mxu0 %v409
  %566 = vmatprep.subr.bf16.mxu0 %v408
  %567 = vmatpush2.bf16.msra.mxu0 %v407
  %568 = vmatprep.subr.bf16.mxu0 %v406
  %569 = vmatpush2.bf16.msra.mxu0 %v405
  %570 = vmatprep.mubr.bf16.mxu0 %v152
  %571 = vmatmul.mubr.bf16.gmra.mxu0 %v151
  %v572 = vpop.f32.mrf.mxu0
  %v573 = vadd.f32 %v520, %v572
  %v574 = vpop.f32.mrf.mxu0
  %v575 = vadd.f32 %v522, %v574
  %v576 = vpop.f32.mrf.mxu0
  %v577 = vadd.f32 %v524, %v576
  %v578 = vpop.f32.mrf.mxu0
  %v579 = vadd.f32 %v526, %v578
  %580 = vmatprep.mubr.bf16.mxu0 %v156
  %581 = vmatmul.mubr.bf16.gmra.mxu0 %v155
  %v582 = vpop.f32.mrf.mxu0
  %v583 = vadd.f32 %v530, %v582
  %v584 = vpop.f32.mrf.mxu0
  %v585 = vadd.f32 %v532, %v584
  %v586 = vpop.f32.mrf.mxu0
  %v587 = vadd.f32 %v534, %v586
  %v588 = vpop.f32.mrf.mxu0
  %v589 = vadd.f32 %v536, %v588
  %590 = vdwg.mxu0
  %vm591 = vcmp.ge.f32.partialorder %v573, 0.0
  %vm592 = vcmp.ge.f32.partialorder %v575, 0.0
  %vm593 = vcmp.ge.f32.partialorder %v577, 0.0
  %vm594 = vcmp.ge.f32.partialorder %v579, 0.0
  %vm595 = vcmp.ge.f32.partialorder %v583, 0.0
  %vm596 = vcmp.ge.f32.partialorder %v585, 0.0
  %vm597 = vcmp.ge.f32.partialorder %v587, 0.0
  %vm598 = vcmp.ge.f32.partialorder %v589, 0.0
  %v599 = vmul.f32 %v573, 0.1
  %v600 = vmul.f32 %v575, 0.1
  %v601 = vmul.f32 %v577, 0.1
  %v602 = vmul.f32 %v579, 0.1
  %v603 = vmul.f32 %v583, 0.1
  %v604 = vmul.f32 %v585, 0.1
  %v605 = vmul.f32 %v587, 0.1
  %v606 = vmul.f32 %v589, 0.1
  %v607 = vsel %vm591, %v573, %v599
  %v608 = vsel %vm592, %v575, %v600
  %v609 = vsel %vm593, %v577, %v601
  %v610 = vsel %vm594, %v579, %v602
  %v611 = vsel %vm595, %v583, %v603
  %v612 = vsel %vm596, %v585, %v604
  %v613 = vsel %vm597, %v587, %v605
  %v614 = vsel %vm598, %v589, %v606
  %v615 = vpack.c.bf16 %v609, %v607
  %v616 = vpack.c.bf16 %v610, %v608
  %v617 = vpack.c.bf16 %v613, %v611
  %v618 = vpack.c.bf16 %v614, %v612
  %v619 = vld [vmem:[%s4] sm:$0xff]
  %v620 = vld [vmem:[%s4 + $0x8] sm:$0xff]
  %v621 = vld [vmem:[%s4 + $0x10] sm:$0xff]
  %v622 = vld [vmem:[%s4 + $0x18] sm:$0xff]
  %v623 = vld [vmem:[%s4 + $0x20] sm:$0xff]
  %v624 = vld [vmem:[%s4 + $0x28] sm:$0xff]
  %v625 = vld [vmem:[%s4 + $0x30] sm:$0xff]
  %v626 = vld [vmem:[%s4 + $0x38] sm:$0xff]
  %v627 = vld [vmem:[%s4 + $0x40] sm:$0xff]
  %v628 = vld [vmem:[%s4 + $0x48] sm:$0xff]
  %v629 = vld [vmem:[%s4 + $0x50] sm:$0xff]
  %v630 = vld [vmem:[%s4 + $0x58] sm:$0xff]
  %v631 = vld [vmem:[%s4 + $0x60] sm:$0xff]
  %v632 = vld [vmem:[%s4 + $0x68] sm:$0xff]
  %v633 = vld [vmem:[%s4 + $0x70] sm:$0xff]
  %v634 = vld [vmem:[%s4 + $0x78] sm:$0xff]
  %v635 = vld [vmem:[%s4 + $0x80] sm:$0xff]
  %v636 = vld [vmem:[%s4 + $0x88] sm:$0xff]
  %v637 = vld [vmem:[%s4 + $0x90] sm:$0xff]
  %v638 = vld [vmem:[%s4 + $0x98] sm:$0xff]
  %v639 = vld [vmem:[%s4 + $0xa0] sm:$0xff]
  %v640 = vld [vmem:[%s4 + $0xa8] sm:$0xff]
  %v641 = vld [vmem:[%s4 + $0xb0] sm:$0xff]
  %v642 = vld [vmem:[%s4 + $0xb8] sm:$0xff]
  %v643 = vld [vmem:[%s4 + $0xc0] sm:$0xff]
  %v644 = vld [vmem:[%s4 + $0xc8] sm:$0xff]
  %v645 = vld [vmem:[%s4 + $0xd0] sm:$0xff]
  %v646 = vld [vmem:[%s4 + $0xd8] sm:$0xff]
  %v647 = vld [vmem:[%s4 + $0xe0] sm:$0xff]
  %v648 = vld [vmem:[%s4 + $0xe8] sm:$0xff]
  %v649 = vld [vmem:[%s4 + $0xf0] sm:$0xff]
  %v650 = vld [vmem:[%s4 + $0xf8] sm:$0xff]
  %v651 = vld [vmem:[%s1] sm:$0xff]
  %v652 = vld [vmem:[%s1 + $0x8] sm:$0xff]
  %v653 = vld [vmem:[%s1 + $0x10] sm:$0xff]
  %v654 = vld [vmem:[%s1 + $0x18] sm:$0xff]
  %v655 = vld [vmem:[%s5] sm:$0xff]
  %v656 = vld [vmem:[%s5 + $0x8] sm:$0xff]
  %v657 = vld [vmem:[%s5 + $0x10] sm:$0xff]
  %v658 = vld [vmem:[%s5 + $0x18] sm:$0xff]
  %v659 = vld [vmem:[%s5 + $0x20] sm:$0xff]
  %v660 = vld [vmem:[%s5 + $0x28] sm:$0xff]
  %v661 = vld [vmem:[%s5 + $0x30] sm:$0xff]
  %v662 = vld [vmem:[%s5 + $0x38] sm:$0xff]
  %v663 = vld [vmem:[%s5 + $0x40] sm:$0xff]
  %v664 = vld [vmem:[%s5 + $0x48] sm:$0xff]
  %v665 = vld [vmem:[%s5 + $0x50] sm:$0xff]
  %v666 = vld [vmem:[%s5 + $0x58] sm:$0xff]
  %v667 = vld [vmem:[%s5 + $0x60] sm:$0xff]
  %v668 = vld [vmem:[%s5 + $0x68] sm:$0xff]
  %v669 = vld [vmem:[%s5 + $0x70] sm:$0xff]
  %v670 = vld [vmem:[%s5 + $0x78] sm:$0xff]
  %v671 = vld [vmem:[%s5 + $0x80] sm:$0xff]
  %v672 = vld [vmem:[%s5 + $0x88] sm:$0xff]
  %v673 = vld [vmem:[%s5 + $0x90] sm:$0xff]
  %v674 = vld [vmem:[%s5 + $0x98] sm:$0xff]
  %v675 = vld [vmem:[%s5 + $0xa0] sm:$0xff]
  %v676 = vld [vmem:[%s5 + $0xa8] sm:$0xff]
  %v677 = vld [vmem:[%s5 + $0xb0] sm:$0xff]
  %v678 = vld [vmem:[%s5 + $0xb8] sm:$0xff]
  %v679 = vld [vmem:[%s5 + $0xc0] sm:$0xff]
  %v680 = vld [vmem:[%s5 + $0xc8] sm:$0xff]
  %v681 = vld [vmem:[%s5 + $0xd0] sm:$0xff]
  %v682 = vld [vmem:[%s5 + $0xd8] sm:$0xff]
  %v683 = vld [vmem:[%s5 + $0xe0] sm:$0xff]
  %v684 = vld [vmem:[%s5 + $0xe8] sm:$0xff]
  %v685 = vld [vmem:[%s5 + $0xf0] sm:$0xff]
  %v686 = vld [vmem:[%s5 + $0xf8] sm:$0xff]
  %v691 = vunpack.c.l.b16 %v651
  %v692 = vunpack.c.h.b16 %v651
  %v693 = vunpack.c.l.b16 %v652
  %v694 = vunpack.c.h.b16 %v652
  %v695 = vunpack.c.l.b16 %v653
  %v696 = vunpack.c.h.b16 %v653
  %v697 = vunpack.c.l.b16 %v654
  %v698 = vunpack.c.h.b16 %v654
  %v699 = vpack.c.b16 %v693, %v691
  %v700 = vpack.c.b16 %v694, %v692
  %v701 = vpack.c.b16 %v697, %v695
  %v702 = vpack.c.b16 %v698, %v696
  %v739 = vunpack.c.l.b16 %v655
  %v740 = vunpack.c.h.b16 %v655
  %v741 = vunpack.c.l.b16 %v656
  %v742 = vunpack.c.h.b16 %v656
  %v743 = vunpack.c.l.b16 %v657
  %v744 = vunpack.c.h.b16 %v657
  %v745 = vunpack.c.l.b16 %v658
  %v746 = vunpack.c.h.b16 %v658
  %v747 = vunpack.c.l.b16 %v659
  %v748 = vunpack.c.h.b16 %v659
  %v749 = vunpack.c.l.b16 %v660
  %v750 = vunpack.c.h.b16 %v660
  %v751 = vunpack.c.l.b16 %v661
  %v752 = vunpack.c.h.b16 %v661
  %v753 = vunpack.c.l.b16 %v662
  %v754 = vunpack.c.h.b16 %v662
  %v755 = vunpack.c.l.b16 %v663
  %v756 = vunpack.c.h.b16 %v663
  %v757 = vunpack.c.l.b16 %v664
  %v758 = vunpack.c.h.b16 %v664
  %v759 = vunpack.c.l.b16 %v665
  %v760 = vunpack.c.h.b16 %v665
  %v761 = vunpack.c.l.b16 %v666
  %v762 = vunpack.c.h.b16 %v666
  %v763 = vunpack.c.l.b16 %v667
  %v764 = vunpack.c.h.b16 %v667
  %v765 = vunpack.c.l.b16 %v668
  %v766 = vunpack.c.h.b16 %v668
  %v767 = vunpack.c.l.b16 %v669
  %v768 = vunpack.c.h.b16 %v669
  %v769 = vunpack.c.l.b16 %v670
  %v770 = vunpack.c.h.b16 %v670
  %v771 = vunpack.c.l.b16 %v671
  %v772 = vunpack.c.h.b16 %v671
  %v773 = vunpack.c.l.b16 %v672
  %v774 = vunpack.c.h.b16 %v672
  %v775 = vunpack.c.l.b16 %v673
  %v776 = vunpack.c.h.b16 %v673
  %v777 = vunpack.c.l.b16 %v674
  %v778 = vunpack.c.h.b16 %v674
  %v779 = vunpack.c.l.b16 %v675
  %v780 = vunpack.c.h.b16 %v675
  %v781 = vunpack.c.l.b16 %v676
  %v782 = vunpack.c.h.b16 %v676
  %v783 = vunpack.c.l.b16 %v677
  %v784 = vunpack.c.h.b16 %v677
  %v785 = vunpack.c.l.b16 %v678
  %v786 = vunpack.c.h.b16 %v678
  %v787 = vunpack.c.l.b16 %v679
  %v788 = vunpack.c.h.b16 %v679
  %v789 = vunpack.c.l.b16 %v680
  %v790 = vunpack.c.h.b16 %v680
  %v791 = vunpack.c.l.b16 %v681
  %v792 = vunpack.c.h.b16 %v681
  %v793 = vunpack.c.l.b16 %v682
  %v794 = vunpack.c.h.b16 %v682
  %v795 = vunpack.c.l.b16 %v683
  %v796 = vunpack.c.h.b16 %v683
  %v797 = vunpack.c.l.b16 %v684
  %v798 = vunpack.c.h.b16 %v684
  %v799 = vunpack.c.l.b16 %v685
  %v800 = vunpack.c.h.b16 %v685
  %v801 = vunpack.c.l.b16 %v686
  %v802 = vunpack.c.h.b16 %v686
  %v803 = vpack.c.b16 %v741, %v739
  %v804 = vpack.c.b16 %v742, %v740
  %v805 = vpack.c.b16 %v745, %v743
  %v806 = vpack.c.b16 %v746, %v744
  %v807 = vpack.c.b16 %v749, %v747
  %v808 = vpack.c.b16 %v750, %v748
  %v809 = vpack.c.b16 %v753, %v751
  %v810 = vpack.c.b16 %v754, %v752
  %v811 = vpack.c.b16 %v757, %v755
  %v812 = vpack.c.b16 %v758, %v756
  %v813 = vpack.c.b16 %v761, %v759
  %v814 = vpack.c.b16 %v762, %v760
  %v815 = vpack.c.b16 %v765, %v763
  %v816 = vpack.c.b16 %v766, %v764
  %v817 = vpack.c.b16 %v769, %v767
  %v818 = vpack.c.b16 %v770, %v768
  %v819 = vpack.c.b16 %v773, %v771
  %v820 = vpack.c.b16 %v774, %v772
  %v821 = vpack.c.b16 %v777, %v775
  %v822 = vpack.c.b16 %v778, %v776
  %v823 = vpack.c.b16 %v781, %v779
  %v824 = vpack.c.b16 %v782, %v780
  %v825 = vpack.c.b16 %v785, %v783
  %v826 = vpack.c.b16 %v786, %v784
  %v827 = vpack.c.b16 %v789, %v787
  %v828 = vpack.c.b16 %v790, %v788
  %v829 = vpack.c.b16 %v793, %v791
  %v830 = vpack.c.b16 %v794, %v792
  %v831 = vpack.c.b16 %v797, %v795
  %v832 = vpack.c.b16 %v798, %v796
  %v833 = vpack.c.b16 %v801, %v799
  %v834 = vpack.c.b16 %v802, %v800
  %867 = vmatprep.subr.bf16.mxu0 %v818
  %868 = vmatpush1.bf16.msra.mxu0 %v817
  %869 = vmatprep.subr.bf16.mxu0 %v816
  %870 = vmatpush1.bf16.msra.mxu0 %v815
  %871 = vmatprep.subr.bf16.mxu0 %v814
  %872 = vmatpush1.bf16.msra.mxu0 %v813
  %873 = vmatprep.subr.bf16.mxu0 %v812
  %874 = vmatpush1.bf16.msra.mxu0 %v811
  %875 = vmatprep.subr.bf16.mxu0 %v810
  %876 = vmatpush1.bf16.msra.mxu0 %v809
  %877 = vmatprep.subr.bf16.mxu0 %v808
  %878 = vmatpush1.bf16.msra.mxu0 %v807
  %879 = vmatprep.subr.bf16.mxu0 %v806
  %880 = vmatpush1.bf16.msra.mxu0 %v805
  %881 = vmatprep.subr.bf16.mxu0 %v804
  %882 = vmatpush1.bf16.msra.mxu0 %v803
  %883 = vmatprep.subr.bf16.mxu0 %v834
  %884 = vmatpush2.bf16.msra.mxu0 %v833
  %885 = vmatprep.subr.bf16.mxu0 %v832
  %886 = vmatpush2.bf16.msra.mxu0 %v831
  %887 = vmatprep.subr.bf16.mxu0 %v830
  %888 = vmatpush2.bf16.msra.mxu0 %v829
  %889 = vmatprep.subr.bf16.mxu0 %v828
  %890 = vmatpush2.bf16.msra.mxu0 %v827
  %891 = vmatprep.subr.bf16.mxu0 %v826
  %892 = vmatpush2.bf16.msra.mxu0 %v825
  %893 = vmatprep.subr.bf16.mxu0 %v824
  %894 = vmatpush2.bf16.msra.mxu0 %v823
  %895 = vmatprep.subr.bf16.mxu0 %v822
  %896 = vmatpush2.bf16.msra.mxu0 %v821
  %897 = vmatprep.subr.bf16.mxu0 %v820
  %898 = vmatpush2.bf16.msra.mxu0 %v819
  %899 = vmatprep.mubr.bf16.mxu0 %v700
  %900 = vmatmul.mubr.bf16.gmra.mxu0 %v699
  %v901 = vpop.f32.mrf.mxu0
  %v902 = vadd.f32 0.0, %v901
  %v903 = vpop.f32.mrf.mxu0
  %v904 = vadd.f32 0.0, %v903
  %v905 = vpop.f32.mrf.mxu0
  %v906 = vadd.f32 0.0, %v905
  %v907 = vpop.f32.mrf.mxu0
  %v908 = vadd.f32 0.0, %v907
  %909 = vmatprep.mubr.bf16.mxu0 %v702
  %910 = vmatmul.mubr.bf16.gmra.mxu0 %v701
  %v911 = vpop.f32.mrf.mxu0
  %v912 = vadd.f32 0.0, %v911
  %v913 = vpop.f32.mrf.mxu0
  %v914 = vadd.f32 0.0, %v913
  %v915 = vpop.f32.mrf.mxu0
  %v916 = vadd.f32 0.0, %v915
  %v917 = vpop.f32.mrf.mxu0
  %v918 = vadd.f32 0.0, %v917
  %919 = vdwg.mxu0
  %v952 = vunpack.c.l.b16 %v619
  %v953 = vunpack.c.h.b16 %v619
  %v954 = vunpack.c.l.b16 %v620
  %v955 = vunpack.c.h.b16 %v620
  %v956 = vunpack.c.l.b16 %v621
  %v957 = vunpack.c.h.b16 %v621
  %v958 = vunpack.c.l.b16 %v622
  %v959 = vunpack.c.h.b16 %v622
  %v960 = vunpack.c.l.b16 %v623
  %v961 = vunpack.c.h.b16 %v623
  %v962 = vunpack.c.l.b16 %v624
  %v963 = vunpack.c.h.b16 %v624
  %v964 = vunpack.c.l.b16 %v625
  %v965 = vunpack.c.h.b16 %v625
  %v966 = vunpack.c.l.b16 %v626
  %v967 = vunpack.c.h.b16 %v626
  %v968 = vunpack.c.l.b16 %v627
  %v969 = vunpack.c.h.b16 %v627
  %v970 = vunpack.c.l.b16 %v628
  %v971 = vunpack.c.h.b16 %v628
  %v972 = vunpack.c.l.b16 %v629
  %v973 = vunpack.c.h.b16 %v629
  %v974 = vunpack.c.l.b16 %v630
  %v975 = vunpack.c.h.b16 %v630
  %v976 = vunpack.c.l.b16 %v631
  %v977 = vunpack.c.h.b16 %v631
  %v978 = vunpack.c.l.b16 %v632
  %v979 = vunpack.c.h.b16 %v632
  %v980 = vunpack.c.l.b16 %v633
  %v981 = vunpack.c.h.b16 %v633
  %v982 = vunpack.c.l.b16 %v634
  %v983 = vunpack.c.h.b16 %v634
  %v984 = vunpack.c.l.b16 %v635
  %v985 = vunpack.c.h.b16 %v635
  %v986 = vunpack.c.l.b16 %v636
  %v987 = vunpack.c.h.b16 %v636
  %v988 = vunpack.c.l.b16 %v637
  %v989 = vunpack.c.h.b16 %v637
  %v990 = vunpack.c.l.b16 %v638
  %v991 = vunpack.c.h.b16 %v638
  %v992 = vunpack.c.l.b16 %v639
  %v993 = vunpack.c.h.b16 %v639
  %v994 = vunpack.c.l.b16 %v640
  %v995 = vunpack.c.h.b16 %v640
  %v996 = vunpack.c.l.b16 %v641
  %v997 = vunpack.c.h.b16 %v641
  %v998 = vunpack.c.l.b16 %v642
  %v999 = vunpack.c.h.b16 %v642
  %v1000 = vunpack.c.l.b16 %v643
  %v1001 = vunpack.c.h.b16 %v643
  %v1002 = vunpack.c.l.b16 %v644
  %v1003 = vunpack.c.h.b16 %v644
  %v1004 = vunpack.c.l.b16 %v645
  %v1005 = vunpack.c.h.b16 %v645
  %v1006 = vunpack.c.l.b16 %v646
  %v1007 = vunpack.c.h.b16 %v646
  %v1008 = vunpack.c.l.b16 %v647
  %v1009 = vunpack.c.h.b16 %v647
  %v1010 = vunpack.c.l.b16 %v648
  %v1011 = vunpack.c.h.b16 %v648
  %v1012 = vunpack.c.l.b16 %v649
  %v1013 = vunpack.c.h.b16 %v649
  %v1014 = vunpack.c.l.b16 %v650
  %v1015 = vunpack.c.h.b16 %v650
  %v1016 = vpack.c.b16 %v954, %v952
  %v1017 = vpack.c.b16 %v955, %v953
  %v1018 = vpack.c.b16 %v958, %v956
  %v1019 = vpack.c.b16 %v959, %v957
  %v1020 = vpack.c.b16 %v962, %v960
  %v1021 = vpack.c.b16 %v963, %v961
  %v1022 = vpack.c.b16 %v966, %v964
  %v1023 = vpack.c.b16 %v967, %v965
  %v1024 = vpack.c.b16 %v970, %v968
  %v1025 = vpack.c.b16 %v971, %v969
  %v1026 = vpack.c.b16 %v974, %v972
  %v1027 = vpack.c.b16 %v975, %v973
  %v1028 = vpack.c.b16 %v978, %v976
  %v1029 = vpack.c.b16 %v979, %v977
  %v1030 = vpack.c.b16 %v982, %v980
  %v1031 = vpack.c.b16 %v983, %v981
  %v1032 = vpack.c.b16 %v986, %v984
  %v1033 = vpack.c.b16 %v987, %v985
  %v1034 = vpack.c.b16 %v990, %v988
  %v1035 = vpack.c.b16 %v991, %v989
  %v1036 = vpack.c.b16 %v994, %v992
  %v1037 = vpack.c.b16 %v995, %v993
  %v1038 = vpack.c.b16 %v998, %v996
  %v1039 = vpack.c.b16 %v999, %v997
  %v1040 = vpack.c.b16 %v1002, %v1000
  %v1041 = vpack.c.b16 %v1003, %v1001
  %v1042 = vpack.c.b16 %v1006, %v1004
  %v1043 = vpack.c.b16 %v1007, %v1005
  %v1044 = vpack.c.b16 %v1010, %v1008
  %v1045 = vpack.c.b16 %v1011, %v1009
  %v1046 = vpack.c.b16 %v1014, %v1012
  %v1047 = vpack.c.b16 %v1015, %v1013
  %1080 = vmatprep.subr.bf16.mxu0 %v1031
  %1081 = vmatpush1.bf16.msra.mxu0 %v1030
  %1082 = vmatprep.subr.bf16.mxu0 %v1029
  %1083 = vmatpush1.bf16.msra.mxu0 %v1028
  %1084 = vmatprep.subr.bf16.mxu0 %v1027
  %1085 = vmatpush1.bf16.msra.mxu0 %v1026
  %1086 = vmatprep.subr.bf16.mxu0 %v1025
  %1087 = vmatpush1.bf16.msra.mxu0 %v1024
  %1088 = vmatprep.subr.bf16.mxu0 %v1023
  %1089 = vmatpush1.bf16.msra.mxu0 %v1022
  %1090 = vmatprep.subr.bf16.mxu0 %v1021
  %1091 = vmatpush1.bf16.msra.mxu0 %v1020
  %1092 = vmatprep.subr.bf16.mxu0 %v1019
  %1093 = vmatpush1.bf16.msra.mxu0 %v1018
  %1094 = vmatprep.subr.bf16.mxu0 %v1017
  %1095 = vmatpush1.bf16.msra.mxu0 %v1016
  %1096 = vmatprep.subr.bf16.mxu0 %v1047
  %1097 = vmatpush2.bf16.msra.mxu0 %v1046
  %1098 = vmatprep.subr.bf16.mxu0 %v1045
  %1099 = vmatpush2.bf16.msra.mxu0 %v1044
  %1100 = vmatprep.subr.bf16.mxu0 %v1043
  %1101 = vmatpush2.bf16.msra.mxu0 %v1042
  %1102 = vmatprep.subr.bf16.mxu0 %v1041
  %1103 = vmatpush2.bf16.msra.mxu0 %v1040
  %1104 = vmatprep.subr.bf16.mxu0 %v1039
  %1105 = vmatpush2.bf16.msra.mxu0 %v1038
  %1106 = vmatprep.subr.bf16.mxu0 %v1037
  %1107 = vmatpush2.bf16.msra.mxu0 %v1036
  %1108 = vmatprep.subr.bf16.mxu0 %v1035
  %1109 = vmatpush2.bf16.msra.mxu0 %v1034
  %1110 = vmatprep.subr.bf16.mxu0 %v1033
  %1111 = vmatpush2.bf16.msra.mxu0 %v1032
  %1112 = vmatprep.mubr.bf16.mxu0 %v616
  %1113 = vmatmul.mubr.bf16.gmra.mxu0 %v615
  %v1114 = vpop.f32.mrf.mxu0
  %v1115 = vadd.f32 %v902, %v1114
  %v1116 = vpop.f32.mrf.mxu0
  %v1117 = vadd.f32 %v904, %v1116
  %v1118 = vpop.f32.mrf.mxu0
  %v1119 = vadd.f32 %v906, %v1118
  %v1120 = vpop.f32.mrf.mxu0
  %v1121 = vadd.f32 %v908, %v1120
  %1122 = vmatprep.mubr.bf16.mxu0 %v618
  %1123 = vmatmul.mubr.bf16.gmra.mxu0 %v617
  %v1124 = vpop.f32.mrf.mxu0
  %v1125 = vadd.f32 %v912, %v1124
  %v1126 = vpop.f32.mrf.mxu0
  %v1127 = vadd.f32 %v914, %v1126
  %v1128 = vpop.f32.mrf.mxu0
  %v1129 = vadd.f32 %v916, %v1128
  %v1130 = vpop.f32.mrf.mxu0
  %v1131 = vadd.f32 %v918, %v1130
  %1132 = vdwg.mxu0
  %v1133 = vld [vmem:[%s6] sm:$0x3]
  %v1135 = vlaneseq
  %v1136 = vshrl.u32 %v1135, 7
  %v1137 = vsub.s32 0, %v1136
  %v1138 = vrot.slane %v1133, %v1137
  %v1139 = vlaneseq
  %v1140 = vshrl.u32 %v1139, 7
  %v1141 = vsub.s32 1, %v1140
  %v1142 = vrot.slane %v1133, %v1141
  %v1145 = vadd.f32 %v1115, %v1138
  %v1146 = vadd.f32 %v1117, %v1142
  %v1147 = vadd.f32 %v1119, %v1138
  %v1148 = vadd.f32 %v1121, %v1142
  %v1149 = vadd.f32 %v1125, %v1138
  %v1150 = vadd.f32 %v1127, %v1142
  %v1151 = vadd.f32 %v1129, %v1138
  %v1152 = vadd.f32 %v1131, %v1142
  %vm1153 = vcmp.ge.f32.partialorder %v1145, 0.0
  %vm1154 = vcmp.ge.f32.partialorder %v1146, 0.0
  %vm1155 = vcmp.ge.f32.partialorder %v1147, 0.0
  %vm1156 = vcmp.ge.f32.partialorder %v1148, 0.0
  %vm1157 = vcmp.ge.f32.partialorder %v1149, 0.0
  %vm1158 = vcmp.ge.f32.partialorder %v1150, 0.0
  %vm1159 = vcmp.ge.f32.partialorder %v1151, 0.0
  %vm1160 = vcmp.ge.f32.partialorder %v1152, 0.0
  %v1161 = vmul.f32 %v1145, 0.1
  %v1162 = vmul.f32 %v1146, 0.1
  %v1163 = vmul.f32 %v1147, 0.1
  %v1164 = vmul.f32 %v1148, 0.1
  %v1165 = vmul.f32 %v1149, 0.1
  %v1166 = vmul.f32 %v1150, 0.1
  %v1167 = vmul.f32 %v1151, 0.1
  %v1168 = vmul.f32 %v1152, 0.1
  %v1169 = vsel %vm1153, %v1145, %v1161
  %v1170 = vsel %vm1154, %v1146, %v1162
  %v1171 = vsel %vm1155, %v1147, %v1163
  %v1172 = vsel %vm1156, %v1148, %v1164
  %v1173 = vsel %vm1157, %v1149, %v1165
  %v1174 = vsel %vm1158, %v1150, %v1166
  %v1175 = vsel %vm1159, %v1151, %v1167
  %v1176 = vsel %vm1160, %v1152, %v1168
  %v1177 = vpack.c.bf16 %v1171, %v1169
  %v1178 = vpack.c.bf16 %v1172, %v1170
  %v1179 = vpack.c.bf16 %v1175, %v1173
  %v1180 = vpack.c.bf16 %v1176, %v1174
  %v1185 = vunpack.c.l.b16 %v1177
  %v1186 = vunpack.c.l.b16 %v1178
  %v1187 = vunpack.c.h.b16 %v1177
  %v1188 = vunpack.c.h.b16 %v1178
  %v1189 = vunpack.c.l.b16 %v1179
  %v1190 = vunpack.c.l.b16 %v1180
  %v1191 = vunpack.c.h.b16 %v1179
  %v1192 = vunpack.c.h.b16 %v1180
  %v1193 = vpack.c.b16 %v1186, %v1185
  %v1194 = vpack.c.b16 %v1188, %v1187
  %v1195 = vpack.c.b16 %v1190, %v1189
  %v1196 = vpack.c.b16 %v1192, %v1191
  %1201 = vst [vmem:[%s11] sm:$0xff] %v1193
  %1202 = vst [vmem:[%s11 + $0x8] sm:$0xff] %v1194
  %1203 = vst [vmem:[%s11 + $0x10] sm:$0xff] %v1195
  %1204 = vst [vmem:[%s11 + $0x18] sm:$0xff] %v1196
  %v1205 = vld [vmem:[%s7] sm:$0xf]
  %v1206 = vld [vmem:[%s7 + $0x4] sm:$0xf]
  %v1207 = vld [vmem:[%s7 + $0x8] sm:$0xf]
  %v1208 = vld [vmem:[%s7 + $0xc] sm:$0xf]
  %v1209 = vld [vmem:[%s7 + $0x10] sm:$0xf]
  %v1210 = vld [vmem:[%s7 + $0x14] sm:$0xf]
  %v1211 = vld [vmem:[%s7 + $0x18] sm:$0xf]
  %v1212 = vld [vmem:[%s7 + $0x1c] sm:$0xf]
  %v1213 = vld [vmem:[%s7 + $0x20] sm:$0xf]
  %v1214 = vld [vmem:[%s7 + $0x24] sm:$0xf]
  %v1215 = vld [vmem:[%s7 + $0x28] sm:$0xf]
  %v1216 = vld [vmem:[%s7 + $0x2c] sm:$0xf]
  %v1217 = vld [vmem:[%s7 + $0x30] sm:$0xf]
  %v1218 = vld [vmem:[%s7 + $0x34] sm:$0xf]
  %v1219 = vld [vmem:[%s7 + $0x38] sm:$0xf]
  %v1220 = vld [vmem:[%s7 + $0x3c] sm:$0xf]
  %v1221 = vld [vmem:[%s7 + $0x40] sm:$0xf]
  %v1222 = vld [vmem:[%s7 + $0x44] sm:$0xf]
  %v1223 = vld [vmem:[%s7 + $0x48] sm:$0xf]
  %v1224 = vld [vmem:[%s7 + $0x4c] sm:$0xf]
  %v1225 = vld [vmem:[%s7 + $0x50] sm:$0xf]
  %v1226 = vld [vmem:[%s7 + $0x54] sm:$0xf]
  %v1227 = vld [vmem:[%s7 + $0x58] sm:$0xf]
  %v1228 = vld [vmem:[%s7 + $0x5c] sm:$0xf]
  %v1229 = vld [vmem:[%s7 + $0x60] sm:$0xf]
  %v1230 = vld [vmem:[%s7 + $0x64] sm:$0xf]
  %v1231 = vld [vmem:[%s7 + $0x68] sm:$0xf]
  %v1232 = vld [vmem:[%s7 + $0x6c] sm:$0xf]
  %v1233 = vld [vmem:[%s7 + $0x70] sm:$0xf]
  %v1234 = vld [vmem:[%s7 + $0x74] sm:$0xf]
  %v1235 = vld [vmem:[%s7 + $0x78] sm:$0xf]
  %v1236 = vld [vmem:[%s7 + $0x7c] sm:$0xf]
  %v1237 = vld [vmem:[%s8] sm:$0x1]
  %v1239 = vlaneseq
  %v1240 = vshrl.u32 %v1239, 7
  %v1241 = vsub.s32 0, %v1240
  %v1242 = vrot.slane %v1237, %v1241
  %v1276 = vunpack.c.l.b16 %v1205
  %v1277 = vunpack.c.l.b16 %v1206
  %v1278 = vunpack.c.l.b16 %v1207
  %v1279 = vunpack.c.l.b16 %v1208
  %v1280 = vunpack.c.l.b16 %v1209
  %v1281 = vunpack.c.l.b16 %v1210
  %v1282 = vunpack.c.l.b16 %v1211
  %v1283 = vunpack.c.l.b16 %v1212
  %v1284 = vunpack.c.l.b16 %v1213
  %v1285 = vunpack.c.l.b16 %v1214
  %v1286 = vunpack.c.l.b16 %v1215
  %v1287 = vunpack.c.l.b16 %v1216
  %v1288 = vunpack.c.l.b16 %v1217
  %v1289 = vunpack.c.l.b16 %v1218
  %v1290 = vunpack.c.l.b16 %v1219
  %v1291 = vunpack.c.l.b16 %v1220
  %v1292 = vunpack.c.l.b16 %v1221
  %v1293 = vunpack.c.l.b16 %v1222
  %v1294 = vunpack.c.l.b16 %v1223
  %v1295 = vunpack.c.l.b16 %v1224
  %v1296 = vunpack.c.l.b16 %v1225
  %v1297 = vunpack.c.l.b16 %v1226
  %v1298 = vunpack.c.l.b16 %v1227
  %v1299 = vunpack.c.l.b16 %v1228
  %v1300 = vunpack.c.l.b16 %v1229
  %v1301 = vunpack.c.l.b16 %v1230
  %v1302 = vunpack.c.l.b16 %v1231
  %v1303 = vunpack.c.l.b16 %v1232
  %v1304 = vunpack.c.l.b16 %v1233
  %v1305 = vunpack.c.l.b16 %v1234
  %v1306 = vunpack.c.l.b16 %v1235
  %v1307 = vunpack.c.l.b16 %v1236
  %v1308 = vpack.c.b16 %v1277, %v1276
  %v1309 = vpack.c.b16 %v1279, %v1278
  %v1310 = vpack.c.b16 %v1281, %v1280
  %v1311 = vpack.c.b16 %v1283, %v1282
  %v1312 = vpack.c.b16 %v1285, %v1284
  %v1313 = vpack.c.b16 %v1287, %v1286
  %v1314 = vpack.c.b16 %v1289, %v1288
  %v1315 = vpack.c.b16 %v1291, %v1290
  %v1316 = vpack.c.b16 %v1293, %v1292
  %v1317 = vpack.c.b16 %v1295, %v1294
  %v1318 = vpack.c.b16 %v1297, %v1296
  %v1319 = vpack.c.b16 %v1299, %v1298
  %v1320 = vpack.c.b16 %v1301, %v1300
  %v1321 = vpack.c.b16 %v1303, %v1302
  %v1322 = vpack.c.b16 %v1305, %v1304
  %v1323 = vpack.c.b16 %v1307, %v1306
  %1340 = vmatprep.subr.bf16.mxu0 0
  %1341 = vmatpush1.bf16.msra.mxu0 %v1315
  %1342 = vmatprep.subr.bf16.mxu0 0
  %1343 = vmatpush1.bf16.msra.mxu0 %v1314
  %1344 = vmatprep.subr.bf16.mxu0 0
  %1345 = vmatpush1.bf16.msra.mxu0 %v1313
  %1346 = vmatprep.subr.bf16.mxu0 0
  %1347 = vmatpush1.bf16.msra.mxu0 %v1312
  %1348 = vmatprep.subr.bf16.mxu0 0
  %1349 = vmatpush1.bf16.msra.mxu0 %v1311
  %1350 = vmatprep.subr.bf16.mxu0 0
  %1351 = vmatpush1.bf16.msra.mxu0 %v1310
  %1352 = vmatprep.subr.bf16.mxu0 0
  %1353 = vmatpush1.bf16.msra.mxu0 %v1309
  %1354 = vmatprep.subr.bf16.mxu0 0
  %1355 = vmatpush1.bf16.msra.mxu0 %v1308
  %1356 = vmatprep.subr.bf16.mxu0 0
  %1357 = vmatpush2.bf16.msra.mxu0 %v1323
  %1358 = vmatprep.subr.bf16.mxu0 0
  %1359 = vmatpush2.bf16.msra.mxu0 %v1322
  %1360 = vmatprep.subr.bf16.mxu0 0
  %1361 = vmatpush2.bf16.msra.mxu0 %v1321
  %1362 = vmatprep.subr.bf16.mxu0 0
  %1363 = vmatpush2.bf16.msra.mxu0 %v1320
  %1364 = vmatprep.subr.bf16.mxu0 0
  %1365 = vmatpush2.bf16.msra.mxu0 %v1319
  %1366 = vmatprep.subr.bf16.mxu0 0
  %1367 = vmatpush2.bf16.msra.mxu0 %v1318
  %1368 = vmatprep.subr.bf16.mxu0 0
  %1369 = vmatpush2.bf16.msra.mxu0 %v1317
  %1370 = vmatprep.subr.bf16.mxu0 0
  %1371 = vmatpush2.bf16.msra.mxu0 %v1316
  %1372 = vmatprep.mubr.bf16.mxu0 %v1178
  %1373 = vmatmul.mubr.bf16.gmra.mxu0 %v1177
  %v1374 = vpop.f32.mrf.mxu0
  %v1375 = vadd.f32 %v1242, %v1374
  %v1376 = vpop.f32.mrf.mxu0
  %v1377 = vpop.f32.mrf.mxu0
  %v1378 = vadd.f32 %v1242, %v1377
  %v1379 = vpop.f32.mrf.mxu0
  %1380 = vmatprep.mubr.bf16.mxu0 %v1180
  %1381 = vmatmul.mubr.bf16.gmra.mxu0 %v1179
  %v1382 = vpop.f32.mrf.mxu0
  %v1383 = vadd.f32 %v1242, %v1382
  %v1384 = vpop.f32.mrf.mxu0
  %v1385 = vpop.f32.mrf.mxu0
  %v1386 = vadd.f32 %v1242, %v1385
  %v1387 = vpop.f32.mrf.mxu0
  %1388 = vdwg.mxu0
  %v1389 = vld [vmem:[%s9] sm:$0xff]
  %v1390 = vld [vmem:[%s9 + $0x8] sm:$0xff]
  %v1391 = vld [vmem:[%s9 + $0x10] sm:$0xff]
  %v1392 = vld [vmem:[%s9 + $0x18] sm:$0xff]
  %v1393 = vld [vmem:[%s10] sm:$0x1]
  %v1394 = vsub.f32 0.0, %v1375
  %v1395 = vsub.f32 0.0, %v1378
  %v1396 = vsub.f32 0.0, %v1383
  %v1397 = vsub.f32 0.0, %v1386
  %v1398 = vmul.f32 %v1394, 1.442695
  %v1399 = vpow.pop %v1398
  %v1400 = vmul.f32 %v1395, 1.442695
  %v1401 = vpow.pop %v1400
  %v1402 = vmul.f32 %v1396, 1.442695
  %v1403 = vpow.pop %v1402
  %v1404 = vmul.f32 %v1397, 1.442695
  %v1405 = vpow.pop %v1404
  %v1406 = vadd.f32 %v1399, 1.0
  %v1407 = vadd.f32 %v1401, 1.0
  %v1408 = vadd.f32 %v1403, 1.0
  %v1409 = vadd.f32 %v1405, 1.0
  %v1410 = vrcp.pop %v1406
  %v1411 = vmul.f32 1.0, %v1410
  %v1412 = vrcp.pop %v1407
  %v1413 = vmul.f32 1.0, %v1412
  %v1414 = vrcp.pop %v1408
  %v1415 = vmul.f32 1.0, %v1414
  %v1416 = vrcp.pop %v1409
  %v1417 = vmul.f32 1.0, %v1416
  %v1418 = vmul.f32 %v1375, 1.442695
  %v1419 = vpow.pop %v1418
  %v1420 = vmul.f32 %v1378, 1.442695
  %v1421 = vpow.pop %v1420
  %v1422 = vmul.f32 %v1383, 1.442695
  %v1423 = vpow.pop %v1422
  %v1424 = vmul.f32 %v1386, 1.442695
  %v1425 = vpow.pop %v1424
  %v1426 = vlaneseq
  %v1427 = vand.u32 %v1426, 127
  %vm1428 = vcmp.ge.s32.totalorder %v1427, 12
  %v1429 = vsub.s32 %v1427, 12
  %vm1430 = vcmp.ge.s32.totalorder %v1427, 6
  %v1431 = vsub.s32 %v1427, 6
  %v1432 = vsel %vm1430, %v1431, %v1427
  %v1433 = vsel %vm1428, %v1429, %v1432
  %vm1434 = vcmp.eq.s32.totalorder %v1433, 0
  %1436 = vset.pattern.permute.xlu0 0
  %1437 = vperm.xlu0 %1436, %v1389
  %v1438 = vpop.permute.xlu0 %1437
  %1441 = vset.pattern.permute.xlu0 0
  %1442 = vperm.xlu0 %1441, %v1390
  %v1443 = vpop.permute.xlu0 %1442
  %1446 = vset.pattern.permute.xlu0 0
  %1447 = vperm.xlu0 %1446, %v1391
  %v1448 = vpop.permute.xlu0 %1447
  %1451 = vset.pattern.permute.xlu0 0
  %1452 = vperm.xlu0 %1451, %v1392
  %v1453 = vpop.permute.xlu0 %1452
  %1455 = vset.pattern.permute.xlu0 1
  %1456 = vperm.xlu0 %1455, %v1389
  %v1457 = vpop.permute.xlu0 %1456
  %1459 = vset.pattern.permute.xlu0 1
  %1460 = vperm.xlu0 %1459, %v1390
  %v1461 = vpop.permute.xlu0 %1460
  %1463 = vset.pattern.permute.xlu0 1
  %1464 = vperm.xlu0 %1463, %v1391
  %v1465 = vpop.permute.xlu0 %1464
  %1467 = vset.pattern.permute.xlu0 1
  %1468 = vperm.xlu0 %1467, %v1392
  %v1469 = vpop.permute.xlu0 %1468
  %v1471 = vsel %vm1434, %v1438, %v1457
  %v1472 = vsel %vm1434, %v1443, %v1461
  %v1473 = vsel %vm1434, %v1448, %v1465
  %v1474 = vsel %vm1434, %v1453, %v1469
  %v1475 = vadd.f32 %v1411, %v1471
  %v1476 = vadd.f32 %v1413, %v1472
  %v1477 = vadd.f32 %v1415, %v1473
  %v1478 = vadd.f32 %v1417, %v1474
  %v1479 = vmul.f32 %v1475, 16.0
  %v1480 = vmul.f32 %v1476, 16.0
  %v1481 = vmul.f32 %v1477, 16.0
  %v1482 = vmul.f32 %v1478, 16.0
  %v1484 = vlaneseq
  %v1485 = vshrl.u32 %v1484, 7
  %v1486 = vsub.s32 0, %v1485
  %v1487 = vrot.slane %v1393, %v1486
  %v1489 = vmul.f32 %v1419, %v1487
  %v1490 = vmul.f32 %v1421, %v1487
  %v1491 = vmul.f32 %v1423, %v1487
  %v1492 = vmul.f32 %v1425, %v1487
  %v1493 = vmul.f32 %v1411, 360.0
  %v1494 = vmul.f32 %v1413, 360.0
  %v1495 = vmul.f32 %v1415, 360.0
  %v1496 = vmul.f32 %v1417, 360.0
  %v1497 = vsub.f32 %v1493, 180.0
  %v1498 = vsub.f32 %v1494, 180.0
  %v1499 = vsub.f32 %v1495, 180.0
  %v1500 = vsub.f32 %v1496, 180.0
  %vm1501 = vcmp.lt.s32.totalorder %v1433, 2
  %vm1502 = vcmp.lt.s32.totalorder %v1433, 4
  %vm1503 = vcmp.eq.s32.totalorder %v1433, 4
  %v1504 = vsel %vm1503, %v1497, %v1411
  %v1505 = vsel %vm1503, %v1498, %v1413
  %v1506 = vsel %vm1503, %v1499, %v1415
  %v1507 = vsel %vm1503, %v1500, %v1417
  %v1508 = vsel %vm1502, %v1489, %v1504
  %v1509 = vsel %vm1502, %v1490, %v1505
  %v1510 = vsel %vm1502, %v1491, %v1506
  %v1511 = vsel %vm1502, %v1492, %v1507
  %v1512 = vsel %vm1501, %v1479, %v1508
  %v1513 = vsel %vm1501, %v1480, %v1509
  %v1514 = vsel %vm1501, %v1481, %v1510
  %v1515 = vsel %vm1501, %v1482, %v1511
  %vm1516 = vcmask 146432
  %1517 = vst.msk [vmem:[%s12] sm:$0xff] %vm1516, %v1512
  %1518 = vst.msk [vmem:[%s12 + $0x8] sm:$0xff] %vm1516, %v1513
  %1519 = vst.msk [vmem:[%s12 + $0x10] sm:$0xff] %vm1516, %v1514
  %1520 = vst.msk [vmem:[%s12 + $0x18] sm:$0xff] %vm1516, %v1515
  // Predicated region
  $region46: #{forward.13} parent=0 // pred_check
    _
  $region47: #{forward.13} parent=0 // pred_check_branch
    %1522 = sbr.rel (0) target = $region49
  $region48: #{forward.13} parent=0 // pred_region
    _
  $region49: #{forward.13} parent=0 // pred_fallthru
    _
  // Predicated region
  $region50: #{forward.13} parent=0 // pred_check
    _
  $region51: #{forward.13} parent=0 // pred_check_branch
    %1524 = sbr.rel (0) target = $region53
  $region52: #{forward.13} parent=0 // pred_region
    _
  $region53: #{forward.13} parent=0 // pred_fallthru
    _
  // Predicated region
  $region54: #{forward.13} parent=0 // pred_check
    _
  $region55: #{forward.13} parent=0 // pred_check_branch
    %1526 = sbr.rel (0) target = $region57
  $region56: #{forward.13} parent=0 // pred_region
    _
  $region57: #{forward.13} parent=0 // pred_fallthru
    _
  // Predicated region
  $region58: #{forward.13} parent=0 // pred_check
    _
  $region59: #{forward.13} parent=0 // pred_check_branch
    %1528 = sbr.rel (0) target = $region61
  $region60: #{forward.13} parent=0 // pred_region
    _
  $region61: #{forward.13} parent=0 // pred_fallthru
    _

// kernel: forward.8
$region0: #{forward.8}
  #allocation0 [shape = 'u32[]', space=smem, size = 0x4, offset = 0x4, fixed_abs, tag = 'smem constant byte address 0x4 - core index']
  #allocation1 [shape = 'u32[144,128]{1,0:T(1,128)}', space=vmem, size = 0x12000, scoped, tag = 'internal scratch']
  %s0 = inlined_call_operand.vmem [shape: bf16[128,8], index: 0, kind: input, shape index: {}]
  %s1 = inlined_call_operand.vmem [shape: bf16[8,256], index: 1, kind: input, shape index: {}]
  %s2 = inlined_call_operand.vmem [shape: f32[1,256], index: 2, kind: input, shape index: {}]
  %s3 = inlined_call_operand.vmem [shape: bf16[128,256], index: 3, kind: output, shape index: {}]
  %s4 = sld [smem:[#allocation0]]
  $region22: #{forward.8} parent=0
    _
  %s6 = ssub.s32 1, %s4
  %s7 = scalar_select 0, %s6, %s4
  // Predicated region
  $region2: #{forward.8} parent=0 // pred_check
    _
  $region3: #{forward.8} parent=0 // pred_check_branch
    %9 = sbr.rel (0) target = $region5
  $region4: #{forward.8} parent=0 // pred_region
    _
  $region5: #{forward.8} parent=0 // pred_fallthru
    _
  // Predicated region
  $region6: #{forward.8} parent=0 // pred_check
    _
  $region7: #{forward.8} parent=0 // pred_check_branch
    %11 = sbr.rel (0) target = $region9
  $region8: #{forward.8} parent=0 // pred_region
    _
  $region9: #{forward.8} parent=0 // pred_fallthru
    _
  // Predicated region
  $region10: #{forward.8} parent=0 // pred_check
    _
  $region11: #{forward.8} parent=0 // pred_check_branch
    %13 = sbr.rel (0) target = $region13
  $region12: #{forward.8} parent=0 // pred_region
    _
  $region13: #{forward.8} parent=0 // pred_fallthru
    _
  %v15 = vld [vmem:[%s0] sm:$0xf]
  %v16 = vld [vmem:[%s0 + $0x4] sm:$0xf]
  %v17 = vld [vmem:[%s0 + $0x8] sm:$0xf]
  %v18 = vld [vmem:[%s0 + $0xc] sm:$0xf]
  %v19 = vld [vmem:[%s0 + $0x10] sm:$0xf]
  %v20 = vld [vmem:[%s0 + $0x14] sm:$0xf]
  %v21 = vld [vmem:[%s0 + $0x18] sm:$0xf]
  %v22 = vld [vmem:[%s0 + $0x1c] sm:$0xf]
  %v23 = vld [vmem:[%s0 + $0x20] sm:$0xf]
  %v24 = vld [vmem:[%s0 + $0x24] sm:$0xf]
  %v25 = vld [vmem:[%s0 + $0x28] sm:$0xf]
  %v26 = vld [vmem:[%s0 + $0x2c] sm:$0xf]
  %v27 = vld [vmem:[%s0 + $0x30] sm:$0xf]
  %v28 = vld [vmem:[%s0 + $0x34] sm:$0xf]
  %v29 = vld [vmem:[%s0 + $0x38] sm:$0xf]
  %v30 = vld [vmem:[%s0 + $0x3c] sm:$0xf]
  %v31 = vld [vmem:[%s1] sm:$0xff]
  %v32 = vld [vmem:[%s2] sm:$0x3]
  %v34 = vlaneseq
  %v35 = vshrl.u32 %v34, 7
  %v36 = vsub.s32 0, %v35
  %v37 = vrot.slane %v32, %v36
  %v38 = vlaneseq
  %v39 = vshrl.u32 %v38, 7
  %v40 = vsub.s32 1, %v39
  %v41 = vrot.slane %v32, %v40
  %v60 = vunpack.c.l.b16 %v15
  %v61 = vunpack.c.l.b16 %v16
  %v62 = vunpack.c.l.b16 %v17
  %v63 = vunpack.c.l.b16 %v18
  %v64 = vunpack.c.l.b16 %v19
  %v65 = vunpack.c.l.b16 %v20
  %v66 = vunpack.c.l.b16 %v21
  %v67 = vunpack.c.l.b16 %v22
  %v68 = vunpack.c.l.b16 %v23
  %v69 = vunpack.c.l.b16 %v24
  %v70 = vunpack.c.l.b16 %v25
  %v71 = vunpack.c.l.b16 %v26
  %v72 = vunpack.c.l.b16 %v27
  %v73 = vunpack.c.l.b16 %v28
  %v74 = vunpack.c.l.b16 %v29
  %v75 = vunpack.c.l.b16 %v30
  %v76 = vpack.c.b16 %v61, %v60
  %v77 = vpack.c.b16 %v63, %v62
  %v78 = vpack.c.b16 %v65, %v64
  %v79 = vpack.c.b16 %v67, %v66
  %v80 = vpack.c.b16 %v69, %v68
  %v81 = vpack.c.b16 %v71, %v70
  %v82 = vpack.c.b16 %v73, %v72
  %v83 = vpack.c.b16 %v75, %v74
  %v85 = vunpack.c.l.b16 %v31
  %v86 = vunpack.c.h.b16 %v31
  %v87 = vpack.c.b16 %v85, %v85
  %v88 = vpack.c.b16 %v86, %v86
  %vm89 = vcmask 64512
  %v91 = vsel %vm89, %v76, 0
  %v94 = vsel %vm89, %v77, 0
  %v97 = vsel %vm89, %v78, 0
  %v100 = vsel %vm89, %v79, 0
  %v103 = vsel %vm89, %v80, 0
  %v106 = vsel %vm89, %v81, 0
  %v109 = vsel %vm89, %v82, 0
  %v112 = vsel %vm89, %v83, 0
  %vm114 = vcmask 1043456
  %v116 = vsel %vm114, %v87, 0
  %v119 = vsel %vm114, %v88, 0
  %121 = vmatprep.subr.bf16.mxu0 0
  %122 = vmatpush1.bf16.msra.mxu0 0
  %123 = vmatprep.subr.bf16.mxu0 0
  %124 = vmatpush1.bf16.msra.mxu0 0
  %125 = vmatprep.subr.bf16.mxu0 0
  %126 = vmatpush1.bf16.msra.mxu0 0
  %127 = vmatprep.subr.bf16.mxu0 0
  %128 = vmatpush1.bf16.msra.mxu0 0
  %129 = vmatprep.subr.bf16.mxu0 0
  %130 = vmatpush1.bf16.msra.mxu0 0
  %131 = vmatprep.subr.bf16.mxu0 0
  %132 = vmatpush1.bf16.msra.mxu0 0
  %133 = vmatprep.subr.bf16.mxu0 0
  %134 = vmatpush1.bf16.msra.mxu0 0
  %135 = vmatprep.subr.bf16.mxu0 %v119
  %136 = vmatpush1.bf16.msra.mxu0 %v116
  %137 = vmatprep.subr.bf16.mxu0 0
  %138 = vmatpush2.bf16.msra.mxu0 0
  %139 = vmatprep.subr.bf16.mxu0 0
  %140 = vmatpush2.bf16.msra.mxu0 0
  %141 = vmatprep.subr.bf16.mxu0 0
  %142 = vmatpush2.bf16.msra.mxu0 0
  %143 = vmatprep.subr.bf16.mxu0 0
  %144 = vmatpush2.bf16.msra.mxu0 0
  %145 = vmatprep.subr.bf16.mxu0 0
  %146 = vmatpush2.bf16.msra.mxu0 0
  %147 = vmatprep.subr.bf16.mxu0 0
  %148 = vmatpush2.bf16.msra.mxu0 0
  %149 = vmatprep.subr.bf16.mxu0 0
  %150 = vmatpush2.bf16.msra.mxu0 0
  %151 = vmatprep.subr.bf16.mxu0 0
  %152 = vmatpush2.bf16.msra.mxu0 0
  %153 = vmatprep.mubr.bf16.mxu0 0
  %154 = vmatmul.mubr.bf16.gmra.mxu0 %v91
  %v155 = vpop.f32.mrf.mxu0
  %v156 = vadd.f32 %v37, %v155
  %v157 = vpop.f32.mrf.mxu0
  %v158 = vadd.f32 %v41, %v157
  %v159 = vpop.f32.mrf.mxu0
  %v160 = vadd.f32 %v37, %v159
  %v161 = vpop.f32.mrf.mxu0
  %v162 = vadd.f32 %v41, %v161
  %163 = vmatprep.mubr.bf16.mxu0 0
  %164 = vmatmul.mubr.bf16.gmra.mxu0 %v94
  %v165 = vpop.f32.mrf.mxu0
  %v166 = vadd.f32 %v37, %v165
  %v167 = vpop.f32.mrf.mxu0
  %v168 = vadd.f32 %v41, %v167
  %v169 = vpop.f32.mrf.mxu0
  %v170 = vadd.f32 %v37, %v169
  %v171 = vpop.f32.mrf.mxu0
  %v172 = vadd.f32 %v41, %v171
  %173 = vmatprep.mubr.bf16.mxu0 0
  %174 = vmatmul.mubr.bf16.gmra.mxu0 %v97
  %v175 = vpop.f32.mrf.mxu0
  %v176 = vadd.f32 %v37, %v175
  %v177 = vpop.f32.mrf.mxu0
  %v178 = vadd.f32 %v41, %v177
  %v179 = vpop.f32.mrf.mxu0
  %v180 = vadd.f32 %v37, %v179
  %v181 = vpop.f32.mrf.mxu0
  %v182 = vadd.f32 %v41, %v181
  %183 = vmatprep.mubr.bf16.mxu0 0
  %184 = vmatmul.mubr.bf16.gmra.mxu0 %v100
  %v185 = vpop.f32.mrf.mxu0
  %v186 = vadd.f32 %v37, %v185
  %v187 = vpop.f32.mrf.mxu0
  %v188 = vadd.f32 %v41, %v187
  %v189 = vpop.f32.mrf.mxu0
  %v190 = vadd.f32 %v37, %v189
  %v191 = vpop.f32.mrf.mxu0
  %v192 = vadd.f32 %v41, %v191
  %193 = vmatprep.mubr.bf16.mxu0 0
  %194 = vmatmul.mubr.bf16.gmra.mxu0 %v103
  %v195 = vpop.f32.mrf.mxu0
  %v196 = vadd.f32 %v37, %v195
  %v197 = vpop.f32.mrf.mxu0
  %v198 = vadd.f32 %v41, %v197
  %v199 = vpop.f32.mrf.mxu0
  %v200 = vadd.f32 %v37, %v199
  %v201 = vpop.f32.mrf.mxu0
  %v202 = vadd.f32 %v41, %v201
  %203 = vmatprep.mubr.bf16.mxu0 0
  %204 = vmatmul.mubr.bf16.gmra.mxu0 %v106
  %v205 = vpop.f32.mrf.mxu0
  %v206 = vadd.f32 %v37, %v205
  %v207 = vpop.f32.mrf.mxu0
  %v208 = vadd.f32 %v41, %v207
  %v209 = vpop.f32.mrf.mxu0
  %v210 = vadd.f32 %v37, %v209
  %v211 = vpop.f32.mrf.mxu0
  %v212 = vadd.f32 %v41, %v211
  %213 = vmatprep.mubr.bf16.mxu0 0
  %214 = vmatmul.mubr.bf16.gmra.mxu0 %v109
  %v215 = vpop.f32.mrf.mxu0
  %v216 = vadd.f32 %v37, %v215
  %v217 = vpop.f32.mrf.mxu0
  %v218 = vadd.f32 %v41, %v217
  %v219 = vpop.f32.mrf.mxu0
  %v220 = vadd.f32 %v37, %v219
  %v221 = vpop.f32.mrf.mxu0
  %v222 = vadd.f32 %v41, %v221
  %223 = vmatprep.mubr.bf16.mxu0 0
  %224 = vmatmul.mubr.bf16.gmra.mxu0 %v112
  %v225 = vpop.f32.mrf.mxu0
  %v226 = vadd.f32 %v37, %v225
  %v227 = vpop.f32.mrf.mxu0
  %v228 = vadd.f32 %v41, %v227
  %v229 = vpop.f32.mrf.mxu0
  %v230 = vadd.f32 %v37, %v229
  %v231 = vpop.f32.mrf.mxu0
  %v232 = vadd.f32 %v41, %v231
  %233 = vdwg.mxu0
  %v234 = vpack.c.bf16 %v160, %v156
  %v235 = vpack.c.bf16 %v162, %v158
  %v236 = vpack.c.bf16 %v170, %v166
  %v237 = vpack.c.bf16 %v172, %v168
  %v238 = vpack.c.bf16 %v180, %v176
  %v239 = vpack.c.bf16 %v182, %v178
  %v240 = vpack.c.bf16 %v190, %v186
  %v241 = vpack.c.bf16 %v192, %v188
  %v242 = vpack.c.bf16 %v200, %v196
  %v243 = vpack.c.bf16 %v202, %v198
  %v244 = vpack.c.bf16 %v210, %v206
  %v245 = vpack.c.bf16 %v212, %v208
  %v246 = vpack.c.bf16 %v220, %v216
  %v247 = vpack.c.bf16 %v222, %v218
  %v248 = vpack.c.bf16 %v230, %v226
  %v249 = vpack.c.bf16 %v232, %v228
  %v266 = vunpack.c.l.b16 %v234
  %v267 = vunpack.c.l.b16 %v235
  %v268 = vunpack.c.h.b16 %v234
  %v269 = vunpack.c.h.b16 %v235
  %v270 = vunpack.c.l.b16 %v236
  %v271 = vunpack.c.l.b16 %v237
  %v272 = vunpack.c.h.b16 %v236
  %v273 = vunpack.c.h.b16 %v237
  %v274 = vunpack.c.l.b16 %v238
  %v275 = vunpack.c.l.b16 %v239
  %v276 = vunpack.c.h.b16 %v238
  %v277 = vunpack.c.h.b16 %v239
  %v278 = vunpack.c.l.b16 %v240
  %v279 = vunpack.c.l.b16 %v241
  %v280 = vunpack.c.h.b16 %v240
  %v281 = vunpack.c.h.b16 %v241
  %v282 = vunpack.c.l.b16 %v242
  %v283 = vunpack.c.l.b16 %v243
  %v284 = vunpack.c.h.b16 %v242
  %v285 = vunpack.c.h.b16 %v243
  %v286 = vunpack.c.l.b16 %v244
  %v287 = vunpack.c.l.b16 %v245
  %v288 = vunpack.c.h.b16 %v244
  %v289 = vunpack.c.h.b16 %v245
  %v290 = vunpack.c.l.b16 %v246
  %v291 = vunpack.c.l.b16 %v247
  %v292 = vunpack.c.h.b16 %v246
  %v293 = vunpack.c.h.b16 %v247
  %v294 = vunpack.c.l.b16 %v248
  %v295 = vunpack.c.l.b16 %v249
  %v296 = vunpack.c.h.b16 %v248
  %v297 = vunpack.c.h.b16 %v249
  %v298 = vpack.c.b16 %v267, %v266
  %v299 = vpack.c.b16 %v269, %v268
  %v300 = vpack.c.b16 %v271, %v270
  %v301 = vpack.c.b16 %v273, %v272
  %v302 = vpack.c.b16 %v275, %v274
  %v303 = vpack.c.b16 %v277, %v276
  %v304 = vpack.c.b16 %v279, %v278
  %v305 = vpack.c.b16 %v281, %v280
  %v306 = vpack.c.b16 %v283, %v282
  %v307 = vpack.c.b16 %v285, %v284
  %v308 = vpack.c.b16 %v287, %v286
  %v309 = vpack.c.b16 %v289, %v288
  %v310 = vpack.c.b16 %v291, %v290
  %v311 = vpack.c.b16 %v293, %v292
  %v312 = vpack.c.b16 %v295, %v294
  %v313 = vpack.c.b16 %v297, %v296
  %330 = vst [vmem:[%s3] sm:$0xff] %v298
  %331 = vst [vmem:[%s3 + $0x8] sm:$0xff] %v299
  %332 = vst [vmem:[%s3 + $0x10] sm:$0xff] %v300
  %333 = vst [vmem:[%s3 + $0x18] sm:$0xff] %v301
  %334 = vst [vmem:[%s3 + $0x20] sm:$0xff] %v302
  %335 = vst [vmem:[%s3 + $0x28] sm:$0xff] %v303
  %336 = vst [vmem:[%s3 + $0x30] sm:$0xff] %v304
  %337 = vst [vmem:[%s3 + $0x38] sm:$0xff] %v305
  %338 = vst [vmem:[%s3 + $0x40] sm:$0xff] %v306
  %339 = vst [vmem:[%s3 + $0x48] sm:$0xff] %v307
  %340 = vst [vmem:[%s3 + $0x50] sm:$0xff] %v308
  %341 = vst [vmem:[%s3 + $0x58] sm:$0xff] %v309
  %342 = vst [vmem:[%s3 + $0x60] sm:$0xff] %v310
  %343 = vst [vmem:[%s3 + $0x68] sm:$0xff] %v311
  %344 = vst [vmem:[%s3 + $0x70] sm:$0xff] %v312
  %345 = vst [vmem:[%s3 + $0x78] sm:$0xff] %v313
  // Predicated region
  $region14: #{forward.8} parent=0 // pred_check
    _
  $region15: #{forward.8} parent=0 // pred_check_branch
    %347 = sbr.rel (0) target = $region17
  $region16: #{forward.8} parent=0 // pred_region
    _
  $region17: #{forward.8} parent=0 // pred_fallthru
    _
  // Predicated region
  $region18: #{forward.8} parent=0 // pred_check
    _
  $region19: #{forward.8} parent=0 // pred_check_branch
    %349 = sbr.rel (0) target = $region21
  $region20: #{forward.8} parent=0 // pred_region
    _
  $region21: #{forward.8} parent=0 // pred_fallthru
    _

// kernel: forward.15
$region0: #{forward.15}
  #allocation0 [shape = 'u32[]', space=smem, size = 0x4, offset = 0x4, fixed_abs, tag = 'smem constant byte address 0x4 - core index']
  #allocation1 [shape = 'u32[144,128]{1,0:T(1,128)}', space=vmem, size = 0x12000, scoped, tag = 'internal scratch']
  %s0 = inlined_call_operand.vmem [shape: bf16[128,256], index: 0, kind: input, shape index: {}]
  %s1 = inlined_call_operand.vmem [shape: bf16[128,128], index: 1, kind: input, shape index: {}]
  %s2 = inlined_call_operand.vmem [shape: bf16[256,128], index: 2, kind: input, shape index: {}]
  %s3 = inlined_call_operand.vmem [shape: f32[1,128], index: 3, kind: input, shape index: {}]
  %s4 = inlined_call_operand.vmem [shape: bf16[128,128], index: 4, kind: input, shape index: {}]
  %s5 = inlined_call_operand.vmem [shape: bf16[128,128], index: 5, kind: input, shape index: {}]
  %s6 = inlined_call_operand.vmem [shape: f32[1,128], index: 6, kind: input, shape index: {}]
  %s7 = inlined_call_operand.vmem [shape: bf16[128,18], index: 7, kind: input, shape index: {}]
  %s8 = inlined_call_operand.vmem [shape: f32[1,18], index: 8, kind: input, shape index: {}]
  %s9 = inlined_call_operand.vmem [shape: f32[128,2], index: 9, kind: input, shape index: {}]
  %s10 = inlined_call_operand.vmem [shape: f32[1,18], index: 10, kind: input, shape index: {}]
  %s11 = inlined_call_operand.hbm [shape: bf16[128,128], index: 11, kind: output, shape index: {0}]
  %s12 = inlined_call_operand.vmem [shape: f32[128,18], index: 12, kind: output, shape index: {1}]
  %13 = xla_tuple %s11, %s12
  %s14 = sld [smem:[#allocation0]]
  $region62: #{forward.15} parent=0
    _
  %s16 = ssub.s32 1, %s14
  %s17 = scalar_select 0, %s16, %s14
  $region1: #{forward.15} parent=0
    #allocation2 [shape = 'u8[32768]{0}', space=vmem, size = 0x8000, scoped, tag = 'output window, operand 0, single buffered']
    #allocation3 [shape = 's32[1]{0}', space=sflag, size = 0x4, scoped, tag = 'scoped memory for forward.15']
    %18 = vsyncpa [#allocation3], 0
    // Predicated region
    $region2: #{forward.15} parent=1 // pred_check
      _
    $region3: #{forward.15} parent=1 // pred_check_branch
      %20 = sbr.rel (0) target = $region5
    $region4: #{forward.15} parent=1 // pred_region
      _
    $region5: #{forward.15} parent=1 // pred_fallthru
      _
    // Predicated region
    $region6: #{forward.15} parent=1 // pred_check
      _
    $region7: #{forward.15} parent=1 // pred_check_branch
      %22 = sbr.rel (0) target = $region9
    $region8: #{forward.15} parent=1 // pred_region
      _
    $region9: #{forward.15} parent=1 // pred_fallthru
      _
    // Predicated region
    $region10: #{forward.15} parent=1 // pred_check
      _
    $region11: #{forward.15} parent=1 // pred_check_branch
      %24 = sbr.rel (0) target = $region13
    $region12: #{forward.15} parent=1 // pred_region
      _
    $region13: #{forward.15} parent=1 // pred_fallthru
      _
    // Predicated region
    $region14: #{forward.15} parent=1 // pred_check
      _
    $region15: #{forward.15} parent=1 // pred_check_branch
      %26 = sbr.rel (0) target = $region17
    $region16: #{forward.15} parent=1 // pred_region
      _
    $region17: #{forward.15} parent=1 // pred_fallthru
      _
    // Predicated region
    $region18: #{forward.15} parent=1 // pred_check
      _
    $region19: #{forward.15} parent=1 // pred_check_branch
      %28 = sbr.rel (0) target = $region21
    $region20: #{forward.15} parent=1 // pred_region
      _
    $region21: #{forward.15} parent=1 // pred_fallthru
      _
    // Predicated region
    $region22: #{forward.15} parent=1 // pred_check
      _
    $region23: #{forward.15} parent=1 // pred_check_branch
      %30 = sbr.rel (0) target = $region25
    $region24: #{forward.15} parent=1 // pred_region
      _
    $region25: #{forward.15} parent=1 // pred_fallthru
      _
    // Predicated region
    $region26: #{forward.15} parent=1 // pred_check
      _
    $region27: #{forward.15} parent=1 // pred_check_branch
      %32 = sbr.rel (0) target = $region29
    $region28: #{forward.15} parent=1 // pred_region
      _
    $region29: #{forward.15} parent=1 // pred_fallthru
      _
    // Predicated region
    $region30: #{forward.15} parent=1 // pred_check
      _
    $region31: #{forward.15} parent=1 // pred_check_branch
      %34 = sbr.rel (0) target = $region33
    $region32: #{forward.15} parent=1 // pred_region
      _
    $region33: #{forward.15} parent=1 // pred_fallthru
      _
    // Predicated region
    $region34: #{forward.15} parent=1 // pred_check
      _
    $region35: #{forward.15} parent=1 // pred_check_branch
      %36 = sbr.rel (0) target = $region37
    $region36: #{forward.15} parent=1 // pred_region
      _
    $region37: #{forward.15} parent=1 // pred_fallthru
      _
    // Predicated region
    $region38: #{forward.15} parent=1 // pred_check
      _
    $region39: #{forward.15} parent=1 // pred_check_branch
      %38 = sbr.rel (0) target = $region41
    $region40: #{forward.15} parent=1 // pred_region
      _
    $region41: #{forward.15} parent=1 // pred_fallthru
      _
    // Predicated region
    $region42: #{forward.15} parent=1 // pred_check
      _
    $region43: #{forward.15} parent=1 // pred_check_branch
      %40 = sbr.rel (0) target = $region45
    $region44: #{forward.15} parent=1 // pred_region
      _
    $region45: #{forward.15} parent=1 // pred_fallthru
      _
    %v42 = vld [vmem:[%s0] sm:$0xff]
    %v43 = vld [vmem:[%s0 + $0x8] sm:$0xff]
    %v44 = vld [vmem:[%s0 + $0x10] sm:$0xff]
    %v45 = vld [vmem:[%s0 + $0x18] sm:$0xff]
    %v46 = vld [vmem:[%s0 + $0x20] sm:$0xff]
    %v47 = vld [vmem:[%s0 + $0x28] sm:$0xff]
    %v48 = vld [vmem:[%s0 + $0x30] sm:$0xff]
    %v49 = vld [vmem:[%s0 + $0x38] sm:$0xff]
    %v50 = vld [vmem:[%s0 + $0x40] sm:$0xff]
    %v51 = vld [vmem:[%s0 + $0x48] sm:$0xff]
    %v52 = vld [vmem:[%s0 + $0x50] sm:$0xff]
    %v53 = vld [vmem:[%s0 + $0x58] sm:$0xff]
    %v54 = vld [vmem:[%s0 + $0x60] sm:$0xff]
    %v55 = vld [vmem:[%s0 + $0x68] sm:$0xff]
    %v56 = vld [vmem:[%s0 + $0x70] sm:$0xff]
    %v57 = vld [vmem:[%s0 + $0x78] sm:$0xff]
    %v58 = vld [vmem:[%s2] sm:$0xf]
    %v59 = vld [vmem:[%s2 + $0x4] sm:$0xf]
    %v60 = vld [vmem:[%s2 + $0x8] sm:$0xf]
    %v61 = vld [vmem:[%s2 + $0xc] sm:$0xf]
    %v62 = vld [vmem:[%s2 + $0x10] sm:$0xf]
    %v63 = vld [vmem:[%s2 + $0x14] sm:$0xf]
    %v64 = vld [vmem:[%s2 + $0x18] sm:$0xf]
    %v65 = vld [vmem:[%s2 + $0x1c] sm:$0xf]
    %v66 = vld [vmem:[%s2 + $0x20] sm:$0xf]
    %v67 = vld [vmem:[%s2 + $0x24] sm:$0xf]
    %v68 = vld [vmem:[%s2 + $0x28] sm:$0xf]
    %v69 = vld [vmem:[%s2 + $0x2c] sm:$0xf]
    %v70 = vld [vmem:[%s2 + $0x30] sm:$0xf]
    %v71 = vld [vmem:[%s2 + $0x34] sm:$0xf]
    %v72 = vld [vmem:[%s2 + $0x38] sm:$0xf]
    %v73 = vld [vmem:[%s2 + $0x3c] sm:$0xf]
    %v74 = vld [vmem:[%s2 + $0x40] sm:$0xf]
    %v75 = vld [vmem:[%s2 + $0x44] sm:$0xf]
    %v76 = vld [vmem:[%s2 + $0x48] sm:$0xf]
    %v77 = vld [vmem:[%s2 + $0x4c] sm:$0xf]
    %v78 = vld [vmem:[%s2 + $0x50] sm:$0xf]
    %v79 = vld [vmem:[%s2 + $0x54] sm:$0xf]
    %v80 = vld [vmem:[%s2 + $0x58] sm:$0xf]
    %v81 = vld [vmem:[%s2 + $0x5c] sm:$0xf]
    %v82 = vld [vmem:[%s2 + $0x60] sm:$0xf]
    %v83 = vld [vmem:[%s2 + $0x64] sm:$0xf]
    %v84 = vld [vmem:[%s2 + $0x68] sm:$0xf]
    %v85 = vld [vmem:[%s2 + $0x6c] sm:$0xf]
    %v86 = vld [vmem:[%s2 + $0x70] sm:$0xf]
    %v87 = vld [vmem:[%s2 + $0x74] sm:$0xf]
    %v88 = vld [vmem:[%s2 + $0x78] sm:$0xf]
    %v89 = vld [vmem:[%s2 + $0x7c] sm:$0xf]
    %v90 = vld [vmem:[%s3] sm:$0x1]
    %v92 = vlaneseq
    %v93 = vshrl.u32 %v92, 7
    %v94 = vsub.s32 0, %v93
    %v95 = vrot.slane %v90, %v94
    %v113 = vunpack.c.l.b16 %v42
    %v114 = vunpack.c.h.b16 %v42
    %v115 = vunpack.c.l.b16 %v43
    %v116 = vunpack.c.h.b16 %v43
    %v117 = vunpack.c.l.b16 %v44
    %v118 = vunpack.c.h.b16 %v44
    %v119 = vunpack.c.l.b16 %v45
    %v120 = vunpack.c.h.b16 %v45
    %v121 = vunpack.c.l.b16 %v46
    %v122 = vunpack.c.h.b16 %v46
    %v123 = vunpack.c.l.b16 %v47
    %v124 = vunpack.c.h.b16 %v47
    %v125 = vunpack.c.l.b16 %v48
    %v126 = vunpack.c.h.b16 %v48
    %v127 = vunpack.c.l.b16 %v49
    %v128 = vunpack.c.h.b16 %v49
    %v129 = vunpack.c.l.b16 %v50
    %v130 = vunpack.c.h.b16 %v50
    %v131 = vunpack.c.l.b16 %v51
    %v132 = vunpack.c.h.b16 %v51
    %v133 = vunpack.c.l.b16 %v52
    %v134 = vunpack.c.h.b16 %v52
    %v135 = vunpack.c.l.b16 %v53
    %v136 = vunpack.c.h.b16 %v53
    %v137 = vunpack.c.l.b16 %v54
    %v138 = vunpack.c.h.b16 %v54
    %v139 = vunpack.c.l.b16 %v55
    %v140 = vunpack.c.h.b16 %v55
    %v141 = vunpack.c.l.b16 %v56
    %v142 = vunpack.c.h.b16 %v56
    %v143 = vunpack.c.l.b16 %v57
    %v144 = vunpack.c.h.b16 %v57
    %v145 = vpack.c.b16 %v115, %v113
    %v146 = vpack.c.b16 %v116, %v114
    %v147 = vpack.c.b16 %v119, %v117
    %v148 = vpack.c.b16 %v120, %v118
    %v149 = vpack.c.b16 %v123, %v121
    %v150 = vpack.c.b16 %v124, %v122
    %v151 = vpack.c.b16 %v127, %v125
    %v152 = vpack.c.b16 %v128, %v126
    %v153 = vpack.c.b16 %v131, %v129
    %v154 = vpack.c.b16 %v132, %v130
    %v155 = vpack.c.b16 %v135, %v133
    %v156 = vpack.c.b16 %v136, %v134
    %v157 = vpack.c.b16 %v139, %v137
    %v158 = vpack.c.b16 %v140, %v138
    %v159 = vpack.c.b16 %v143, %v141
    %v160 = vpack.c.b16 %v144, %v142
    %v209 = vunpack.c.l.b16 %v58
    %v210 = vunpack.c.l.b16 %v59
    %v211 = vunpack.c.l.b16 %v60
    %v212 = vunpack.c.l.b16 %v61
    %v213 = vunpack.c.l.b16 %v62
    %v214 = vunpack.c.l.b16 %v63
    %v215 = vunpack.c.l.b16 %v64
    %v216 = vunpack.c.l.b16 %v65
    %v217 = vunpack.c.l.b16 %v66
    %v218 = vunpack.c.l.b16 %v67
    %v219 = vunpack.c.l.b16 %v68
    %v220 = vunpack.c.l.b16 %v69
    %v221 = vunpack.c.l.b16 %v70
    %v222 = vunpack.c.l.b16 %v71
    %v223 = vunpack.c.l.b16 %v72
    %v224 = vunpack.c.l.b16 %v73
    %v225 = vunpack.c.l.b16 %v74
    %v226 = vunpack.c.l.b16 %v75
    %v227 = vunpack.c.l.b16 %v76
    %v228 = vunpack.c.l.b16 %v77
    %v229 = vunpack.c.l.b16 %v78
    %v230 = vunpack.c.l.b16 %v79
    %v231 = vunpack.c.l.b16 %v80
    %v232 = vunpack.c.l.b16 %v81
    %v233 = vunpack.c.l.b16 %v82
    %v234 = vunpack.c.l.b16 %v83
    %v235 = vunpack.c.l.b16 %v84
    %v236 = vunpack.c.l.b16 %v85
    %v237 = vunpack.c.l.b16 %v86
    %v238 = vunpack.c.l.b16 %v87
    %v239 = vunpack.c.l.b16 %v88
    %v240 = vunpack.c.l.b16 %v89
    %v241 = vpack.c.b16 %v210, %v209
    %v242 = vpack.c.b16 %v212, %v211
    %v243 = vpack.c.b16 %v214, %v213
    %v244 = vpack.c.b16 %v216, %v215
    %v245 = vpack.c.b16 %v218, %v217
    %v246 = vpack.c.b16 %v220, %v219
    %v247 = vpack.c.b16 %v222, %v221
    %v248 = vpack.c.b16 %v224, %v223
    %v249 = vpack.c.b16 %v226, %v225
    %v250 = vpack.c.b16 %v228, %v227
    %v251 = vpack.c.b16 %v230, %v229
    %v252 = vpack.c.b16 %v232, %v231
    %v253 = vpack.c.b16 %v234, %v233
    %v254 = vpack.c.b16 %v236, %v235
    %v255 = vpack.c.b16 %v238, %v237
    %v256 = vpack.c.b16 %v240, %v239
    %273 = vmatprep.subr.bf16.mxu0 0
    %274 = vmatpush1.bf16.msra.mxu0 %v248
    %275 = vmatprep.subr.bf16.mxu0 0
    %276 = vmatpush1.bf16.msra.mxu0 %v247
    %277 = vmatprep.subr.bf16.mxu0 0
    %278 = vmatpush1.bf16.msra.mxu0 %v246
    %279 = vmatprep.subr.bf16.mxu0 0
    %280 = vmatpush1.bf16.msra.mxu0 %v245
    %281 = vmatprep.subr.bf16.mxu0 0
    %282 = vmatpush1.bf16.msra.mxu0 %v244
    %283 = vmatprep.subr.bf16.mxu0 0
    %284 = vmatpush1.bf16.msra.mxu0 %v243
    %285 = vmatprep.subr.bf16.mxu0 0
    %286 = vmatpush1.bf16.msra.mxu0 %v242
    %287 = vmatprep.subr.bf16.mxu0 0
    %288 = vmatpush1.bf16.msra.mxu0 %v241
    %289 = vmatprep.subr.bf16.mxu0 0
    %290 = vmatpush2.bf16.msra.mxu0 %v256
    %291 = vmatprep.subr.bf16.mxu0 0
    %292 = vmatpush2.bf16.msra.mxu0 %v255
    %293 = vmatprep.subr.bf16.mxu0 0
    %294 = vmatpush2.bf16.msra.mxu0 %v254
    %295 = vmatprep.subr.bf16.mxu0 0
    %296 = vmatpush2.bf16.msra.mxu0 %v253
    %297 = vmatprep.subr.bf16.mxu0 0
    %298 = vmatpush2.bf16.msra.mxu0 %v252
    %299 = vmatprep.subr.bf16.mxu0 0
    %300 = vmatpush2.bf16.msra.mxu0 %v251
    %301 = vmatprep.subr.bf16.mxu0 0
    %302 = vmatpush2.bf16.msra.mxu0 %v250
    %303 = vmatprep.subr.bf16.mxu0 0
    %304 = vmatpush2.bf16.msra.mxu0 %v249
    %305 = vmatprep.mubr.bf16.mxu0 %v146
    %306 = vmatmul.mubr.bf16.gmra.mxu0 %v145
    %v307 = vpop.f32.mrf.mxu0
    %v308 = vadd.f32 %v95, %v307
    %v309 = vpop.f32.mrf.mxu0
    %v310 = vpop.f32.mrf.mxu0
    %v311 = vadd.f32 %v95, %v310
    %v312 = vpop.f32.mrf.mxu0
    %313 = vmatprep.mubr.bf16.mxu0 %v148
    %314 = vmatmul.mubr.bf16.gmra.mxu0 %v147
    %v315 = vpop.f32.mrf.mxu0
    %v316 = vadd.f32 %v95, %v315
    %v317 = vpop.f32.mrf.mxu0
    %v318 = vpop.f32.mrf.mxu0
    %v319 = vadd.f32 %v95, %v318
    %v320 = vpop.f32.mrf.mxu0
    %321 = vmatprep.mubr.bf16.mxu0 %v150
    %322 = vmatmul.mubr.bf16.gmra.mxu0 %v149
    %v323 = vpop.f32.mrf.mxu0
    %v324 = vadd.f32 %v95, %v323
    %v325 = vpop.f32.mrf.mxu0
    %v326 = vpop.f32.mrf.mxu0
    %v327 = vadd.f32 %v95, %v326
    %v328 = vpop.f32.mrf.mxu0
    %329 = vmatprep.mubr.bf16.mxu0 %v152
    %330 = vmatmul.mubr.bf16.gmra.mxu0 %v151
    %v331 = vpop.f32.mrf.mxu0
    %v332 = vadd.f32 %v95, %v331
    %v333 = vpop.f32.mrf.mxu0
    %v334 = vpop.f32.mrf.mxu0
    %v335 = vadd.f32 %v95, %v334
    %v336 = vpop.f32.mrf.mxu0
    %337 = vmatprep.mubr.bf16.mxu0 %v154
    %338 = vmatmul.mubr.bf16.gmra.mxu0 %v153
    %v339 = vpop.f32.mrf.mxu0
    %v340 = vadd.f32 %v95, %v339
    %v341 = vpop.f32.mrf.mxu0
    %v342 = vpop.f32.mrf.mxu0
    %v343 = vadd.f32 %v95, %v342
    %v344 = vpop.f32.mrf.mxu0
    %345 = vmatprep.mubr.bf16.mxu0 %v156
    %346 = vmatmul.mubr.bf16.gmra.mxu0 %v155
    %v347 = vpop.f32.mrf.mxu0
    %v348 = vadd.f32 %v95, %v347
    %v349 = vpop.f32.mrf.mxu0
    %v350 = vpop.f32.mrf.mxu0
    %v351 = vadd.f32 %v95, %v350
    %v352 = vpop.f32.mrf.mxu0
    %353 = vmatprep.mubr.bf16.mxu0 %v158
    %354 = vmatmul.mubr.bf16.gmra.mxu0 %v157
    %v355 = vpop.f32.mrf.mxu0
    %v356 = vadd.f32 %v95, %v355
    %v357 = vpop.f32.mrf.mxu0
    %v358 = vpop.f32.mrf.mxu0
    %v359 = vadd.f32 %v95, %v358
    %v360 = vpop.f32.mrf.mxu0
    %361 = vmatprep.mubr.bf16.mxu0 %v160
    %362 = vmatmul.mubr.bf16.gmra.mxu0 %v159
    %v363 = vpop.f32.mrf.mxu0
    %v364 = vadd.f32 %v95, %v363
    %v365 = vpop.f32.mrf.mxu0
    %v366 = vpop.f32.mrf.mxu0
    %v367 = vadd.f32 %v95, %v366
    %v368 = vpop.f32.mrf.mxu0
    %369 = vdwg.mxu0
    %vm370 = vcmp.ge.f32.partialorder %v308, 0.0
    %vm371 = vcmp.ge.f32.partialorder %v311, 0.0
    %vm372 = vcmp.ge.f32.partialorder %v316, 0.0
    %vm373 = vcmp.ge.f32.partialorder %v319, 0.0
    %vm374 = vcmp.ge.f32.partialorder %v324, 0.0
    %vm375 = vcmp.ge.f32.partialorder %v327, 0.0
    %vm376 = vcmp.ge.f32.partialorder %v332, 0.0
    %vm377 = vcmp.ge.f32.partialorder %v335, 0.0
    %vm378 = vcmp.ge.f32.partialorder %v340, 0.0
    %vm379 = vcmp.ge.f32.partialorder %v343, 0.0
    %vm380 = vcmp.ge.f32.partialorder %v348, 0.0
    %vm381 = vcmp.ge.f32.partialorder %v351, 0.0
    %vm382 = vcmp.ge.f32.partialorder %v356, 0.0
    %vm383 = vcmp.ge.f32.partialorder %v359, 0.0
    %vm384 = vcmp.ge.f32.partialorder %v364, 0.0
    %vm385 = vcmp.ge.f32.partialorder %v367, 0.0
    %v386 = vmul.f32 %v308, 0.1
    %v387 = vmul.f32 %v311, 0.1
    %v388 = vmul.f32 %v316, 0.1
    %v389 = vmul.f32 %v319, 0.1
    %v390 = vmul.f32 %v324, 0.1
    %v391 = vmul.f32 %v327, 0.1
    %v392 = vmul.f32 %v332, 0.1
    %v393 = vmul.f32 %v335, 0.1
    %v394 = vmul.f32 %v340, 0.1
    %v395 = vmul.f32 %v343, 0.1
    %v396 = vmul.f32 %v348, 0.1
    %v397 = vmul.f32 %v351, 0.1
    %v398 = vmul.f32 %v356, 0.1
    %v399 = vmul.f32 %v359, 0.1
    %v400 = vmul.f32 %v364, 0.1
    %v401 = vmul.f32 %v367, 0.1
    %v402 = vsel %vm370, %v308, %v386
    %v403 = vsel %vm371, %v311, %v387
    %v404 = vsel %vm372, %v316, %v388
    %v405 = vsel %vm373, %v319, %v389
    %v406 = vsel %vm374, %v324, %v390
    %v407 = vsel %vm375, %v327, %v391
    %v408 = vsel %vm376, %v332, %v392
    %v409 = vsel %vm377, %v335, %v393
    %v410 = vsel %vm378, %v340, %v394
    %v411 = vsel %vm379, %v343, %v395
    %v412 = vsel %vm380, %v348, %v396
    %v413 = vsel %vm381, %v351, %v397
    %v414 = vsel %vm382, %v356, %v398
    %v415 = vsel %vm383, %v359, %v399
    %v416 = vsel %vm384, %v364, %v400
    %v417 = vsel %vm385, %v367, %v401
    %v418 = vpack.c.bf16 %v403, %v402
    %v419 = vpack.c.bf16 %v405, %v404
    %v420 = vpack.c.bf16 %v407, %v406
    %v421 = vpack.c.bf16 %v409, %v408
    %v422 = vpack.c.bf16 %v411, %v410
    %v423 = vpack.c.bf16 %v413, %v412
    %v424 = vpack.c.bf16 %v415, %v414
    %v425 = vpack.c.bf16 %v417, %v416
    %v426 = vld [vmem:[%s4] sm:$0xf]
    %v427 = vld [vmem:[%s4 + $0x4] sm:$0xf]
    %v428 = vld [vmem:[%s4 + $0x8] sm:$0xf]
    %v429 = vld [vmem:[%s4 + $0xc] sm:$0xf]
    %v430 = vld [vmem:[%s4 + $0x10] sm:$0xf]
    %v431 = vld [vmem:[%s4 + $0x14] sm:$0xf]
    %v432 = vld [vmem:[%s4 + $0x18] sm:$0xf]
    %v433 = vld [vmem:[%s4 + $0x1c] sm:$0xf]
    %v434 = vld [vmem:[%s4 + $0x20] sm:$0xf]
    %v435 = vld [vmem:[%s4 + $0x24] sm:$0xf]
    %v436 = vld [vmem:[%s4 + $0x28] sm:$0xf]
    %v437 = vld [vmem:[%s4 + $0x2c] sm:$0xf]
    %v438 = vld [vmem:[%s4 + $0x30] sm:$0xf]
    %v439 = vld [vmem:[%s4 + $0x34] sm:$0xf]
    %v440 = vld [vmem:[%s4 + $0x38] sm:$0xf]
    %v441 = vld [vmem:[%s4 + $0x3c] sm:$0xf]
    %v442 = vld [vmem:[%s1] sm:$0xf]
    %v443 = vld [vmem:[%s1 + $0x4] sm:$0xf]
    %v444 = vld [vmem:[%s1 + $0x8] sm:$0xf]
    %v445 = vld [vmem:[%s1 + $0xc] sm:$0xf]
    %v446 = vld [vmem:[%s1 + $0x10] sm:$0xf]
    %v447 = vld [vmem:[%s1 + $0x14] sm:$0xf]
    %v448 = vld [vmem:[%s1 + $0x18] sm:$0xf]
    %v449 = vld [vmem:[%s1 + $0x1c] sm:$0xf]
    %v450 = vld [vmem:[%s1 + $0x20] sm:$0xf]
    %v451 = vld [vmem:[%s1 + $0x24] sm:$0xf]
    %v452 = vld [vmem:[%s1 + $0x28] sm:$0xf]
    %v453 = vld [vmem:[%s1 + $0x2c] sm:$0xf]
    %v454 = vld [vmem:[%s1 + $0x30] sm:$0xf]
    %v455 = vld [vmem:[%s1 + $0x34] sm:$0xf]
    %v456 = vld [vmem:[%s1 + $0x38] sm:$0xf]
    %v457 = vld [vmem:[%s1 + $0x3c] sm:$0xf]
    %v458 = vld [vmem:[%s5] sm:$0xf]
    %v459 = vld [vmem:[%s5 + $0x4] sm:$0xf]
    %v460 = vld [vmem:[%s5 + $0x8] sm:$0xf]
    %v461 = vld [vmem:[%s5 + $0xc] sm:$0xf]
    %v462 = vld [vmem:[%s5 + $0x10] sm:$0xf]
    %v463 = vld [vmem:[%s5 + $0x14] sm:$0xf]
    %v464 = vld [vmem:[%s5 + $0x18] sm:$0xf]
    %v465 = vld [vmem:[%s5 + $0x1c] sm:$0xf]
    %v466 = vld [vmem:[%s5 + $0x20] sm:$0xf]
    %v467 = vld [vmem:[%s5 + $0x24] sm:$0xf]
    %v468 = vld [vmem:[%s5 + $0x28] sm:$0xf]
    %v469 = vld [vmem:[%s5 + $0x2c] sm:$0xf]
    %v470 = vld [vmem:[%s5 + $0x30] sm:$0xf]
    %v471 = vld [vmem:[%s5 + $0x34] sm:$0xf]
    %v472 = vld [vmem:[%s5 + $0x38] sm:$0xf]
    %v473 = vld [vmem:[%s5 + $0x3c] sm:$0xf]
    %v490 = vunpack.c.l.b16 %v442
    %v491 = vunpack.c.l.b16 %v443
    %v492 = vunpack.c.l.b16 %v444
    %v493 = vunpack.c.l.b16 %v445
    %v494 = vunpack.c.l.b16 %v446
    %v495 = vunpack.c.l.b16 %v447
    %v496 = vunpack.c.l.b16 %v448
    %v497 = vunpack.c.l.b16 %v449
    %v498 = vunpack.c.l.b16 %v450
    %v499 = vunpack.c.l.b16 %v451
    %v500 = vunpack.c.l.b16 %v452
    %v501 = vunpack.c.l.b16 %v453
    %v502 = vunpack.c.l.b16 %v454
    %v503 = vunpack.c.l.b16 %v455
    %v504 = vunpack.c.l.b16 %v456
    %v505 = vunpack.c.l.b16 %v457
    %v506 = vpack.c.b16 %v491, %v490
    %v507 = vpack.c.b16 %v493, %v492
    %v508 = vpack.c.b16 %v495, %v494
    %v509 = vpack.c.b16 %v497, %v496
    %v510 = vpack.c.b16 %v499, %v498
    %v511 = vpack.c.b16 %v501, %v500
    %v512 = vpack.c.b16 %v503, %v502
    %v513 = vpack.c.b16 %v505, %v504
    %v538 = vunpack.c.l.b16 %v458
    %v539 = vunpack.c.l.b16 %v459
    %v540 = vunpack.c.l.b16 %v460
    %v541 = vunpack.c.l.b16 %v461
    %v542 = vunpack.c.l.b16 %v462
    %v543 = vunpack.c.l.b16 %v463
    %v544 = vunpack.c.l.b16 %v464
    %v545 = vunpack.c.l.b16 %v465
    %v546 = vunpack.c.l.b16 %v466
    %v547 = vunpack.c.l.b16 %v467
    %v548 = vunpack.c.l.b16 %v468
    %v549 = vunpack.c.l.b16 %v469
    %v550 = vunpack.c.l.b16 %v470
    %v551 = vunpack.c.l.b16 %v471
    %v552 = vunpack.c.l.b16 %v472
    %v553 = vunpack.c.l.b16 %v473
    %v554 = vpack.c.b16 %v539, %v538
    %v555 = vpack.c.b16 %v541, %v540
    %v556 = vpack.c.b16 %v543, %v542
    %v557 = vpack.c.b16 %v545, %v544
    %v558 = vpack.c.b16 %v547, %v546
    %v559 = vpack.c.b16 %v549, %v548
    %v560 = vpack.c.b16 %v551, %v550
    %v561 = vpack.c.b16 %v553, %v552
    %570 = vmatprep.subr.bf16.mxu0 0
    %571 = vmatpush1.bf16.msra.mxu0 %v561
    %572 = vmatprep.subr.bf16.mxu0 0
    %573 = vmatpush1.bf16.msra.mxu0 %v560
    %574 = vmatprep.subr.bf16.mxu0 0
    %575 = vmatpush1.bf16.msra.mxu0 %v559
    %576 = vmatprep.subr.bf16.mxu0 0
    %577 = vmatpush1.bf16.msra.mxu0 %v558
    %578 = vmatprep.subr.bf16.mxu0 0
    %579 = vmatpush1.bf16.msra.mxu0 %v557
    %580 = vmatprep.subr.bf16.mxu0 0
    %581 = vmatpush1.bf16.msra.mxu0 %v556
    %582 = vmatprep.subr.bf16.mxu0 0
    %583 = vmatpush1.bf16.msra.mxu0 %v555
    %584 = vmatprep.subr.bf16.mxu0 0
    %585 = vmatpush1.bf16.msra.mxu0 %v554
    %586 = vmatprep.subr.bf16.mxu0 0
    %587 = vmatpush2.bf16.msra.mxu0 0
    %588 = vmatprep.subr.bf16.mxu0 0
    %589 = vmatpush2.bf16.msra.mxu0 0
    %590 = vmatprep.subr.bf16.mxu0 0
    %591 = vmatpush2.bf16.msra.mxu0 0
    %592 = vmatprep.subr.bf16.mxu0 0
    %593 = vmatpush2.bf16.msra.mxu0 0
    %594 = vmatprep.subr.bf16.mxu0 0
    %595 = vmatpush2.bf16.msra.mxu0 0
    %596 = vmatprep.subr.bf16.mxu0 0
    %597 = vmatpush2.bf16.msra.mxu0 0
    %598 = vmatprep.subr.bf16.mxu0 0
    %599 = vmatpush2.bf16.msra.mxu0 0
    %600 = vmatprep.subr.bf16.mxu0 0
    %601 = vmatpush2.bf16.msra.mxu0 0
    %602 = vmatprep.mubr.bf16.mxu0 0
    %603 = vmatmul.mubr.bf16.gmra.mxu0 %v506
    %v604 = vpop.f32.mrf.mxu0
    %v605 = vadd.f32 0.0, %v604
    %v606 = vpop.f32.mrf.mxu0
    %v607 = vpop.f32.mrf.mxu0
    %v608 = vadd.f32 0.0, %v607
    %v609 = vpop.f32.mrf.mxu0
    %610 = vmatprep.mubr.bf16.mxu0 0
    %611 = vmatmul.mubr.bf16.gmra.mxu0 %v507
    %v612 = vpop.f32.mrf.mxu0
    %v613 = vadd.f32 0.0, %v612
    %v614 = vpop.f32.mrf.mxu0
    %v615 = vpop.f32.mrf.mxu0
    %v616 = vadd.f32 0.0, %v615
    %v617 = vpop.f32.mrf.mxu0
    %618 = vmatprep.mubr.bf16.mxu0 0
    %619 = vmatmul.mubr.bf16.gmra.mxu0 %v508
    %v620 = vpop.f32.mrf.mxu0
    %v621 = vadd.f32 0.0, %v620
    %v622 = vpop.f32.mrf.mxu0
    %v623 = vpop.f32.mrf.mxu0
    %v624 = vadd.f32 0.0, %v623
    %v625 = vpop.f32.mrf.mxu0
    %626 = vmatprep.mubr.bf16.mxu0 0
    %627 = vmatmul.mubr.bf16.gmra.mxu0 %v509
    %v628 = vpop.f32.mrf.mxu0
    %v629 = vadd.f32 0.0, %v628
    %v630 = vpop.f32.mrf.mxu0
    %v631 = vpop.f32.mrf.mxu0
    %v632 = vadd.f32 0.0, %v631
    %v633 = vpop.f32.mrf.mxu0
    %634 = vmatprep.mubr.bf16.mxu0 0
    %635 = vmatmul.mubr.bf16.gmra.mxu0 %v510
    %v636 = vpop.f32.mrf.mxu0
    %v637 = vadd.f32 0.0, %v636
    %v638 = vpop.f32.mrf.mxu0
    %v639 = vpop.f32.mrf.mxu0
    %v640 = vadd.f32 0.0, %v639
    %v641 = vpop.f32.mrf.mxu0
    %642 = vmatprep.mubr.bf16.mxu0 0
    %643 = vmatmul.mubr.bf16.gmra.mxu0 %v511
    %v644 = vpop.f32.mrf.mxu0
    %v645 = vadd.f32 0.0, %v644
    %v646 = vpop.f32.mrf.mxu0
    %v647 = vpop.f32.mrf.mxu0
    %v648 = vadd.f32 0.0, %v647
    %v649 = vpop.f32.mrf.mxu0
    %650 = vmatprep.mubr.bf16.mxu0 0
    %651 = vmatmul.mubr.bf16.gmra.mxu0 %v512
    %v652 = vpop.f32.mrf.mxu0
    %v653 = vadd.f32 0.0, %v652
    %v654 = vpop.f32.mrf.mxu0
    %v655 = vpop.f32.mrf.mxu0
    %v656 = vadd.f32 0.0, %v655
    %v657 = vpop.f32.mrf.mxu0
    %658 = vmatprep.mubr.bf16.mxu0 0
    %659 = vmatmul.mubr.bf16.gmra.mxu0 %v513
    %v660 = vpop.f32.mrf.mxu0
    %v661 = vadd.f32 0.0, %v660
    %v662 = vpop.f32.mrf.mxu0
    %v663 = vpop.f32.mrf.mxu0
    %v664 = vadd.f32 0.0, %v663
    %v665 = vpop.f32.mrf.mxu0
    %666 = vdwg.mxu0
    %v683 = vunpack.c.l.b16 %v426
    %v684 = vunpack.c.l.b16 %v427
    %v685 = vunpack.c.l.b16 %v428
    %v686 = vunpack.c.l.b16 %v429
    %v687 = vunpack.c.l.b16 %v430
    %v688 = vunpack.c.l.b16 %v431
    %v689 = vunpack.c.l.b16 %v432
    %v690 = vunpack.c.l.b16 %v433
    %v691 = vunpack.c.l.b16 %v434
    %v692 = vunpack.c.l.b16 %v435
    %v693 = vunpack.c.l.b16 %v436
    %v694 = vunpack.c.l.b16 %v437
    %v695 = vunpack.c.l.b16 %v438
    %v696 = vunpack.c.l.b16 %v439
    %v697 = vunpack.c.l.b16 %v440
    %v698 = vunpack.c.l.b16 %v441
    %v699 = vpack.c.b16 %v684, %v683
    %v700 = vpack.c.b16 %v686, %v685
    %v701 = vpack.c.b16 %v688, %v687
    %v702 = vpack.c.b16 %v690, %v689
    %v703 = vpack.c.b16 %v692, %v691
    %v704 = vpack.c.b16 %v694, %v693
    %v705 = vpack.c.b16 %v696, %v695
    %v706 = vpack.c.b16 %v698, %v697
    %715 = vmatprep.subr.bf16.mxu0 0
    %716 = vmatpush1.bf16.msra.mxu0 %v706
    %717 = vmatprep.subr.bf16.mxu0 0
    %718 = vmatpush1.bf16.msra.mxu0 %v705
    %719 = vmatprep.subr.bf16.mxu0 0
    %720 = vmatpush1.bf16.msra.mxu0 %v704
    %721 = vmatprep.subr.bf16.mxu0 0
    %722 = vmatpush1.bf16.msra.mxu0 %v703
    %723 = vmatprep.subr.bf16.mxu0 0
    %724 = vmatpush1.bf16.msra.mxu0 %v702
    %725 = vmatprep.subr.bf16.mxu0 0
    %726 = vmatpush1.bf16.msra.mxu0 %v701
    %727 = vmatprep.subr.bf16.mxu0 0
    %728 = vmatpush1.bf16.msra.mxu0 %v700
    %729 = vmatprep.subr.bf16.mxu0 0
    %730 = vmatpush1.bf16.msra.mxu0 %v699
    %731 = vmatprep.subr.bf16.mxu0 0
    %732 = vmatpush2.bf16.msra.mxu0 0
    %733 = vmatprep.subr.bf16.mxu0 0
    %734 = vmatpush2.bf16.msra.mxu0 0
    %735 = vmatprep.subr.bf16.mxu0 0
    %736 = vmatpush2.bf16.msra.mxu0 0
    %737 = vmatprep.subr.bf16.mxu0 0
    %738 = vmatpush2.bf16.msra.mxu0 0
    %739 = vmatprep.subr.bf16.mxu0 0
    %740 = vmatpush2.bf16.msra.mxu0 0
    %741 = vmatprep.subr.bf16.mxu0 0
    %742 = vmatpush2.bf16.msra.mxu0 0
    %743 = vmatprep.subr.bf16.mxu0 0
    %744 = vmatpush2.bf16.msra.mxu0 0
    %745 = vmatprep.subr.bf16.mxu0 0
    %746 = vmatpush2.bf16.msra.mxu0 0
    %747 = vmatprep.mubr.bf16.mxu0 0
    %748 = vmatmul.mubr.bf16.gmra.mxu0 %v418
    %v749 = vpop.f32.mrf.mxu0
    %v750 = vadd.f32 %v605, %v749
    %v751 = vpop.f32.mrf.mxu0
    %v752 = vpop.f32.mrf.mxu0
    %v753 = vadd.f32 %v608, %v752
    %v754 = vpop.f32.mrf.mxu0
    %755 = vmatprep.mubr.bf16.mxu0 0
    %756 = vmatmul.mubr.bf16.gmra.mxu0 %v419
    %v757 = vpop.f32.mrf.mxu0
    %v758 = vadd.f32 %v613, %v757
    %v759 = vpop.f32.mrf.mxu0
    %v760 = vpop.f32.mrf.mxu0
    %v761 = vadd.f32 %v616, %v760
    %v762 = vpop.f32.mrf.mxu0
    %763 = vmatprep.mubr.bf16.mxu0 0
    %764 = vmatmul.mubr.bf16.gmra.mxu0 %v420
    %v765 = vpop.f32.mrf.mxu0
    %v766 = vadd.f32 %v621, %v765
    %v767 = vpop.f32.mrf.mxu0
    %v768 = vpop.f32.mrf.mxu0
    %v769 = vadd.f32 %v624, %v768
    %v770 = vpop.f32.mrf.mxu0
    %771 = vmatprep.mubr.bf16.mxu0 0
    %772 = vmatmul.mubr.bf16.gmra.mxu0 %v421
    %v773 = vpop.f32.mrf.mxu0
    %v774 = vadd.f32 %v629, %v773
    %v775 = vpop.f32.mrf.mxu0
    %v776 = vpop.f32.mrf.mxu0
    %v777 = vadd.f32 %v632, %v776
    %v778 = vpop.f32.mrf.mxu0
    %779 = vmatprep.mubr.bf16.mxu0 0
    %780 = vmatmul.mubr.bf16.gmra.mxu0 %v422
    %v781 = vpop.f32.mrf.mxu0
    %v782 = vadd.f32 %v637, %v781
    %v783 = vpop.f32.mrf.mxu0
    %v784 = vpop.f32.mrf.mxu0
    %v785 = vadd.f32 %v640, %v784
    %v786 = vpop.f32.mrf.mxu0
    %787 = vmatprep.mubr.bf16.mxu0 0
    %788 = vmatmul.mubr.bf16.gmra.mxu0 %v423
    %v789 = vpop.f32.mrf.mxu0
    %v790 = vadd.f32 %v645, %v789
    %v791 = vpop.f32.mrf.mxu0
    %v792 = vpop.f32.mrf.mxu0
    %v793 = vadd.f32 %v648, %v792
    %v794 = vpop.f32.mrf.mxu0
    %795 = vmatprep.mubr.bf16.mxu0 0
    %796 = vmatmul.mubr.bf16.gmra.mxu0 %v424
    %v797 = vpop.f32.mrf.mxu0
    %v798 = vadd.f32 %v653, %v797
    %v799 = vpop.f32.mrf.mxu0
    %v800 = vpop.f32.mrf.mxu0
    %v801 = vadd.f32 %v656, %v800
    %v802 = vpop.f32.mrf.mxu0
    %803 = vmatprep.mubr.bf16.mxu0 0
    %804 = vmatmul.mubr.bf16.gmra.mxu0 %v425
    %v805 = vpop.f32.mrf.mxu0
    %v806 = vadd.f32 %v661, %v805
    %v807 = vpop.f32.mrf.mxu0
    %v808 = vpop.f32.mrf.mxu0
    %v809 = vadd.f32 %v664, %v808
    %v810 = vpop.f32.mrf.mxu0
    %811 = vdwg.mxu0
    %v812 = vld [vmem:[%s6] sm:$0x1]
    %v814 = vlaneseq
    %v815 = vshrl.u32 %v814, 7
    %v816 = vsub.s32 0, %v815
    %v817 = vrot.slane %v812, %v816
    %v819 = vadd.f32 %v750, %v817
    %v820 = vadd.f32 %v753, %v817
    %v821 = vadd.f32 %v758, %v817
    %v822 = vadd.f32 %v761, %v817
    %v823 = vadd.f32 %v766, %v817
    %v824 = vadd.f32 %v769, %v817
    %v825 = vadd.f32 %v774, %v817
    %v826 = vadd.f32 %v777, %v817
    %v827 = vadd.f32 %v782, %v817
    %v828 = vadd.f32 %v785, %v817
    %v829 = vadd.f32 %v790, %v817
    %v830 = vadd.f32 %v793, %v817
    %v831 = vadd.f32 %v798, %v817
    %v832 = vadd.f32 %v801, %v817
    %v833 = vadd.f32 %v806, %v817
    %v834 = vadd.f32 %v809, %v817
    %vm835 = vcmp.ge.f32.partialorder %v819, 0.0
    %vm836 = vcmp.ge.f32.partialorder %v820, 0.0
    %vm837 = vcmp.ge.f32.partialorder %v821, 0.0
    %vm838 = vcmp.ge.f32.partialorder %v822, 0.0
    %vm839 = vcmp.ge.f32.partialorder %v823, 0.0
    %vm840 = vcmp.ge.f32.partialorder %v824, 0.0
    %vm841 = vcmp.ge.f32.partialorder %v825, 0.0
    %vm842 = vcmp.ge.f32.partialorder %v826, 0.0
    %vm843 = vcmp.ge.f32.partialorder %v827, 0.0
    %vm844 = vcmp.ge.f32.partialorder %v828, 0.0
    %vm845 = vcmp.ge.f32.partialorder %v829, 0.0
    %vm846 = vcmp.ge.f32.partialorder %v830, 0.0
    %vm847 = vcmp.ge.f32.partialorder %v831, 0.0
    %vm848 = vcmp.ge.f32.partialorder %v832, 0.0
    %vm849 = vcmp.ge.f32.partialorder %v833, 0.0
    %vm850 = vcmp.ge.f32.partialorder %v834, 0.0
    %v851 = vmul.f32 %v819, 0.1
    %v852 = vmul.f32 %v820, 0.1
    %v853 = vmul.f32 %v821, 0.1
    %v854 = vmul.f32 %v822, 0.1
    %v855 = vmul.f32 %v823, 0.1
    %v856 = vmul.f32 %v824, 0.1
    %v857 = vmul.f32 %v825, 0.1
    %v858 = vmul.f32 %v826, 0.1
    %v859 = vmul.f32 %v827, 0.1
    %v860 = vmul.f32 %v828, 0.1
    %v861 = vmul.f32 %v829, 0.1
    %v862 = vmul.f32 %v830, 0.1
    %v863 = vmul.f32 %v831, 0.1
    %v864 = vmul.f32 %v832, 0.1
    %v865 = vmul.f32 %v833, 0.1
    %v866 = vmul.f32 %v834, 0.1
    %v867 = vsel %vm835, %v819, %v851
    %v868 = vsel %vm836, %v820, %v852
    %v869 = vsel %vm837, %v821, %v853
    %v870 = vsel %vm838, %v822, %v854
    %v871 = vsel %vm839, %v823, %v855
    %v872 = vsel %vm840, %v824, %v856
    %v873 = vsel %vm841, %v825, %v857
    %v874 = vsel %vm842, %v826, %v858
    %v875 = vsel %vm843, %v827, %v859
    %v876 = vsel %vm844, %v828, %v860
    %v877 = vsel %vm845, %v829, %v861
    %v878 = vsel %vm846, %v830, %v862
    %v879 = vsel %vm847, %v831, %v863
    %v880 = vsel %vm848, %v832, %v864
    %v881 = vsel %vm849, %v833, %v865
    %v882 = vsel %vm850, %v834, %v866
    %v883 = vpack.c.bf16 %v868, %v867
    %v884 = vpack.c.bf16 %v870, %v869
    %v885 = vpack.c.bf16 %v872, %v871
    %v886 = vpack.c.bf16 %v874, %v873
    %v887 = vpack.c.bf16 %v876, %v875
    %v888 = vpack.c.bf16 %v878, %v877
    %v889 = vpack.c.bf16 %v880, %v879
    %v890 = vpack.c.bf16 %v882, %v881
    %v899 = vunpack.c.l.b16 %v883
    %v900 = vunpack.c.h.b16 %v883
    %v901 = vunpack.c.l.b16 %v884
    %v902 = vunpack.c.h.b16 %v884
    %v903 = vunpack.c.l.b16 %v885
    %v904 = vunpack.c.h.b16 %v885
    %v905 = vunpack.c.l.b16 %v886
    %v906 = vunpack.c.h.b16 %v886
    %v907 = vunpack.c.l.b16 %v887
    %v908 = vunpack.c.h.b16 %v887
    %v909 = vunpack.c.l.b16 %v888
    %v910 = vunpack.c.h.b16 %v888
    %v911 = vunpack.c.l.b16 %v889
    %v912 = vunpack.c.h.b16 %v889
    %v913 = vunpack.c.l.b16 %v890
    %v914 = vunpack.c.h.b16 %v890
    %v915 = vpack.c.b16 %v899, %v899
    %v916 = vpack.c.b16 %v900, %v900
    %v917 = vpack.c.b16 %v901, %v901
    %v918 = vpack.c.b16 %v902, %v902
    %v919 = vpack.c.b16 %v903, %v903
    %v920 = vpack.c.b16 %v904, %v904
    %v921 = vpack.c.b16 %v905, %v905
    %v922 = vpack.c.b16 %v906, %v906
    %v923 = vpack.c.b16 %v907, %v907
    %v924 = vpack.c.b16 %v908, %v908
    %v925 = vpack.c.b16 %v909, %v909
    %v926 = vpack.c.b16 %v910, %v910
    %v927 = vpack.c.b16 %v911, %v911
    %v928 = vpack.c.b16 %v912, %v912
    %v929 = vpack.c.b16 %v913, %v913
    %v930 = vpack.c.b16 %v914, %v914
    %947 = vst [vmem:[#allocation2] sm:$0xf] %v915
    %948 = vst [vmem:[#allocation2 + $0x4] sm:$0xf] %v916
    %949 = vst [vmem:[#allocation2 + $0x8] sm:$0xf] %v917
    %950 = vst [vmem:[#allocation2 + $0xc] sm:$0xf] %v918
    %951 = vst [vmem:[#allocation2 + $0x10] sm:$0xf] %v919
    %952 = vst [vmem:[#allocation2 + $0x14] sm:$0xf] %v920
    %953 = vst [vmem:[#allocation2 + $0x18] sm:$0xf] %v921
    %954 = vst [vmem:[#allocation2 + $0x1c] sm:$0xf] %v922
    %955 = vst [vmem:[#allocation2 + $0x20] sm:$0xf] %v923
    %956 = vst [vmem:[#allocation2 + $0x24] sm:$0xf] %v924
    %957 = vst [vmem:[#allocation2 + $0x28] sm:$0xf] %v925
    %958 = vst [vmem:[#allocation2 + $0x2c] sm:$0xf] %v926
    %959 = vst [vmem:[#allocation2 + $0x30] sm:$0xf] %v927
    %960 = vst [vmem:[#allocation2 + $0x34] sm:$0xf] %v928
    %961 = vst [vmem:[#allocation2 + $0x38] sm:$0xf] %v929
    %962 = vst [vmem:[#allocation2 + $0x3c] sm:$0xf] %v930
    %v963 = vld [vmem:[%s7] sm:$0xf]
    %v964 = vld [vmem:[%s7 + $0x4] sm:$0xf]
    %v965 = vld [vmem:[%s7 + $0x8] sm:$0xf]
    %v966 = vld [vmem:[%s7 + $0xc] sm:$0xf]
    %v967 = vld [vmem:[%s7 + $0x10] sm:$0xf]
    %v968 = vld [vmem:[%s7 + $0x14] sm:$0xf]
    %v969 = vld [vmem:[%s7 + $0x18] sm:$0xf]
    %v970 = vld [vmem:[%s7 + $0x1c] sm:$0xf]
    %v971 = vld [vmem:[%s7 + $0x20] sm:$0xf]
    %v972 = vld [vmem:[%s7 + $0x24] sm:$0xf]
    %v973 = vld [vmem:[%s7 + $0x28] sm:$0xf]
    %v974 = vld [vmem:[%s7 + $0x2c] sm:$0xf]
    %v975 = vld [vmem:[%s7 + $0x30] sm:$0xf]
    %v976 = vld [vmem:[%s7 + $0x34] sm:$0xf]
    %v977 = vld [vmem:[%s7 + $0x38] sm:$0xf]
    %v978 = vld [vmem:[%s7 + $0x3c] sm:$0xf]
    %v979 = vld [vmem:[%s8] sm:$0x1]
    %v981 = vlaneseq
    %v982 = vshrl.u32 %v981, 7
    %v983 = vsub.s32 0, %v982
    %v984 = vrot.slane %v979, %v983
    %v1002 = vunpack.c.l.b16 %v963
    %v1003 = vunpack.c.l.b16 %v964
    %v1004 = vunpack.c.l.b16 %v965
    %v1005 = vunpack.c.l.b16 %v966
    %v1006 = vunpack.c.l.b16 %v967
    %v1007 = vunpack.c.l.b16 %v968
    %v1008 = vunpack.c.l.b16 %v969
    %v1009 = vunpack.c.l.b16 %v970
    %v1010 = vunpack.c.l.b16 %v971
    %v1011 = vunpack.c.l.b16 %v972
    %v1012 = vunpack.c.l.b16 %v973
    %v1013 = vunpack.c.l.b16 %v974
    %v1014 = vunpack.c.l.b16 %v975
    %v1015 = vunpack.c.l.b16 %v976
    %v1016 = vunpack.c.l.b16 %v977
    %v1017 = vunpack.c.l.b16 %v978
    %v1018 = vpack.c.b16 %v1003, %v1002
    %v1019 = vpack.c.b16 %v1005, %v1004
    %v1020 = vpack.c.b16 %v1007, %v1006
    %v1021 = vpack.c.b16 %v1009, %v1008
    %v1022 = vpack.c.b16 %v1011, %v1010
    %v1023 = vpack.c.b16 %v1013, %v1012
    %v1024 = vpack.c.b16 %v1015, %v1014
    %v1025 = vpack.c.b16 %v1017, %v1016
    %1034 = vmatprep.subr.bf16.mxu0 0
    %1035 = vmatpush1.bf16.msra.mxu0 %v1025
    %1036 = vmatprep.subr.bf16.mxu0 0
    %1037 = vmatpush1.bf16.msra.mxu0 %v1024
    %1038 = vmatprep.subr.bf16.mxu0 0
    %1039 = vmatpush1.bf16.msra.mxu0 %v1023
    %1040 = vmatprep.subr.bf16.mxu0 0
    %1041 = vmatpush1.bf16.msra.mxu0 %v1022
    %1042 = vmatprep.subr.bf16.mxu0 0
    %1043 = vmatpush1.bf16.msra.mxu0 %v1021
    %1044 = vmatprep.subr.bf16.mxu0 0
    %1045 = vmatpush1.bf16.msra.mxu0 %v1020
    %1046 = vmatprep.subr.bf16.mxu0 0
    %1047 = vmatpush1.bf16.msra.mxu0 %v1019
    %1048 = vmatprep.subr.bf16.mxu0 0
    %1049 = vmatpush1.bf16.msra.mxu0 %v1018
    %1050 = vmatprep.subr.bf16.mxu0 0
    %1051 = vmatpush2.bf16.msra.mxu0 0
    %1052 = vmatprep.subr.bf16.mxu0 0
    %1053 = vmatpush2.bf16.msra.mxu0 0
    %1054 = vmatprep.subr.bf16.mxu0 0
    %1055 = vmatpush2.bf16.msra.mxu0 0
    %1056 = vmatprep.subr.bf16.mxu0 0
    %1057 = vmatpush2.bf16.msra.mxu0 0
    %1058 = vmatprep.subr.bf16.mxu0 0
    %1059 = vmatpush2.bf16.msra.mxu0 0
    %1060 = vmatprep.subr.bf16.mxu0 0
    %1061 = vmatpush2.bf16.msra.mxu0 0
    %1062 = vmatprep.subr.bf16.mxu0 0
    %1063 = vmatpush2.bf16.msra.mxu0 0
    %1064 = vmatprep.subr.bf16.mxu0 0
    %1065 = vmatpush2.bf16.msra.mxu0 0
    %1066 = vmatprep.mubr.bf16.mxu0 0
    %1067 = vmatmul.mubr.bf16.gmra.mxu0 %v883
    %v1068 = vpop.f32.mrf.mxu0
    %v1069 = vadd.f32 %v984, %v1068
    %v1070 = vpop.f32.mrf.mxu0
    %v1071 = vpop.f32.mrf.mxu0
    %v1072 = vadd.f32 %v984, %v1071
    %v1073 = vpop.f32.mrf.mxu0
    %1074 = vmatprep.mubr.bf16.mxu0 0
    %1075 = vmatmul.mubr.bf16.gmra.mxu0 %v884
    %v1076 = vpop.f32.mrf.mxu0
    %v1077 = vadd.f32 %v984, %v1076
    %v1078 = vpop.f32.mrf.mxu0
    %v1079 = vpop.f32.mrf.mxu0
    %v1080 = vadd.f32 %v984, %v1079
    %v1081 = vpop.f32.mrf.mxu0
    %1082 = vmatprep.mubr.bf16.mxu0 0
    %1083 = vmatmul.mubr.bf16.gmra.mxu0 %v885
    %v1084 = vpop.f32.mrf.mxu0
    %v1085 = vadd.f32 %v984, %v1084
    %v1086 = vpop.f32.mrf.mxu0
    %v1087 = vpop.f32.mrf.mxu0
    %v1088 = vadd.f32 %v984, %v1087
    %v1089 = vpop.f32.mrf.mxu0
    %1090 = vmatprep.mubr.bf16.mxu0 0
    %1091 = vmatmul.mubr.bf16.gmra.mxu0 %v886
    %v1092 = vpop.f32.mrf.mxu0
    %v1093 = vadd.f32 %v984, %v1092
    %v1094 = vpop.f32.mrf.mxu0
    %v1095 = vpop.f32.mrf.mxu0
    %v1096 = vadd.f32 %v984, %v1095
    %v1097 = vpop.f32.mrf.mxu0
    %1098 = vmatprep.mubr.bf16.mxu0 0
    %1099 = vmatmul.mubr.bf16.gmra.mxu0 %v887
    %v1100 = vpop.f32.mrf.mxu0
    %v1101 = vadd.f32 %v984, %v1100
    %v1102 = vpop.f32.mrf.mxu0
    %v1103 = vpop.f32.mrf.mxu0
    %v1104 = vadd.f32 %v984, %v1103
    %v1105 = vpop.f32.mrf.mxu0
    %1106 = vmatprep.mubr.bf16.mxu0 0
    %1107 = vmatmul.mubr.bf16.gmra.mxu0 %v888
    %v1108 = vpop.f32.mrf.mxu0
    %v1109 = vadd.f32 %v984, %v1108
    %v1110 = vpop.f32.mrf.mxu0
    %v1111 = vpop.f32.mrf.mxu0
    %v1112 = vadd.f32 %v984, %v1111
    %v1113 = vpop.f32.mrf.mxu0
    %1114 = vmatprep.mubr.bf16.mxu0 0
    %1115 = vmatmul.mubr.bf16.gmra.mxu0 %v889
    %v1116 = vpop.f32.mrf.mxu0
    %v1117 = vadd.f32 %v984, %v1116
    %v1118 = vpop.f32.mrf.mxu0
    %v1119 = vpop.f32.mrf.mxu0
    %v1120 = vadd.f32 %v984, %v1119
    %v1121 = vpop.f32.mrf.mxu0
    %1122 = vmatprep.mubr.bf16.mxu0 0
    %1123 = vmatmul.mubr.bf16.gmra.mxu0 %v890
    %v1124 = vpop.f32.mrf.mxu0
    %v1125 = vadd.f32 %v984, %v1124
    %v1126 = vpop.f32.mrf.mxu0
    %v1127 = vpop.f32.mrf.mxu0
    %v1128 = vadd.f32 %v984, %v1127
    %v1129 = vpop.f32.mrf.mxu0
    %1130 = vdwg.mxu0
    %v1131 = vld [vmem:[%s9] sm:$0xff]
    %v1132 = vld [vmem:[%s9 + $0x8] sm:$0xff]
    %v1133 = vld [vmem:[%s9 + $0x10] sm:$0xff]
    %v1134 = vld [vmem:[%s9 + $0x18] sm:$0xff]
    %v1135 = vld [vmem:[%s9 + $0x20] sm:$0xff]
    %v1136 = vld [vmem:[%s9 + $0x28] sm:$0xff]
    %v1137 = vld [vmem:[%s9 + $0x30] sm:$0xff]
    %v1138 = vld [vmem:[%s9 + $0x38] sm:$0xff]
    %v1139 = vld [vmem:[%s9 + $0x40] sm:$0xff]
    %v1140 = vld [vmem:[%s9 + $0x48] sm:$0xff]
    %v1141 = vld [vmem:[%s9 + $0x50] sm:$0xff]
    %v1142 = vld [vmem:[%s9 + $0x58] sm:$0xff]
    %v1143 = vld [vmem:[%s9 + $0x60] sm:$0xff]
    %v1144 = vld [vmem:[%s9 + $0x68] sm:$0xff]
    %v1145 = vld [vmem:[%s9 + $0x70] sm:$0xff]
    %v1146 = vld [vmem:[%s9 + $0x78] sm:$0xff]
    %v1147 = vld [vmem:[%s10] sm:$0x1]
    %v1148 = vsub.f32 0.0, %v1069
    %v1149 = vsub.f32 0.0, %v1072
    %v1150 = vsub.f32 0.0, %v1077
    %v1151 = vsub.f32 0.0, %v1080
    %v1152 = vsub.f32 0.0, %v1085
    %v1153 = vsub.f32 0.0, %v1088
    %v1154 = vsub.f32 0.0, %v1093
    %v1155 = vsub.f32 0.0, %v1096
    %v1156 = vsub.f32 0.0, %v1101
    %v1157 = vsub.f32 0.0, %v1104
    %v1158 = vsub.f32 0.0, %v1109
    %v1159 = vsub.f32 0.0, %v1112
    %v1160 = vsub.f32 0.0, %v1117
    %v1161 = vsub.f32 0.0, %v1120
    %v1162 = vsub.f32 0.0, %v1125
    %v1163 = vsub.f32 0.0, %v1128
    %v1164 = vmul.f32 %v1148, 1.442695
    %v1165 = vpow.pop %v1164
    %v1166 = vmul.f32 %v1149, 1.442695
    %v1167 = vpow.pop %v1166
    %v1168 = vmul.f32 %v1150, 1.442695
    %v1169 = vpow.pop %v1168
    %v1170 = vmul.f32 %v1151, 1.442695
    %v1171 = vpow.pop %v1170
    %v1172 = vmul.f32 %v1152, 1.442695
    %v1173 = vpow.pop %v1172
    %v1174 = vmul.f32 %v1153, 1.442695
    %v1175 = vpow.pop %v1174
    %v1176 = vmul.f32 %v1154, 1.442695
    %v1177 = vpow.pop %v1176
    %v1178 = vmul.f32 %v1155, 1.442695
    %v1179 = vpow.pop %v1178
    %v1180 = vmul.f32 %v1156, 1.442695
    %v1181 = vpow.pop %v1180
    %v1182 = vmul.f32 %v1157, 1.442695
    %v1183 = vpow.pop %v1182
    %v1184 = vmul.f32 %v1158, 1.442695
    %v1185 = vpow.pop %v1184
    %v1186 = vmul.f32 %v1159, 1.442695
    %v1187 = vpow.pop %v1186
    %v1188 = vmul.f32 %v1160, 1.442695
    %v1189 = vpow.pop %v1188
    %v1190 = vmul.f32 %v1161, 1.442695
    %v1191 = vpow.pop %v1190
    %v1192 = vmul.f32 %v1162, 1.442695
    %v1193 = vpow.pop %v1192
    %v1194 = vmul.f32 %v1163, 1.442695
    %v1195 = vpow.pop %v1194
    %v1196 = vadd.f32 %v1165, 1.0
    %v1197 = vadd.f32 %v1167, 1.0
    %v1198 = vadd.f32 %v1169, 1.0
    %v1199 = vadd.f32 %v1171, 1.0
    %v1200 = vadd.f32 %v1173, 1.0
    %v1201 = vadd.f32 %v1175, 1.0
    %v1202 = vadd.f32 %v1177, 1.0
    %v1203 = vadd.f32 %v1179, 1.0
    %v1204 = vadd.f32 %v1181, 1.0
    %v1205 = vadd.f32 %v1183, 1.0
    %v1206 = vadd.f32 %v1185, 1.0
    %v1207 = vadd.f32 %v1187, 1.0
    %v1208 = vadd.f32 %v1189, 1.0
    %v1209 = vadd.f32 %v1191, 1.0
    %v1210 = vadd.f32 %v1193, 1.0
    %v1211 = vadd.f32 %v1195, 1.0
    %v1212 = vrcp.pop %v1196
    %v1213 = vmul.f32 1.0, %v1212
    %v1214 = vrcp.pop %v1197
    %v1215 = vmul.f32 1.0, %v1214
    %v1216 = vrcp.pop %v1198
    %v1217 = vmul.f32 1.0, %v1216
    %v1218 = vrcp.pop %v1199
    %v1219 = vmul.f32 1.0, %v1218
    %v1220 = vrcp.pop %v1200
    %v1221 = vmul.f32 1.0, %v1220
    %v1222 = vrcp.pop %v1201
    %v1223 = vmul.f32 1.0, %v1222
    %v1224 = vrcp.pop %v1202
    %v1225 = vmul.f32 1.0, %v1224
    %v1226 = vrcp.pop %v1203
    %v1227 = vmul.f32 1.0, %v1226
    %v1228 = vrcp.pop %v1204
    %v1229 = vmul.f32 1.0, %v1228
    %v1230 = vrcp.pop %v1205
    %v1231 = vmul.f32 1.0, %v1230
    %v1232 = vrcp.pop %v1206
    %v1233 = vmul.f32 1.0, %v1232
    %v1234 = vrcp.pop %v1207
    %v1235 = vmul.f32 1.0, %v1234
    %v1236 = vrcp.pop %v1208
    %v1237 = vmul.f32 1.0, %v1236
    %v1238 = vrcp.pop %v1209
    %v1239 = vmul.f32 1.0, %v1238
    %v1240 = vrcp.pop %v1210
    %v1241 = vmul.f32 1.0, %v1240
    %v1242 = vrcp.pop %v1211
    %v1243 = vmul.f32 1.0, %v1242
    %v1244 = vmul.f32 %v1069, 1.442695
    %v1245 = vpow.pop %v1244
    %v1246 = vmul.f32 %v1072, 1.442695
    %v1247 = vpow.pop %v1246
    %v1248 = vmul.f32 %v1077, 1.442695
    %v1249 = vpow.pop %v1248
    %v1250 = vmul.f32 %v1080, 1.442695
    %v1251 = vpow.pop %v1250
    %v1252 = vmul.f32 %v1085, 1.442695
    %v1253 = vpow.pop %v1252
    %v1254 = vmul.f32 %v1088, 1.442695
    %v1255 = vpow.pop %v1254
    %v1256 = vmul.f32 %v1093, 1.442695
    %v1257 = vpow.pop %v1256
    %v1258 = vmul.f32 %v1096, 1.442695
    %v1259 = vpow.pop %v1258
    %v1260 = vmul.f32 %v1101, 1.442695
    %v1261 = vpow.pop %v1260
    %v1262 = vmul.f32 %v1104, 1.442695
    %v1263 = vpow.pop %v1262
    %v1264 = vmul.f32 %v1109, 1.442695
    %v1265 = vpow.pop %v1264
    %v1266 = vmul.f32 %v1112, 1.442695
    %v1267 = vpow.pop %v1266
    %v1268 = vmul.f32 %v1117, 1.442695
    %v1269 = vpow.pop %v1268
    %v1270 = vmul.f32 %v1120, 1.442695
    %v1271 = vpow.pop %v1270
    %v1272 = vmul.f32 %v1125, 1.442695
    %v1273 = vpow.pop %v1272
    %v1274 = vmul.f32 %v1128, 1.442695
    %v1275 = vpow.pop %v1274
    %v1276 = vlaneseq
    %v1277 = vand.u32 %v1276, 127
    %vm1278 = vcmp.ge.s32.totalorder %v1277, 12
    %v1279 = vsub.s32 %v1277, 12
    %vm1280 = vcmp.ge.s32.totalorder %v1277, 6
    %v1281 = vsub.s32 %v1277, 6
    %v1282 = vsel %vm1280, %v1281, %v1277
    %v1283 = vsel %vm1278, %v1279, %v1282
    %vm1284 = vcmp.eq.s32.totalorder %v1283, 0
    %1286 = vset.pattern.permute.xlu0 0
    %1287 = vperm.xlu0 %1286, %v1131
    %v1288 = vpop.permute.xlu0 %1287
    %1291 = vset.pattern.permute.xlu0 0
    %1292 = vperm.xlu0 %1291, %v1132
    %v1293 = vpop.permute.xlu0 %1292
    %1296 = vset.pattern.permute.xlu0 0
    %1297 = vperm.xlu0 %1296, %v1133
    %v1298 = vpop.permute.xlu0 %1297
    %1301 = vset.pattern.permute.xlu0 0
    %1302 = vperm.xlu0 %1301, %v1134
    %v1303 = vpop.permute.xlu0 %1302
    %1306 = vset.pattern.permute.xlu0 0
    %1307 = vperm.xlu0 %1306, %v1135
    %v1308 = vpop.permute.xlu0 %1307
    %1311 = vset.pattern.permute.xlu0 0
    %1312 = vperm.xlu0 %1311, %v1136
    %v1313 = vpop.permute.xlu0 %1312
    %1316 = vset.pattern.permute.xlu0 0
    %1317 = vperm.xlu0 %1316, %v1137
    %v1318 = vpop.permute.xlu0 %1317
    %1321 = vset.pattern.permute.xlu0 0
    %1322 = vperm.xlu0 %1321, %v1138
    %v1323 = vpop.permute.xlu0 %1322
    %1326 = vset.pattern.permute.xlu0 0
    %1327 = vperm.xlu0 %1326, %v1139
    %v1328 = vpop.permute.xlu0 %1327
    %1331 = vset.pattern.permute.xlu0 0
    %1332 = vperm.xlu0 %1331, %v1140
    %v1333 = vpop.permute.xlu0 %1332
    %1336 = vset.pattern.permute.xlu0 0
    %1337 = vperm.xlu0 %1336, %v1141
    %v1338 = vpop.permute.xlu0 %1337
    %1341 = vset.pattern.permute.xlu0 0
    %1342 = vperm.xlu0 %1341, %v1142
    %v1343 = vpop.permute.xlu0 %1342
    %1346 = vset.pattern.permute.xlu0 0
    %1347 = vperm.xlu0 %1346, %v1143
    %v1348 = vpop.permute.xlu0 %1347
    %1351 = vset.pattern.permute.xlu0 0
    %1352 = vperm.xlu0 %1351, %v1144
    %v1353 = vpop.permute.xlu0 %1352
    %1356 = vset.pattern.permute.xlu0 0
    %1357 = vperm.xlu0 %1356, %v1145
    %v1358 = vpop.permute.xlu0 %1357
    %1361 = vset.pattern.permute.xlu0 0
    %1362 = vperm.xlu0 %1361, %v1146
    %v1363 = vpop.permute.xlu0 %1362
    %1365 = vset.pattern.permute.xlu0 1
    %1366 = vperm.xlu0 %1365, %v1131
    %v1367 = vpop.permute.xlu0 %1366
    %1369 = vset.pattern.permute.xlu0 1
    %1370 = vperm.xlu0 %1369, %v1132
    %v1371 = vpop.permute.xlu0 %1370
    %1373 = vset.pattern.permute.xlu0 1
    %1374 = vperm.xlu0 %1373, %v1133
    %v1375 = vpop.permute.xlu0 %1374
    %1377 = vset.pattern.permute.xlu0 1
    %1378 = vperm.xlu0 %1377, %v1134
    %v1379 = vpop.permute.xlu0 %1378
    %1381 = vset.pattern.permute.xlu0 1
    %1382 = vperm.xlu0 %1381, %v1135
    %v1383 = vpop.permute.xlu0 %1382
    %1385 = vset.pattern.permute.xlu0 1
    %1386 = vperm.xlu0 %1385, %v1136
    %v1387 = vpop.permute.xlu0 %1386
    %1389 = vset.pattern.permute.xlu0 1
    %1390 = vperm.xlu0 %1389, %v1137
    %v1391 = vpop.permute.xlu0 %1390
    %1393 = vset.pattern.permute.xlu0 1
    %1394 = vperm.xlu0 %1393, %v1138
    %v1395 = vpop.permute.xlu0 %1394
    %1397 = vset.pattern.permute.xlu0 1
    %1398 = vperm.xlu0 %1397, %v1139
    %v1399 = vpop.permute.xlu0 %1398
    %1401 = vset.pattern.permute.xlu0 1
    %1402 = vperm.xlu0 %1401, %v1140
    %v1403 = vpop.permute.xlu0 %1402
    %1405 = vset.pattern.permute.xlu0 1
    %1406 = vperm.xlu0 %1405, %v1141
    %v1407 = vpop.permute.xlu0 %1406
    %1409 = vset.pattern.permute.xlu0 1
    %1410 = vperm.xlu0 %1409, %v1142
    %v1411 = vpop.permute.xlu0 %1410
    %1413 = vset.pattern.permute.xlu0 1
    %1414 = vperm.xlu0 %1413, %v1143
    %v1415 = vpop.permute.xlu0 %1414
    %1417 = vset.pattern.permute.xlu0 1
    %1418 = vperm.xlu0 %1417, %v1144
    %v1419 = vpop.permute.xlu0 %1418
    %1421 = vset.pattern.permute.xlu0 1
    %1422 = vperm.xlu0 %1421, %v1145
    %v1423 = vpop.permute.xlu0 %1422
    %1425 = vset.pattern.permute.xlu0 1
    %1426 = vperm.xlu0 %1425, %v1146
    %v1427 = vpop.permute.xlu0 %1426
    %v1429 = vsel %vm1284, %v1288, %v1367
    %v1430 = vsel %vm1284, %v1293, %v1371
    %v1431 = vsel %vm1284, %v1298, %v1375
    %v1432 = vsel %vm1284, %v1303, %v1379
    %v1433 = vsel %vm1284, %v1308, %v1383
    %v1434 = vsel %vm1284, %v1313, %v1387
    %v1435 = vsel %vm1284, %v1318, %v1391
    %v1436 = vsel %vm1284, %v1323, %v1395
    %v1437 = vsel %vm1284, %v1328, %v1399
    %v1438 = vsel %vm1284, %v1333, %v1403
    %v1439 = vsel %vm1284, %v1338, %v1407
    %v1440 = vsel %vm1284, %v1343, %v1411
    %v1441 = vsel %vm1284, %v1348, %v1415
    %v1442 = vsel %vm1284, %v1353, %v1419
    %v1443 = vsel %vm1284, %v1358, %v1423
    %v1444 = vsel %vm1284, %v1363, %v1427
    %v1445 = vadd.f32 %v1213, %v1429
    %v1446 = vadd.f32 %v1215, %v1430
    %v1447 = vadd.f32 %v1217, %v1431
    %v1448 = vadd.f32 %v1219, %v1432
    %v1449 = vadd.f32 %v1221, %v1433
    %v1450 = vadd.f32 %v1223, %v1434
    %v1451 = vadd.f32 %v1225, %v1435
    %v1452 = vadd.f32 %v1227, %v1436
    %v1453 = vadd.f32 %v1229, %v1437
    %v1454 = vadd.f32 %v1231, %v1438
    %v1455 = vadd.f32 %v1233, %v1439
    %v1456 = vadd.f32 %v1235, %v1440
    %v1457 = vadd.f32 %v1237, %v1441
    %v1458 = vadd.f32 %v1239, %v1442
    %v1459 = vadd.f32 %v1241, %v1443
    %v1460 = vadd.f32 %v1243, %v1444
    %v1461 = vmul.f32 %v1445, 8.0
    %v1462 = vmul.f32 %v1446, 8.0
    %v1463 = vmul.f32 %v1447, 8.0
    %v1464 = vmul.f32 %v1448, 8.0
    %v1465 = vmul.f32 %v1449, 8.0
    %v1466 = vmul.f32 %v1450, 8.0
    %v1467 = vmul.f32 %v1451, 8.0
    %v1468 = vmul.f32 %v1452, 8.0
    %v1469 = vmul.f32 %v1453, 8.0
    %v1470 = vmul.f32 %v1454, 8.0
    %v1471 = vmul.f32 %v1455, 8.0
    %v1472 = vmul.f32 %v1456, 8.0
    %v1473 = vmul.f32 %v1457, 8.0
    %v1474 = vmul.f32 %v1458, 8.0
    %v1475 = vmul.f32 %v1459, 8.0
    %v1476 = vmul.f32 %v1460, 8.0
    %v1478 = vlaneseq
    %v1479 = vshrl.u32 %v1478, 7
    %v1480 = vsub.s32 0, %v1479
    %v1481 = vrot.slane %v1147, %v1480
    %v1483 = vmul.f32 %v1245, %v1481
    %v1484 = vmul.f32 %v1247, %v1481
    %v1485 = vmul.f32 %v1249, %v1481
    %v1486 = vmul.f32 %v1251, %v1481
    %v1487 = vmul.f32 %v1253, %v1481
    %v1488 = vmul.f32 %v1255, %v1481
    %v1489 = vmul.f32 %v1257, %v1481
    %v1490 = vmul.f32 %v1259, %v1481
    %v1491 = vmul.f32 %v1261, %v1481
    %v1492 = vmul.f32 %v1263, %v1481
    %v1493 = vmul.f32 %v1265, %v1481
    %v1494 = vmul.f32 %v1267, %v1481
    %v1495 = vmul.f32 %v1269, %v1481
    %v1496 = vmul.f32 %v1271, %v1481
    %v1497 = vmul.f32 %v1273, %v1481
    %v1498 = vmul.f32 %v1275, %v1481
    %v1499 = vmul.f32 %v1213, 360.0
    %v1500 = vmul.f32 %v1215, 360.0
    %v1501 = vmul.f32 %v1217, 360.0
    %v1502 = vmul.f32 %v1219, 360.0
    %v1503 = vmul.f32 %v1221, 360.0
    %v1504 = vmul.f32 %v1223, 360.0
    %v1505 = vmul.f32 %v1225, 360.0
    %v1506 = vmul.f32 %v1227, 360.0
    %v1507 = vmul.f32 %v1229, 360.0
    %v1508 = vmul.f32 %v1231, 360.0
    %v1509 = vmul.f32 %v1233, 360.0
    %v1510 = vmul.f32 %v1235, 360.0
    %v1511 = vmul.f32 %v1237, 360.0
    %v1512 = vmul.f32 %v1239, 360.0
    %v1513 = vmul.f32 %v1241, 360.0
    %v1514 = vmul.f32 %v1243, 360.0
    %v1515 = vsub.f32 %v1499, 180.0
    %v1516 = vsub.f32 %v1500, 180.0
    %v1517 = vsub.f32 %v1501, 180.0
    %v1518 = vsub.f32 %v1502, 180.0
    %v1519 = vsub.f32 %v1503, 180.0
    %v1520 = vsub.f32 %v1504, 180.0
    %v1521 = vsub.f32 %v1505, 180.0
    %v1522 = vsub.f32 %v1506, 180.0
    %v1523 = vsub.f32 %v1507, 180.0
    %v1524 = vsub.f32 %v1508, 180.0
    %v1525 = vsub.f32 %v1509, 180.0
    %v1526 = vsub.f32 %v1510, 180.0
    %v1527 = vsub.f32 %v1511, 180.0
    %v1528 = vsub.f32 %v1512, 180.0
    %v1529 = vsub.f32 %v1513, 180.0
    %v1530 = vsub.f32 %v1514, 180.0
    %vm1531 = vcmp.lt.s32.totalorder %v1283, 2
    %vm1532 = vcmp.lt.s32.totalorder %v1283, 4
    %vm1533 = vcmp.eq.s32.totalorder %v1283, 4
    %v1534 = vsel %vm1533, %v1515, %v1213
    %v1535 = vsel %vm1533, %v1516, %v1215
    %v1536 = vsel %vm1533, %v1517, %v1217
    %v1537 = vsel %vm1533, %v1518, %v1219
    %v1538 = vsel %vm1533, %v1519, %v1221
    %v1539 = vsel %vm1533, %v1520, %v1223
    %v1540 = vsel %vm1533, %v1521, %v1225
    %v1541 = vsel %vm1533, %v1522, %v1227
    %v1542 = vsel %vm1533, %v1523, %v1229
    %v1543 = vsel %vm1533, %v1524, %v1231
    %v1544 = vsel %vm1533, %v1525, %v1233
    %v1545 = vsel %vm1533, %v1526, %v1235
    %v1546 = vsel %vm1533, %v1527, %v1237
    %v1547 = vsel %vm1533, %v1528, %v1239
    %v1548 = vsel %vm1533, %v1529, %v1241
    %v1549 = vsel %vm1533, %v1530, %v1243
    %v1550 = vsel %vm1532, %v1483, %v1534
    %v1551 = vsel %vm1532, %v1484, %v1535
    %v1552 = vsel %vm1532, %v1485, %v1536
    %v1553 = vsel %vm1532, %v1486, %v1537
    %v1554 = vsel %vm1532, %v1487, %v1538
    %v1555 = vsel %vm1532, %v1488, %v1539
    %v1556 = vsel %vm1532, %v1489, %v1540
    %v1557 = vsel %vm1532, %v1490, %v1541
    %v1558 = vsel %vm1532, %v1491, %v1542
    %v1559 = vsel %vm1532, %v1492, %v1543
    %v1560 = vsel %vm1532, %v1493, %v1544
    %v1561 = vsel %vm1532, %v1494, %v1545
    %v1562 = vsel %vm1532, %v1495, %v1546
    %v1563 = vsel %vm1532, %v1496, %v1547
    %v1564 = vsel %vm1532, %v1497, %v1548
    %v1565 = vsel %vm1532, %v1498, %v1549
    %v1566 = vsel %vm1531, %v1461, %v1550
    %v1567 = vsel %vm1531, %v1462, %v1551
    %v1568 = vsel %vm1531, %v1463, %v1552
    %v1569 = vsel %vm1531, %v1464, %v1553
    %v1570 = vsel %vm1531, %v1465, %v1554
    %v1571 = vsel %vm1531, %v1466, %v1555
    %v1572 = vsel %vm1531, %v1467, %v1556
    %v1573 = vsel %vm1531, %v1468, %v1557
    %v1574 = vsel %vm1531, %v1469, %v1558
    %v1575 = vsel %vm1531, %v1470, %v1559
    %v1576 = vsel %vm1531, %v1471, %v1560
    %v1577 = vsel %vm1531, %v1472, %v1561
    %v1578 = vsel %vm1531, %v1473, %v1562
    %v1579 = vsel %vm1531, %v1474, %v1563
    %v1580 = vsel %vm1531, %v1475, %v1564
    %v1581 = vsel %vm1531, %v1476, %v1565
    %vm1582 = vcmask 146432
    %1583 = vst.msk [vmem:[%s12] sm:$0xff] %vm1582, %v1566
    %1584 = vst.msk [vmem:[%s12 + $0x8] sm:$0xff] %vm1582, %v1567
    %1585 = vst.msk [vmem:[%s12 + $0x10] sm:$0xff] %vm1582, %v1568
    %1586 = vst.msk [vmem:[%s12 + $0x18] sm:$0xff] %vm1582, %v1569
    %1587 = vst.msk [vmem:[%s12 + $0x20] sm:$0xff] %vm1582, %v1570
    %1588 = vst.msk [vmem:[%s12 + $0x28] sm:$0xff] %vm1582, %v1571
    %1589 = vst.msk [vmem:[%s12 + $0x30] sm:$0xff] %vm1582, %v1572
    %1590 = vst.msk [vmem:[%s12 + $0x38] sm:$0xff] %vm1582, %v1573
    %1591 = vst.msk [vmem:[%s12 + $0x40] sm:$0xff] %vm1582, %v1574
    %1592 = vst.msk [vmem:[%s12 + $0x48] sm:$0xff] %vm1582, %v1575
    %1593 = vst.msk [vmem:[%s12 + $0x50] sm:$0xff] %vm1582, %v1576
    %1594 = vst.msk [vmem:[%s12 + $0x58] sm:$0xff] %vm1582, %v1577
    %1595 = vst.msk [vmem:[%s12 + $0x60] sm:$0xff] %vm1582, %v1578
    %1596 = vst.msk [vmem:[%s12 + $0x68] sm:$0xff] %vm1582, %v1579
    %1597 = vst.msk [vmem:[%s12 + $0x70] sm:$0xff] %vm1582, %v1580
    %1598 = vst.msk [vmem:[%s12 + $0x78] sm:$0xff] %vm1582, %v1581
    // Predicated region
    $region46: #{forward.15} parent=1 // pred_check
      _
    $region47: #{forward.15} parent=1 // pred_check_branch
      %1600 = sbr.rel (0) target = $region49
    $region48: #{forward.15} parent=1 // pred_region
      %s1602 = ssub.s32 1024, 1024
      %1603 = vsyncadd [#allocation3], %s1602
      %s1604 = sshll.u32 [#allocation2], 4
      %s1605 = int_to_ptr.vmem [resolvable:$true] %s1604
      %1610 = dma.vmem_to_hbm [thread:$0]  %s1605, 1024, %s11, [#allocation3], 64, 64, 4
    $region49: #{forward.15} parent=1 // pred_fallthru
      _
    // Predicated region
    $region50: #{forward.15} parent=1 // pred_check
      _
    $region51: #{forward.15} parent=1 // pred_check_branch
      %1612 = sbr.rel (0) target = $region53
    $region52: #{forward.15} parent=1 // pred_region
      _
    $region53: #{forward.15} parent=1 // pred_fallthru
      _
    // Predicated region
    $region54: #{forward.15} parent=1 // pred_check
      _
    $region55: #{forward.15} parent=1 // pred_check_branch
      %1614 = sbr.rel (0) target = $region57
    $region56: #{forward.15} parent=1 // pred_region
      %1615 = dma.done [#allocation3], 1024
    $region57: #{forward.15} parent=1 // pred_fallthru
      _
    // Predicated region
    $region58: #{forward.15} parent=1 // pred_check
      _
    $region59: #{forward.15} parent=1 // pred_check_branch
      %1617 = sbr.rel (0) target = $region61
    $region60: #{forward.15} parent=1 // pred_region
      _
    $region61: #{forward.15} parent=1 // pred_fallthru
      _
    %1618 = vsyncpa [#allocation3], 1

</llo_original>
